<compile_context>
chip_gen: v7x
topology: tpu7x:2x2x1
jax: 0.10.0
libtpu: 0.0.40
codegen_flags: <defaults>
</compile_context>

<pallas_src>
import functools

import jax
import jax.numpy as jnp
from jax import lax
from jax.experimental import pallas as pl
from jax.experimental.pallas import tpu as pltpu

EMBEDDING_DIM = 300
VOCAB_SIZE = 1024          # synthetic vocab (original uses 100948); lookup semantics identical
CONV_CH = 64
KSIZE = 5
HIDDEN = 64
FC_DIM = 512

KE = KSIZE * EMBEDDING_DIM      # 1500
KE_PAD = 1536                   # contraction dim padded to a multiple of 128

MATMUL_DTYPE = jnp.bfloat16     # MXU-operand dtype (f32 accumulation everywhere)


# --------------------------------------------------------------------------
# Fused kernel:
#   conv1d(valid,K=5)+ReLU -> biLSTM(last step) -> fc1/fc2/fc3 -> sigmoid
#
#   xcol_ref  : (L*B_pad, KE_PAD)  im2col slab, TIME-MAJOR (row = t*B_pad + b), bf16
#   wcol_ref  : (KE_PAD, C)        conv weight, im2col layout, zero-padded rows, bf16
#   bconv_ref : (1, C) f32
#   wih_fb_ref: (C, 8H) bf16   fwd | bwd input projections, g-cols pre-scaled x2
#   b_fb_ref  : (1, 8H) f32    fwd | bwd (b_ih+b_hh), g-cols pre-scaled x2
#   whh_f_ref : (H, 4H) f32    forward recurrent weight, g-cols pre-scaled x2
#   w1a_hbm / w1b_hbm : (H, 512) bf16  fc1 fwd/bwd halves, left in HBM (pl.ANY)
#   b1_ref    : (1, 512) f32
#   w2_hbm    : (512, 512) bf16 in HBM (pl.ANY) ; b2 : (1, 512) f32
#   w3_ref    : (512, 1) bf16 ; b3 : (1, 1) f32
#   o_ref     : (B, 1) f32
# scratch:
#   gx_ref    : (L*B_pad, 4H) f32  hoisted forward gate pre-activations
#   w1_vmem   : (2, H, 512) bf16 ; w2_vmem : (512, 512) bf16 ; sems : DMA (3,)
# PyTorch gate order: i, f, g, o.
# --------------------------------------------------------------------------
def fused_kernel(xcol_ref, wcol_ref, bconv_ref,
                 wih_fb_ref, b_fb_ref, whh_f_ref,
                 w1a_hbm, w1b_hbm, b1_ref, w2_hbm, b2_ref, w3_ref, b3_ref,
                 o_ref,
                 gx_ref, w1_vmem, w2_vmem, sems,
                 *, L, B_pad):
    B = o_ref.shape[0]
    H = HIDDEN
    G = 4 * H
    cdt = wcol_ref.dtype                                   # matmul operand dtype (bf16)

    # ---- kick off MLP-head weight DMAs; hidden behind conv + recurrence ----
    cp_w1a = pltpu.make_async_copy(w1a_hbm, w1_vmem.at[0], sems.at[0])
    cp_w1b = pltpu.make_async_copy(w1b_hbm, w1_vmem.at[1], sems.at[1])
    cp_w2 = pltpu.make_async_copy(w2_hbm, w2_vmem, sems.at[2])
    cp_w1a.start()
    cp_w1b.start()
    cp_w2.start()

    def sigmoid_exact(x):        # exp on EUP + exact reciprocal (no compounding error)
        return pl.reciprocal(1.0 + jnp.exp(-x), approx=False)

    # ---- conv1d + ReLU: one im2col MXU matmul, output already time-major ----
    conv = jnp.maximum(
        jnp.dot(xcol_ref[...], wcol_ref[...], preferred_element_type=jnp.float32)
        + bconv_ref[...], 0.0)                             # (L*B_pad, C) f32
    conv_c = conv.astype(cdt)

    # ---- fused fwd+bwd input projection for ALL timesteps (one matmul) ----
    gx = (jnp.dot(conv_c, wih_fb_ref[...], preferred_element_type=jnp.float32)
          + b_fb_ref[...])                                 # (L*B_pad, 8H)
    gx_ref[...] = gx[:, 0:G]                               # forward gate pre-acts
    g_b = gx[(L - 1) * B_pad:L * B_pad, G:2 * G]           # backward gates @ last t (aligned)

    whh_f = whh_f_ref[...]                                 # f32: no per-step bf16 cast of h

    def gate_math(g, c):
        # Gate-wide sigmoid: g-gate columns were pre-scaled x2 at param prep, so
        # tanh(z_g) = 2*sigmoid(2*z_g) - 1 falls out of the same sigmoid block.
        s = sigmoid_exact(g)                               # (B_pad, 4H) f32
        i = s[:, 0:H]
        f = s[:, H:2 * H]
        tg = 2.0 * s[:, 2 * H:3 * H] - 1.0
        o = s[:, 3 * H:4 * H]
        c_new = f * c + i * tg
        return o * jnp.tanh(c_new), c_new

    zeros = jnp.zeros((B_pad, H), jnp.float32)

    # ---- backward direction at output index L-1: one cell step, zero state ----
    # (h0 == 0 => h0 @ whh_b == 0, so whh_b is not needed.)
    h_bwd, _ = gate_math(g_b, zeros)

    # ---- forward recurrence: only h @ W_hh + hoisted gates on the serial path ----
    def fwd_body(t, carry):
        h, c = carry
        row = pl.multiple_of(t * B_pad, B_pad)             # 8-sublane aligned slice
        g = (gx_ref[pl.ds(row, B_pad), :]
             + jnp.dot(h, whh_f, preferred_element_type=jnp.float32))
        return gate_math(g, c)

    h_fwd, _ = lax.fori_loop(0, L, fwd_body, (zeros, zeros), unroll=True)

    # ---- MLP head (fc1 split avoids a lane-concat of h_fwd / h_bwd) ----
    cp_w1a.wait()
    cp_w1b.wait()
    z1 = jnp.maximum(
        jnp.dot(h_fwd.astype(cdt), w1_vmem[0], preferred_element_type=jnp.float32)
        + jnp.dot(h_bwd.astype(cdt), w1_vmem[1], preferred_element_type=jnp.float32)
        + b1_ref[...], 0.0)
    cp_w2.wait()
    z2 = jnp.maximum(
        jnp.dot(z1.astype(cdt), w2_vmem[...], preferred_element_type=jnp.float32)
        + b2_ref[...], 0.0)
    z3 = (jnp.dot(z2.astype(cdt), w3_ref[...], preferred_element_type=jnp.float32)
          + b3_ref[...])
    o_ref[...] = pl.reciprocal(1.0 + jnp.exp(-z3[0:B, :]), approx=True)


def fused_forward(xcol, p, B, B_pad, L):
    args = (xcol, p['w_col'], p['b_conv'],
            p['wih_fb'], p['b_fb'], p['whh_f'],
            p['w1a'], p['w1b'], p['b1'],
            p['w2'], p['b2'], p['w3'], p['b3'])

    def full_spec(a):
        n = a.ndim
        return pl.BlockSpec(a.shape, (lambda m: (lambda i: (0,) * m))(n))

    any_spec = pl.BlockSpec(memory_space=pl.ANY)
    in_specs = [full_spec(args[k]) for k in range(6)]      # xcol..whh_f in VMEM
    in_specs += [any_spec, any_spec]                       # w1a, w1b stay in HBM
    in_specs += [full_spec(p['b1'])]
    in_specs += [any_spec]                                 # w2 stays in HBM
    in_specs += [full_spec(p['b2']), full_spec(p['w3']), full_spec(p['b3'])]

    kernel = functools.partial(fused_kernel, L=L, B_pad=B_pad)

    # Single-core, grid=(1,): at B=2 the kernel is latency-bound; a cross-core
    # batch split would add overhead with zero compute benefit.
    return pl.pallas_call(
        kernel,
        out_shape=jax.ShapeDtypeStruct((B, 1), jnp.float32),
        grid=(1,),
        in_specs=in_specs,
        out_specs=pl.BlockSpec((B, 1), lambda i: (0, 0)),
        scratch_shapes=[
            pltpu.VMEM((L * B_pad, 4 * HIDDEN), jnp.float32),   # hoisted fwd gates
            pltpu.VMEM((2, HIDDEN, FC_DIM), MATMUL_DTYPE),      # fc1 fwd/bwd halves
            pltpu.VMEM((FC_DIM, FC_DIM), MATMUL_DTYPE),         # fc2 weight
            pltpu.SemaphoreType.DMA((3,)),
        ],
        compiler_params=pltpu.CompilerParams(
            dimension_semantics=("arbitrary",)),
    )(*args)


# --------------------------------------------------------------------------
# Full forward. Glue (plain JAX, fused by XLA): masking, embedding gather,
# im2col + time-major layout, batch/K padding, bf16 cast of the slab.
# --------------------------------------------------------------------------
def model_forward(ids, mask, p):
    ids_m = jnp.where(mask, 0, ids)                        # masked_fill(mask, 0)
    # TODO(synk): fold the embedding gather + im2col into the kernel via
    # PrefetchScalarGridSpec (ids in SMEM) + per-row DMA gather from the HBM
    # embedding table to also eliminate this XLA glue at tiny batch sizes.
    x = p['emb'][ids_m]                                    # (B, T, E) f32
    B, T, E = x.shape
    L = T - KSIZE + 1
    B_pad = max(8, -(-B // 8) * 8)                         # pad batch rows to 8-sublane tiles
    # im2col, time-major: xcol[t, b, k*E + e] = x[b, t+k, e]
    taps = [x[:, k:k + L, :] for k in range(KSIZE)]        # each (B, L, E)
    xcol = jnp.concatenate(taps, axis=-1)                  # (B, L, K*E)
    xcol = jnp.transpose(xcol, (1, 0, 2))                  # (L, B, K*E)
    xcol = jnp.pad(xcol, ((0, 0), (0, B_pad - B), (0, KE_PAD - KE)))
    xcol = xcol.reshape(L * B_pad, KE_PAD).astype(MATMUL_DTYPE)
    return fused_forward(xcol, p, B, B_pad, L)


# --------------------------------------------------------------------------
# Pure-JAX f32 reference (mirrors the PyTorch forward in eval mode)
# --------------------------------------------------------------------------
def reference_forward(ids, mask, raw):
    ids_m = jnp.where(mask, 0, ids)
    emb = raw['emb'][ids_m]                                # (B, T, E)
    B, T, E = emb.shape
    L = T - KSIZE + 1
    conv = jnp.zeros((B, L, CONV_CH), jnp.float32)
    for k in range(KSIZE):
        conv = conv + jnp.einsum('ble,ce->blc', emb[:, k:k + L, :], raw['w_conv'][:, :, k])
    conv = jax.nn.relu(conv + raw['b_conv'])

    def cell(x_t, h, c, wih, whh, bih, bhh):
        g = x_t @ wih.T + bih + bhh
        if whh is not None:
            g = g + h @ whh.T
        i = jax.nn.sigmoid(g[:, :HIDDEN])
        f = jax.nn.sigmoid(g[:, HIDDEN:2 * HIDDEN])
        gg = jnp.tanh(g[:, 2 * HIDDEN:3 * HIDDEN])
        o = jax.nn.sigmoid(g[:, 3 * HIDDEN:])
        c = f * c + i * gg
        return o * jnp.tanh(c), c

    h = jnp.zeros((B, HIDDEN), jnp.float32)
    c = jnp.zeros((B, HIDDEN), jnp.float32)
    for t in range(L):
        h, c = cell(conv[:, t, :], h, c,
                    raw['wih_f'], raw['whh_f'], raw['bih_f'], raw['bhh_f'])
    h_b, _ = cell(conv[:, L - 1, :],
                  jnp.zeros((B, HIDDEN), jnp.float32), jnp.zeros((B, HIDDEN), jnp.float32),
                  raw['wih_b'], None, raw['bih_b'], raw['bhh_b'])
    x = jnp.concatenate([h, h_b], axis=1)
    z1 = jax.nn.relu(x @ raw['w1'].T + raw['b1'])
    z2 = jax.nn.relu(z1 @ raw['w2'].T + raw['b2'])
    return jax.nn.sigmoid(z2 @ raw['w3'].T + raw['b3'])


# --------------------------------------------------------------------------
# Parameter init (PyTorch shapes, f32) + kernel-layout preparation
# --------------------------------------------------------------------------
def init_raw_params(key):
    ks = jax.random.split(key, 20)
    f32 = jnp.float32
    nrm = lambda k, s, sc: sc * jax.random.normal(k, s, f32)

    emb = nrm(ks[0], (VOCAB_SIZE, EMBEDDING_DIM), 0.1)
    emb = emb.at[0].set(0.0)                               # padding_idx = 0

    w_conv = nrm(ks[1], (CONV_CH, EMBEDDING_DIM, KSIZE), 0.05)
    b_conv = nrm(ks[2], (CONV_CH,), 0.05)

    wih_f = nrm(ks[3], (4 * HIDDEN, CONV_CH), 0.05)
    whh_f = nrm(ks[4], (4 * HIDDEN, HIDDEN), 0.05)
    bih_f = nrm(ks[5], (4 * HIDDEN,), 0.05)
    bhh_f = nrm(ks[6], (4 * HIDDEN,), 0.05)
    wih_b = nrm(ks[7], (4 * HIDDEN, CONV_CH), 0.05)
    whh_b = nrm(ks[8], (4 * HIDDEN, HIDDEN), 0.05)         # unused by model output
    bih_b = nrm(ks[9], (4 * HIDDEN,), 0.05)
    bhh_b = nrm(ks[10], (4 * HIDDEN,), 0.05)

    w1 = nrm(ks[11], (FC_DIM, 2 * HIDDEN), 0.05)
    b1 = nrm(ks[12], (FC_DIM,), 0.05)
    w2 = nrm(ks[13], (FC_DIM, FC_DIM), 0.05)
    b2 = nrm(ks[14], (FC_DIM,), 0.05)
    w3 = nrm(ks[15], (1, FC_DIM), 0.05)
    b3 = nrm(ks[16], (1,), 0.05)

    return dict(emb=emb, w_conv=w_conv, b_conv=b_conv,
                wih_f=wih_f, whh_f=whh_f, bih_f=bih_f, bhh_f=bhh_f,
                wih_b=wih_b, whh_b=whh_b, bih_b=bih_b, bhh_b=bhh_b,
                w1=w1, b1=b1, w2=w2, b2=b2, w3=w3, b3=b3)


def prepare_kernel_params(raw):
    H = HIDDEN
    E = EMBEDDING_DIM
    cast = lambda w: w.astype(MATMUL_DTYPE)

    # Conv1d: torch weight (C_out, C_in=E, K) -> im2col layout (K*E, C), padded rows.
    w_col = jnp.transpose(raw['w_conv'], (2, 1, 0)).reshape(KE, CONV_CH)
    w_col = jnp.pad(w_col, ((0, KE_PAD - KE), (0, 0)))
    b_conv = raw['b_conv'].reshape(1, CONV_CH)

    def g2(x):   # scale g-gate columns (2H:3H) by 2 -> tanh via 2*sigmoid(2z)-1
        return x.at[..., 2 * H:3 * H].multiply(2.0)

    wih_f = g2(raw['wih_f'].T)                             # (C, 4H)
    wih_b = g2(raw['wih_b'].T)
    b_f = g2((raw['bih_f'] + raw['bhh_f']).reshape(1, 4 * H))
    b_b = g2((raw['bih_b'] + raw['bhh_b']).reshape(1, 4 * H))
    whh_f = g2(raw['whh_f'].T)                             # (H, 4H), kept f32
    # whh_b unused: backward direction takes one step from zero state -> h0 @ whh_b == 0

    wih_fb = jnp.concatenate([wih_f, wih_b], axis=1)       # (C, 8H)
    b_fb = jnp.concatenate([b_f, b_b], axis=1)             # (1, 8H)

    # fc1: torch (512, 128) -> split into forward/backward halves, (H, 512) each
    w1a = raw['w1'][:, :H].T
    w1b = raw['w1'][:, H:].T

    return dict(emb=raw['emb'],
                w_col=cast(w_col), b_conv=b_conv,
                wih_fb=cast(wih_fb), b_fb=b_fb, whh_f=whh_f,
                w1a=cast(w1a), w1b=cast(w1b), b1=raw['b1'].reshape(1, FC_DIM),
                w2=cast(raw['w2'].T), b2=raw['b2'].reshape(1, FC_DIM),
                w3=cast(raw['w3'].T), b3=raw['b3'].reshape(1, 1))


if __name__ == "__main__":
    key = jax.random.PRNGKey(0)
    k_par, k_ids, k_mask = jax.random.split(key, 3)

    B, T = 2, 16                                           # seq len 16 -> conv length 12
    raw = init_raw_params(k_par)
    kparams = prepare_kernel_params(raw)
    ids = jax.random.randint(k_ids, (B, T), 1, VOCAB_SIZE, dtype=jnp.int32)
    mask = jax.random.bernoulli(k_mask, 0.2, (B, T))

    fwd = jax.jit(model_forward)
    out = jax.block_until_ready(fwd(ids, mask, kparams))
    ref = jax.block_until_ready(reference_forward(ids, mask, raw))

    assert out.shape == (B, 1), out.shape
    assert jnp.all(jnp.isfinite(out))
    assert jnp.allclose(out, ref, atol=1e-2, rtol=1e-2), (out, ref)

    print("KERNEL_OK")
</pallas_src>

<mosaic_0001>
module attributes {stable_mosaic.version = 11 : i64} {
  func.func @fused_kernel(%arg0: i32, %arg1: memref<96x1536xbf16, #tpu.memory_space<vmem>>, %arg2: memref<1536x64xbf16, #tpu.memory_space<vmem>>, %arg3: memref<1x64xf32, #tpu.memory_space<vmem>>, %arg4: memref<64x512xbf16, #tpu.memory_space<vmem>>, %arg5: memref<1x512xf32, #tpu.memory_space<vmem>>, %arg6: memref<64x256xf32, #tpu.memory_space<vmem>>, %arg7: memref<64x512xbf16, #tpu.memory_space<any>>, %arg8: memref<64x512xbf16, #tpu.memory_space<any>>, %arg9: memref<1x512xf32, #tpu.memory_space<vmem>>, %arg10: memref<512x512xbf16, #tpu.memory_space<any>>, %arg11: memref<1x512xf32, #tpu.memory_space<vmem>>, %arg12: memref<512x1xbf16, #tpu.memory_space<vmem>>, %arg13: memref<1x1xf32, #tpu.memory_space<vmem>>, %arg14: memref<2x1xf32, #tpu.memory_space<vmem>>, %arg15: memref<96x256xf32, #tpu.memory_space<vmem>>, %arg16: memref<2x64x512xbf16, #tpu.memory_space<vmem>>, %arg17: memref<512x512xbf16, #tpu.memory_space<vmem>>, %arg18: memref<3x!tpu.dma_semaphore, #tpu.memory_space<semaphore_mem>>) attributes {dimension_semantics = [#tpu.dimension_semantics<arbitrary>], iteration_bounds = array<i64: 1>, scalar_prefetch = 0 : i64, scratch_operands = 4 : i64, tpu.core_type = #tpu.core_type<tc>, window_params = [{pipeline_mode = #tpu.pipeline_mode<synchronous>, transform_indices = @transform_0, window_bounds = array<i64: 96, 1536>}, {pipeline_mode = #tpu.pipeline_mode<synchronous>, transform_indices = @transform_1, window_bounds = array<i64: 1536, 64>}, {pipeline_mode = #tpu.pipeline_mode<synchronous>, transform_indices = @transform_2, window_bounds = array<i64: 1, 64>}, {pipeline_mode = #tpu.pipeline_mode<synchronous>, transform_indices = @transform_3, window_bounds = array<i64: 64, 512>}, {pipeline_mode = #tpu.pipeline_mode<synchronous>, transform_indices = @transform_4, window_bounds = array<i64: 1, 512>}, {pipeline_mode = #tpu.pipeline_mode<synchronous>, transform_indices = @transform_5, window_bounds = array<i64: 64, 256>}, {}, {}, {pipeline_mode = #tpu.pipeline_mode<synchronous>, transform_indices = @transform_8, window_bounds = array<i64: 1, 512>}, {}, {pipeline_mode = #tpu.pipeline_mode<synchronous>, transform_indices = @transform_10, window_bounds = array<i64: 1, 512>}, {pipeline_mode = #tpu.pipeline_mode<synchronous>, transform_indices = @transform_11, window_bounds = array<i64: 512, 1>}, {pipeline_mode = #tpu.pipeline_mode<synchronous>, transform_indices = @transform_12, window_bounds = array<i64: 1, 1>}, {pipeline_mode = #tpu.pipeline_mode<synchronous>, transform_indices = @transform_13, window_bounds = array<i64: 2, 1>}]} {
    %c0_i32 = arith.constant 0 : i32
    %c0_i32_0 = arith.constant 0 : i32
    %c0_i32_1 = arith.constant 0 : i32
    %c0_i32_2 = arith.constant 0 : i32
    %0 = tpu.memref_slice %arg16[%c0_i32, %c0_i32_1, %c0_i32_2] : memref<2x64x512xbf16, #tpu.memory_space<vmem>> -> memref<1x64x512xbf16, #tpu.memory_space<vmem>>
    %1 = tpu.memref_squeeze %0 : memref<1x64x512xbf16, #tpu.memory_space<vmem>> -> memref<64x512xbf16, #tpu.memory_space<vmem>>
    %2 = tpu.memref_slice %arg18[%c0_i32_0] : memref<3x!tpu.dma_semaphore, #tpu.memory_space<semaphore_mem>> -> memref<1x!tpu.dma_semaphore, #tpu.memory_space<semaphore_mem>>
    %3 = tpu.memref_squeeze %2 : memref<1x!tpu.dma_semaphore, #tpu.memory_space<semaphore_mem>> -> memref<!tpu.dma_semaphore, #tpu.memory_space<semaphore_mem>>
    tpu.enqueue_dma source(%arg7 : memref<64x512xbf16, #tpu.memory_space<any>>) target(%1 : memref<64x512xbf16, #tpu.memory_space<vmem>>) target_semaphore(%3 : memref<!tpu.dma_semaphore, #tpu.memory_space<semaphore_mem>>)
    %c1_i32 = arith.constant 1 : i32
    %c1_i32_3 = arith.constant 1 : i32
    %c0_i32_4 = arith.constant 0 : i32
    %c0_i32_5 = arith.constant 0 : i32
    %4 = tpu.memref_slice %arg16[%c1_i32, %c0_i32_4, %c0_i32_5] : memref<2x64x512xbf16, #tpu.memory_space<vmem>> -> memref<1x64x512xbf16, #tpu.memory_space<vmem>>
    %5 = tpu.memref_squeeze %4 : memref<1x64x512xbf16, #tpu.memory_space<vmem>> -> memref<64x512xbf16, #tpu.memory_space<vmem>>
    %6 = tpu.memref_slice %arg18[%c1_i32_3] : memref<3x!tpu.dma_semaphore, #tpu.memory_space<semaphore_mem>> -> memref<1x!tpu.dma_semaphore, #tpu.memory_space<semaphore_mem>>
    %7 = tpu.memref_squeeze %6 : memref<1x!tpu.dma_semaphore, #tpu.memory_space<semaphore_mem>> -> memref<!tpu.dma_semaphore, #tpu.memory_space<semaphore_mem>>
    tpu.enqueue_dma source(%arg8 : memref<64x512xbf16, #tpu.memory_space<any>>) target(%5 : memref<64x512xbf16, #tpu.memory_space<vmem>>) target_semaphore(%7 : memref<!tpu.dma_semaphore, #tpu.memory_space<semaphore_mem>>)
    %c2_i32 = arith.constant 2 : i32
    %8 = tpu.memref_slice %arg18[%c2_i32] : memref<3x!tpu.dma_semaphore, #tpu.memory_space<semaphore_mem>> -> memref<1x!tpu.dma_semaphore, #tpu.memory_space<semaphore_mem>>
    %9 = tpu.memref_squeeze %8 : memref<1x!tpu.dma_semaphore, #tpu.memory_space<semaphore_mem>> -> memref<!tpu.dma_semaphore, #tpu.memory_space<semaphore_mem>>
    tpu.enqueue_dma source(%arg10 : memref<512x512xbf16, #tpu.memory_space<any>>) target(%arg17 : memref<512x512xbf16, #tpu.memory_space<vmem>>) target_semaphore(%9 : memref<!tpu.dma_semaphore, #tpu.memory_space<semaphore_mem>>)
    %c0 = arith.constant 0 : index
    %c0_6 = arith.constant 0 : index
    %10 = vector.load %arg1[%c0, %c0_6] : memref<96x1536xbf16, #tpu.memory_space<vmem>>, vector<96x1536xbf16>
    %c0_7 = arith.constant 0 : index
    %c0_8 = arith.constant 0 : index
    %11 = vector.load %arg2[%c0_7, %c0_8] : memref<1536x64xbf16, #tpu.memory_space<vmem>>, vector<1536x64xbf16>
    %cst = arith.constant dense<0.000000e+00> : vector<96x64xf32>
    %12 = tpu.matmul %10, %11, %cst {dimension_numbers = #tpu.dot_dimension_numbers<[1], [0], [0], [1], [0, 0, 1, 1], [], []>} : vector<96x1536xbf16>, vector<1536x64xbf16>, vector<96x64xf32> -> vector<96x64xf32>
    %c0_9 = arith.constant 0 : index
    %c0_10 = arith.constant 0 : index
    %13 = vector.load %arg3[%c0_9, %c0_10] : memref<1x64xf32, #tpu.memory_space<vmem>>, vector<1x64xf32>
    %14 = vector.broadcast %13 : vector<1x64xf32> to vector<96x64xf32>
    %15 = arith.addf %12, %14 : vector<96x64xf32>
    %cst_11 = arith.constant 0.000000e+00 : f32
    %16 = vector.broadcast %cst_11 : f32 to vector<96x64xf32>
    %17 = arith.maximumf %15, %16 : vector<96x64xf32>
    %18 = arith.truncf %17 : vector<96x64xf32> to vector<96x64xbf16>
    %c0_12 = arith.constant 0 : index
    %c0_13 = arith.constant 0 : index
    %19 = vector.load %arg4[%c0_12, %c0_13] : memref<64x512xbf16, #tpu.memory_space<vmem>>, vector<64x512xbf16>
    %cst_14 = arith.constant dense<0.000000e+00> : vector<96x512xf32>
    %20 = tpu.matmul %18, %19, %cst_14 {dimension_numbers = #tpu.dot_dimension_numbers<[1], [0], [0], [1], [0, 0, 1, 1], [], []>} : vector<96x64xbf16>, vector<64x512xbf16>, vector<96x512xf32> -> vector<96x512xf32>
    %c0_15 = arith.constant 0 : index
    %c0_16 = arith.constant 0 : index
    %21 = vector.load %arg5[%c0_15, %c0_16] : memref<1x512xf32, #tpu.memory_space<vmem>>, vector<1x512xf32>
    %22 = vector.broadcast %21 : vector<1x512xf32> to vector<96x512xf32>
    %23 = arith.addf %20, %22 : vector<96x512xf32>
    %24 = vector.extract_strided_slice %23 {offsets = [0, 0], sizes = [96, 256], strides = [1, 1]} : vector<96x512xf32> to vector<96x256xf32>
    %c0_17 = arith.constant 0 : index
    %c0_18 = arith.constant 0 : index
    %25 = vector.load %arg15[%c0_17, %c0_18] : memref<96x256xf32, #tpu.memory_space<vmem>>, vector<96x256xf32>
    tpu.vector_store %arg15[%c0_17, %c0_18], %24 {strides = array<i32>} : memref<96x256xf32, #tpu.memory_space<vmem>>, vector<96x256xf32>,
    %26 = vector.extract_strided_slice %23 {offsets = [88, 256], sizes = [8, 256], strides = [1, 1]} : vector<96x512xf32> to vector<8x256xf32>
    %c0_19 = arith.constant 0 : index
    %c0_20 = arith.constant 0 : index
    %27 = vector.load %arg6[%c0_19, %c0_20] : memref<64x256xf32, #tpu.memory_space<vmem>>, vector<64x256xf32>
    %cst_21 = arith.constant 0.000000e+00 : f32
    %28 = vector.broadcast %cst_21 : f32 to vector<8x64xf32>
    %cst_22 = arith.constant 0.000000e+00 : f32
    %29 = vector.broadcast %cst_22 : f32 to vector<8x256xf32>
    %30 = arith.subf %29, %26 : vector<8x256xf32>
    %31 = math.exp %30 : vector<8x256xf32>
    %cst_23 = arith.constant 1.000000e+00 : f32
    %32 = vector.broadcast %cst_23 : f32 to vector<8x256xf32>
    %33 = arith.addf %32, %31 : vector<8x256xf32>
    %34 = tpu.reciprocal %33 : vector<8x256xf32> -> vector<8x256xf32>
    %35 = vector.extract_strided_slice %34 {offsets = [0, 0], sizes = [8, 64], strides = [1, 1]} : vector<8x256xf32> to vector<8x64xf32>
    %36 = vector.extract_strided_slice %34 {offsets = [0, 64], sizes = [8, 64], strides = [1, 1]} : vector<8x256xf32> to vector<8x64xf32>
    %37 = vector.extract_strided_slice %34 {offsets = [0, 128], sizes = [8, 64], strides = [1, 1]} : vector<8x256xf32> to vector<8x64xf32>
    %cst_24 = arith.constant 2.000000e+00 : f32
    %38 = vector.broadcast %cst_24 : f32 to vector<8x64xf32>
    %39 = arith.mulf %38, %37 : vector<8x64xf32>
    %cst_25 = arith.constant 1.000000e+00 : f32
    %40 = vector.broadcast %cst_25 : f32 to vector<8x64xf32>
    %41 = arith.subf %39, %40 : vector<8x64xf32>
    %42 = vector.extract_strided_slice %34 {offsets = [0, 192], sizes = [8, 64], strides = [1, 1]} : vector<8x256xf32> to vector<8x64xf32>
    %43 = arith.mulf %36, %28 : vector<8x64xf32>
    %44 = arith.mulf %35, %41 : vector<8x64xf32>
    %45 = arith.addf %43, %44 : vector<8x64xf32>
    %46 = math.tanh %45 : vector<8x64xf32>
    %47 = arith.mulf %42, %46 : vector<8x64xf32>
    %c0_i32_26 = arith.constant 0 : i32
    %c8_i32 = arith.constant 8 : i32
    %48 = arith.muli %c0_i32_26, %c8_i32 : i32
    %49 = tpu.assume_multiple %48, 8 : i32
    %50 = arith.index_cast %49 : i32 to index
    %c0_27 = arith.constant 0 : index
    %51 = vector.load %arg15[%50, %c0_27] : memref<96x256xf32, #tpu.memory_space<vmem>>, vector<8x256xf32>
    %cst_28 = arith.constant dense<0.000000e+00> : vector<8x256xf32>
    %52 = tpu.matmul %28, %27, %cst_28 {dimension_numbers = #tpu.dot_dimension_numbers<[1], [0], [0], [1], [0, 0, 1, 1], [], []>} : vector<8x64xf32>, vector<64x256xf32>, vector<8x256xf32> -> vector<8x256xf32>
    %53 = arith.addf %51, %52 : vector<8x256xf32>
    %cst_29 = arith.constant 0.000000e+00 : f32
    %54 = vector.broadcast %cst_29 : f32 to vector<8x256xf32>
    %55 = arith.subf %54, %53 : vector<8x256xf32>
    %56 = math.exp %55 : vector<8x256xf32>
    %cst_30 = arith.constant 1.000000e+00 : f32
    %57 = vector.broadcast %cst_30 : f32 to vector<8x256xf32>
    %58 = arith.addf %57, %56 : vector<8x256xf32>
    %59 = tpu.reciprocal %58 : vector<8x256xf32> -> vector<8x256xf32>
    %60 = vector.extract_strided_slice %59 {offsets = [0, 0], sizes = [8, 64], strides = [1, 1]} : vector<8x256xf32> to vector<8x64xf32>
    %61 = vector.extract_strided_slice %59 {offsets = [0, 64], sizes = [8, 64], strides = [1, 1]} : vector<8x256xf32> to vector<8x64xf32>
    %62 = vector.extract_strided_slice %59 {offsets = [0, 128], sizes = [8, 64], strides = [1, 1]} : vector<8x256xf32> to vector<8x64xf32>
    %cst_31 = arith.constant 2.000000e+00 : f32
    %63 = vector.broadcast %cst_31 : f32 to vector<8x64xf32>
    %64 = arith.mulf %63, %62 : vector<8x64xf32>
    %cst_32 = arith.constant 1.000000e+00 : f32
    %65 = vector.broadcast %cst_32 : f32 to vector<8x64xf32>
    %66 = arith.subf %64, %65 : vector<8x64xf32>
    %67 = vector.extract_strided_slice %59 {offsets = [0, 192], sizes = [8, 64], strides = [1, 1]} : vector<8x256xf32> to vector<8x64xf32>
    %68 = arith.mulf %61, %28 : vector<8x64xf32>
    %69 = arith.mulf %60, %66 : vector<8x64xf32>
    %70 = arith.addf %68, %69 : vector<8x64xf32>
    %71 = math.tanh %70 : vector<8x64xf32>
    %72 = arith.mulf %67, %71 : vector<8x64xf32>
    %c1_i32_33 = arith.constant 1 : i32
    %c8_i32_34 = arith.constant 8 : i32
    %73 = arith.muli %c1_i32_33, %c8_i32_34 : i32
    %74 = tpu.assume_multiple %73, 8 : i32
    %75 = arith.index_cast %74 : i32 to index
    %c0_35 = arith.constant 0 : index
    %76 = vector.load %arg15[%75, %c0_35] : memref<96x256xf32, #tpu.memory_space<vmem>>, vector<8x256xf32>
    %cst_36 = arith.constant dense<0.000000e+00> : vector<8x256xf32>
    %77 = tpu.matmul %72, %27, %cst_36 {dimension_numbers = #tpu.dot_dimension_numbers<[1], [0], [0], [1], [0, 0, 1, 1], [], []>} : vector<8x64xf32>, vector<64x256xf32>, vector<8x256xf32> -> vector<8x256xf32>
    %78 = arith.addf %76, %77 : vector<8x256xf32>
    %cst_37 = arith.constant 0.000000e+00 : f32
    %79 = vector.broadcast %cst_37 : f32 to vector<8x256xf32>
    %80 = arith.subf %79, %78 : vector<8x256xf32>
    %81 = math.exp %80 : vector<8x256xf32>
    %cst_38 = arith.constant 1.000000e+00 : f32
    %82 = vector.broadcast %cst_38 : f32 to vector<8x256xf32>
    %83 = arith.addf %82, %81 : vector<8x256xf32>
    %84 = tpu.reciprocal %83 : vector<8x256xf32> -> vector<8x256xf32>
    %85 = vector.extract_strided_slice %84 {offsets = [0, 0], sizes = [8, 64], strides = [1, 1]} : vector<8x256xf32> to vector<8x64xf32>
    %86 = vector.extract_strided_slice %84 {offsets = [0, 64], sizes = [8, 64], strides = [1, 1]} : vector<8x256xf32> to vector<8x64xf32>
    %87 = vector.extract_strided_slice %84 {offsets = [0, 128], sizes = [8, 64], strides = [1, 1]} : vector<8x256xf32> to vector<8x64xf32>
    %cst_39 = arith.constant 2.000000e+00 : f32
    %88 = vector.broadcast %cst_39 : f32 to vector<8x64xf32>
    %89 = arith.mulf %88, %87 : vector<8x64xf32>
    %cst_40 = arith.constant 1.000000e+00 : f32
    %90 = vector.broadcast %cst_40 : f32 to vector<8x64xf32>
    %91 = arith.subf %89, %90 : vector<8x64xf32>
    %92 = vector.extract_strided_slice %84 {offsets = [0, 192], sizes = [8, 64], strides = [1, 1]} : vector<8x256xf32> to vector<8x64xf32>
    %93 = arith.mulf %86, %70 : vector<8x64xf32>
    %94 = arith.mulf %85, %91 : vector<8x64xf32>
    %95 = arith.addf %93, %94 : vector<8x64xf32>
    %96 = math.tanh %95 : vector<8x64xf32>
    %97 = arith.mulf %92, %96 : vector<8x64xf32>
    %c2_i32_41 = arith.constant 2 : i32
    %c8_i32_42 = arith.constant 8 : i32
    %98 = arith.muli %c2_i32_41, %c8_i32_42 : i32
    %99 = tpu.assume_multiple %98, 8 : i32
    %100 = arith.index_cast %99 : i32 to index
    %c0_43 = arith.constant 0 : index
    %101 = vector.load %arg15[%100, %c0_43] : memref<96x256xf32, #tpu.memory_space<vmem>>, vector<8x256xf32>
    %cst_44 = arith.constant dense<0.000000e+00> : vector<8x256xf32>
    %102 = tpu.matmul %97, %27, %cst_44 {dimension_numbers = #tpu.dot_dimension_numbers<[1], [0], [0], [1], [0, 0, 1, 1], [], []>} : vector<8x64xf32>, vector<64x256xf32>, vector<8x256xf32> -> vector<8x256xf32>
    %103 = arith.addf %101, %102 : vector<8x256xf32>
    %cst_45 = arith.constant 0.000000e+00 : f32
    %104 = vector.broadcast %cst_45 : f32 to vector<8x256xf32>
    %105 = arith.subf %104, %103 : vector<8x256xf32>
    %106 = math.exp %105 : vector<8x256xf32>
    %cst_46 = arith.constant 1.000000e+00 : f32
    %107 = vector.broadcast %cst_46 : f32 to vector<8x256xf32>
    %108 = arith.addf %107, %106 : vector<8x256xf32>
    %109 = tpu.reciprocal %108 : vector<8x256xf32> -> vector<8x256xf32>
    %110 = vector.extract_strided_slice %109 {offsets = [0, 0], sizes = [8, 64], strides = [1, 1]} : vector<8x256xf32> to vector<8x64xf32>
    %111 = vector.extract_strided_slice %109 {offsets = [0, 64], sizes = [8, 64], strides = [1, 1]} : vector<8x256xf32> to vector<8x64xf32>
    %112 = vector.extract_strided_slice %109 {offsets = [0, 128], sizes = [8, 64], strides = [1, 1]} : vector<8x256xf32> to vector<8x64xf32>
    %cst_47 = arith.constant 2.000000e+00 : f32
    %113 = vector.broadcast %cst_47 : f32 to vector<8x64xf32>
    %114 = arith.mulf %113, %112 : vector<8x64xf32>
    %cst_48 = arith.constant 1.000000e+00 : f32
    %115 = vector.broadcast %cst_48 : f32 to vector<8x64xf32>
    %116 = arith.subf %114, %115 : vector<8x64xf32>
    %117 = vector.extract_strided_slice %109 {offsets = [0, 192], sizes = [8, 64], strides = [1, 1]} : vector<8x256xf32> to vector<8x64xf32>
    %118 = arith.mulf %111, %95 : vector<8x64xf32>
    %119 = arith.mulf %110, %116 : vector<8x64xf32>
    %120 = arith.addf %118, %119 : vector<8x64xf32>
    %121 = math.tanh %120 : vector<8x64xf32>
    %122 = arith.mulf %117, %121 : vector<8x64xf32>
    %c3_i32 = arith.constant 3 : i32
    %c8_i32_49 = arith.constant 8 : i32
    %123 = arith.muli %c3_i32, %c8_i32_49 : i32
    %124 = tpu.assume_multiple %123, 8 : i32
    %125 = arith.index_cast %124 : i32 to index
    %c0_50 = arith.constant 0 : index
    %126 = vector.load %arg15[%125, %c0_50] : memref<96x256xf32, #tpu.memory_space<vmem>>, vector<8x256xf32>
    %cst_51 = arith.constant dense<0.000000e+00> : vector<8x256xf32>
    %127 = tpu.matmul %122, %27, %cst_51 {dimension_numbers = #tpu.dot_dimension_numbers<[1], [0], [0], [1], [0, 0, 1, 1], [], []>} : vector<8x64xf32>, vector<64x256xf32>, vector<8x256xf32> -> vector<8x256xf32>
    %128 = arith.addf %126, %127 : vector<8x256xf32>
    %cst_52 = arith.constant 0.000000e+00 : f32
    %129 = vector.broadcast %cst_52 : f32 to vector<8x256xf32>
    %130 = arith.subf %129, %128 : vector<8x256xf32>
    %131 = math.exp %130 : vector<8x256xf32>
    %cst_53 = arith.constant 1.000000e+00 : f32
    %132 = vector.broadcast %cst_53 : f32 to vector<8x256xf32>
    %133 = arith.addf %132, %131 : vector<8x256xf32>
    %134 = tpu.reciprocal %133 : vector<8x256xf32> -> vector<8x256xf32>
    %135 = vector.extract_strided_slice %134 {offsets = [0, 0], sizes = [8, 64], strides = [1, 1]} : vector<8x256xf32> to vector<8x64xf32>
    %136 = vector.extract_strided_slice %134 {offsets = [0, 64], sizes = [8, 64], strides = [1, 1]} : vector<8x256xf32> to vector<8x64xf32>
    %137 = vector.extract_strided_slice %134 {offsets = [0, 128], sizes = [8, 64], strides = [1, 1]} : vector<8x256xf32> to vector<8x64xf32>
    %cst_54 = arith.constant 2.000000e+00 : f32
    %138 = vector.broadcast %cst_54 : f32 to vector<8x64xf32>
    %139 = arith.mulf %138, %137 : vector<8x64xf32>
    %cst_55 = arith.constant 1.000000e+00 : f32
    %140 = vector.broadcast %cst_55 : f32 to vector<8x64xf32>
    %141 = arith.subf %139, %140 : vector<8x64xf32>
    %142 = vector.extract_strided_slice %134 {offsets = [0, 192], sizes = [8, 64], strides = [1, 1]} : vector<8x256xf32> to vector<8x64xf32>
    %143 = arith.mulf %136, %120 : vector<8x64xf32>
    %144 = arith.mulf %135, %141 : vector<8x64xf32>
    %145 = arith.addf %143, %144 : vector<8x64xf32>
    %146 = math.tanh %145 : vector<8x64xf32>
    %147 = arith.mulf %142, %146 : vector<8x64xf32>
    %c4_i32 = arith.constant 4 : i32
    %c8_i32_56 = arith.constant 8 : i32
    %148 = arith.muli %c4_i32, %c8_i32_56 : i32
    %149 = tpu.assume_multiple %148, 8 : i32
    %150 = arith.index_cast %149 : i32 to index
    %c0_57 = arith.constant 0 : index
    %151 = vector.load %arg15[%150, %c0_57] : memref<96x256xf32, #tpu.memory_space<vmem>>, vector<8x256xf32>
    %cst_58 = arith.constant dense<0.000000e+00> : vector<8x256xf32>
    %152 = tpu.matmul %147, %27, %cst_58 {dimension_numbers = #tpu.dot_dimension_numbers<[1], [0], [0], [1], [0, 0, 1, 1], [], []>} : vector<8x64xf32>, vector<64x256xf32>, vector<8x256xf32> -> vector<8x256xf32>
    %153 = arith.addf %151, %152 : vector<8x256xf32>
    %cst_59 = arith.constant 0.000000e+00 : f32
    %154 = vector.broadcast %cst_59 : f32 to vector<8x256xf32>
    %155 = arith.subf %154, %153 : vector<8x256xf32>
    %156 = math.exp %155 : vector<8x256xf32>
    %cst_60 = arith.constant 1.000000e+00 : f32
    %157 = vector.broadcast %cst_60 : f32 to vector<8x256xf32>
    %158 = arith.addf %157, %156 : vector<8x256xf32>
    %159 = tpu.reciprocal %158 : vector<8x256xf32> -> vector<8x256xf32>
    %160 = vector.extract_strided_slice %159 {offsets = [0, 0], sizes = [8, 64], strides = [1, 1]} : vector<8x256xf32> to vector<8x64xf32>
    %161 = vector.extract_strided_slice %159 {offsets = [0, 64], sizes = [8, 64], strides = [1, 1]} : vector<8x256xf32> to vector<8x64xf32>
    %162 = vector.extract_strided_slice %159 {offsets = [0, 128], sizes = [8, 64], strides = [1, 1]} : vector<8x256xf32> to vector<8x64xf32>
    %cst_61 = arith.constant 2.000000e+00 : f32
    %163 = vector.broadcast %cst_61 : f32 to vector<8x64xf32>
    %164 = arith.mulf %163, %162 : vector<8x64xf32>
    %cst_62 = arith.constant 1.000000e+00 : f32
    %165 = vector.broadcast %cst_62 : f32 to vector<8x64xf32>
    %166 = arith.subf %164, %165 : vector<8x64xf32>
    %167 = vector.extract_strided_slice %159 {offsets = [0, 192], sizes = [8, 64], strides = [1, 1]} : vector<8x256xf32> to vector<8x64xf32>
    %168 = arith.mulf %161, %145 : vector<8x64xf32>
    %169 = arith.mulf %160, %166 : vector<8x64xf32>
    %170 = arith.addf %168, %169 : vector<8x64xf32>
    %171 = math.tanh %170 : vector<8x64xf32>
    %172 = arith.mulf %167, %171 : vector<8x64xf32>
    %c5_i32 = arith.constant 5 : i32
    %c8_i32_63 = arith.constant 8 : i32
    %173 = arith.muli %c5_i32, %c8_i32_63 : i32
    %174 = tpu.assume_multiple %173, 8 : i32
    %175 = arith.index_cast %174 : i32 to index
    %c0_64 = arith.constant 0 : index
    %176 = vector.load %arg15[%175, %c0_64] : memref<96x256xf32, #tpu.memory_space<vmem>>, vector<8x256xf32>
    %cst_65 = arith.constant dense<0.000000e+00> : vector<8x256xf32>
    %177 = tpu.matmul %172, %27, %cst_65 {dimension_numbers = #tpu.dot_dimension_numbers<[1], [0], [0], [1], [0, 0, 1, 1], [], []>} : vector<8x64xf32>, vector<64x256xf32>, vector<8x256xf32> -> vector<8x256xf32>
    %178 = arith.addf %176, %177 : vector<8x256xf32>
    %cst_66 = arith.constant 0.000000e+00 : f32
    %179 = vector.broadcast %cst_66 : f32 to vector<8x256xf32>
    %180 = arith.subf %179, %178 : vector<8x256xf32>
    %181 = math.exp %180 : vector<8x256xf32>
    %cst_67 = arith.constant 1.000000e+00 : f32
    %182 = vector.broadcast %cst_67 : f32 to vector<8x256xf32>
    %183 = arith.addf %182, %181 : vector<8x256xf32>
    %184 = tpu.reciprocal %183 : vector<8x256xf32> -> vector<8x256xf32>
    %185 = vector.extract_strided_slice %184 {offsets = [0, 0], sizes = [8, 64], strides = [1, 1]} : vector<8x256xf32> to vector<8x64xf32>
    %186 = vector.extract_strided_slice %184 {offsets = [0, 64], sizes = [8, 64], strides = [1, 1]} : vector<8x256xf32> to vector<8x64xf32>
    %187 = vector.extract_strided_slice %184 {offsets = [0, 128], sizes = [8, 64], strides = [1, 1]} : vector<8x256xf32> to vector<8x64xf32>
    %cst_68 = arith.constant 2.000000e+00 : f32
    %188 = vector.broadcast %cst_68 : f32 to vector<8x64xf32>
    %189 = arith.mulf %188, %187 : vector<8x64xf32>
    %cst_69 = arith.constant 1.000000e+00 : f32
    %190 = vector.broadcast %cst_69 : f32 to vector<8x64xf32>
    %191 = arith.subf %189, %190 : vector<8x64xf32>
    %192 = vector.extract_strided_slice %184 {offsets = [0, 192], sizes = [8, 64], strides = [1, 1]} : vector<8x256xf32> to vector<8x64xf32>
    %193 = arith.mulf %186, %170 : vector<8x64xf32>
    %194 = arith.mulf %185, %191 : vector<8x64xf32>
    %195 = arith.addf %193, %194 : vector<8x64xf32>
    %196 = math.tanh %195 : vector<8x64xf32>
    %197 = arith.mulf %192, %196 : vector<8x64xf32>
    %c6_i32 = arith.constant 6 : i32
    %c8_i32_70 = arith.constant 8 : i32
    %198 = arith.muli %c6_i32, %c8_i32_70 : i32
    %199 = tpu.assume_multiple %198, 8 : i32
    %200 = arith.index_cast %199 : i32 to index
    %c0_71 = arith.constant 0 : index
    %201 = vector.load %arg15[%200, %c0_71] : memref<96x256xf32, #tpu.memory_space<vmem>>, vector<8x256xf32>
    %cst_72 = arith.constant dense<0.000000e+00> : vector<8x256xf32>
    %202 = tpu.matmul %197, %27, %cst_72 {dimension_numbers = #tpu.dot_dimension_numbers<[1], [0], [0], [1], [0, 0, 1, 1], [], []>} : vector<8x64xf32>, vector<64x256xf32>, vector<8x256xf32> -> vector<8x256xf32>
    %203 = arith.addf %201, %202 : vector<8x256xf32>
    %cst_73 = arith.constant 0.000000e+00 : f32
    %204 = vector.broadcast %cst_73 : f32 to vector<8x256xf32>
    %205 = arith.subf %204, %203 : vector<8x256xf32>
    %206 = math.exp %205 : vector<8x256xf32>
    %cst_74 = arith.constant 1.000000e+00 : f32
    %207 = vector.broadcast %cst_74 : f32 to vector<8x256xf32>
    %208 = arith.addf %207, %206 : vector<8x256xf32>
    %209 = tpu.reciprocal %208 : vector<8x256xf32> -> vector<8x256xf32>
    %210 = vector.extract_strided_slice %209 {offsets = [0, 0], sizes = [8, 64], strides = [1, 1]} : vector<8x256xf32> to vector<8x64xf32>
    %211 = vector.extract_strided_slice %209 {offsets = [0, 64], sizes = [8, 64], strides = [1, 1]} : vector<8x256xf32> to vector<8x64xf32>
    %212 = vector.extract_strided_slice %209 {offsets = [0, 128], sizes = [8, 64], strides = [1, 1]} : vector<8x256xf32> to vector<8x64xf32>
    %cst_75 = arith.constant 2.000000e+00 : f32
    %213 = vector.broadcast %cst_75 : f32 to vector<8x64xf32>
    %214 = arith.mulf %213, %212 : vector<8x64xf32>
    %cst_76 = arith.constant 1.000000e+00 : f32
    %215 = vector.broadcast %cst_76 : f32 to vector<8x64xf32>
    %216 = arith.subf %214, %215 : vector<8x64xf32>
    %217 = vector.extract_strided_slice %209 {offsets = [0, 192], sizes = [8, 64], strides = [1, 1]} : vector<8x256xf32> to vector<8x64xf32>
    %218 = arith.mulf %211, %195 : vector<8x64xf32>
    %219 = arith.mulf %210, %216 : vector<8x64xf32>
    %220 = arith.addf %218, %219 : vector<8x64xf32>
    %221 = math.tanh %220 : vector<8x64xf32>
    %222 = arith.mulf %217, %221 : vector<8x64xf32>
    %c7_i32 = arith.constant 7 : i32
    %c8_i32_77 = arith.constant 8 : i32
    %223 = arith.muli %c7_i32, %c8_i32_77 : i32
    %224 = tpu.assume_multiple %223, 8 : i32
    %225 = arith.index_cast %224 : i32 to index
    %c0_78 = arith.constant 0 : index
    %226 = vector.load %arg15[%225, %c0_78] : memref<96x256xf32, #tpu.memory_space<vmem>>, vector<8x256xf32>
    %cst_79 = arith.constant dense<0.000000e+00> : vector<8x256xf32>
    %227 = tpu.matmul %222, %27, %cst_79 {dimension_numbers = #tpu.dot_dimension_numbers<[1], [0], [0], [1], [0, 0, 1, 1], [], []>} : vector<8x64xf32>, vector<64x256xf32>, vector<8x256xf32> -> vector<8x256xf32>
    %228 = arith.addf %226, %227 : vector<8x256xf32>
    %cst_80 = arith.constant 0.000000e+00 : f32
    %229 = vector.broadcast %cst_80 : f32 to vector<8x256xf32>
    %230 = arith.subf %229, %228 : vector<8x256xf32>
    %231 = math.exp %230 : vector<8x256xf32>
    %cst_81 = arith.constant 1.000000e+00 : f32
    %232 = vector.broadcast %cst_81 : f32 to vector<8x256xf32>
    %233 = arith.addf %232, %231 : vector<8x256xf32>
    %234 = tpu.reciprocal %233 : vector<8x256xf32> -> vector<8x256xf32>
    %235 = vector.extract_strided_slice %234 {offsets = [0, 0], sizes = [8, 64], strides = [1, 1]} : vector<8x256xf32> to vector<8x64xf32>
    %236 = vector.extract_strided_slice %234 {offsets = [0, 64], sizes = [8, 64], strides = [1, 1]} : vector<8x256xf32> to vector<8x64xf32>
    %237 = vector.extract_strided_slice %234 {offsets = [0, 128], sizes = [8, 64], strides = [1, 1]} : vector<8x256xf32> to vector<8x64xf32>
    %cst_82 = arith.constant 2.000000e+00 : f32
    %238 = vector.broadcast %cst_82 : f32 to vector<8x64xf32>
    %239 = arith.mulf %238, %237 : vector<8x64xf32>
    %cst_83 = arith.constant 1.000000e+00 : f32
    %240 = vector.broadcast %cst_83 : f32 to vector<8x64xf32>
    %241 = arith.subf %239, %240 : vector<8x64xf32>
    %242 = vector.extract_strided_slice %234 {offsets = [0, 192], sizes = [8, 64], strides = [1, 1]} : vector<8x256xf32> to vector<8x64xf32>
    %243 = arith.mulf %236, %220 : vector<8x64xf32>
    %244 = arith.mulf %235, %241 : vector<8x64xf32>
    %245 = arith.addf %243, %244 : vector<8x64xf32>
    %246 = math.tanh %245 : vector<8x64xf32>
    %247 = arith.mulf %242, %246 : vector<8x64xf32>
    %c8_i32_84 = arith.constant 8 : i32
    %c8_i32_85 = arith.constant 8 : i32
    %248 = arith.muli %c8_i32_84, %c8_i32_85 : i32
    %249 = tpu.assume_multiple %248, 8 : i32
    %250 = arith.index_cast %249 : i32 to index
    %c0_86 = arith.constant 0 : index
    %251 = vector.load %arg15[%250, %c0_86] : memref<96x256xf32, #tpu.memory_space<vmem>>, vector<8x256xf32>
    %cst_87 = arith.constant dense<0.000000e+00> : vector<8x256xf32>
    %252 = tpu.matmul %247, %27, %cst_87 {dimension_numbers = #tpu.dot_dimension_numbers<[1], [0], [0], [1], [0, 0, 1, 1], [], []>} : vector<8x64xf32>, vector<64x256xf32>, vector<8x256xf32> -> vector<8x256xf32>
    %253 = arith.addf %251, %252 : vector<8x256xf32>
    %cst_88 = arith.constant 0.000000e+00 : f32
    %254 = vector.broadcast %cst_88 : f32 to vector<8x256xf32>
    %255 = arith.subf %254, %253 : vector<8x256xf32>
    %256 = math.exp %255 : vector<8x256xf32>
    %cst_89 = arith.constant 1.000000e+00 : f32
    %257 = vector.broadcast %cst_89 : f32 to vector<8x256xf32>
    %258 = arith.addf %257, %256 : vector<8x256xf32>
    %259 = tpu.reciprocal %258 : vector<8x256xf32> -> vector<8x256xf32>
    %260 = vector.extract_strided_slice %259 {offsets = [0, 0], sizes = [8, 64], strides = [1, 1]} : vector<8x256xf32> to vector<8x64xf32>
    %261 = vector.extract_strided_slice %259 {offsets = [0, 64], sizes = [8, 64], strides = [1, 1]} : vector<8x256xf32> to vector<8x64xf32>
    %262 = vector.extract_strided_slice %259 {offsets = [0, 128], sizes = [8, 64], strides = [1, 1]} : vector<8x256xf32> to vector<8x64xf32>
    %cst_90 = arith.constant 2.000000e+00 : f32
    %263 = vector.broadcast %cst_90 : f32 to vector<8x64xf32>
    %264 = arith.mulf %263, %262 : vector<8x64xf32>
    %cst_91 = arith.constant 1.000000e+00 : f32
    %265 = vector.broadcast %cst_91 : f32 to vector<8x64xf32>
    %266 = arith.subf %264, %265 : vector<8x64xf32>
    %267 = vector.extract_strided_slice %259 {offsets = [0, 192], sizes = [8, 64], strides = [1, 1]} : vector<8x256xf32> to vector<8x64xf32>
    %268 = arith.mulf %261, %245 : vector<8x64xf32>
    %269 = arith.mulf %260, %266 : vector<8x64xf32>
    %270 = arith.addf %268, %269 : vector<8x64xf32>
    %271 = math.tanh %270 : vector<8x64xf32>
    %272 = arith.mulf %267, %271 : vector<8x64xf32>
    %c9_i32 = arith.constant 9 : i32
    %c8_i32_92 = arith.constant 8 : i32
    %273 = arith.muli %c9_i32, %c8_i32_92 : i32
    %274 = tpu.assume_multiple %273, 8 : i32
    %275 = arith.index_cast %274 : i32 to index
    %c0_93 = arith.constant 0 : index
    %276 = vector.load %arg15[%275, %c0_93] : memref<96x256xf32, #tpu.memory_space<vmem>>, vector<8x256xf32>
    %cst_94 = arith.constant dense<0.000000e+00> : vector<8x256xf32>
    %277 = tpu.matmul %272, %27, %cst_94 {dimension_numbers = #tpu.dot_dimension_numbers<[1], [0], [0], [1], [0, 0, 1, 1], [], []>} : vector<8x64xf32>, vector<64x256xf32>, vector<8x256xf32> -> vector<8x256xf32>
    %278 = arith.addf %276, %277 : vector<8x256xf32>
    %cst_95 = arith.constant 0.000000e+00 : f32
    %279 = vector.broadcast %cst_95 : f32 to vector<8x256xf32>
    %280 = arith.subf %279, %278 : vector<8x256xf32>
    %281 = math.exp %280 : vector<8x256xf32>
    %cst_96 = arith.constant 1.000000e+00 : f32
    %282 = vector.broadcast %cst_96 : f32 to vector<8x256xf32>
    %283 = arith.addf %282, %281 : vector<8x256xf32>
    %284 = tpu.reciprocal %283 : vector<8x256xf32> -> vector<8x256xf32>
    %285 = vector.extract_strided_slice %284 {offsets = [0, 0], sizes = [8, 64], strides = [1, 1]} : vector<8x256xf32> to vector<8x64xf32>
    %286 = vector.extract_strided_slice %284 {offsets = [0, 64], sizes = [8, 64], strides = [1, 1]} : vector<8x256xf32> to vector<8x64xf32>
    %287 = vector.extract_strided_slice %284 {offsets = [0, 128], sizes = [8, 64], strides = [1, 1]} : vector<8x256xf32> to vector<8x64xf32>
    %cst_97 = arith.constant 2.000000e+00 : f32
    %288 = vector.broadcast %cst_97 : f32 to vector<8x64xf32>
    %289 = arith.mulf %288, %287 : vector<8x64xf32>
    %cst_98 = arith.constant 1.000000e+00 : f32
    %290 = vector.broadcast %cst_98 : f32 to vector<8x64xf32>
    %291 = arith.subf %289, %290 : vector<8x64xf32>
    %292 = vector.extract_strided_slice %284 {offsets = [0, 192], sizes = [8, 64], strides = [1, 1]} : vector<8x256xf32> to vector<8x64xf32>
    %293 = arith.mulf %286, %270 : vector<8x64xf32>
    %294 = arith.mulf %285, %291 : vector<8x64xf32>
    %295 = arith.addf %293, %294 : vector<8x64xf32>
    %296 = math.tanh %295 : vector<8x64xf32>
    %297 = arith.mulf %292, %296 : vector<8x64xf32>
    %c10_i32 = arith.constant 10 : i32
    %c8_i32_99 = arith.constant 8 : i32
    %298 = arith.muli %c10_i32, %c8_i32_99 : i32
    %299 = tpu.assume_multiple %298, 8 : i32
    %300 = arith.index_cast %299 : i32 to index
    %c0_100 = arith.constant 0 : index
    %301 = vector.load %arg15[%300, %c0_100] : memref<96x256xf32, #tpu.memory_space<vmem>>, vector<8x256xf32>
    %cst_101 = arith.constant dense<0.000000e+00> : vector<8x256xf32>
    %302 = tpu.matmul %297, %27, %cst_101 {dimension_numbers = #tpu.dot_dimension_numbers<[1], [0], [0], [1], [0, 0, 1, 1], [], []>} : vector<8x64xf32>, vector<64x256xf32>, vector<8x256xf32> -> vector<8x256xf32>
    %303 = arith.addf %301, %302 : vector<8x256xf32>
    %cst_102 = arith.constant 0.000000e+00 : f32
    %304 = vector.broadcast %cst_102 : f32 to vector<8x256xf32>
    %305 = arith.subf %304, %303 : vector<8x256xf32>
    %306 = math.exp %305 : vector<8x256xf32>
    %cst_103 = arith.constant 1.000000e+00 : f32
    %307 = vector.broadcast %cst_103 : f32 to vector<8x256xf32>
    %308 = arith.addf %307, %306 : vector<8x256xf32>
    %309 = tpu.reciprocal %308 : vector<8x256xf32> -> vector<8x256xf32>
    %310 = vector.extract_strided_slice %309 {offsets = [0, 0], sizes = [8, 64], strides = [1, 1]} : vector<8x256xf32> to vector<8x64xf32>
    %311 = vector.extract_strided_slice %309 {offsets = [0, 64], sizes = [8, 64], strides = [1, 1]} : vector<8x256xf32> to vector<8x64xf32>
    %312 = vector.extract_strided_slice %309 {offsets = [0, 128], sizes = [8, 64], strides = [1, 1]} : vector<8x256xf32> to vector<8x64xf32>
    %cst_104 = arith.constant 2.000000e+00 : f32
    %313 = vector.broadcast %cst_104 : f32 to vector<8x64xf32>
    %314 = arith.mulf %313, %312 : vector<8x64xf32>
    %cst_105 = arith.constant 1.000000e+00 : f32
    %315 = vector.broadcast %cst_105 : f32 to vector<8x64xf32>
    %316 = arith.subf %314, %315 : vector<8x64xf32>
    %317 = vector.extract_strided_slice %309 {offsets = [0, 192], sizes = [8, 64], strides = [1, 1]} : vector<8x256xf32> to vector<8x64xf32>
    %318 = arith.mulf %311, %295 : vector<8x64xf32>
    %319 = arith.mulf %310, %316 : vector<8x64xf32>
    %320 = arith.addf %318, %319 : vector<8x64xf32>
    %321 = math.tanh %320 : vector<8x64xf32>
    %322 = arith.mulf %317, %321 : vector<8x64xf32>
    %c11_i32 = arith.constant 11 : i32
    %c8_i32_106 = arith.constant 8 : i32
    %323 = arith.muli %c11_i32, %c8_i32_106 : i32
    %324 = tpu.assume_multiple %323, 8 : i32
    %325 = arith.index_cast %324 : i32 to index
    %c0_107 = arith.constant 0 : index
    %326 = vector.load %arg15[%325, %c0_107] : memref<96x256xf32, #tpu.memory_space<vmem>>, vector<8x256xf32>
    %cst_108 = arith.constant dense<0.000000e+00> : vector<8x256xf32>
    %327 = tpu.matmul %322, %27, %cst_108 {dimension_numbers = #tpu.dot_dimension_numbers<[1], [0], [0], [1], [0, 0, 1, 1], [], []>} : vector<8x64xf32>, vector<64x256xf32>, vector<8x256xf32> -> vector<8x256xf32>
    %328 = arith.addf %326, %327 : vector<8x256xf32>
    %cst_109 = arith.constant 0.000000e+00 : f32
    %329 = vector.broadcast %cst_109 : f32 to vector<8x256xf32>
    %330 = arith.subf %329, %328 : vector<8x256xf32>
    %331 = math.exp %330 : vector<8x256xf32>
    %cst_110 = arith.constant 1.000000e+00 : f32
    %332 = vector.broadcast %cst_110 : f32 to vector<8x256xf32>
    %333 = arith.addf %332, %331 : vector<8x256xf32>
    %334 = tpu.reciprocal %333 : vector<8x256xf32> -> vector<8x256xf32>
    %335 = vector.extract_strided_slice %334 {offsets = [0, 0], sizes = [8, 64], strides = [1, 1]} : vector<8x256xf32> to vector<8x64xf32>
    %336 = vector.extract_strided_slice %334 {offsets = [0, 64], sizes = [8, 64], strides = [1, 1]} : vector<8x256xf32> to vector<8x64xf32>
    %337 = vector.extract_strided_slice %334 {offsets = [0, 128], sizes = [8, 64], strides = [1, 1]} : vector<8x256xf32> to vector<8x64xf32>
    %cst_111 = arith.constant 2.000000e+00 : f32
    %338 = vector.broadcast %cst_111 : f32 to vector<8x64xf32>
    %339 = arith.mulf %338, %337 : vector<8x64xf32>
    %cst_112 = arith.constant 1.000000e+00 : f32
    %340 = vector.broadcast %cst_112 : f32 to vector<8x64xf32>
    %341 = arith.subf %339, %340 : vector<8x64xf32>
    %342 = vector.extract_strided_slice %334 {offsets = [0, 192], sizes = [8, 64], strides = [1, 1]} : vector<8x256xf32> to vector<8x64xf32>
    %343 = arith.mulf %336, %320 : vector<8x64xf32>
    %344 = arith.mulf %335, %341 : vector<8x64xf32>
    %345 = arith.addf %343, %344 : vector<8x64xf32>
    %346 = math.tanh %345 : vector<8x64xf32>
    %347 = arith.mulf %342, %346 : vector<8x64xf32>
    %c12_i32 = arith.constant 12 : i32
    %c0_i32_113 = arith.constant 0 : i32
    %c0_i32_114 = arith.constant 0 : i32
    %c0_i32_115 = arith.constant 0 : i32
    %c0_i32_116 = arith.constant 0 : i32
    %348 = tpu.memref_slice %arg16[%c0_i32_113, %c0_i32_115, %c0_i32_116] : memref<2x64x512xbf16, #tpu.memory_space<vmem>> -> memref<1x64x512xbf16, #tpu.memory_space<vmem>>
    %349 = tpu.memref_squeeze %348 : memref<1x64x512xbf16, #tpu.memory_space<vmem>> -> memref<64x512xbf16, #tpu.memory_space<vmem>>
    %350 = tpu.memref_slice %arg18[%c0_i32_114] : memref<3x!tpu.dma_semaphore, #tpu.memory_space<semaphore_mem>> -> memref<1x!tpu.dma_semaphore, #tpu.memory_space<semaphore_mem>>
    %351 = tpu.memref_squeeze %350 : memref<1x!tpu.dma_semaphore, #tpu.memory_space<semaphore_mem>> -> memref<!tpu.dma_semaphore, #tpu.memory_space<semaphore_mem>>
    tpu.wait_dma2 semaphore(%351 : memref<!tpu.dma_semaphore, #tpu.memory_space<semaphore_mem>>) src(%arg7 : memref<64x512xbf16, #tpu.memory_space<any>>) dst(%349 : memref<64x512xbf16, #tpu.memory_space<vmem>>)
    %c1_i32_117 = arith.constant 1 : i32
    %c1_i32_118 = arith.constant 1 : i32
    %c0_i32_119 = arith.constant 0 : i32
    %c0_i32_120 = arith.constant 0 : i32
    %352 = tpu.memref_slice %arg16[%c1_i32_117, %c0_i32_119, %c0_i32_120] : memref<2x64x512xbf16, #tpu.memory_space<vmem>> -> memref<1x64x512xbf16, #tpu.memory_space<vmem>>
    %353 = tpu.memref_squeeze %352 : memref<1x64x512xbf16, #tpu.memory_space<vmem>> -> memref<64x512xbf16, #tpu.memory_space<vmem>>
    %354 = tpu.memref_slice %arg18[%c1_i32_118] : memref<3x!tpu.dma_semaphore, #tpu.memory_space<semaphore_mem>> -> memref<1x!tpu.dma_semaphore, #tpu.memory_space<semaphore_mem>>
    %355 = tpu.memref_squeeze %354 : memref<1x!tpu.dma_semaphore, #tpu.memory_space<semaphore_mem>> -> memref<!tpu.dma_semaphore, #tpu.memory_space<semaphore_mem>>
    tpu.wait_dma2 semaphore(%355 : memref<!tpu.dma_semaphore, #tpu.memory_space<semaphore_mem>>) src(%arg8 : memref<64x512xbf16, #tpu.memory_space<any>>) dst(%353 : memref<64x512xbf16, #tpu.memory_space<vmem>>)
    %356 = arith.truncf %347 : vector<8x64xf32> to vector<8x64xbf16>
    %c0_121 = arith.constant 0 : index
    %c0_122 = arith.constant 0 : index
    %c0_123 = arith.constant 0 : index
    %357 = vector.load %arg16[%c0_121, %c0_122, %c0_123] : memref<2x64x512xbf16, #tpu.memory_space<vmem>>, vector<1x64x512xbf16>
    %358 = vector.shape_cast %357 : vector<1x64x512xbf16> to vector<64x512xbf16>
    %cst_124 = arith.constant dense<0.000000e+00> : vector<8x512xf32>
    %359 = tpu.matmul %356, %358, %cst_124 {dimension_numbers = #tpu.dot_dimension_numbers<[1], [0], [0], [1], [0, 0, 1, 1], [], []>} : vector<8x64xbf16>, vector<64x512xbf16>, vector<8x512xf32> -> vector<8x512xf32>
    %360 = arith.truncf %47 : vector<8x64xf32> to vector<8x64xbf16>
    %c1 = arith.constant 1 : index
    %c0_125 = arith.constant 0 : index
    %c0_126 = arith.constant 0 : index
    %361 = vector.load %arg16[%c1, %c0_125, %c0_126] : memref<2x64x512xbf16, #tpu.memory_space<vmem>>, vector<1x64x512xbf16>
    %362 = vector.shape_cast %361 : vector<1x64x512xbf16> to vector<64x512xbf16>
    %cst_127 = arith.constant dense<0.000000e+00> : vector<8x512xf32>
    %363 = tpu.matmul %360, %362, %cst_127 {dimension_numbers = #tpu.dot_dimension_numbers<[1], [0], [0], [1], [0, 0, 1, 1], [], []>} : vector<8x64xbf16>, vector<64x512xbf16>, vector<8x512xf32> -> vector<8x512xf32>
    %364 = arith.addf %359, %363 : vector<8x512xf32>
    %c0_128 = arith.constant 0 : index
    %c0_129 = arith.constant 0 : index
    %365 = vector.load %arg9[%c0_128, %c0_129] : memref<1x512xf32, #tpu.memory_space<vmem>>, vector<1x512xf32>
    %366 = vector.broadcast %365 : vector<1x512xf32> to vector<8x512xf32>
    %367 = arith.addf %364, %366 : vector<8x512xf32>
    %cst_130 = arith.constant 0.000000e+00 : f32
    %368 = vector.broadcast %cst_130 : f32 to vector<8x512xf32>
    %369 = arith.maximumf %367, %368 : vector<8x512xf32>
    %c2_i32_131 = arith.constant 2 : i32
    %370 = tpu.memref_slice %arg18[%c2_i32_131] : memref<3x!tpu.dma_semaphore, #tpu.memory_space<semaphore_mem>> -> memref<1x!tpu.dma_semaphore, #tpu.memory_space<semaphore_mem>>
    %371 = tpu.memref_squeeze %370 : memref<1x!tpu.dma_semaphore, #tpu.memory_space<semaphore_mem>> -> memref<!tpu.dma_semaphore, #tpu.memory_space<semaphore_mem>>
    tpu.wait_dma2 semaphore(%371 : memref<!tpu.dma_semaphore, #tpu.memory_space<semaphore_mem>>) src(%arg10 : memref<512x512xbf16, #tpu.memory_space<any>>) dst(%arg17 : memref<512x512xbf16, #tpu.memory_space<vmem>>)
    %372 = arith.truncf %369 : vector<8x512xf32> to vector<8x512xbf16>
    %c0_132 = arith.constant 0 : index
    %c0_133 = arith.constant 0 : index
    %373 = vector.load %arg17[%c0_132, %c0_133] : memref<512x512xbf16, #tpu.memory_space<vmem>>, vector<512x512xbf16>
    %cst_134 = arith.constant dense<0.000000e+00> : vector<8x512xf32>
    %374 = tpu.matmul %372, %373, %cst_134 {dimension_numbers = #tpu.dot_dimension_numbers<[1], [0], [0], [1], [0, 0, 1, 1], [], []>} : vector<8x512xbf16>, vector<512x512xbf16>, vector<8x512xf32> -> vector<8x512xf32>
    %c0_135 = arith.constant 0 : index
    %c0_136 = arith.constant 0 : index
    %375 = vector.load %arg11[%c0_135, %c0_136] : memref<1x512xf32, #tpu.memory_space<vmem>>, vector<1x512xf32>
    %376 = vector.broadcast %375 : vector<1x512xf32> to vector<8x512xf32>
    %377 = arith.addf %374, %376 : vector<8x512xf32>
    %cst_137 = arith.constant 0.000000e+00 : f32
    %378 = vector.broadcast %cst_137 : f32 to vector<8x512xf32>
    %379 = arith.maximumf %377, %378 : vector<8x512xf32>
    %380 = arith.truncf %379 : vector<8x512xf32> to vector<8x512xbf16>
    %c0_138 = arith.constant 0 : index
    %c0_139 = arith.constant 0 : index
    %381 = vector.load %arg12[%c0_138, %c0_139] : memref<512x1xbf16, #tpu.memory_space<vmem>>, vector<512x1xbf16>
    %cst_140 = arith.constant dense<0.000000e+00> : vector<8x1xf32>
    %382 = tpu.matmul %380, %381, %cst_140 {dimension_numbers = #tpu.dot_dimension_numbers<[1], [0], [0], [1], [0, 0, 1, 1], [], []>} : vector<8x512xbf16>, vector<512x1xbf16>, vector<8x1xf32> -> vector<8x1xf32>
    %c0_141 = arith.constant 0 : index
    %c0_142 = arith.constant 0 : index
    %383 = vector.load %arg13[%c0_141, %c0_142] : memref<1x1xf32, #tpu.memory_space<vmem>>, vector<1x1xf32>
    %384 = vector.broadcast %383 : vector<1x1xf32> to vector<8x1xf32>
    %385 = arith.addf %382, %384 : vector<8x1xf32>
    %386 = vector.extract_strided_slice %385 {offsets = [0, 0], sizes = [2, 1], strides = [1, 1]} : vector<8x1xf32> to vector<2x1xf32>
    %cst_143 = arith.constant 0.000000e+00 : f32
    %387 = vector.broadcast %cst_143 : f32 to vector<2x1xf32>
    %388 = arith.subf %387, %386 : vector<2x1xf32>
    %389 = math.exp %388 : vector<2x1xf32>
    %cst_144 = arith.constant 1.000000e+00 : f32
    %390 = vector.broadcast %cst_144 : f32 to vector<2x1xf32>
    %391 = arith.addf %390, %389 : vector<2x1xf32>
    %392 = tpu.reciprocal %391 {approx = true} : vector<2x1xf32> -> vector<2x1xf32>
    %c0_145 = arith.constant 0 : index
    %c0_146 = arith.constant 0 : index
    %393 = vector.load %arg14[%c0_145, %c0_146] : memref<2x1xf32, #tpu.memory_space<vmem>>, vector<2x1xf32>
    tpu.vector_store %arg14[%c0_145, %c0_146], %392 {strides = array<i32>} : memref<2x1xf32, #tpu.memory_space<vmem>>, vector<2x1xf32>,
    return
  }
  func.func @transform_0(%arg0: i32) -> (i32, i32) {
    %c0_i32 = arith.constant 0 : i32
    %c0_i32_0 = arith.constant 0 : i32
    %c0_i32_1 = arith.constant 0 : i32
    return %c0_i32, %c0_i32_0 : i32, i32
  }
  func.func @transform_1(%arg0: i32) -> (i32, i32) {
    %c0_i32 = arith.constant 0 : i32
    %c0_i32_0 = arith.constant 0 : i32
    %c0_i32_1 = arith.constant 0 : i32
    return %c0_i32, %c0_i32_0 : i32, i32
  }
  func.func @transform_2(%arg0: i32) -> (i32, i32) {
    %c0_i32 = arith.constant 0 : i32
    %c0_i32_0 = arith.constant 0 : i32
    %c0_i32_1 = arith.constant 0 : i32
    return %c0_i32, %c0_i32_0 : i32, i32
  }
  func.func @transform_3(%arg0: i32) -> (i32, i32) {
    %c0_i32 = arith.constant 0 : i32
    %c0_i32_0 = arith.constant 0 : i32
    %c0_i32_1 = arith.constant 0 : i32
    return %c0_i32, %c0_i32_0 : i32, i32
  }
  func.func @transform_4(%arg0: i32) -> (i32, i32) {
    %c0_i32 = arith.constant 0 : i32
    %c0_i32_0 = arith.constant 0 : i32
    %c0_i32_1 = arith.constant 0 : i32
    return %c0_i32, %c0_i32_0 : i32, i32
  }
  func.func @transform_5(%arg0: i32) -> (i32, i32) {
    %c0_i32 = arith.constant 0 : i32
    %c0_i32_0 = arith.constant 0 : i32
    %c0_i32_1 = arith.constant 0 : i32
    return %c0_i32, %c0_i32_0 : i32, i32
  }
  func.func @transform_8(%arg0: i32) -> (i32, i32) {
    %c0_i32 = arith.constant 0 : i32
    %c0_i32_0 = arith.constant 0 : i32
    %c0_i32_1 = arith.constant 0 : i32
    return %c0_i32, %c0_i32_0 : i32, i32
  }
  func.func @transform_10(%arg0: i32) -> (i32, i32) {
    %c0_i32 = arith.constant 0 : i32
    %c0_i32_0 = arith.constant 0 : i32
    %c0_i32_1 = arith.constant 0 : i32
    return %c0_i32, %c0_i32_0 : i32, i32
  }
  func.func @transform_11(%arg0: i32) -> (i32, i32) {
    %c0_i32 = arith.constant 0 : i32
    %c0_i32_0 = arith.constant 0 : i32
    %c0_i32_1 = arith.constant 0 : i32
    return %c0_i32, %c0_i32_0 : i32, i32
  }
  func.func @transform_12(%arg0: i32) -> (i32, i32) {
    %c0_i32 = arith.constant 0 : i32
    %c0_i32_0 = arith.constant 0 : i32
    %c0_i32_1 = arith.constant 0 : i32
    return %c0_i32, %c0_i32_0 : i32, i32
  }
  func.func @transform_13(%arg0: i32) -> (i32, i32) {
    %c0_i32 = arith.constant 0 : i32
    %c0_i32_0 = arith.constant 0 : i32
    %c0_i32_1 = arith.constant 0 : i32
    return %c0_i32, %c0_i32_0 : i32, i32
  }
}

</mosaic_0001>

<llo_original>
// kernel: model_forward.1
$region0: #{model_forward.1}
  #allocation0 [shape = 'u32[]', space=smem, size = 0x4, offset = 0x4, fixed_abs, tag = 'smem constant byte address 0x4 - core index']
  #allocation1 [shape = 'u32[144,128]{1,0:T(1,128)}', space=vmem, size = 0x12000, scoped, tag = 'internal scratch']
  #allocation2 [shape = 'f32[96,256]{1,0:T(8,128)}', space=vmem, size = 0x18000, scoped, tag = 'scratch operand']
  #allocation3 [shape = 'bf16[2,64,512]{2,1,0:T(16,128)(2,1)}', space=vmem, size = 0x20000, scoped, tag = 'scratch operand']
  #allocation4 [shape = 'bf16[512,512]{1,0:T(16,128)(2,1)}', space=vmem, size = 0x80000, scoped, tag = 'scratch operand']
  #allocation5 [shape = 's32[3]{0}', space=sflag, size = 0xc, scoped, tag = 'scratch operand']
  #allocation6 [shape = 'f32[1,1]{1,0:T(1,128)S(1)}', space=vmem, size = 0x200, scoped, tag = 'scoped memory for model_forward.1']
  #allocation7 [shape = 's32[]', space=sflag, size = 0x4, offset = 0, fixed_abs, tag = 'sflag constant byte address 0x0 - dummy sync flag']
  #allocation8 [shape = 's32[]', space=sflag, size = 0x4, offset = 0, fixed_abs, tag = 'sflag constant byte address 0x0 - dummy sync flag']
  #allocation9 [shape = 's32[]', space=sflag, size = 0x4, offset = 0, fixed_abs, tag = 'sflag constant byte address 0x0 - dummy sync flag']
  %s0 = inlined_call_operand.vmem [shape: bf16[96,1536], index: 0, kind: input, shape index: {}]
  %s1 = inlined_call_operand.vmem [shape: bf16[1536,64], index: 1, kind: input, shape index: {}]
  %s2 = inlined_call_operand.vmem [shape: f32[1,64], index: 2, kind: input, shape index: {}]
  %s3 = inlined_call_operand.vmem [shape: bf16[64,512], index: 3, kind: input, shape index: {}]
  %s4 = inlined_call_operand.vmem [shape: f32[1,512], index: 4, kind: input, shape index: {}]
  %s5 = inlined_call_operand.vmem [shape: f32[64,256], index: 5, kind: input, shape index: {}]
  %s6 = inlined_call_operand.vmem [shape: bf16[64,512], index: 6, kind: input, shape index: {}]
  %s7 = inlined_call_operand.vmem [shape: bf16[64,512], index: 7, kind: input, shape index: {}]
  %s8 = inlined_call_operand.vmem [shape: f32[1,512], index: 8, kind: input, shape index: {}]
  %s9 = inlined_call_operand.vmem [shape: bf16[512,512], index: 9, kind: input, shape index: {}]
  %s10 = inlined_call_operand.vmem [shape: f32[1,512], index: 10, kind: input, shape index: {}]
  %s11 = inlined_call_operand.vmem [shape: bf16[512,1], index: 11, kind: input, shape index: {}]
  %s12 = inlined_call_operand.<no memory space> [shape: f32[1,1], index: 12, kind: input, shape index: {}]
  %s13 = inlined_call_operand.vmem [shape: f32[2,1], index: 13, kind: output, shape index: {}]
  %s14 = sld [smem:[#allocation0]]
  $region161: #{model_forward.1} parent=0
    _
  %s16 = ssub.s32 1, %s14
  %s17 = scalar_select 0, %s16, %s14
  %v18 = vstv %s12
  %19 = vst [vmem:[#allocation6] sm:$0x1] %v18
  // Predicated region
  $region2: #{model_forward.1} parent=0 // pred_check
    _
  $region3: #{model_forward.1} parent=0 // pred_check_branch
    %21 = sbr.rel (0) target = $region5
  $region4: #{model_forward.1} parent=0 // pred_region
    _
  $region5: #{model_forward.1} parent=0 // pred_fallthru
    _
  // Predicated region
  $region6: #{model_forward.1} parent=0 // pred_check
    _
  $region7: #{model_forward.1} parent=0 // pred_check_branch
    %23 = sbr.rel (0) target = $region9
  $region8: #{model_forward.1} parent=0 // pred_region
    _
  $region9: #{model_forward.1} parent=0 // pred_fallthru
    _
  // Predicated region
  $region10: #{model_forward.1} parent=0 // pred_check
    _
  $region11: #{model_forward.1} parent=0 // pred_check_branch
    %25 = sbr.rel (0) target = $region13
  $region12: #{model_forward.1} parent=0 // pred_region
    _
  $region13: #{model_forward.1} parent=0 // pred_fallthru
    _
  // Predicated region
  $region14: #{model_forward.1} parent=0 // pred_check
    _
  $region15: #{model_forward.1} parent=0 // pred_check_branch
    %27 = sbr.rel (0) target = $region17
  $region16: #{model_forward.1} parent=0 // pred_region
    _
  $region17: #{model_forward.1} parent=0 // pred_fallthru
    _
  // Predicated region
  $region18: #{model_forward.1} parent=0 // pred_check
    _
  $region19: #{model_forward.1} parent=0 // pred_check_branch
    %29 = sbr.rel (0) target = $region21
  $region20: #{model_forward.1} parent=0 // pred_region
    _
  $region21: #{model_forward.1} parent=0 // pred_fallthru
    _
  // Predicated region
  $region22: #{model_forward.1} parent=0 // pred_check
    _
  $region23: #{model_forward.1} parent=0 // pred_check_branch
    %31 = sbr.rel (0) target = $region25
  $region24: #{model_forward.1} parent=0 // pred_region
    _
  $region25: #{model_forward.1} parent=0 // pred_fallthru
    _
  // Predicated region
  $region26: #{model_forward.1} parent=0 // pred_check
    _
  $region27: #{model_forward.1} parent=0 // pred_check_branch
    %33 = sbr.rel (0) target = $region29
  $region28: #{model_forward.1} parent=0 // pred_region
    _
  $region29: #{model_forward.1} parent=0 // pred_fallthru
    _
  // Predicated region
  $region30: #{model_forward.1} parent=0 // pred_check
    _
  $region31: #{model_forward.1} parent=0 // pred_check_branch
    %35 = sbr.rel (0) target = $region33
  $region32: #{model_forward.1} parent=0 // pred_region
    _
  $region33: #{model_forward.1} parent=0 // pred_fallthru
    _
  // Predicated region
  $region34: #{model_forward.1} parent=0 // pred_check
    _
  $region35: #{model_forward.1} parent=0 // pred_check_branch
    %37 = sbr.rel (0) target = $region37
  $region36: #{model_forward.1} parent=0 // pred_region
    _
  $region37: #{model_forward.1} parent=0 // pred_fallthru
    _
  // Predicated region
  $region38: #{model_forward.1} parent=0 // pred_check
    _
  $region39: #{model_forward.1} parent=0 // pred_check_branch
    %39 = sbr.rel (0) target = $region41
  $region40: #{model_forward.1} parent=0 // pred_region
    _
  $region41: #{model_forward.1} parent=0 // pred_fallthru
    _
  %p42 = scmp.lt.u32.totalorder 4, 8
  %p43 = pneg %p42
  // Predicated region
  $region42: #{model_forward.1} parent=0 // pred_check
    _
  $region43: #{model_forward.1} parent=0 // pred_check_branch
    %45 = sbr.rel (%p42) target = $region45
  $region44: #{model_forward.1} parent=0 // pred_region
    %s122 = sand.u32 4, 7
    %p123 = scmp.eq.s32.totalorder %s122, 0
    %p124 = pneg %p123
    // Predicated region
    $region57: #{model_forward.1} parent=44 // pred_check
      _
    $region58: #{model_forward.1} parent=44 // pred_check_branch
      %126 = sbr.rel (%p123) target = $region60
    $region59: #{model_forward.1} parent=44 // pred_region
      %s127 = sand.u32 4, 7
      %s128 = ssub.s32 4, %s127
      %s129 = scalar_lea.vmem %s6, %s128
      %s130 = ssub.s32 4, %s127
      %s131 = scalar_lea.vmem [#allocation3], %s130
      loop: start=0, step=1, limit=1
      $region61: #{model_forward.1} parent=59 // loop_pre_header
        _
      $region62: #{model_forward.1} parent=59 // loop_header
        %s133 = sphi 0, %s137
        %p134 = scmp.ge.s32.totalorder %s133, 1
        %s138 = sphi %s6, %s6
        %s139 = sphi [#allocation3], [#allocation3]
      $region63: #{model_forward.1} parent=59 // loop_header_branch
        %136 = sbr.rel (%p134) target = $region67
      $region64: #{model_forward.1} parent=59 // loop_body
        _
      $region65: #{model_forward.1} parent=59 // loop_footer
        %s137 = sadd.s32 1, %s133
      $region66: #{model_forward.1} parent=59 // loop_footer_branch
        %132 = sbr.rel target = $region62
      $region67: #{model_forward.1} parent=59 // loop_exit
        _
      %s140 = sshllo.u32 0, %s127
      loop: start=0, step=1, limit=1
      $region68: #{model_forward.1} parent=59 // loop_pre_header
        _
      $region69: #{model_forward.1} parent=59 // loop_header
        %s142 = sphi 0, %s146
        %p143 = scmp.ge.s32.totalorder %s142, 1
        %s147 = sphi %s129, %s129
        %s148 = sphi %s131, %s131
      $region70: #{model_forward.1} parent=59 // loop_header_branch
        %145 = sbr.rel (%p143) target = $region74
      $region71: #{model_forward.1} parent=59 // loop_body
        %v149 = vld [vmem:[%s147] sm:%s140]
        %150 = vst [vmem:[%s148] sm:%s140] %v149
        %v151 = vld [vmem:[%s147 + $0x10] sm:%s140]
        %152 = vst [vmem:[%s148 + $0x4] sm:%s140] %v151
        %v153 = vld [vmem:[%s147 + $0x4] sm:%s140]
        %154 = vst [vmem:[%s148 + $0x8] sm:%s140] %v153
        %v155 = vld [vmem:[%s147 + $0x14] sm:%s140]
        %156 = vst [vmem:[%s148 + $0xc] sm:%s140] %v155
        %v157 = vld [vmem:[%s147 + $0x8] sm:%s140]
        %158 = vst [vmem:[%s148 + $0x10] sm:%s140] %v157
        %v159 = vld [vmem:[%s147 + $0x18] sm:%s140]
        %160 = vst [vmem:[%s148 + $0x14] sm:%s140] %v159
        %v161 = vld [vmem:[%s147 + $0xc] sm:%s140]
        %162 = vst [vmem:[%s148 + $0x18] sm:%s140] %v161
        %v163 = vld [vmem:[%s147 + $0x1c] sm:%s140]
        %164 = vst [vmem:[%s148 + $0x1c] sm:%s140] %v163
        %v165 = vld [vmem:[%s147 + $0x20] sm:%s140]
        %166 = vst [vmem:[%s148 + $0x20] sm:%s140] %v165
        %v167 = vld [vmem:[%s147 + $0x30] sm:%s140]
        %168 = vst [vmem:[%s148 + $0x24] sm:%s140] %v167
        %v169 = vld [vmem:[%s147 + $0x24] sm:%s140]
        %170 = vst [vmem:[%s148 + $0x28] sm:%s140] %v169
        %v171 = vld [vmem:[%s147 + $0x34] sm:%s140]
        %172 = vst [vmem:[%s148 + $0x2c] sm:%s140] %v171
        %v173 = vld [vmem:[%s147 + $0x28] sm:%s140]
        %174 = vst [vmem:[%s148 + $0x30] sm:%s140] %v173
        %v175 = vld [vmem:[%s147 + $0x38] sm:%s140]
        %176 = vst [vmem:[%s148 + $0x34] sm:%s140] %v175
        %v177 = vld [vmem:[%s147 + $0x2c] sm:%s140]
        %178 = vst [vmem:[%s148 + $0x38] sm:%s140] %v177
        %v179 = vld [vmem:[%s147 + $0x3c] sm:%s140]
        %180 = vst [vmem:[%s148 + $0x3c] sm:%s140] %v179
        %v181 = vld [vmem:[%s147 + $0x40] sm:%s140]
        %182 = vst [vmem:[%s148 + $0x40] sm:%s140] %v181
        %v183 = vld [vmem:[%s147 + $0x50] sm:%s140]
        %184 = vst [vmem:[%s148 + $0x44] sm:%s140] %v183
        %v185 = vld [vmem:[%s147 + $0x44] sm:%s140]
        %186 = vst [vmem:[%s148 + $0x48] sm:%s140] %v185
        %v187 = vld [vmem:[%s147 + $0x54] sm:%s140]
        %188 = vst [vmem:[%s148 + $0x4c] sm:%s140] %v187
        %v189 = vld [vmem:[%s147 + $0x48] sm:%s140]
        %190 = vst [vmem:[%s148 + $0x50] sm:%s140] %v189
        %v191 = vld [vmem:[%s147 + $0x58] sm:%s140]
        %192 = vst [vmem:[%s148 + $0x54] sm:%s140] %v191
        %v193 = vld [vmem:[%s147 + $0x4c] sm:%s140]
        %194 = vst [vmem:[%s148 + $0x58] sm:%s140] %v193
        %v195 = vld [vmem:[%s147 + $0x5c] sm:%s140]
        %196 = vst [vmem:[%s148 + $0x5c] sm:%s140] %v195
        %v197 = vld [vmem:[%s147 + $0x60] sm:%s140]
        %198 = vst [vmem:[%s148 + $0x60] sm:%s140] %v197
        %v199 = vld [vmem:[%s147 + $0x70] sm:%s140]
        %200 = vst [vmem:[%s148 + $0x64] sm:%s140] %v199
        %v201 = vld [vmem:[%s147 + $0x64] sm:%s140]
        %202 = vst [vmem:[%s148 + $0x68] sm:%s140] %v201
        %v203 = vld [vmem:[%s147 + $0x74] sm:%s140]
        %204 = vst [vmem:[%s148 + $0x6c] sm:%s140] %v203
        %v205 = vld [vmem:[%s147 + $0x68] sm:%s140]
        %206 = vst [vmem:[%s148 + $0x70] sm:%s140] %v205
        %v207 = vld [vmem:[%s147 + $0x78] sm:%s140]
        %208 = vst [vmem:[%s148 + $0x74] sm:%s140] %v207
        %v209 = vld [vmem:[%s147 + $0x6c] sm:%s140]
        %210 = vst [vmem:[%s148 + $0x78] sm:%s140] %v209
        %v211 = vld [vmem:[%s147 + $0x7c] sm:%s140]
        %212 = vst [vmem:[%s148 + $0x7c] sm:%s140] %v211
      $region72: #{model_forward.1} parent=59 // loop_footer
        %s146 = sadd.s32 1, %s142
      $region73: #{model_forward.1} parent=59 // loop_footer_branch
        %141 = sbr.rel target = $region69
      $region74: #{model_forward.1} parent=59 // loop_exit
        _
    $region60: #{model_forward.1} parent=44 // pred_fallthru
      _
  $region45: #{model_forward.1} parent=0 // pred_fallthru
    _
  // Predicated region
  $region46: #{model_forward.1} parent=0 // pred_check
    %p46 = pneg %p42
  $region47: #{model_forward.1} parent=0 // pred_check_branch
    %48 = sbr.rel (%p46) target = $region49
  $region48: #{model_forward.1} parent=0 // pred_region
    %s49 = sshllo.u32 0, 4
    loop: start=0, step=1, limit=1
    $region50: #{model_forward.1} parent=48 // loop_pre_header
      _
    $region51: #{model_forward.1} parent=48 // loop_header
      %s51 = sphi 0, %s55
      %p52 = scmp.ge.s32.totalorder %s51, 1
      %s56 = sphi %s6, %s6
      %s57 = sphi [#allocation3], [#allocation3]
    $region52: #{model_forward.1} parent=48 // loop_header_branch
      %54 = sbr.rel (%p52) target = $region56
    $region53: #{model_forward.1} parent=48 // loop_body
      %v58 = vld [vmem:[%s56] sm:%s49]
      %59 = vst [vmem:[%s57] sm:%s49] %v58
      %v60 = vld [vmem:[%s56 + $0x10] sm:%s49]
      %61 = vst [vmem:[%s57 + $0x4] sm:%s49] %v60
      %v62 = vld [vmem:[%s56 + $0x4] sm:%s49]
      %63 = vst [vmem:[%s57 + $0x8] sm:%s49] %v62
      %v64 = vld [vmem:[%s56 + $0x14] sm:%s49]
      %65 = vst [vmem:[%s57 + $0xc] sm:%s49] %v64
      %v66 = vld [vmem:[%s56 + $0x8] sm:%s49]
      %67 = vst [vmem:[%s57 + $0x10] sm:%s49] %v66
      %v68 = vld [vmem:[%s56 + $0x18] sm:%s49]
      %69 = vst [vmem:[%s57 + $0x14] sm:%s49] %v68
      %v70 = vld [vmem:[%s56 + $0xc] sm:%s49]
      %71 = vst [vmem:[%s57 + $0x18] sm:%s49] %v70
      %v72 = vld [vmem:[%s56 + $0x1c] sm:%s49]
      %73 = vst [vmem:[%s57 + $0x1c] sm:%s49] %v72
      %v74 = vld [vmem:[%s56 + $0x20] sm:%s49]
      %75 = vst [vmem:[%s57 + $0x20] sm:%s49] %v74
      %v76 = vld [vmem:[%s56 + $0x30] sm:%s49]
      %77 = vst [vmem:[%s57 + $0x24] sm:%s49] %v76
      %v78 = vld [vmem:[%s56 + $0x24] sm:%s49]
      %79 = vst [vmem:[%s57 + $0x28] sm:%s49] %v78
      %v80 = vld [vmem:[%s56 + $0x34] sm:%s49]
      %81 = vst [vmem:[%s57 + $0x2c] sm:%s49] %v80
      %v82 = vld [vmem:[%s56 + $0x28] sm:%s49]
      %83 = vst [vmem:[%s57 + $0x30] sm:%s49] %v82
      %v84 = vld [vmem:[%s56 + $0x38] sm:%s49]
      %85 = vst [vmem:[%s57 + $0x34] sm:%s49] %v84
      %v86 = vld [vmem:[%s56 + $0x2c] sm:%s49]
      %87 = vst [vmem:[%s57 + $0x38] sm:%s49] %v86
      %v88 = vld [vmem:[%s56 + $0x3c] sm:%s49]
      %89 = vst [vmem:[%s57 + $0x3c] sm:%s49] %v88
      %v90 = vld [vmem:[%s56 + $0x40] sm:%s49]
      %91 = vst [vmem:[%s57 + $0x40] sm:%s49] %v90
      %v92 = vld [vmem:[%s56 + $0x50] sm:%s49]
      %93 = vst [vmem:[%s57 + $0x44] sm:%s49] %v92
      %v94 = vld [vmem:[%s56 + $0x44] sm:%s49]
      %95 = vst [vmem:[%s57 + $0x48] sm:%s49] %v94
      %v96 = vld [vmem:[%s56 + $0x54] sm:%s49]
      %97 = vst [vmem:[%s57 + $0x4c] sm:%s49] %v96
      %v98 = vld [vmem:[%s56 + $0x48] sm:%s49]
      %99 = vst [vmem:[%s57 + $0x50] sm:%s49] %v98
      %v100 = vld [vmem:[%s56 + $0x58] sm:%s49]
      %101 = vst [vmem:[%s57 + $0x54] sm:%s49] %v100
      %v102 = vld [vmem:[%s56 + $0x4c] sm:%s49]
      %103 = vst [vmem:[%s57 + $0x58] sm:%s49] %v102
      %v104 = vld [vmem:[%s56 + $0x5c] sm:%s49]
      %105 = vst [vmem:[%s57 + $0x5c] sm:%s49] %v104
      %v106 = vld [vmem:[%s56 + $0x60] sm:%s49]
      %107 = vst [vmem:[%s57 + $0x60] sm:%s49] %v106
      %v108 = vld [vmem:[%s56 + $0x70] sm:%s49]
      %109 = vst [vmem:[%s57 + $0x64] sm:%s49] %v108
      %v110 = vld [vmem:[%s56 + $0x64] sm:%s49]
      %111 = vst [vmem:[%s57 + $0x68] sm:%s49] %v110
      %v112 = vld [vmem:[%s56 + $0x74] sm:%s49]
      %113 = vst [vmem:[%s57 + $0x6c] sm:%s49] %v112
      %v114 = vld [vmem:[%s56 + $0x68] sm:%s49]
      %115 = vst [vmem:[%s57 + $0x70] sm:%s49] %v114
      %v116 = vld [vmem:[%s56 + $0x78] sm:%s49]
      %117 = vst [vmem:[%s57 + $0x74] sm:%s49] %v116
      %v118 = vld [vmem:[%s56 + $0x6c] sm:%s49]
      %119 = vst [vmem:[%s57 + $0x78] sm:%s49] %v118
      %v120 = vld [vmem:[%s56 + $0x7c] sm:%s49]
      %121 = vst [vmem:[%s57 + $0x7c] sm:%s49] %v120
    $region54: #{model_forward.1} parent=48 // loop_footer
      %s55 = sadd.s32 1, %s51
    $region55: #{model_forward.1} parent=48 // loop_footer_branch
      %50 = sbr.rel target = $region51
    $region56: #{model_forward.1} parent=48 // loop_exit
      _
  $region49: #{model_forward.1} parent=0 // pred_fallthru
    _
  // Predicated region
  $region75: #{model_forward.1} parent=0 // pred_check
    _
  $region76: #{model_forward.1} parent=0 // pred_check_branch
    %215 = sbr.rel (0) target = $region78
  $region77: #{model_forward.1} parent=0 // pred_region
    %216 = vsyncadd [#allocation5], 2048
  $region78: #{model_forward.1} parent=0 // pred_fallthru
    _
  %s217 = scalar_lea.vmem [#allocation3], 128
  %s218 = scalar_lea.sflag [#allocation5], 1
  %p220 = scmp.lt.u32.totalorder 4, 8
  %p221 = pneg %p220
  // Predicated region
  $region79: #{model_forward.1} parent=0 // pred_check
    _
  $region80: #{model_forward.1} parent=0 // pred_check_branch
    %223 = sbr.rel (%p220) target = $region82
  $region81: #{model_forward.1} parent=0 // pred_region
    %s300 = sand.u32 4, 7
    %p301 = scmp.eq.s32.totalorder %s300, 0
    %p302 = pneg %p301
    // Predicated region
    $region94: #{model_forward.1} parent=81 // pred_check
      _
    $region95: #{model_forward.1} parent=81 // pred_check_branch
      %304 = sbr.rel (%p301) target = $region97
    $region96: #{model_forward.1} parent=81 // pred_region
      %s305 = sand.u32 4, 7
      %s306 = ssub.s32 4, %s305
      %s307 = scalar_lea.vmem %s7, %s306
      %s308 = ssub.s32 4, %s305
      %s309 = scalar_lea.vmem %s217, %s308 [#allocation3]
      loop: start=0, step=1, limit=1
      $region98: #{model_forward.1} parent=96 // loop_pre_header
        _
      $region99: #{model_forward.1} parent=96 // loop_header
        %s311 = sphi 0, %s315
        %p312 = scmp.ge.s32.totalorder %s311, 1
        %s316 = sphi %s7, %s7
        %s317 = sphi %s217, %s217
      $region100: #{model_forward.1} parent=96 // loop_header_branch
        %314 = sbr.rel (%p312) target = $region104
      $region101: #{model_forward.1} parent=96 // loop_body
        _
      $region102: #{model_forward.1} parent=96 // loop_footer
        %s315 = sadd.s32 1, %s311
      $region103: #{model_forward.1} parent=96 // loop_footer_branch
        %310 = sbr.rel target = $region99
      $region104: #{model_forward.1} parent=96 // loop_exit
        _
      %s318 = sshllo.u32 0, %s305
      loop: start=0, step=1, limit=1
      $region105: #{model_forward.1} parent=96 // loop_pre_header
        _
      $region106: #{model_forward.1} parent=96 // loop_header
        %s320 = sphi 0, %s324
        %p321 = scmp.ge.s32.totalorder %s320, 1
        %s325 = sphi %s307, %s307
        %s326 = sphi %s309, %s309
      $region107: #{model_forward.1} parent=96 // loop_header_branch
        %323 = sbr.rel (%p321) target = $region111
      $region108: #{model_forward.1} parent=96 // loop_body
        %v327 = vld [vmem:[%s325] sm:%s318]
        %328 = vst [vmem:[%s326] sm:%s318] %v327
        %v329 = vld [vmem:[%s325 + $0x10] sm:%s318]
        %330 = vst [vmem:[%s326 + $0x4] sm:%s318] %v329
        %v331 = vld [vmem:[%s325 + $0x4] sm:%s318]
        %332 = vst [vmem:[%s326 + $0x8] sm:%s318] %v331
        %v333 = vld [vmem:[%s325 + $0x14] sm:%s318]
        %334 = vst [vmem:[%s326 + $0xc] sm:%s318] %v333
        %v335 = vld [vmem:[%s325 + $0x8] sm:%s318]
        %336 = vst [vmem:[%s326 + $0x10] sm:%s318] %v335
        %v337 = vld [vmem:[%s325 + $0x18] sm:%s318]
        %338 = vst [vmem:[%s326 + $0x14] sm:%s318] %v337
        %v339 = vld [vmem:[%s325 + $0xc] sm:%s318]
        %340 = vst [vmem:[%s326 + $0x18] sm:%s318] %v339
        %v341 = vld [vmem:[%s325 + $0x1c] sm:%s318]
        %342 = vst [vmem:[%s326 + $0x1c] sm:%s318] %v341
        %v343 = vld [vmem:[%s325 + $0x20] sm:%s318]
        %344 = vst [vmem:[%s326 + $0x20] sm:%s318] %v343
        %v345 = vld [vmem:[%s325 + $0x30] sm:%s318]
        %346 = vst [vmem:[%s326 + $0x24] sm:%s318] %v345
        %v347 = vld [vmem:[%s325 + $0x24] sm:%s318]
        %348 = vst [vmem:[%s326 + $0x28] sm:%s318] %v347
        %v349 = vld [vmem:[%s325 + $0x34] sm:%s318]
        %350 = vst [vmem:[%s326 + $0x2c] sm:%s318] %v349
        %v351 = vld [vmem:[%s325 + $0x28] sm:%s318]
        %352 = vst [vmem:[%s326 + $0x30] sm:%s318] %v351
        %v353 = vld [vmem:[%s325 + $0x38] sm:%s318]
        %354 = vst [vmem:[%s326 + $0x34] sm:%s318] %v353
        %v355 = vld [vmem:[%s325 + $0x2c] sm:%s318]
        %356 = vst [vmem:[%s326 + $0x38] sm:%s318] %v355
        %v357 = vld [vmem:[%s325 + $0x3c] sm:%s318]
        %358 = vst [vmem:[%s326 + $0x3c] sm:%s318] %v357
        %v359 = vld [vmem:[%s325 + $0x40] sm:%s318]
        %360 = vst [vmem:[%s326 + $0x40] sm:%s318] %v359
        %v361 = vld [vmem:[%s325 + $0x50] sm:%s318]
        %362 = vst [vmem:[%s326 + $0x44] sm:%s318] %v361
        %v363 = vld [vmem:[%s325 + $0x44] sm:%s318]
        %364 = vst [vmem:[%s326 + $0x48] sm:%s318] %v363
        %v365 = vld [vmem:[%s325 + $0x54] sm:%s318]
        %366 = vst [vmem:[%s326 + $0x4c] sm:%s318] %v365
        %v367 = vld [vmem:[%s325 + $0x48] sm:%s318]
        %368 = vst [vmem:[%s326 + $0x50] sm:%s318] %v367
        %v369 = vld [vmem:[%s325 + $0x58] sm:%s318]
        %370 = vst [vmem:[%s326 + $0x54] sm:%s318] %v369
        %v371 = vld [vmem:[%s325 + $0x4c] sm:%s318]
        %372 = vst [vmem:[%s326 + $0x58] sm:%s318] %v371
        %v373 = vld [vmem:[%s325 + $0x5c] sm:%s318]
        %374 = vst [vmem:[%s326 + $0x5c] sm:%s318] %v373
        %v375 = vld [vmem:[%s325 + $0x60] sm:%s318]
        %376 = vst [vmem:[%s326 + $0x60] sm:%s318] %v375
        %v377 = vld [vmem:[%s325 + $0x70] sm:%s318]
        %378 = vst [vmem:[%s326 + $0x64] sm:%s318] %v377
        %v379 = vld [vmem:[%s325 + $0x64] sm:%s318]
        %380 = vst [vmem:[%s326 + $0x68] sm:%s318] %v379
        %v381 = vld [vmem:[%s325 + $0x74] sm:%s318]
        %382 = vst [vmem:[%s326 + $0x6c] sm:%s318] %v381
        %v383 = vld [vmem:[%s325 + $0x68] sm:%s318]
        %384 = vst [vmem:[%s326 + $0x70] sm:%s318] %v383
        %v385 = vld [vmem:[%s325 + $0x78] sm:%s318]
        %386 = vst [vmem:[%s326 + $0x74] sm:%s318] %v385
        %v387 = vld [vmem:[%s325 + $0x6c] sm:%s318]
        %388 = vst [vmem:[%s326 + $0x78] sm:%s318] %v387
        %v389 = vld [vmem:[%s325 + $0x7c] sm:%s318]
        %390 = vst [vmem:[%s326 + $0x7c] sm:%s318] %v389
      $region109: #{model_forward.1} parent=96 // loop_footer
        %s324 = sadd.s32 1, %s320
      $region110: #{model_forward.1} parent=96 // loop_footer_branch
        %319 = sbr.rel target = $region106
      $region111: #{model_forward.1} parent=96 // loop_exit
        _
    $region97: #{model_forward.1} parent=81 // pred_fallthru
      _
  $region82: #{model_forward.1} parent=0 // pred_fallthru
    _
  // Predicated region
  $region83: #{model_forward.1} parent=0 // pred_check
    %p224 = pneg %p220
  $region84: #{model_forward.1} parent=0 // pred_check_branch
    %226 = sbr.rel (%p224) target = $region86
  $region85: #{model_forward.1} parent=0 // pred_region
    %s227 = sshllo.u32 0, 4
    loop: start=0, step=1, limit=1
    $region87: #{model_forward.1} parent=85 // loop_pre_header
      _
    $region88: #{model_forward.1} parent=85 // loop_header
      %s229 = sphi 0, %s233
      %p230 = scmp.ge.s32.totalorder %s229, 1
      %s234 = sphi %s7, %s7
      %s235 = sphi %s217, %s217
    $region89: #{model_forward.1} parent=85 // loop_header_branch
      %232 = sbr.rel (%p230) target = $region93
    $region90: #{model_forward.1} parent=85 // loop_body
      %v236 = vld [vmem:[%s234] sm:%s227]
      %237 = vst [vmem:[%s235] sm:%s227] %v236
      %v238 = vld [vmem:[%s234 + $0x10] sm:%s227]
      %239 = vst [vmem:[%s235 + $0x4] sm:%s227] %v238
      %v240 = vld [vmem:[%s234 + $0x4] sm:%s227]
      %241 = vst [vmem:[%s235 + $0x8] sm:%s227] %v240
      %v242 = vld [vmem:[%s234 + $0x14] sm:%s227]
      %243 = vst [vmem:[%s235 + $0xc] sm:%s227] %v242
      %v244 = vld [vmem:[%s234 + $0x8] sm:%s227]
      %245 = vst [vmem:[%s235 + $0x10] sm:%s227] %v244
      %v246 = vld [vmem:[%s234 + $0x18] sm:%s227]
      %247 = vst [vmem:[%s235 + $0x14] sm:%s227] %v246
      %v248 = vld [vmem:[%s234 + $0xc] sm:%s227]
      %249 = vst [vmem:[%s235 + $0x18] sm:%s227] %v248
      %v250 = vld [vmem:[%s234 + $0x1c] sm:%s227]
      %251 = vst [vmem:[%s235 + $0x1c] sm:%s227] %v250
      %v252 = vld [vmem:[%s234 + $0x20] sm:%s227]
      %253 = vst [vmem:[%s235 + $0x20] sm:%s227] %v252
      %v254 = vld [vmem:[%s234 + $0x30] sm:%s227]
      %255 = vst [vmem:[%s235 + $0x24] sm:%s227] %v254
      %v256 = vld [vmem:[%s234 + $0x24] sm:%s227]
      %257 = vst [vmem:[%s235 + $0x28] sm:%s227] %v256
      %v258 = vld [vmem:[%s234 + $0x34] sm:%s227]
      %259 = vst [vmem:[%s235 + $0x2c] sm:%s227] %v258
      %v260 = vld [vmem:[%s234 + $0x28] sm:%s227]
      %261 = vst [vmem:[%s235 + $0x30] sm:%s227] %v260
      %v262 = vld [vmem:[%s234 + $0x38] sm:%s227]
      %263 = vst [vmem:[%s235 + $0x34] sm:%s227] %v262
      %v264 = vld [vmem:[%s234 + $0x2c] sm:%s227]
      %265 = vst [vmem:[%s235 + $0x38] sm:%s227] %v264
      %v266 = vld [vmem:[%s234 + $0x3c] sm:%s227]
      %267 = vst [vmem:[%s235 + $0x3c] sm:%s227] %v266
      %v268 = vld [vmem:[%s234 + $0x40] sm:%s227]
      %269 = vst [vmem:[%s235 + $0x40] sm:%s227] %v268
      %v270 = vld [vmem:[%s234 + $0x50] sm:%s227]
      %271 = vst [vmem:[%s235 + $0x44] sm:%s227] %v270
      %v272 = vld [vmem:[%s234 + $0x44] sm:%s227]
      %273 = vst [vmem:[%s235 + $0x48] sm:%s227] %v272
      %v274 = vld [vmem:[%s234 + $0x54] sm:%s227]
      %275 = vst [vmem:[%s235 + $0x4c] sm:%s227] %v274
      %v276 = vld [vmem:[%s234 + $0x48] sm:%s227]
      %277 = vst [vmem:[%s235 + $0x50] sm:%s227] %v276
      %v278 = vld [vmem:[%s234 + $0x58] sm:%s227]
      %279 = vst [vmem:[%s235 + $0x54] sm:%s227] %v278
      %v280 = vld [vmem:[%s234 + $0x4c] sm:%s227]
      %281 = vst [vmem:[%s235 + $0x58] sm:%s227] %v280
      %v282 = vld [vmem:[%s234 + $0x5c] sm:%s227]
      %283 = vst [vmem:[%s235 + $0x5c] sm:%s227] %v282
      %v284 = vld [vmem:[%s234 + $0x60] sm:%s227]
      %285 = vst [vmem:[%s235 + $0x60] sm:%s227] %v284
      %v286 = vld [vmem:[%s234 + $0x70] sm:%s227]
      %287 = vst [vmem:[%s235 + $0x64] sm:%s227] %v286
      %v288 = vld [vmem:[%s234 + $0x64] sm:%s227]
      %289 = vst [vmem:[%s235 + $0x68] sm:%s227] %v288
      %v290 = vld [vmem:[%s234 + $0x74] sm:%s227]
      %291 = vst [vmem:[%s235 + $0x6c] sm:%s227] %v290
      %v292 = vld [vmem:[%s234 + $0x68] sm:%s227]
      %293 = vst [vmem:[%s235 + $0x70] sm:%s227] %v292
      %v294 = vld [vmem:[%s234 + $0x78] sm:%s227]
      %295 = vst [vmem:[%s235 + $0x74] sm:%s227] %v294
      %v296 = vld [vmem:[%s234 + $0x6c] sm:%s227]
      %297 = vst [vmem:[%s235 + $0x78] sm:%s227] %v296
      %v298 = vld [vmem:[%s234 + $0x7c] sm:%s227]
      %299 = vst [vmem:[%s235 + $0x7c] sm:%s227] %v298
    $region91: #{model_forward.1} parent=85 // loop_footer
      %s233 = sadd.s32 1, %s229
    $region92: #{model_forward.1} parent=85 // loop_footer_branch
      %228 = sbr.rel target = $region88
    $region93: #{model_forward.1} parent=85 // loop_exit
      _
  $region86: #{model_forward.1} parent=0 // pred_fallthru
    _
  // Predicated region
  $region112: #{model_forward.1} parent=0 // pred_check
    _
  $region113: #{model_forward.1} parent=0 // pred_check_branch
    %393 = sbr.rel (0) target = $region115
  $region114: #{model_forward.1} parent=0 // pred_region
    %394 = vsyncadd %s218, 2048
  $region115: #{model_forward.1} parent=0 // pred_fallthru
    _
  %s395 = scalar_lea.sflag [#allocation5], 2
  %p397 = scmp.lt.u32.totalorder 4, 8
  %p398 = pneg %p397
  // Predicated region
  $region116: #{model_forward.1} parent=0 // pred_check
    _
  $region117: #{model_forward.1} parent=0 // pred_check_branch
    %400 = sbr.rel (%p397) target = $region119
  $region118: #{model_forward.1} parent=0 // pred_region
    %s925 = sand.u32 4, 7
    %p926 = scmp.eq.s32.totalorder %s925, 0
    %p927 = pneg %p926
    // Predicated region
    $region131: #{model_forward.1} parent=118 // pred_check
      _
    $region132: #{model_forward.1} parent=118 // pred_check_branch
      %929 = sbr.rel (%p926) target = $region134
    $region133: #{model_forward.1} parent=118 // pred_region
      %s930 = sand.u32 4, 7
      %s931 = ssub.s32 4, %s930
      %s932 = scalar_lea.vmem %s9, %s931
      %s933 = ssub.s32 4, %s930
      %s934 = scalar_lea.vmem [#allocation4], %s933
      loop: start=0, step=1, limit=1
      $region135: #{model_forward.1} parent=133 // loop_pre_header
        _
      $region136: #{model_forward.1} parent=133 // loop_header
        %s936 = sphi 0, %s940
        %p937 = scmp.ge.s32.totalorder %s936, 1
        %s941 = sphi %s9, %s9
        %s942 = sphi [#allocation4], [#allocation4]
      $region137: #{model_forward.1} parent=133 // loop_header_branch
        %939 = sbr.rel (%p937) target = $region141
      $region138: #{model_forward.1} parent=133 // loop_body
        _
      $region139: #{model_forward.1} parent=133 // loop_footer
        %s940 = sadd.s32 1, %s936
      $region140: #{model_forward.1} parent=133 // loop_footer_branch
        %935 = sbr.rel target = $region136
      $region141: #{model_forward.1} parent=133 // loop_exit
        _
      %s943 = sshllo.u32 0, %s930
      loop: start=0, step=1, limit=1
      $region142: #{model_forward.1} parent=133 // loop_pre_header
        _
      $region143: #{model_forward.1} parent=133 // loop_header
        %s945 = sphi 0, %s949
        %p946 = scmp.ge.s32.totalorder %s945, 1
        %s950 = sphi %s932, %s932
        %s951 = sphi %s934, %s934
      $region144: #{model_forward.1} parent=133 // loop_header_branch
        %948 = sbr.rel (%p946) target = $region148
      $region145: #{model_forward.1} parent=133 // loop_body
        %v952 = vld [vmem:[%s950] sm:%s943]
        %953 = vst [vmem:[%s951] sm:%s943] %v952
        %v954 = vld [vmem:[%s950 + $0x10] sm:%s943]
        %955 = vst [vmem:[%s951 + $0x4] sm:%s943] %v954
        %v956 = vld [vmem:[%s950 + $0x4] sm:%s943]
        %957 = vst [vmem:[%s951 + $0x8] sm:%s943] %v956
        %v958 = vld [vmem:[%s950 + $0x14] sm:%s943]
        %959 = vst [vmem:[%s951 + $0xc] sm:%s943] %v958
        %v960 = vld [vmem:[%s950 + $0x8] sm:%s943]
        %961 = vst [vmem:[%s951 + $0x10] sm:%s943] %v960
        %v962 = vld [vmem:[%s950 + $0x18] sm:%s943]
        %963 = vst [vmem:[%s951 + $0x14] sm:%s943] %v962
        %v964 = vld [vmem:[%s950 + $0xc] sm:%s943]
        %965 = vst [vmem:[%s951 + $0x18] sm:%s943] %v964
        %v966 = vld [vmem:[%s950 + $0x1c] sm:%s943]
        %967 = vst [vmem:[%s951 + $0x1c] sm:%s943] %v966
        %v968 = vld [vmem:[%s950 + $0x20] sm:%s943]
        %969 = vst [vmem:[%s951 + $0x20] sm:%s943] %v968
        %v970 = vld [vmem:[%s950 + $0x30] sm:%s943]
        %971 = vst [vmem:[%s951 + $0x24] sm:%s943] %v970
        %v972 = vld [vmem:[%s950 + $0x24] sm:%s943]
        %973 = vst [vmem:[%s951 + $0x28] sm:%s943] %v972
        %v974 = vld [vmem:[%s950 + $0x34] sm:%s943]
        %975 = vst [vmem:[%s951 + $0x2c] sm:%s943] %v974
        %v976 = vld [vmem:[%s950 + $0x28] sm:%s943]
        %977 = vst [vmem:[%s951 + $0x30] sm:%s943] %v976
        %v978 = vld [vmem:[%s950 + $0x38] sm:%s943]
        %979 = vst [vmem:[%s951 + $0x34] sm:%s943] %v978
        %v980 = vld [vmem:[%s950 + $0x2c] sm:%s943]
        %981 = vst [vmem:[%s951 + $0x38] sm:%s943] %v980
        %v982 = vld [vmem:[%s950 + $0x3c] sm:%s943]
        %983 = vst [vmem:[%s951 + $0x3c] sm:%s943] %v982
        %v984 = vld [vmem:[%s950 + $0x40] sm:%s943]
        %985 = vst [vmem:[%s951 + $0x40] sm:%s943] %v984
        %v986 = vld [vmem:[%s950 + $0x50] sm:%s943]
        %987 = vst [vmem:[%s951 + $0x44] sm:%s943] %v986
        %v988 = vld [vmem:[%s950 + $0x44] sm:%s943]
        %989 = vst [vmem:[%s951 + $0x48] sm:%s943] %v988
        %v990 = vld [vmem:[%s950 + $0x54] sm:%s943]
        %991 = vst [vmem:[%s951 + $0x4c] sm:%s943] %v990
        %v992 = vld [vmem:[%s950 + $0x48] sm:%s943]
        %993 = vst [vmem:[%s951 + $0x50] sm:%s943] %v992
        %v994 = vld [vmem:[%s950 + $0x58] sm:%s943]
        %995 = vst [vmem:[%s951 + $0x54] sm:%s943] %v994
        %v996 = vld [vmem:[%s950 + $0x4c] sm:%s943]
        %997 = vst [vmem:[%s951 + $0x58] sm:%s943] %v996
        %v998 = vld [vmem:[%s950 + $0x5c] sm:%s943]
        %999 = vst [vmem:[%s951 + $0x5c] sm:%s943] %v998
        %v1000 = vld [vmem:[%s950 + $0x60] sm:%s943]
        %1001 = vst [vmem:[%s951 + $0x60] sm:%s943] %v1000
        %v1002 = vld [vmem:[%s950 + $0x70] sm:%s943]
        %1003 = vst [vmem:[%s951 + $0x64] sm:%s943] %v1002
        %v1004 = vld [vmem:[%s950 + $0x64] sm:%s943]
        %1005 = vst [vmem:[%s951 + $0x68] sm:%s943] %v1004
        %v1006 = vld [vmem:[%s950 + $0x74] sm:%s943]
        %1007 = vst [vmem:[%s951 + $0x6c] sm:%s943] %v1006
        %v1008 = vld [vmem:[%s950 + $0x68] sm:%s943]
        %1009 = vst [vmem:[%s951 + $0x70] sm:%s943] %v1008
        %v1010 = vld [vmem:[%s950 + $0x78] sm:%s943]
        %1011 = vst [vmem:[%s951 + $0x74] sm:%s943] %v1010
        %v1012 = vld [vmem:[%s950 + $0x6c] sm:%s943]
        %1013 = vst [vmem:[%s951 + $0x78] sm:%s943] %v1012
        %v1014 = vld [vmem:[%s950 + $0x7c] sm:%s943]
        %1015 = vst [vmem:[%s951 + $0x7c] sm:%s943] %v1014
        %v1016 = vld [vmem:[%s950 + $0x80] sm:%s943]
        %1017 = vst [vmem:[%s951 + $0x80] sm:%s943] %v1016
        %v1018 = vld [vmem:[%s950 + $0x90] sm:%s943]
        %1019 = vst [vmem:[%s951 + $0x84] sm:%s943] %v1018
        %v1020 = vld [vmem:[%s950 + $0x84] sm:%s943]
        %1021 = vst [vmem:[%s951 + $0x88] sm:%s943] %v1020
        %v1022 = vld [vmem:[%s950 + $0x94] sm:%s943]
        %1023 = vst [vmem:[%s951 + $0x8c] sm:%s943] %v1022
        %v1024 = vld [vmem:[%s950 + $0x88] sm:%s943]
        %1025 = vst [vmem:[%s951 + $0x90] sm:%s943] %v1024
        %v1026 = vld [vmem:[%s950 + $0x98] sm:%s943]
        %1027 = vst [vmem:[%s951 + $0x94] sm:%s943] %v1026
        %v1028 = vld [vmem:[%s950 + $0x8c] sm:%s943]
        %1029 = vst [vmem:[%s951 + $0x98] sm:%s943] %v1028
        %v1030 = vld [vmem:[%s950 + $0x9c] sm:%s943]
        %1031 = vst [vmem:[%s951 + $0x9c] sm:%s943] %v1030
        %v1032 = vld [vmem:[%s950 + $0xa0] sm:%s943]
        %1033 = vst [vmem:[%s951 + $0xa0] sm:%s943] %v1032
        %v1034 = vld [vmem:[%s950 + $0xb0] sm:%s943]
        %1035 = vst [vmem:[%s951 + $0xa4] sm:%s943] %v1034
        %v1036 = vld [vmem:[%s950 + $0xa4] sm:%s943]
        %1037 = vst [vmem:[%s951 + $0xa8] sm:%s943] %v1036
        %v1038 = vld [vmem:[%s950 + $0xb4] sm:%s943]
        %1039 = vst [vmem:[%s951 + $0xac] sm:%s943] %v1038
        %v1040 = vld [vmem:[%s950 + $0xa8] sm:%s943]
        %1041 = vst [vmem:[%s951 + $0xb0] sm:%s943] %v1040
        %v1042 = vld [vmem:[%s950 + $0xb8] sm:%s943]
        %1043 = vst [vmem:[%s951 + $0xb4] sm:%s943] %v1042
        %v1044 = vld [vmem:[%s950 + $0xac] sm:%s943]
        %1045 = vst [vmem:[%s951 + $0xb8] sm:%s943] %v1044
        %v1046 = vld [vmem:[%s950 + $0xbc] sm:%s943]
        %1047 = vst [vmem:[%s951 + $0xbc] sm:%s943] %v1046
        %v1048 = vld [vmem:[%s950 + $0xc0] sm:%s943]
        %1049 = vst [vmem:[%s951 + $0xc0] sm:%s943] %v1048
        %v1050 = vld [vmem:[%s950 + $0xd0] sm:%s943]
        %1051 = vst [vmem:[%s951 + $0xc4] sm:%s943] %v1050
        %v1052 = vld [vmem:[%s950 + $0xc4] sm:%s943]
        %1053 = vst [vmem:[%s951 + $0xc8] sm:%s943] %v1052
        %v1054 = vld [vmem:[%s950 + $0xd4] sm:%s943]
        %1055 = vst [vmem:[%s951 + $0xcc] sm:%s943] %v1054
        %v1056 = vld [vmem:[%s950 + $0xc8] sm:%s943]
        %1057 = vst [vmem:[%s951 + $0xd0] sm:%s943] %v1056
        %v1058 = vld [vmem:[%s950 + $0xd8] sm:%s943]
        %1059 = vst [vmem:[%s951 + $0xd4] sm:%s943] %v1058
        %v1060 = vld [vmem:[%s950 + $0xcc] sm:%s943]
        %1061 = vst [vmem:[%s951 + $0xd8] sm:%s943] %v1060
        %v1062 = vld [vmem:[%s950 + $0xdc] sm:%s943]
        %1063 = vst [vmem:[%s951 + $0xdc] sm:%s943] %v1062
        %v1064 = vld [vmem:[%s950 + $0xe0] sm:%s943]
        %1065 = vst [vmem:[%s951 + $0xe0] sm:%s943] %v1064
        %v1066 = vld [vmem:[%s950 + $0xf0] sm:%s943]
        %1067 = vst [vmem:[%s951 + $0xe4] sm:%s943] %v1066
        %v1068 = vld [vmem:[%s950 + $0xe4] sm:%s943]
        %1069 = vst [vmem:[%s951 + $0xe8] sm:%s943] %v1068
        %v1070 = vld [vmem:[%s950 + $0xf4] sm:%s943]
        %1071 = vst [vmem:[%s951 + $0xec] sm:%s943] %v1070
        %v1072 = vld [vmem:[%s950 + $0xe8] sm:%s943]
        %1073 = vst [vmem:[%s951 + $0xf0] sm:%s943] %v1072
        %v1074 = vld [vmem:[%s950 + $0xf8] sm:%s943]
        %1075 = vst [vmem:[%s951 + $0xf4] sm:%s943] %v1074
        %v1076 = vld [vmem:[%s950 + $0xec] sm:%s943]
        %1077 = vst [vmem:[%s951 + $0xf8] sm:%s943] %v1076
        %v1078 = vld [vmem:[%s950 + $0xfc] sm:%s943]
        %1079 = vst [vmem:[%s951 + $0xfc] sm:%s943] %v1078
        %v1080 = vld [vmem:[%s950 + $0x100] sm:%s943]
        %1081 = vst [vmem:[%s951 + $0x100] sm:%s943] %v1080
        %v1082 = vld [vmem:[%s950 + $0x110] sm:%s943]
        %1083 = vst [vmem:[%s951 + $0x104] sm:%s943] %v1082
        %v1084 = vld [vmem:[%s950 + $0x104] sm:%s943]
        %1085 = vst [vmem:[%s951 + $0x108] sm:%s943] %v1084
        %v1086 = vld [vmem:[%s950 + $0x114] sm:%s943]
        %1087 = vst [vmem:[%s951 + $0x10c] sm:%s943] %v1086
        %v1088 = vld [vmem:[%s950 + $0x108] sm:%s943]
        %1089 = vst [vmem:[%s951 + $0x110] sm:%s943] %v1088
        %v1090 = vld [vmem:[%s950 + $0x118] sm:%s943]
        %1091 = vst [vmem:[%s951 + $0x114] sm:%s943] %v1090
        %v1092 = vld [vmem:[%s950 + $0x10c] sm:%s943]
        %1093 = vst [vmem:[%s951 + $0x118] sm:%s943] %v1092
        %v1094 = vld [vmem:[%s950 + $0x11c] sm:%s943]
        %1095 = vst [vmem:[%s951 + $0x11c] sm:%s943] %v1094
        %v1096 = vld [vmem:[%s950 + $0x120] sm:%s943]
        %1097 = vst [vmem:[%s951 + $0x120] sm:%s943] %v1096
        %v1098 = vld [vmem:[%s950 + $0x130] sm:%s943]
        %1099 = vst [vmem:[%s951 + $0x124] sm:%s943] %v1098
        %v1100 = vld [vmem:[%s950 + $0x124] sm:%s943]
        %1101 = vst [vmem:[%s951 + $0x128] sm:%s943] %v1100
        %v1102 = vld [vmem:[%s950 + $0x134] sm:%s943]
        %1103 = vst [vmem:[%s951 + $0x12c] sm:%s943] %v1102
        %v1104 = vld [vmem:[%s950 + $0x128] sm:%s943]
        %1105 = vst [vmem:[%s951 + $0x130] sm:%s943] %v1104
        %v1106 = vld [vmem:[%s950 + $0x138] sm:%s943]
        %1107 = vst [vmem:[%s951 + $0x134] sm:%s943] %v1106
        %v1108 = vld [vmem:[%s950 + $0x12c] sm:%s943]
        %1109 = vst [vmem:[%s951 + $0x138] sm:%s943] %v1108
        %v1110 = vld [vmem:[%s950 + $0x13c] sm:%s943]
        %1111 = vst [vmem:[%s951 + $0x13c] sm:%s943] %v1110
        %v1112 = vld [vmem:[%s950 + $0x140] sm:%s943]
        %1113 = vst [vmem:[%s951 + $0x140] sm:%s943] %v1112
        %v1114 = vld [vmem:[%s950 + $0x150] sm:%s943]
        %1115 = vst [vmem:[%s951 + $0x144] sm:%s943] %v1114
        %v1116 = vld [vmem:[%s950 + $0x144] sm:%s943]
        %1117 = vst [vmem:[%s951 + $0x148] sm:%s943] %v1116
        %v1118 = vld [vmem:[%s950 + $0x154] sm:%s943]
        %1119 = vst [vmem:[%s951 + $0x14c] sm:%s943] %v1118
        %v1120 = vld [vmem:[%s950 + $0x148] sm:%s943]
        %1121 = vst [vmem:[%s951 + $0x150] sm:%s943] %v1120
        %v1122 = vld [vmem:[%s950 + $0x158] sm:%s943]
        %1123 = vst [vmem:[%s951 + $0x154] sm:%s943] %v1122
        %v1124 = vld [vmem:[%s950 + $0x14c] sm:%s943]
        %1125 = vst [vmem:[%s951 + $0x158] sm:%s943] %v1124
        %v1126 = vld [vmem:[%s950 + $0x15c] sm:%s943]
        %1127 = vst [vmem:[%s951 + $0x15c] sm:%s943] %v1126
        %v1128 = vld [vmem:[%s950 + $0x160] sm:%s943]
        %1129 = vst [vmem:[%s951 + $0x160] sm:%s943] %v1128
        %v1130 = vld [vmem:[%s950 + $0x170] sm:%s943]
        %1131 = vst [vmem:[%s951 + $0x164] sm:%s943] %v1130
        %v1132 = vld [vmem:[%s950 + $0x164] sm:%s943]
        %1133 = vst [vmem:[%s951 + $0x168] sm:%s943] %v1132
        %v1134 = vld [vmem:[%s950 + $0x174] sm:%s943]
        %1135 = vst [vmem:[%s951 + $0x16c] sm:%s943] %v1134
        %v1136 = vld [vmem:[%s950 + $0x168] sm:%s943]
        %1137 = vst [vmem:[%s951 + $0x170] sm:%s943] %v1136
        %v1138 = vld [vmem:[%s950 + $0x178] sm:%s943]
        %1139 = vst [vmem:[%s951 + $0x174] sm:%s943] %v1138
        %v1140 = vld [vmem:[%s950 + $0x16c] sm:%s943]
        %1141 = vst [vmem:[%s951 + $0x178] sm:%s943] %v1140
        %v1142 = vld [vmem:[%s950 + $0x17c] sm:%s943]
        %1143 = vst [vmem:[%s951 + $0x17c] sm:%s943] %v1142
        %v1144 = vld [vmem:[%s950 + $0x180] sm:%s943]
        %1145 = vst [vmem:[%s951 + $0x180] sm:%s943] %v1144
        %v1146 = vld [vmem:[%s950 + $0x190] sm:%s943]
        %1147 = vst [vmem:[%s951 + $0x184] sm:%s943] %v1146
        %v1148 = vld [vmem:[%s950 + $0x184] sm:%s943]
        %1149 = vst [vmem:[%s951 + $0x188] sm:%s943] %v1148
        %v1150 = vld [vmem:[%s950 + $0x194] sm:%s943]
        %1151 = vst [vmem:[%s951 + $0x18c] sm:%s943] %v1150
        %v1152 = vld [vmem:[%s950 + $0x188] sm:%s943]
        %1153 = vst [vmem:[%s951 + $0x190] sm:%s943] %v1152
        %v1154 = vld [vmem:[%s950 + $0x198] sm:%s943]
        %1155 = vst [vmem:[%s951 + $0x194] sm:%s943] %v1154
        %v1156 = vld [vmem:[%s950 + $0x18c] sm:%s943]
        %1157 = vst [vmem:[%s951 + $0x198] sm:%s943] %v1156
        %v1158 = vld [vmem:[%s950 + $0x19c] sm:%s943]
        %1159 = vst [vmem:[%s951 + $0x19c] sm:%s943] %v1158
        %v1160 = vld [vmem:[%s950 + $0x1a0] sm:%s943]
        %1161 = vst [vmem:[%s951 + $0x1a0] sm:%s943] %v1160
        %v1162 = vld [vmem:[%s950 + $0x1b0] sm:%s943]
        %1163 = vst [vmem:[%s951 + $0x1a4] sm:%s943] %v1162
        %v1164 = vld [vmem:[%s950 + $0x1a4] sm:%s943]
        %1165 = vst [vmem:[%s951 + $0x1a8] sm:%s943] %v1164
        %v1166 = vld [vmem:[%s950 + $0x1b4] sm:%s943]
        %1167 = vst [vmem:[%s951 + $0x1ac] sm:%s943] %v1166
        %v1168 = vld [vmem:[%s950 + $0x1a8] sm:%s943]
        %1169 = vst [vmem:[%s951 + $0x1b0] sm:%s943] %v1168
        %v1170 = vld [vmem:[%s950 + $0x1b8] sm:%s943]
        %1171 = vst [vmem:[%s951 + $0x1b4] sm:%s943] %v1170
        %v1172 = vld [vmem:[%s950 + $0x1ac] sm:%s943]
        %1173 = vst [vmem:[%s951 + $0x1b8] sm:%s943] %v1172
        %v1174 = vld [vmem:[%s950 + $0x1bc] sm:%s943]
        %1175 = vst [vmem:[%s951 + $0x1bc] sm:%s943] %v1174
        %v1176 = vld [vmem:[%s950 + $0x1c0] sm:%s943]
        %1177 = vst [vmem:[%s951 + $0x1c0] sm:%s943] %v1176
        %v1178 = vld [vmem:[%s950 + $0x1d0] sm:%s943]
        %1179 = vst [vmem:[%s951 + $0x1c4] sm:%s943] %v1178
        %v1180 = vld [vmem:[%s950 + $0x1c4] sm:%s943]
        %1181 = vst [vmem:[%s951 + $0x1c8] sm:%s943] %v1180
        %v1182 = vld [vmem:[%s950 + $0x1d4] sm:%s943]
        %1183 = vst [vmem:[%s951 + $0x1cc] sm:%s943] %v1182
        %v1184 = vld [vmem:[%s950 + $0x1c8] sm:%s943]
        %1185 = vst [vmem:[%s951 + $0x1d0] sm:%s943] %v1184
        %v1186 = vld [vmem:[%s950 + $0x1d8] sm:%s943]
        %1187 = vst [vmem:[%s951 + $0x1d4] sm:%s943] %v1186
        %v1188 = vld [vmem:[%s950 + $0x1cc] sm:%s943]
        %1189 = vst [vmem:[%s951 + $0x1d8] sm:%s943] %v1188
        %v1190 = vld [vmem:[%s950 + $0x1dc] sm:%s943]
        %1191 = vst [vmem:[%s951 + $0x1dc] sm:%s943] %v1190
        %v1192 = vld [vmem:[%s950 + $0x1e0] sm:%s943]
        %1193 = vst [vmem:[%s951 + $0x1e0] sm:%s943] %v1192
        %v1194 = vld [vmem:[%s950 + $0x1f0] sm:%s943]
        %1195 = vst [vmem:[%s951 + $0x1e4] sm:%s943] %v1194
        %v1196 = vld [vmem:[%s950 + $0x1e4] sm:%s943]
        %1197 = vst [vmem:[%s951 + $0x1e8] sm:%s943] %v1196
        %v1198 = vld [vmem:[%s950 + $0x1f4] sm:%s943]
        %1199 = vst [vmem:[%s951 + $0x1ec] sm:%s943] %v1198
        %v1200 = vld [vmem:[%s950 + $0x1e8] sm:%s943]
        %1201 = vst [vmem:[%s951 + $0x1f0] sm:%s943] %v1200
        %v1202 = vld [vmem:[%s950 + $0x1f8] sm:%s943]
        %1203 = vst [vmem:[%s951 + $0x1f4] sm:%s943] %v1202
        %v1204 = vld [vmem:[%s950 + $0x1ec] sm:%s943]
        %1205 = vst [vmem:[%s951 + $0x1f8] sm:%s943] %v1204
        %v1206 = vld [vmem:[%s950 + $0x1fc] sm:%s943]
        %1207 = vst [vmem:[%s951 + $0x1fc] sm:%s943] %v1206
        %v1208 = vld [vmem:[%s950 + $0x200] sm:%s943]
        %1209 = vst [vmem:[%s951 + $0x200] sm:%s943] %v1208
        %v1210 = vld [vmem:[%s950 + $0x210] sm:%s943]
        %1211 = vst [vmem:[%s951 + $0x204] sm:%s943] %v1210
        %v1212 = vld [vmem:[%s950 + $0x204] sm:%s943]
        %1213 = vst [vmem:[%s951 + $0x208] sm:%s943] %v1212
        %v1214 = vld [vmem:[%s950 + $0x214] sm:%s943]
        %1215 = vst [vmem:[%s951 + $0x20c] sm:%s943] %v1214
        %v1216 = vld [vmem:[%s950 + $0x208] sm:%s943]
        %1217 = vst [vmem:[%s951 + $0x210] sm:%s943] %v1216
        %v1218 = vld [vmem:[%s950 + $0x218] sm:%s943]
        %1219 = vst [vmem:[%s951 + $0x214] sm:%s943] %v1218
        %v1220 = vld [vmem:[%s950 + $0x20c] sm:%s943]
        %1221 = vst [vmem:[%s951 + $0x218] sm:%s943] %v1220
        %v1222 = vld [vmem:[%s950 + $0x21c] sm:%s943]
        %1223 = vst [vmem:[%s951 + $0x21c] sm:%s943] %v1222
        %v1224 = vld [vmem:[%s950 + $0x220] sm:%s943]
        %1225 = vst [vmem:[%s951 + $0x220] sm:%s943] %v1224
        %v1226 = vld [vmem:[%s950 + $0x230] sm:%s943]
        %1227 = vst [vmem:[%s951 + $0x224] sm:%s943] %v1226
        %v1228 = vld [vmem:[%s950 + $0x224] sm:%s943]
        %1229 = vst [vmem:[%s951 + $0x228] sm:%s943] %v1228
        %v1230 = vld [vmem:[%s950 + $0x234] sm:%s943]
        %1231 = vst [vmem:[%s951 + $0x22c] sm:%s943] %v1230
        %v1232 = vld [vmem:[%s950 + $0x228] sm:%s943]
        %1233 = vst [vmem:[%s951 + $0x230] sm:%s943] %v1232
        %v1234 = vld [vmem:[%s950 + $0x238] sm:%s943]
        %1235 = vst [vmem:[%s951 + $0x234] sm:%s943] %v1234
        %v1236 = vld [vmem:[%s950 + $0x22c] sm:%s943]
        %1237 = vst [vmem:[%s951 + $0x238] sm:%s943] %v1236
        %v1238 = vld [vmem:[%s950 + $0x23c] sm:%s943]
        %1239 = vst [vmem:[%s951 + $0x23c] sm:%s943] %v1238
        %v1240 = vld [vmem:[%s950 + $0x240] sm:%s943]
        %1241 = vst [vmem:[%s951 + $0x240] sm:%s943] %v1240
        %v1242 = vld [vmem:[%s950 + $0x250] sm:%s943]
        %1243 = vst [vmem:[%s951 + $0x244] sm:%s943] %v1242
        %v1244 = vld [vmem:[%s950 + $0x244] sm:%s943]
        %1245 = vst [vmem:[%s951 + $0x248] sm:%s943] %v1244
        %v1246 = vld [vmem:[%s950 + $0x254] sm:%s943]
        %1247 = vst [vmem:[%s951 + $0x24c] sm:%s943] %v1246
        %v1248 = vld [vmem:[%s950 + $0x248] sm:%s943]
        %1249 = vst [vmem:[%s951 + $0x250] sm:%s943] %v1248
        %v1250 = vld [vmem:[%s950 + $0x258] sm:%s943]
        %1251 = vst [vmem:[%s951 + $0x254] sm:%s943] %v1250
        %v1252 = vld [vmem:[%s950 + $0x24c] sm:%s943]
        %1253 = vst [vmem:[%s951 + $0x258] sm:%s943] %v1252
        %v1254 = vld [vmem:[%s950 + $0x25c] sm:%s943]
        %1255 = vst [vmem:[%s951 + $0x25c] sm:%s943] %v1254
        %v1256 = vld [vmem:[%s950 + $0x260] sm:%s943]
        %1257 = vst [vmem:[%s951 + $0x260] sm:%s943] %v1256
        %v1258 = vld [vmem:[%s950 + $0x270] sm:%s943]
        %1259 = vst [vmem:[%s951 + $0x264] sm:%s943] %v1258
        %v1260 = vld [vmem:[%s950 + $0x264] sm:%s943]
        %1261 = vst [vmem:[%s951 + $0x268] sm:%s943] %v1260
        %v1262 = vld [vmem:[%s950 + $0x274] sm:%s943]
        %1263 = vst [vmem:[%s951 + $0x26c] sm:%s943] %v1262
        %v1264 = vld [vmem:[%s950 + $0x268] sm:%s943]
        %1265 = vst [vmem:[%s951 + $0x270] sm:%s943] %v1264
        %v1266 = vld [vmem:[%s950 + $0x278] sm:%s943]
        %1267 = vst [vmem:[%s951 + $0x274] sm:%s943] %v1266
        %v1268 = vld [vmem:[%s950 + $0x26c] sm:%s943]
        %1269 = vst [vmem:[%s951 + $0x278] sm:%s943] %v1268
        %v1270 = vld [vmem:[%s950 + $0x27c] sm:%s943]
        %1271 = vst [vmem:[%s951 + $0x27c] sm:%s943] %v1270
        %v1272 = vld [vmem:[%s950 + $0x280] sm:%s943]
        %1273 = vst [vmem:[%s951 + $0x280] sm:%s943] %v1272
        %v1274 = vld [vmem:[%s950 + $0x290] sm:%s943]
        %1275 = vst [vmem:[%s951 + $0x284] sm:%s943] %v1274
        %v1276 = vld [vmem:[%s950 + $0x284] sm:%s943]
        %1277 = vst [vmem:[%s951 + $0x288] sm:%s943] %v1276
        %v1278 = vld [vmem:[%s950 + $0x294] sm:%s943]
        %1279 = vst [vmem:[%s951 + $0x28c] sm:%s943] %v1278
        %v1280 = vld [vmem:[%s950 + $0x288] sm:%s943]
        %1281 = vst [vmem:[%s951 + $0x290] sm:%s943] %v1280
        %v1282 = vld [vmem:[%s950 + $0x298] sm:%s943]
        %1283 = vst [vmem:[%s951 + $0x294] sm:%s943] %v1282
        %v1284 = vld [vmem:[%s950 + $0x28c] sm:%s943]
        %1285 = vst [vmem:[%s951 + $0x298] sm:%s943] %v1284
        %v1286 = vld [vmem:[%s950 + $0x29c] sm:%s943]
        %1287 = vst [vmem:[%s951 + $0x29c] sm:%s943] %v1286
        %v1288 = vld [vmem:[%s950 + $0x2a0] sm:%s943]
        %1289 = vst [vmem:[%s951 + $0x2a0] sm:%s943] %v1288
        %v1290 = vld [vmem:[%s950 + $0x2b0] sm:%s943]
        %1291 = vst [vmem:[%s951 + $0x2a4] sm:%s943] %v1290
        %v1292 = vld [vmem:[%s950 + $0x2a4] sm:%s943]
        %1293 = vst [vmem:[%s951 + $0x2a8] sm:%s943] %v1292
        %v1294 = vld [vmem:[%s950 + $0x2b4] sm:%s943]
        %1295 = vst [vmem:[%s951 + $0x2ac] sm:%s943] %v1294
        %v1296 = vld [vmem:[%s950 + $0x2a8] sm:%s943]
        %1297 = vst [vmem:[%s951 + $0x2b0] sm:%s943] %v1296
        %v1298 = vld [vmem:[%s950 + $0x2b8] sm:%s943]
        %1299 = vst [vmem:[%s951 + $0x2b4] sm:%s943] %v1298
        %v1300 = vld [vmem:[%s950 + $0x2ac] sm:%s943]
        %1301 = vst [vmem:[%s951 + $0x2b8] sm:%s943] %v1300
        %v1302 = vld [vmem:[%s950 + $0x2bc] sm:%s943]
        %1303 = vst [vmem:[%s951 + $0x2bc] sm:%s943] %v1302
        %v1304 = vld [vmem:[%s950 + $0x2c0] sm:%s943]
        %1305 = vst [vmem:[%s951 + $0x2c0] sm:%s943] %v1304
        %v1306 = vld [vmem:[%s950 + $0x2d0] sm:%s943]
        %1307 = vst [vmem:[%s951 + $0x2c4] sm:%s943] %v1306
        %v1308 = vld [vmem:[%s950 + $0x2c4] sm:%s943]
        %1309 = vst [vmem:[%s951 + $0x2c8] sm:%s943] %v1308
        %v1310 = vld [vmem:[%s950 + $0x2d4] sm:%s943]
        %1311 = vst [vmem:[%s951 + $0x2cc] sm:%s943] %v1310
        %v1312 = vld [vmem:[%s950 + $0x2c8] sm:%s943]
        %1313 = vst [vmem:[%s951 + $0x2d0] sm:%s943] %v1312
        %v1314 = vld [vmem:[%s950 + $0x2d8] sm:%s943]
        %1315 = vst [vmem:[%s951 + $0x2d4] sm:%s943] %v1314
        %v1316 = vld [vmem:[%s950 + $0x2cc] sm:%s943]
        %1317 = vst [vmem:[%s951 + $0x2d8] sm:%s943] %v1316
        %v1318 = vld [vmem:[%s950 + $0x2dc] sm:%s943]
        %1319 = vst [vmem:[%s951 + $0x2dc] sm:%s943] %v1318
        %v1320 = vld [vmem:[%s950 + $0x2e0] sm:%s943]
        %1321 = vst [vmem:[%s951 + $0x2e0] sm:%s943] %v1320
        %v1322 = vld [vmem:[%s950 + $0x2f0] sm:%s943]
        %1323 = vst [vmem:[%s951 + $0x2e4] sm:%s943] %v1322
        %v1324 = vld [vmem:[%s950 + $0x2e4] sm:%s943]
        %1325 = vst [vmem:[%s951 + $0x2e8] sm:%s943] %v1324
        %v1326 = vld [vmem:[%s950 + $0x2f4] sm:%s943]
        %1327 = vst [vmem:[%s951 + $0x2ec] sm:%s943] %v1326
        %v1328 = vld [vmem:[%s950 + $0x2e8] sm:%s943]
        %1329 = vst [vmem:[%s951 + $0x2f0] sm:%s943] %v1328
        %v1330 = vld [vmem:[%s950 + $0x2f8] sm:%s943]
        %1331 = vst [vmem:[%s951 + $0x2f4] sm:%s943] %v1330
        %v1332 = vld [vmem:[%s950 + $0x2ec] sm:%s943]
        %1333 = vst [vmem:[%s951 + $0x2f8] sm:%s943] %v1332
        %v1334 = vld [vmem:[%s950 + $0x2fc] sm:%s943]
        %1335 = vst [vmem:[%s951 + $0x2fc] sm:%s943] %v1334
        %v1336 = vld [vmem:[%s950 + $0x300] sm:%s943]
        %1337 = vst [vmem:[%s951 + $0x300] sm:%s943] %v1336
        %v1338 = vld [vmem:[%s950 + $0x310] sm:%s943]
        %1339 = vst [vmem:[%s951 + $0x304] sm:%s943] %v1338
        %v1340 = vld [vmem:[%s950 + $0x304] sm:%s943]
        %1341 = vst [vmem:[%s951 + $0x308] sm:%s943] %v1340
        %v1342 = vld [vmem:[%s950 + $0x314] sm:%s943]
        %1343 = vst [vmem:[%s951 + $0x30c] sm:%s943] %v1342
        %v1344 = vld [vmem:[%s950 + $0x308] sm:%s943]
        %1345 = vst [vmem:[%s951 + $0x310] sm:%s943] %v1344
        %v1346 = vld [vmem:[%s950 + $0x318] sm:%s943]
        %1347 = vst [vmem:[%s951 + $0x314] sm:%s943] %v1346
        %v1348 = vld [vmem:[%s950 + $0x30c] sm:%s943]
        %1349 = vst [vmem:[%s951 + $0x318] sm:%s943] %v1348
        %v1350 = vld [vmem:[%s950 + $0x31c] sm:%s943]
        %1351 = vst [vmem:[%s951 + $0x31c] sm:%s943] %v1350
        %v1352 = vld [vmem:[%s950 + $0x320] sm:%s943]
        %1353 = vst [vmem:[%s951 + $0x320] sm:%s943] %v1352
        %v1354 = vld [vmem:[%s950 + $0x330] sm:%s943]
        %1355 = vst [vmem:[%s951 + $0x324] sm:%s943] %v1354
        %v1356 = vld [vmem:[%s950 + $0x324] sm:%s943]
        %1357 = vst [vmem:[%s951 + $0x328] sm:%s943] %v1356
        %v1358 = vld [vmem:[%s950 + $0x334] sm:%s943]
        %1359 = vst [vmem:[%s951 + $0x32c] sm:%s943] %v1358
        %v1360 = vld [vmem:[%s950 + $0x328] sm:%s943]
        %1361 = vst [vmem:[%s951 + $0x330] sm:%s943] %v1360
        %v1362 = vld [vmem:[%s950 + $0x338] sm:%s943]
        %1363 = vst [vmem:[%s951 + $0x334] sm:%s943] %v1362
        %v1364 = vld [vmem:[%s950 + $0x32c] sm:%s943]
        %1365 = vst [vmem:[%s951 + $0x338] sm:%s943] %v1364
        %v1366 = vld [vmem:[%s950 + $0x33c] sm:%s943]
        %1367 = vst [vmem:[%s951 + $0x33c] sm:%s943] %v1366
        %v1368 = vld [vmem:[%s950 + $0x340] sm:%s943]
        %1369 = vst [vmem:[%s951 + $0x340] sm:%s943] %v1368
        %v1370 = vld [vmem:[%s950 + $0x350] sm:%s943]
        %1371 = vst [vmem:[%s951 + $0x344] sm:%s943] %v1370
        %v1372 = vld [vmem:[%s950 + $0x344] sm:%s943]
        %1373 = vst [vmem:[%s951 + $0x348] sm:%s943] %v1372
        %v1374 = vld [vmem:[%s950 + $0x354] sm:%s943]
        %1375 = vst [vmem:[%s951 + $0x34c] sm:%s943] %v1374
        %v1376 = vld [vmem:[%s950 + $0x348] sm:%s943]
        %1377 = vst [vmem:[%s951 + $0x350] sm:%s943] %v1376
        %v1378 = vld [vmem:[%s950 + $0x358] sm:%s943]
        %1379 = vst [vmem:[%s951 + $0x354] sm:%s943] %v1378
        %v1380 = vld [vmem:[%s950 + $0x34c] sm:%s943]
        %1381 = vst [vmem:[%s951 + $0x358] sm:%s943] %v1380
        %v1382 = vld [vmem:[%s950 + $0x35c] sm:%s943]
        %1383 = vst [vmem:[%s951 + $0x35c] sm:%s943] %v1382
        %v1384 = vld [vmem:[%s950 + $0x360] sm:%s943]
        %1385 = vst [vmem:[%s951 + $0x360] sm:%s943] %v1384
        %v1386 = vld [vmem:[%s950 + $0x370] sm:%s943]
        %1387 = vst [vmem:[%s951 + $0x364] sm:%s943] %v1386
        %v1388 = vld [vmem:[%s950 + $0x364] sm:%s943]
        %1389 = vst [vmem:[%s951 + $0x368] sm:%s943] %v1388
        %v1390 = vld [vmem:[%s950 + $0x374] sm:%s943]
        %1391 = vst [vmem:[%s951 + $0x36c] sm:%s943] %v1390
        %v1392 = vld [vmem:[%s950 + $0x368] sm:%s943]
        %1393 = vst [vmem:[%s951 + $0x370] sm:%s943] %v1392
        %v1394 = vld [vmem:[%s950 + $0x378] sm:%s943]
        %1395 = vst [vmem:[%s951 + $0x374] sm:%s943] %v1394
        %v1396 = vld [vmem:[%s950 + $0x36c] sm:%s943]
        %1397 = vst [vmem:[%s951 + $0x378] sm:%s943] %v1396
        %v1398 = vld [vmem:[%s950 + $0x37c] sm:%s943]
        %1399 = vst [vmem:[%s951 + $0x37c] sm:%s943] %v1398
        %v1400 = vld [vmem:[%s950 + $0x380] sm:%s943]
        %1401 = vst [vmem:[%s951 + $0x380] sm:%s943] %v1400
        %v1402 = vld [vmem:[%s950 + $0x390] sm:%s943]
        %1403 = vst [vmem:[%s951 + $0x384] sm:%s943] %v1402
        %v1404 = vld [vmem:[%s950 + $0x384] sm:%s943]
        %1405 = vst [vmem:[%s951 + $0x388] sm:%s943] %v1404
        %v1406 = vld [vmem:[%s950 + $0x394] sm:%s943]
        %1407 = vst [vmem:[%s951 + $0x38c] sm:%s943] %v1406
        %v1408 = vld [vmem:[%s950 + $0x388] sm:%s943]
        %1409 = vst [vmem:[%s951 + $0x390] sm:%s943] %v1408
        %v1410 = vld [vmem:[%s950 + $0x398] sm:%s943]
        %1411 = vst [vmem:[%s951 + $0x394] sm:%s943] %v1410
        %v1412 = vld [vmem:[%s950 + $0x38c] sm:%s943]
        %1413 = vst [vmem:[%s951 + $0x398] sm:%s943] %v1412
        %v1414 = vld [vmem:[%s950 + $0x39c] sm:%s943]
        %1415 = vst [vmem:[%s951 + $0x39c] sm:%s943] %v1414
        %v1416 = vld [vmem:[%s950 + $0x3a0] sm:%s943]
        %1417 = vst [vmem:[%s951 + $0x3a0] sm:%s943] %v1416
        %v1418 = vld [vmem:[%s950 + $0x3b0] sm:%s943]
        %1419 = vst [vmem:[%s951 + $0x3a4] sm:%s943] %v1418
        %v1420 = vld [vmem:[%s950 + $0x3a4] sm:%s943]
        %1421 = vst [vmem:[%s951 + $0x3a8] sm:%s943] %v1420
        %v1422 = vld [vmem:[%s950 + $0x3b4] sm:%s943]
        %1423 = vst [vmem:[%s951 + $0x3ac] sm:%s943] %v1422
        %v1424 = vld [vmem:[%s950 + $0x3a8] sm:%s943]
        %1425 = vst [vmem:[%s951 + $0x3b0] sm:%s943] %v1424
        %v1426 = vld [vmem:[%s950 + $0x3b8] sm:%s943]
        %1427 = vst [vmem:[%s951 + $0x3b4] sm:%s943] %v1426
        %v1428 = vld [vmem:[%s950 + $0x3ac] sm:%s943]
        %1429 = vst [vmem:[%s951 + $0x3b8] sm:%s943] %v1428
        %v1430 = vld [vmem:[%s950 + $0x3bc] sm:%s943]
        %1431 = vst [vmem:[%s951 + $0x3bc] sm:%s943] %v1430
        %v1432 = vld [vmem:[%s950 + $0x3c0] sm:%s943]
        %1433 = vst [vmem:[%s951 + $0x3c0] sm:%s943] %v1432
        %v1434 = vld [vmem:[%s950 + $0x3d0] sm:%s943]
        %1435 = vst [vmem:[%s951 + $0x3c4] sm:%s943] %v1434
        %v1436 = vld [vmem:[%s950 + $0x3c4] sm:%s943]
        %1437 = vst [vmem:[%s951 + $0x3c8] sm:%s943] %v1436
        %v1438 = vld [vmem:[%s950 + $0x3d4] sm:%s943]
        %1439 = vst [vmem:[%s951 + $0x3cc] sm:%s943] %v1438
        %v1440 = vld [vmem:[%s950 + $0x3c8] sm:%s943]
        %1441 = vst [vmem:[%s951 + $0x3d0] sm:%s943] %v1440
        %v1442 = vld [vmem:[%s950 + $0x3d8] sm:%s943]
        %1443 = vst [vmem:[%s951 + $0x3d4] sm:%s943] %v1442
        %v1444 = vld [vmem:[%s950 + $0x3cc] sm:%s943]
        %1445 = vst [vmem:[%s951 + $0x3d8] sm:%s943] %v1444
        %v1446 = vld [vmem:[%s950 + $0x3dc] sm:%s943]
        %1447 = vst [vmem:[%s951 + $0x3dc] sm:%s943] %v1446
        %v1448 = vld [vmem:[%s950 + $0x3e0] sm:%s943]
        %1449 = vst [vmem:[%s951 + $0x3e0] sm:%s943] %v1448
        %v1450 = vld [vmem:[%s950 + $0x3f0] sm:%s943]
        %1451 = vst [vmem:[%s951 + $0x3e4] sm:%s943] %v1450
        %v1452 = vld [vmem:[%s950 + $0x3e4] sm:%s943]
        %1453 = vst [vmem:[%s951 + $0x3e8] sm:%s943] %v1452
        %v1454 = vld [vmem:[%s950 + $0x3f4] sm:%s943]
        %1455 = vst [vmem:[%s951 + $0x3ec] sm:%s943] %v1454
        %v1456 = vld [vmem:[%s950 + $0x3e8] sm:%s943]
        %1457 = vst [vmem:[%s951 + $0x3f0] sm:%s943] %v1456
        %v1458 = vld [vmem:[%s950 + $0x3f8] sm:%s943]
        %1459 = vst [vmem:[%s951 + $0x3f4] sm:%s943] %v1458
        %v1460 = vld [vmem:[%s950 + $0x3ec] sm:%s943]
        %1461 = vst [vmem:[%s951 + $0x3f8] sm:%s943] %v1460
        %v1462 = vld [vmem:[%s950 + $0x3fc] sm:%s943]
        %1463 = vst [vmem:[%s951 + $0x3fc] sm:%s943] %v1462
      $region146: #{model_forward.1} parent=133 // loop_footer
        %s949 = sadd.s32 1, %s945
      $region147: #{model_forward.1} parent=133 // loop_footer_branch
        %944 = sbr.rel target = $region143
      $region148: #{model_forward.1} parent=133 // loop_exit
        _
    $region134: #{model_forward.1} parent=118 // pred_fallthru
      _
  $region119: #{model_forward.1} parent=0 // pred_fallthru
    _
  // Predicated region
  $region120: #{model_forward.1} parent=0 // pred_check
    %p401 = pneg %p397
  $region121: #{model_forward.1} parent=0 // pred_check_branch
    %403 = sbr.rel (%p401) target = $region123
  $region122: #{model_forward.1} parent=0 // pred_region
    %s404 = sshllo.u32 0, 4
    loop: start=0, step=1, limit=1
    $region124: #{model_forward.1} parent=122 // loop_pre_header
      _
    $region125: #{model_forward.1} parent=122 // loop_header
      %s406 = sphi 0, %s410
      %p407 = scmp.ge.s32.totalorder %s406, 1
      %s411 = sphi %s9, %s9
      %s412 = sphi [#allocation4], [#allocation4]
    $region126: #{model_forward.1} parent=122 // loop_header_branch
      %409 = sbr.rel (%p407) target = $region130
    $region127: #{model_forward.1} parent=122 // loop_body
      %v413 = vld [vmem:[%s411] sm:%s404]
      %414 = vst [vmem:[%s412] sm:%s404] %v413
      %v415 = vld [vmem:[%s411 + $0x10] sm:%s404]
      %416 = vst [vmem:[%s412 + $0x4] sm:%s404] %v415
      %v417 = vld [vmem:[%s411 + $0x4] sm:%s404]
      %418 = vst [vmem:[%s412 + $0x8] sm:%s404] %v417
      %v419 = vld [vmem:[%s411 + $0x14] sm:%s404]
      %420 = vst [vmem:[%s412 + $0xc] sm:%s404] %v419
      %v421 = vld [vmem:[%s411 + $0x8] sm:%s404]
      %422 = vst [vmem:[%s412 + $0x10] sm:%s404] %v421
      %v423 = vld [vmem:[%s411 + $0x18] sm:%s404]
      %424 = vst [vmem:[%s412 + $0x14] sm:%s404] %v423
      %v425 = vld [vmem:[%s411 + $0xc] sm:%s404]
      %426 = vst [vmem:[%s412 + $0x18] sm:%s404] %v425
      %v427 = vld [vmem:[%s411 + $0x1c] sm:%s404]
      %428 = vst [vmem:[%s412 + $0x1c] sm:%s404] %v427
      %v429 = vld [vmem:[%s411 + $0x20] sm:%s404]
      %430 = vst [vmem:[%s412 + $0x20] sm:%s404] %v429
      %v431 = vld [vmem:[%s411 + $0x30] sm:%s404]
      %432 = vst [vmem:[%s412 + $0x24] sm:%s404] %v431
      %v433 = vld [vmem:[%s411 + $0x24] sm:%s404]
      %434 = vst [vmem:[%s412 + $0x28] sm:%s404] %v433
      %v435 = vld [vmem:[%s411 + $0x34] sm:%s404]
      %436 = vst [vmem:[%s412 + $0x2c] sm:%s404] %v435
      %v437 = vld [vmem:[%s411 + $0x28] sm:%s404]
      %438 = vst [vmem:[%s412 + $0x30] sm:%s404] %v437
      %v439 = vld [vmem:[%s411 + $0x38] sm:%s404]
      %440 = vst [vmem:[%s412 + $0x34] sm:%s404] %v439
      %v441 = vld [vmem:[%s411 + $0x2c] sm:%s404]
      %442 = vst [vmem:[%s412 + $0x38] sm:%s404] %v441
      %v443 = vld [vmem:[%s411 + $0x3c] sm:%s404]
      %444 = vst [vmem:[%s412 + $0x3c] sm:%s404] %v443
      %v445 = vld [vmem:[%s411 + $0x40] sm:%s404]
      %446 = vst [vmem:[%s412 + $0x40] sm:%s404] %v445
      %v447 = vld [vmem:[%s411 + $0x50] sm:%s404]
      %448 = vst [vmem:[%s412 + $0x44] sm:%s404] %v447
      %v449 = vld [vmem:[%s411 + $0x44] sm:%s404]
      %450 = vst [vmem:[%s412 + $0x48] sm:%s404] %v449
      %v451 = vld [vmem:[%s411 + $0x54] sm:%s404]
      %452 = vst [vmem:[%s412 + $0x4c] sm:%s404] %v451
      %v453 = vld [vmem:[%s411 + $0x48] sm:%s404]
      %454 = vst [vmem:[%s412 + $0x50] sm:%s404] %v453
      %v455 = vld [vmem:[%s411 + $0x58] sm:%s404]
      %456 = vst [vmem:[%s412 + $0x54] sm:%s404] %v455
      %v457 = vld [vmem:[%s411 + $0x4c] sm:%s404]
      %458 = vst [vmem:[%s412 + $0x58] sm:%s404] %v457
      %v459 = vld [vmem:[%s411 + $0x5c] sm:%s404]
      %460 = vst [vmem:[%s412 + $0x5c] sm:%s404] %v459
      %v461 = vld [vmem:[%s411 + $0x60] sm:%s404]
      %462 = vst [vmem:[%s412 + $0x60] sm:%s404] %v461
      %v463 = vld [vmem:[%s411 + $0x70] sm:%s404]
      %464 = vst [vmem:[%s412 + $0x64] sm:%s404] %v463
      %v465 = vld [vmem:[%s411 + $0x64] sm:%s404]
      %466 = vst [vmem:[%s412 + $0x68] sm:%s404] %v465
      %v467 = vld [vmem:[%s411 + $0x74] sm:%s404]
      %468 = vst [vmem:[%s412 + $0x6c] sm:%s404] %v467
      %v469 = vld [vmem:[%s411 + $0x68] sm:%s404]
      %470 = vst [vmem:[%s412 + $0x70] sm:%s404] %v469
      %v471 = vld [vmem:[%s411 + $0x78] sm:%s404]
      %472 = vst [vmem:[%s412 + $0x74] sm:%s404] %v471
      %v473 = vld [vmem:[%s411 + $0x6c] sm:%s404]
      %474 = vst [vmem:[%s412 + $0x78] sm:%s404] %v473
      %v475 = vld [vmem:[%s411 + $0x7c] sm:%s404]
      %476 = vst [vmem:[%s412 + $0x7c] sm:%s404] %v475
      %v477 = vld [vmem:[%s411 + $0x80] sm:%s404]
      %478 = vst [vmem:[%s412 + $0x80] sm:%s404] %v477
      %v479 = vld [vmem:[%s411 + $0x90] sm:%s404]
      %480 = vst [vmem:[%s412 + $0x84] sm:%s404] %v479
      %v481 = vld [vmem:[%s411 + $0x84] sm:%s404]
      %482 = vst [vmem:[%s412 + $0x88] sm:%s404] %v481
      %v483 = vld [vmem:[%s411 + $0x94] sm:%s404]
      %484 = vst [vmem:[%s412 + $0x8c] sm:%s404] %v483
      %v485 = vld [vmem:[%s411 + $0x88] sm:%s404]
      %486 = vst [vmem:[%s412 + $0x90] sm:%s404] %v485
      %v487 = vld [vmem:[%s411 + $0x98] sm:%s404]
      %488 = vst [vmem:[%s412 + $0x94] sm:%s404] %v487
      %v489 = vld [vmem:[%s411 + $0x8c] sm:%s404]
      %490 = vst [vmem:[%s412 + $0x98] sm:%s404] %v489
      %v491 = vld [vmem:[%s411 + $0x9c] sm:%s404]
      %492 = vst [vmem:[%s412 + $0x9c] sm:%s404] %v491
      %v493 = vld [vmem:[%s411 + $0xa0] sm:%s404]
      %494 = vst [vmem:[%s412 + $0xa0] sm:%s404] %v493
      %v495 = vld [vmem:[%s411 + $0xb0] sm:%s404]
      %496 = vst [vmem:[%s412 + $0xa4] sm:%s404] %v495
      %v497 = vld [vmem:[%s411 + $0xa4] sm:%s404]
      %498 = vst [vmem:[%s412 + $0xa8] sm:%s404] %v497
      %v499 = vld [vmem:[%s411 + $0xb4] sm:%s404]
      %500 = vst [vmem:[%s412 + $0xac] sm:%s404] %v499
      %v501 = vld [vmem:[%s411 + $0xa8] sm:%s404]
      %502 = vst [vmem:[%s412 + $0xb0] sm:%s404] %v501
      %v503 = vld [vmem:[%s411 + $0xb8] sm:%s404]
      %504 = vst [vmem:[%s412 + $0xb4] sm:%s404] %v503
      %v505 = vld [vmem:[%s411 + $0xac] sm:%s404]
      %506 = vst [vmem:[%s412 + $0xb8] sm:%s404] %v505
      %v507 = vld [vmem:[%s411 + $0xbc] sm:%s404]
      %508 = vst [vmem:[%s412 + $0xbc] sm:%s404] %v507
      %v509 = vld [vmem:[%s411 + $0xc0] sm:%s404]
      %510 = vst [vmem:[%s412 + $0xc0] sm:%s404] %v509
      %v511 = vld [vmem:[%s411 + $0xd0] sm:%s404]
      %512 = vst [vmem:[%s412 + $0xc4] sm:%s404] %v511
      %v513 = vld [vmem:[%s411 + $0xc4] sm:%s404]
      %514 = vst [vmem:[%s412 + $0xc8] sm:%s404] %v513
      %v515 = vld [vmem:[%s411 + $0xd4] sm:%s404]
      %516 = vst [vmem:[%s412 + $0xcc] sm:%s404] %v515
      %v517 = vld [vmem:[%s411 + $0xc8] sm:%s404]
      %518 = vst [vmem:[%s412 + $0xd0] sm:%s404] %v517
      %v519 = vld [vmem:[%s411 + $0xd8] sm:%s404]
      %520 = vst [vmem:[%s412 + $0xd4] sm:%s404] %v519
      %v521 = vld [vmem:[%s411 + $0xcc] sm:%s404]
      %522 = vst [vmem:[%s412 + $0xd8] sm:%s404] %v521
      %v523 = vld [vmem:[%s411 + $0xdc] sm:%s404]
      %524 = vst [vmem:[%s412 + $0xdc] sm:%s404] %v523
      %v525 = vld [vmem:[%s411 + $0xe0] sm:%s404]
      %526 = vst [vmem:[%s412 + $0xe0] sm:%s404] %v525
      %v527 = vld [vmem:[%s411 + $0xf0] sm:%s404]
      %528 = vst [vmem:[%s412 + $0xe4] sm:%s404] %v527
      %v529 = vld [vmem:[%s411 + $0xe4] sm:%s404]
      %530 = vst [vmem:[%s412 + $0xe8] sm:%s404] %v529
      %v531 = vld [vmem:[%s411 + $0xf4] sm:%s404]
      %532 = vst [vmem:[%s412 + $0xec] sm:%s404] %v531
      %v533 = vld [vmem:[%s411 + $0xe8] sm:%s404]
      %534 = vst [vmem:[%s412 + $0xf0] sm:%s404] %v533
      %v535 = vld [vmem:[%s411 + $0xf8] sm:%s404]
      %536 = vst [vmem:[%s412 + $0xf4] sm:%s404] %v535
      %v537 = vld [vmem:[%s411 + $0xec] sm:%s404]
      %538 = vst [vmem:[%s412 + $0xf8] sm:%s404] %v537
      %v539 = vld [vmem:[%s411 + $0xfc] sm:%s404]
      %540 = vst [vmem:[%s412 + $0xfc] sm:%s404] %v539
      %v541 = vld [vmem:[%s411 + $0x100] sm:%s404]
      %542 = vst [vmem:[%s412 + $0x100] sm:%s404] %v541
      %v543 = vld [vmem:[%s411 + $0x110] sm:%s404]
      %544 = vst [vmem:[%s412 + $0x104] sm:%s404] %v543
      %v545 = vld [vmem:[%s411 + $0x104] sm:%s404]
      %546 = vst [vmem:[%s412 + $0x108] sm:%s404] %v545
      %v547 = vld [vmem:[%s411 + $0x114] sm:%s404]
      %548 = vst [vmem:[%s412 + $0x10c] sm:%s404] %v547
      %v549 = vld [vmem:[%s411 + $0x108] sm:%s404]
      %550 = vst [vmem:[%s412 + $0x110] sm:%s404] %v549
      %v551 = vld [vmem:[%s411 + $0x118] sm:%s404]
      %552 = vst [vmem:[%s412 + $0x114] sm:%s404] %v551
      %v553 = vld [vmem:[%s411 + $0x10c] sm:%s404]
      %554 = vst [vmem:[%s412 + $0x118] sm:%s404] %v553
      %v555 = vld [vmem:[%s411 + $0x11c] sm:%s404]
      %556 = vst [vmem:[%s412 + $0x11c] sm:%s404] %v555
      %v557 = vld [vmem:[%s411 + $0x120] sm:%s404]
      %558 = vst [vmem:[%s412 + $0x120] sm:%s404] %v557
      %v559 = vld [vmem:[%s411 + $0x130] sm:%s404]
      %560 = vst [vmem:[%s412 + $0x124] sm:%s404] %v559
      %v561 = vld [vmem:[%s411 + $0x124] sm:%s404]
      %562 = vst [vmem:[%s412 + $0x128] sm:%s404] %v561
      %v563 = vld [vmem:[%s411 + $0x134] sm:%s404]
      %564 = vst [vmem:[%s412 + $0x12c] sm:%s404] %v563
      %v565 = vld [vmem:[%s411 + $0x128] sm:%s404]
      %566 = vst [vmem:[%s412 + $0x130] sm:%s404] %v565
      %v567 = vld [vmem:[%s411 + $0x138] sm:%s404]
      %568 = vst [vmem:[%s412 + $0x134] sm:%s404] %v567
      %v569 = vld [vmem:[%s411 + $0x12c] sm:%s404]
      %570 = vst [vmem:[%s412 + $0x138] sm:%s404] %v569
      %v571 = vld [vmem:[%s411 + $0x13c] sm:%s404]
      %572 = vst [vmem:[%s412 + $0x13c] sm:%s404] %v571
      %v573 = vld [vmem:[%s411 + $0x140] sm:%s404]
      %574 = vst [vmem:[%s412 + $0x140] sm:%s404] %v573
      %v575 = vld [vmem:[%s411 + $0x150] sm:%s404]
      %576 = vst [vmem:[%s412 + $0x144] sm:%s404] %v575
      %v577 = vld [vmem:[%s411 + $0x144] sm:%s404]
      %578 = vst [vmem:[%s412 + $0x148] sm:%s404] %v577
      %v579 = vld [vmem:[%s411 + $0x154] sm:%s404]
      %580 = vst [vmem:[%s412 + $0x14c] sm:%s404] %v579
      %v581 = vld [vmem:[%s411 + $0x148] sm:%s404]
      %582 = vst [vmem:[%s412 + $0x150] sm:%s404] %v581
      %v583 = vld [vmem:[%s411 + $0x158] sm:%s404]
      %584 = vst [vmem:[%s412 + $0x154] sm:%s404] %v583
      %v585 = vld [vmem:[%s411 + $0x14c] sm:%s404]
      %586 = vst [vmem:[%s412 + $0x158] sm:%s404] %v585
      %v587 = vld [vmem:[%s411 + $0x15c] sm:%s404]
      %588 = vst [vmem:[%s412 + $0x15c] sm:%s404] %v587
      %v589 = vld [vmem:[%s411 + $0x160] sm:%s404]
      %590 = vst [vmem:[%s412 + $0x160] sm:%s404] %v589
      %v591 = vld [vmem:[%s411 + $0x170] sm:%s404]
      %592 = vst [vmem:[%s412 + $0x164] sm:%s404] %v591
      %v593 = vld [vmem:[%s411 + $0x164] sm:%s404]
      %594 = vst [vmem:[%s412 + $0x168] sm:%s404] %v593
      %v595 = vld [vmem:[%s411 + $0x174] sm:%s404]
      %596 = vst [vmem:[%s412 + $0x16c] sm:%s404] %v595
      %v597 = vld [vmem:[%s411 + $0x168] sm:%s404]
      %598 = vst [vmem:[%s412 + $0x170] sm:%s404] %v597
      %v599 = vld [vmem:[%s411 + $0x178] sm:%s404]
      %600 = vst [vmem:[%s412 + $0x174] sm:%s404] %v599
      %v601 = vld [vmem:[%s411 + $0x16c] sm:%s404]
      %602 = vst [vmem:[%s412 + $0x178] sm:%s404] %v601
      %v603 = vld [vmem:[%s411 + $0x17c] sm:%s404]
      %604 = vst [vmem:[%s412 + $0x17c] sm:%s404] %v603
      %v605 = vld [vmem:[%s411 + $0x180] sm:%s404]
      %606 = vst [vmem:[%s412 + $0x180] sm:%s404] %v605
      %v607 = vld [vmem:[%s411 + $0x190] sm:%s404]
      %608 = vst [vmem:[%s412 + $0x184] sm:%s404] %v607
      %v609 = vld [vmem:[%s411 + $0x184] sm:%s404]
      %610 = vst [vmem:[%s412 + $0x188] sm:%s404] %v609
      %v611 = vld [vmem:[%s411 + $0x194] sm:%s404]
      %612 = vst [vmem:[%s412 + $0x18c] sm:%s404] %v611
      %v613 = vld [vmem:[%s411 + $0x188] sm:%s404]
      %614 = vst [vmem:[%s412 + $0x190] sm:%s404] %v613
      %v615 = vld [vmem:[%s411 + $0x198] sm:%s404]
      %616 = vst [vmem:[%s412 + $0x194] sm:%s404] %v615
      %v617 = vld [vmem:[%s411 + $0x18c] sm:%s404]
      %618 = vst [vmem:[%s412 + $0x198] sm:%s404] %v617
      %v619 = vld [vmem:[%s411 + $0x19c] sm:%s404]
      %620 = vst [vmem:[%s412 + $0x19c] sm:%s404] %v619
      %v621 = vld [vmem:[%s411 + $0x1a0] sm:%s404]
      %622 = vst [vmem:[%s412 + $0x1a0] sm:%s404] %v621
      %v623 = vld [vmem:[%s411 + $0x1b0] sm:%s404]
      %624 = vst [vmem:[%s412 + $0x1a4] sm:%s404] %v623
      %v625 = vld [vmem:[%s411 + $0x1a4] sm:%s404]
      %626 = vst [vmem:[%s412 + $0x1a8] sm:%s404] %v625
      %v627 = vld [vmem:[%s411 + $0x1b4] sm:%s404]
      %628 = vst [vmem:[%s412 + $0x1ac] sm:%s404] %v627
      %v629 = vld [vmem:[%s411 + $0x1a8] sm:%s404]
      %630 = vst [vmem:[%s412 + $0x1b0] sm:%s404] %v629
      %v631 = vld [vmem:[%s411 + $0x1b8] sm:%s404]
      %632 = vst [vmem:[%s412 + $0x1b4] sm:%s404] %v631
      %v633 = vld [vmem:[%s411 + $0x1ac] sm:%s404]
      %634 = vst [vmem:[%s412 + $0x1b8] sm:%s404] %v633
      %v635 = vld [vmem:[%s411 + $0x1bc] sm:%s404]
      %636 = vst [vmem:[%s412 + $0x1bc] sm:%s404] %v635
      %v637 = vld [vmem:[%s411 + $0x1c0] sm:%s404]
      %638 = vst [vmem:[%s412 + $0x1c0] sm:%s404] %v637
      %v639 = vld [vmem:[%s411 + $0x1d0] sm:%s404]
      %640 = vst [vmem:[%s412 + $0x1c4] sm:%s404] %v639
      %v641 = vld [vmem:[%s411 + $0x1c4] sm:%s404]
      %642 = vst [vmem:[%s412 + $0x1c8] sm:%s404] %v641
      %v643 = vld [vmem:[%s411 + $0x1d4] sm:%s404]
      %644 = vst [vmem:[%s412 + $0x1cc] sm:%s404] %v643
      %v645 = vld [vmem:[%s411 + $0x1c8] sm:%s404]
      %646 = vst [vmem:[%s412 + $0x1d0] sm:%s404] %v645
      %v647 = vld [vmem:[%s411 + $0x1d8] sm:%s404]
      %648 = vst [vmem:[%s412 + $0x1d4] sm:%s404] %v647
      %v649 = vld [vmem:[%s411 + $0x1cc] sm:%s404]
      %650 = vst [vmem:[%s412 + $0x1d8] sm:%s404] %v649
      %v651 = vld [vmem:[%s411 + $0x1dc] sm:%s404]
      %652 = vst [vmem:[%s412 + $0x1dc] sm:%s404] %v651
      %v653 = vld [vmem:[%s411 + $0x1e0] sm:%s404]
      %654 = vst [vmem:[%s412 + $0x1e0] sm:%s404] %v653
      %v655 = vld [vmem:[%s411 + $0x1f0] sm:%s404]
      %656 = vst [vmem:[%s412 + $0x1e4] sm:%s404] %v655
      %v657 = vld [vmem:[%s411 + $0x1e4] sm:%s404]
      %658 = vst [vmem:[%s412 + $0x1e8] sm:%s404] %v657
      %v659 = vld [vmem:[%s411 + $0x1f4] sm:%s404]
      %660 = vst [vmem:[%s412 + $0x1ec] sm:%s404] %v659
      %v661 = vld [vmem:[%s411 + $0x1e8] sm:%s404]
      %662 = vst [vmem:[%s412 + $0x1f0] sm:%s404] %v661
      %v663 = vld [vmem:[%s411 + $0x1f8] sm:%s404]
      %664 = vst [vmem:[%s412 + $0x1f4] sm:%s404] %v663
      %v665 = vld [vmem:[%s411 + $0x1ec] sm:%s404]
      %666 = vst [vmem:[%s412 + $0x1f8] sm:%s404] %v665
      %v667 = vld [vmem:[%s411 + $0x1fc] sm:%s404]
      %668 = vst [vmem:[%s412 + $0x1fc] sm:%s404] %v667
      %v669 = vld [vmem:[%s411 + $0x200] sm:%s404]
      %670 = vst [vmem:[%s412 + $0x200] sm:%s404] %v669
      %v671 = vld [vmem:[%s411 + $0x210] sm:%s404]
      %672 = vst [vmem:[%s412 + $0x204] sm:%s404] %v671
      %v673 = vld [vmem:[%s411 + $0x204] sm:%s404]
      %674 = vst [vmem:[%s412 + $0x208] sm:%s404] %v673
      %v675 = vld [vmem:[%s411 + $0x214] sm:%s404]
      %676 = vst [vmem:[%s412 + $0x20c] sm:%s404] %v675
      %v677 = vld [vmem:[%s411 + $0x208] sm:%s404]
      %678 = vst [vmem:[%s412 + $0x210] sm:%s404] %v677
      %v679 = vld [vmem:[%s411 + $0x218] sm:%s404]
      %680 = vst [vmem:[%s412 + $0x214] sm:%s404] %v679
      %v681 = vld [vmem:[%s411 + $0x20c] sm:%s404]
      %682 = vst [vmem:[%s412 + $0x218] sm:%s404] %v681
      %v683 = vld [vmem:[%s411 + $0x21c] sm:%s404]
      %684 = vst [vmem:[%s412 + $0x21c] sm:%s404] %v683
      %v685 = vld [vmem:[%s411 + $0x220] sm:%s404]
      %686 = vst [vmem:[%s412 + $0x220] sm:%s404] %v685
      %v687 = vld [vmem:[%s411 + $0x230] sm:%s404]
      %688 = vst [vmem:[%s412 + $0x224] sm:%s404] %v687
      %v689 = vld [vmem:[%s411 + $0x224] sm:%s404]
      %690 = vst [vmem:[%s412 + $0x228] sm:%s404] %v689
      %v691 = vld [vmem:[%s411 + $0x234] sm:%s404]
      %692 = vst [vmem:[%s412 + $0x22c] sm:%s404] %v691
      %v693 = vld [vmem:[%s411 + $0x228] sm:%s404]
      %694 = vst [vmem:[%s412 + $0x230] sm:%s404] %v693
      %v695 = vld [vmem:[%s411 + $0x238] sm:%s404]
      %696 = vst [vmem:[%s412 + $0x234] sm:%s404] %v695
      %v697 = vld [vmem:[%s411 + $0x22c] sm:%s404]
      %698 = vst [vmem:[%s412 + $0x238] sm:%s404] %v697
      %v699 = vld [vmem:[%s411 + $0x23c] sm:%s404]
      %700 = vst [vmem:[%s412 + $0x23c] sm:%s404] %v699
      %v701 = vld [vmem:[%s411 + $0x240] sm:%s404]
      %702 = vst [vmem:[%s412 + $0x240] sm:%s404] %v701
      %v703 = vld [vmem:[%s411 + $0x250] sm:%s404]
      %704 = vst [vmem:[%s412 + $0x244] sm:%s404] %v703
      %v705 = vld [vmem:[%s411 + $0x244] sm:%s404]
      %706 = vst [vmem:[%s412 + $0x248] sm:%s404] %v705
      %v707 = vld [vmem:[%s411 + $0x254] sm:%s404]
      %708 = vst [vmem:[%s412 + $0x24c] sm:%s404] %v707
      %v709 = vld [vmem:[%s411 + $0x248] sm:%s404]
      %710 = vst [vmem:[%s412 + $0x250] sm:%s404] %v709
      %v711 = vld [vmem:[%s411 + $0x258] sm:%s404]
      %712 = vst [vmem:[%s412 + $0x254] sm:%s404] %v711
      %v713 = vld [vmem:[%s411 + $0x24c] sm:%s404]
      %714 = vst [vmem:[%s412 + $0x258] sm:%s404] %v713
      %v715 = vld [vmem:[%s411 + $0x25c] sm:%s404]
      %716 = vst [vmem:[%s412 + $0x25c] sm:%s404] %v715
      %v717 = vld [vmem:[%s411 + $0x260] sm:%s404]
      %718 = vst [vmem:[%s412 + $0x260] sm:%s404] %v717
      %v719 = vld [vmem:[%s411 + $0x270] sm:%s404]
      %720 = vst [vmem:[%s412 + $0x264] sm:%s404] %v719
      %v721 = vld [vmem:[%s411 + $0x264] sm:%s404]
      %722 = vst [vmem:[%s412 + $0x268] sm:%s404] %v721
      %v723 = vld [vmem:[%s411 + $0x274] sm:%s404]
      %724 = vst [vmem:[%s412 + $0x26c] sm:%s404] %v723
      %v725 = vld [vmem:[%s411 + $0x268] sm:%s404]
      %726 = vst [vmem:[%s412 + $0x270] sm:%s404] %v725
      %v727 = vld [vmem:[%s411 + $0x278] sm:%s404]
      %728 = vst [vmem:[%s412 + $0x274] sm:%s404] %v727
      %v729 = vld [vmem:[%s411 + $0x26c] sm:%s404]
      %730 = vst [vmem:[%s412 + $0x278] sm:%s404] %v729
      %v731 = vld [vmem:[%s411 + $0x27c] sm:%s404]
      %732 = vst [vmem:[%s412 + $0x27c] sm:%s404] %v731
      %v733 = vld [vmem:[%s411 + $0x280] sm:%s404]
      %734 = vst [vmem:[%s412 + $0x280] sm:%s404] %v733
      %v735 = vld [vmem:[%s411 + $0x290] sm:%s404]
      %736 = vst [vmem:[%s412 + $0x284] sm:%s404] %v735
      %v737 = vld [vmem:[%s411 + $0x284] sm:%s404]
      %738 = vst [vmem:[%s412 + $0x288] sm:%s404] %v737
      %v739 = vld [vmem:[%s411 + $0x294] sm:%s404]
      %740 = vst [vmem:[%s412 + $0x28c] sm:%s404] %v739
      %v741 = vld [vmem:[%s411 + $0x288] sm:%s404]
      %742 = vst [vmem:[%s412 + $0x290] sm:%s404] %v741
      %v743 = vld [vmem:[%s411 + $0x298] sm:%s404]
      %744 = vst [vmem:[%s412 + $0x294] sm:%s404] %v743
      %v745 = vld [vmem:[%s411 + $0x28c] sm:%s404]
      %746 = vst [vmem:[%s412 + $0x298] sm:%s404] %v745
      %v747 = vld [vmem:[%s411 + $0x29c] sm:%s404]
      %748 = vst [vmem:[%s412 + $0x29c] sm:%s404] %v747
      %v749 = vld [vmem:[%s411 + $0x2a0] sm:%s404]
      %750 = vst [vmem:[%s412 + $0x2a0] sm:%s404] %v749
      %v751 = vld [vmem:[%s411 + $0x2b0] sm:%s404]
      %752 = vst [vmem:[%s412 + $0x2a4] sm:%s404] %v751
      %v753 = vld [vmem:[%s411 + $0x2a4] sm:%s404]
      %754 = vst [vmem:[%s412 + $0x2a8] sm:%s404] %v753
      %v755 = vld [vmem:[%s411 + $0x2b4] sm:%s404]
      %756 = vst [vmem:[%s412 + $0x2ac] sm:%s404] %v755
      %v757 = vld [vmem:[%s411 + $0x2a8] sm:%s404]
      %758 = vst [vmem:[%s412 + $0x2b0] sm:%s404] %v757
      %v759 = vld [vmem:[%s411 + $0x2b8] sm:%s404]
      %760 = vst [vmem:[%s412 + $0x2b4] sm:%s404] %v759
      %v761 = vld [vmem:[%s411 + $0x2ac] sm:%s404]
      %762 = vst [vmem:[%s412 + $0x2b8] sm:%s404] %v761
      %v763 = vld [vmem:[%s411 + $0x2bc] sm:%s404]
      %764 = vst [vmem:[%s412 + $0x2bc] sm:%s404] %v763
      %v765 = vld [vmem:[%s411 + $0x2c0] sm:%s404]
      %766 = vst [vmem:[%s412 + $0x2c0] sm:%s404] %v765
      %v767 = vld [vmem:[%s411 + $0x2d0] sm:%s404]
      %768 = vst [vmem:[%s412 + $0x2c4] sm:%s404] %v767
      %v769 = vld [vmem:[%s411 + $0x2c4] sm:%s404]
      %770 = vst [vmem:[%s412 + $0x2c8] sm:%s404] %v769
      %v771 = vld [vmem:[%s411 + $0x2d4] sm:%s404]
      %772 = vst [vmem:[%s412 + $0x2cc] sm:%s404] %v771
      %v773 = vld [vmem:[%s411 + $0x2c8] sm:%s404]
      %774 = vst [vmem:[%s412 + $0x2d0] sm:%s404] %v773
      %v775 = vld [vmem:[%s411 + $0x2d8] sm:%s404]
      %776 = vst [vmem:[%s412 + $0x2d4] sm:%s404] %v775
      %v777 = vld [vmem:[%s411 + $0x2cc] sm:%s404]
      %778 = vst [vmem:[%s412 + $0x2d8] sm:%s404] %v777
      %v779 = vld [vmem:[%s411 + $0x2dc] sm:%s404]
      %780 = vst [vmem:[%s412 + $0x2dc] sm:%s404] %v779
      %v781 = vld [vmem:[%s411 + $0x2e0] sm:%s404]
      %782 = vst [vmem:[%s412 + $0x2e0] sm:%s404] %v781
      %v783 = vld [vmem:[%s411 + $0x2f0] sm:%s404]
      %784 = vst [vmem:[%s412 + $0x2e4] sm:%s404] %v783
      %v785 = vld [vmem:[%s411 + $0x2e4] sm:%s404]
      %786 = vst [vmem:[%s412 + $0x2e8] sm:%s404] %v785
      %v787 = vld [vmem:[%s411 + $0x2f4] sm:%s404]
      %788 = vst [vmem:[%s412 + $0x2ec] sm:%s404] %v787
      %v789 = vld [vmem:[%s411 + $0x2e8] sm:%s404]
      %790 = vst [vmem:[%s412 + $0x2f0] sm:%s404] %v789
      %v791 = vld [vmem:[%s411 + $0x2f8] sm:%s404]
      %792 = vst [vmem:[%s412 + $0x2f4] sm:%s404] %v791
      %v793 = vld [vmem:[%s411 + $0x2ec] sm:%s404]
      %794 = vst [vmem:[%s412 + $0x2f8] sm:%s404] %v793
      %v795 = vld [vmem:[%s411 + $0x2fc] sm:%s404]
      %796 = vst [vmem:[%s412 + $0x2fc] sm:%s404] %v795
      %v797 = vld [vmem:[%s411 + $0x300] sm:%s404]
      %798 = vst [vmem:[%s412 + $0x300] sm:%s404] %v797
      %v799 = vld [vmem:[%s411 + $0x310] sm:%s404]
      %800 = vst [vmem:[%s412 + $0x304] sm:%s404] %v799
      %v801 = vld [vmem:[%s411 + $0x304] sm:%s404]
      %802 = vst [vmem:[%s412 + $0x308] sm:%s404] %v801
      %v803 = vld [vmem:[%s411 + $0x314] sm:%s404]
      %804 = vst [vmem:[%s412 + $0x30c] sm:%s404] %v803
      %v805 = vld [vmem:[%s411 + $0x308] sm:%s404]
      %806 = vst [vmem:[%s412 + $0x310] sm:%s404] %v805
      %v807 = vld [vmem:[%s411 + $0x318] sm:%s404]
      %808 = vst [vmem:[%s412 + $0x314] sm:%s404] %v807
      %v809 = vld [vmem:[%s411 + $0x30c] sm:%s404]
      %810 = vst [vmem:[%s412 + $0x318] sm:%s404] %v809
      %v811 = vld [vmem:[%s411 + $0x31c] sm:%s404]
      %812 = vst [vmem:[%s412 + $0x31c] sm:%s404] %v811
      %v813 = vld [vmem:[%s411 + $0x320] sm:%s404]
      %814 = vst [vmem:[%s412 + $0x320] sm:%s404] %v813
      %v815 = vld [vmem:[%s411 + $0x330] sm:%s404]
      %816 = vst [vmem:[%s412 + $0x324] sm:%s404] %v815
      %v817 = vld [vmem:[%s411 + $0x324] sm:%s404]
      %818 = vst [vmem:[%s412 + $0x328] sm:%s404] %v817
      %v819 = vld [vmem:[%s411 + $0x334] sm:%s404]
      %820 = vst [vmem:[%s412 + $0x32c] sm:%s404] %v819
      %v821 = vld [vmem:[%s411 + $0x328] sm:%s404]
      %822 = vst [vmem:[%s412 + $0x330] sm:%s404] %v821
      %v823 = vld [vmem:[%s411 + $0x338] sm:%s404]
      %824 = vst [vmem:[%s412 + $0x334] sm:%s404] %v823
      %v825 = vld [vmem:[%s411 + $0x32c] sm:%s404]
      %826 = vst [vmem:[%s412 + $0x338] sm:%s404] %v825
      %v827 = vld [vmem:[%s411 + $0x33c] sm:%s404]
      %828 = vst [vmem:[%s412 + $0x33c] sm:%s404] %v827
      %v829 = vld [vmem:[%s411 + $0x340] sm:%s404]
      %830 = vst [vmem:[%s412 + $0x340] sm:%s404] %v829
      %v831 = vld [vmem:[%s411 + $0x350] sm:%s404]
      %832 = vst [vmem:[%s412 + $0x344] sm:%s404] %v831
      %v833 = vld [vmem:[%s411 + $0x344] sm:%s404]
      %834 = vst [vmem:[%s412 + $0x348] sm:%s404] %v833
      %v835 = vld [vmem:[%s411 + $0x354] sm:%s404]
      %836 = vst [vmem:[%s412 + $0x34c] sm:%s404] %v835
      %v837 = vld [vmem:[%s411 + $0x348] sm:%s404]
      %838 = vst [vmem:[%s412 + $0x350] sm:%s404] %v837
      %v839 = vld [vmem:[%s411 + $0x358] sm:%s404]
      %840 = vst [vmem:[%s412 + $0x354] sm:%s404] %v839
      %v841 = vld [vmem:[%s411 + $0x34c] sm:%s404]
      %842 = vst [vmem:[%s412 + $0x358] sm:%s404] %v841
      %v843 = vld [vmem:[%s411 + $0x35c] sm:%s404]
      %844 = vst [vmem:[%s412 + $0x35c] sm:%s404] %v843
      %v845 = vld [vmem:[%s411 + $0x360] sm:%s404]
      %846 = vst [vmem:[%s412 + $0x360] sm:%s404] %v845
      %v847 = vld [vmem:[%s411 + $0x370] sm:%s404]
      %848 = vst [vmem:[%s412 + $0x364] sm:%s404] %v847
      %v849 = vld [vmem:[%s411 + $0x364] sm:%s404]
      %850 = vst [vmem:[%s412 + $0x368] sm:%s404] %v849
      %v851 = vld [vmem:[%s411 + $0x374] sm:%s404]
      %852 = vst [vmem:[%s412 + $0x36c] sm:%s404] %v851
      %v853 = vld [vmem:[%s411 + $0x368] sm:%s404]
      %854 = vst [vmem:[%s412 + $0x370] sm:%s404] %v853
      %v855 = vld [vmem:[%s411 + $0x378] sm:%s404]
      %856 = vst [vmem:[%s412 + $0x374] sm:%s404] %v855
      %v857 = vld [vmem:[%s411 + $0x36c] sm:%s404]
      %858 = vst [vmem:[%s412 + $0x378] sm:%s404] %v857
      %v859 = vld [vmem:[%s411 + $0x37c] sm:%s404]
      %860 = vst [vmem:[%s412 + $0x37c] sm:%s404] %v859
      %v861 = vld [vmem:[%s411 + $0x380] sm:%s404]
      %862 = vst [vmem:[%s412 + $0x380] sm:%s404] %v861
      %v863 = vld [vmem:[%s411 + $0x390] sm:%s404]
      %864 = vst [vmem:[%s412 + $0x384] sm:%s404] %v863
      %v865 = vld [vmem:[%s411 + $0x384] sm:%s404]
      %866 = vst [vmem:[%s412 + $0x388] sm:%s404] %v865
      %v867 = vld [vmem:[%s411 + $0x394] sm:%s404]
      %868 = vst [vmem:[%s412 + $0x38c] sm:%s404] %v867
      %v869 = vld [vmem:[%s411 + $0x388] sm:%s404]
      %870 = vst [vmem:[%s412 + $0x390] sm:%s404] %v869
      %v871 = vld [vmem:[%s411 + $0x398] sm:%s404]
      %872 = vst [vmem:[%s412 + $0x394] sm:%s404] %v871
      %v873 = vld [vmem:[%s411 + $0x38c] sm:%s404]
      %874 = vst [vmem:[%s412 + $0x398] sm:%s404] %v873
      %v875 = vld [vmem:[%s411 + $0x39c] sm:%s404]
      %876 = vst [vmem:[%s412 + $0x39c] sm:%s404] %v875
      %v877 = vld [vmem:[%s411 + $0x3a0] sm:%s404]
      %878 = vst [vmem:[%s412 + $0x3a0] sm:%s404] %v877
      %v879 = vld [vmem:[%s411 + $0x3b0] sm:%s404]
      %880 = vst [vmem:[%s412 + $0x3a4] sm:%s404] %v879
      %v881 = vld [vmem:[%s411 + $0x3a4] sm:%s404]
      %882 = vst [vmem:[%s412 + $0x3a8] sm:%s404] %v881
      %v883 = vld [vmem:[%s411 + $0x3b4] sm:%s404]
      %884 = vst [vmem:[%s412 + $0x3ac] sm:%s404] %v883
      %v885 = vld [vmem:[%s411 + $0x3a8] sm:%s404]
      %886 = vst [vmem:[%s412 + $0x3b0] sm:%s404] %v885
      %v887 = vld [vmem:[%s411 + $0x3b8] sm:%s404]
      %888 = vst [vmem:[%s412 + $0x3b4] sm:%s404] %v887
      %v889 = vld [vmem:[%s411 + $0x3ac] sm:%s404]
      %890 = vst [vmem:[%s412 + $0x3b8] sm:%s404] %v889
      %v891 = vld [vmem:[%s411 + $0x3bc] sm:%s404]
      %892 = vst [vmem:[%s412 + $0x3bc] sm:%s404] %v891
      %v893 = vld [vmem:[%s411 + $0x3c0] sm:%s404]
      %894 = vst [vmem:[%s412 + $0x3c0] sm:%s404] %v893
      %v895 = vld [vmem:[%s411 + $0x3d0] sm:%s404]
      %896 = vst [vmem:[%s412 + $0x3c4] sm:%s404] %v895
      %v897 = vld [vmem:[%s411 + $0x3c4] sm:%s404]
      %898 = vst [vmem:[%s412 + $0x3c8] sm:%s404] %v897
      %v899 = vld [vmem:[%s411 + $0x3d4] sm:%s404]
      %900 = vst [vmem:[%s412 + $0x3cc] sm:%s404] %v899
      %v901 = vld [vmem:[%s411 + $0x3c8] sm:%s404]
      %902 = vst [vmem:[%s412 + $0x3d0] sm:%s404] %v901
      %v903 = vld [vmem:[%s411 + $0x3d8] sm:%s404]
      %904 = vst [vmem:[%s412 + $0x3d4] sm:%s404] %v903
      %v905 = vld [vmem:[%s411 + $0x3cc] sm:%s404]
      %906 = vst [vmem:[%s412 + $0x3d8] sm:%s404] %v905
      %v907 = vld [vmem:[%s411 + $0x3dc] sm:%s404]
      %908 = vst [vmem:[%s412 + $0x3dc] sm:%s404] %v907
      %v909 = vld [vmem:[%s411 + $0x3e0] sm:%s404]
      %910 = vst [vmem:[%s412 + $0x3e0] sm:%s404] %v909
      %v911 = vld [vmem:[%s411 + $0x3f0] sm:%s404]
      %912 = vst [vmem:[%s412 + $0x3e4] sm:%s404] %v911
      %v913 = vld [vmem:[%s411 + $0x3e4] sm:%s404]
      %914 = vst [vmem:[%s412 + $0x3e8] sm:%s404] %v913
      %v915 = vld [vmem:[%s411 + $0x3f4] sm:%s404]
      %916 = vst [vmem:[%s412 + $0x3ec] sm:%s404] %v915
      %v917 = vld [vmem:[%s411 + $0x3e8] sm:%s404]
      %918 = vst [vmem:[%s412 + $0x3f0] sm:%s404] %v917
      %v919 = vld [vmem:[%s411 + $0x3f8] sm:%s404]
      %920 = vst [vmem:[%s412 + $0x3f4] sm:%s404] %v919
      %v921 = vld [vmem:[%s411 + $0x3ec] sm:%s404]
      %922 = vst [vmem:[%s412 + $0x3f8] sm:%s404] %v921
      %v923 = vld [vmem:[%s411 + $0x3fc] sm:%s404]
      %924 = vst [vmem:[%s412 + $0x3fc] sm:%s404] %v923
    $region128: #{model_forward.1} parent=122 // loop_footer
      %s410 = sadd.s32 1, %s406
    $region129: #{model_forward.1} parent=122 // loop_footer_branch
      %405 = sbr.rel target = $region125
    $region130: #{model_forward.1} parent=122 // loop_exit
      _
  $region123: #{model_forward.1} parent=0 // pred_fallthru
    _
  // Predicated region
  $region149: #{model_forward.1} parent=0 // pred_check
    _
  $region150: #{model_forward.1} parent=0 // pred_check_branch
    %1466 = sbr.rel (0) target = $region152
  $region151: #{model_forward.1} parent=0 // pred_region
    %1467 = vsyncadd %s395, 16384
  $region152: #{model_forward.1} parent=0 // pred_fallthru
    _
  %v1468 = vld [vmem:[%s0] sm:$0xff]
  %v1469 = vld [vmem:[%s0 + $0x8] sm:$0xff]
  %v1470 = vld [vmem:[%s0 + $0x10] sm:$0xff]
  %v1471 = vld [vmem:[%s0 + $0x18] sm:$0xff]
  %v1472 = vld [vmem:[%s0 + $0x20] sm:$0xff]
  %v1473 = vld [vmem:[%s0 + $0x28] sm:$0xff]
  %v1474 = vld [vmem:[%s0 + $0x30] sm:$0xff]
  %v1475 = vld [vmem:[%s0 + $0x38] sm:$0xff]
  %v1476 = vld [vmem:[%s0 + $0x40] sm:$0xff]
  %v1477 = vld [vmem:[%s0 + $0x48] sm:$0xff]
  %v1478 = vld [vmem:[%s0 + $0x50] sm:$0xff]
  %v1479 = vld [vmem:[%s0 + $0x58] sm:$0xff]
  %v1480 = vld [vmem:[%s0 + $0x60] sm:$0xff]
  %v1481 = vld [vmem:[%s0 + $0x68] sm:$0xff]
  %v1482 = vld [vmem:[%s0 + $0x70] sm:$0xff]
  %v1483 = vld [vmem:[%s0 + $0x78] sm:$0xff]
  %v1484 = vld [vmem:[%s0 + $0x80] sm:$0xff]
  %v1485 = vld [vmem:[%s0 + $0x88] sm:$0xff]
  %v1486 = vld [vmem:[%s0 + $0x90] sm:$0xff]
  %v1487 = vld [vmem:[%s0 + $0x98] sm:$0xff]
  %v1488 = vld [vmem:[%s0 + $0xa0] sm:$0xff]
  %v1489 = vld [vmem:[%s0 + $0xa8] sm:$0xff]
  %v1490 = vld [vmem:[%s0 + $0xb0] sm:$0xff]
  %v1491 = vld [vmem:[%s0 + $0xb8] sm:$0xff]
  %v1492 = vld [vmem:[%s0 + $0xc0] sm:$0xff]
  %v1493 = vld [vmem:[%s0 + $0xc8] sm:$0xff]
  %v1494 = vld [vmem:[%s0 + $0xd0] sm:$0xff]
  %v1495 = vld [vmem:[%s0 + $0xd8] sm:$0xff]
  %v1496 = vld [vmem:[%s0 + $0xe0] sm:$0xff]
  %v1497 = vld [vmem:[%s0 + $0xe8] sm:$0xff]
  %v1498 = vld [vmem:[%s0 + $0xf0] sm:$0xff]
  %v1499 = vld [vmem:[%s0 + $0xf8] sm:$0xff]
  %v1500 = vld [vmem:[%s0 + $0x100] sm:$0xff]
  %v1501 = vld [vmem:[%s0 + $0x108] sm:$0xff]
  %v1502 = vld [vmem:[%s0 + $0x110] sm:$0xff]
  %v1503 = vld [vmem:[%s0 + $0x118] sm:$0xff]
  %v1504 = vld [vmem:[%s0 + $0x120] sm:$0xff]
  %v1505 = vld [vmem:[%s0 + $0x128] sm:$0xff]
  %v1506 = vld [vmem:[%s0 + $0x130] sm:$0xff]
  %v1507 = vld [vmem:[%s0 + $0x138] sm:$0xff]
  %v1508 = vld [vmem:[%s0 + $0x140] sm:$0xff]
  %v1509 = vld [vmem:[%s0 + $0x148] sm:$0xff]
  %v1510 = vld [vmem:[%s0 + $0x150] sm:$0xff]
  %v1511 = vld [vmem:[%s0 + $0x158] sm:$0xff]
  %v1512 = vld [vmem:[%s0 + $0x160] sm:$0xff]
  %v1513 = vld [vmem:[%s0 + $0x168] sm:$0xff]
  %v1514 = vld [vmem:[%s0 + $0x170] sm:$0xff]
  %v1515 = vld [vmem:[%s0 + $0x178] sm:$0xff]
  %v1516 = vld [vmem:[%s0 + $0x180] sm:$0xff]
  %v1517 = vld [vmem:[%s0 + $0x188] sm:$0xff]
  %v1518 = vld [vmem:[%s0 + $0x190] sm:$0xff]
  %v1519 = vld [vmem:[%s0 + $0x198] sm:$0xff]
  %v1520 = vld [vmem:[%s0 + $0x1a0] sm:$0xff]
  %v1521 = vld [vmem:[%s0 + $0x1a8] sm:$0xff]
  %v1522 = vld [vmem:[%s0 + $0x1b0] sm:$0xff]
  %v1523 = vld [vmem:[%s0 + $0x1b8] sm:$0xff]
  %v1524 = vld [vmem:[%s0 + $0x1c0] sm:$0xff]
  %v1525 = vld [vmem:[%s0 + $0x1c8] sm:$0xff]
  %v1526 = vld [vmem:[%s0 + $0x1d0] sm:$0xff]
  %v1527 = vld [vmem:[%s0 + $0x1d8] sm:$0xff]
  %v1528 = vld [vmem:[%s0 + $0x1e0] sm:$0xff]
  %v1529 = vld [vmem:[%s0 + $0x1e8] sm:$0xff]
  %v1530 = vld [vmem:[%s0 + $0x1f0] sm:$0xff]
  %v1531 = vld [vmem:[%s0 + $0x1f8] sm:$0xff]
  %v1532 = vld [vmem:[%s0 + $0x200] sm:$0xff]
  %v1533 = vld [vmem:[%s0 + $0x208] sm:$0xff]
  %v1534 = vld [vmem:[%s0 + $0x210] sm:$0xff]
  %v1535 = vld [vmem:[%s0 + $0x218] sm:$0xff]
  %v1536 = vld [vmem:[%s0 + $0x220] sm:$0xff]
  %v1537 = vld [vmem:[%s0 + $0x228] sm:$0xff]
  %v1538 = vld [vmem:[%s0 + $0x230] sm:$0xff]
  %v1539 = vld [vmem:[%s0 + $0x238] sm:$0xff]
  %v1540 = vld [vmem:[%s1] sm:$0xf]
  %v1541 = vld [vmem:[%s1 + $0x4] sm:$0xf]
  %v1542 = vld [vmem:[%s1 + $0x8] sm:$0xf]
  %v1543 = vld [vmem:[%s1 + $0xc] sm:$0xf]
  %v1544 = vld [vmem:[%s1 + $0x10] sm:$0xf]
  %v1545 = vld [vmem:[%s1 + $0x14] sm:$0xf]
  %v1546 = vld [vmem:[%s1 + $0x18] sm:$0xf]
  %v1547 = vld [vmem:[%s1 + $0x1c] sm:$0xf]
  %v1548 = vld [vmem:[%s1 + $0x20] sm:$0xf]
  %v1549 = vld [vmem:[%s1 + $0x24] sm:$0xf]
  %v1550 = vld [vmem:[%s1 + $0x28] sm:$0xf]
  %v1551 = vld [vmem:[%s1 + $0x2c] sm:$0xf]
  %v1552 = vld [vmem:[%s1 + $0x30] sm:$0xf]
  %v1553 = vld [vmem:[%s1 + $0x34] sm:$0xf]
  %v1554 = vld [vmem:[%s1 + $0x38] sm:$0xf]
  %v1555 = vld [vmem:[%s1 + $0x3c] sm:$0xf]
  %v1556 = vld [vmem:[%s1 + $0x40] sm:$0xf]
  %v1557 = vld [vmem:[%s1 + $0x44] sm:$0xf]
  %v1558 = vld [vmem:[%s1 + $0x48] sm:$0xf]
  %v1559 = vld [vmem:[%s1 + $0x4c] sm:$0xf]
  %v1560 = vld [vmem:[%s1 + $0x50] sm:$0xf]
  %v1561 = vld [vmem:[%s1 + $0x54] sm:$0xf]
  %v1562 = vld [vmem:[%s1 + $0x58] sm:$0xf]
  %v1563 = vld [vmem:[%s1 + $0x5c] sm:$0xf]
  %v1564 = vld [vmem:[%s1 + $0x60] sm:$0xf]
  %v1565 = vld [vmem:[%s1 + $0x64] sm:$0xf]
  %v1566 = vld [vmem:[%s1 + $0x68] sm:$0xf]
  %v1567 = vld [vmem:[%s1 + $0x6c] sm:$0xf]
  %v1568 = vld [vmem:[%s1 + $0x70] sm:$0xf]
  %v1569 = vld [vmem:[%s1 + $0x74] sm:$0xf]
  %v1570 = vld [vmem:[%s1 + $0x78] sm:$0xf]
  %v1571 = vld [vmem:[%s1 + $0x7c] sm:$0xf]
  %v1572 = vld [vmem:[%s1 + $0x80] sm:$0xf]
  %v1573 = vld [vmem:[%s1 + $0x84] sm:$0xf]
  %v1574 = vld [vmem:[%s1 + $0x88] sm:$0xf]
  %v1575 = vld [vmem:[%s1 + $0x8c] sm:$0xf]
  %v1576 = vld [vmem:[%s1 + $0x90] sm:$0xf]
  %v1577 = vld [vmem:[%s1 + $0x94] sm:$0xf]
  %v1578 = vld [vmem:[%s1 + $0x98] sm:$0xf]
  %v1579 = vld [vmem:[%s1 + $0x9c] sm:$0xf]
  %v1580 = vld [vmem:[%s1 + $0xa0] sm:$0xf]
  %v1581 = vld [vmem:[%s1 + $0xa4] sm:$0xf]
  %v1582 = vld [vmem:[%s1 + $0xa8] sm:$0xf]
  %v1583 = vld [vmem:[%s1 + $0xac] sm:$0xf]
  %v1584 = vld [vmem:[%s1 + $0xb0] sm:$0xf]
  %v1585 = vld [vmem:[%s1 + $0xb4] sm:$0xf]
  %v1586 = vld [vmem:[%s1 + $0xb8] sm:$0xf]
  %v1587 = vld [vmem:[%s1 + $0xbc] sm:$0xf]
  %v1588 = vld [vmem:[%s1 + $0xc0] sm:$0xf]
  %v1589 = vld [vmem:[%s1 + $0xc4] sm:$0xf]
  %v1590 = vld [vmem:[%s1 + $0xc8] sm:$0xf]
  %v1591 = vld [vmem:[%s1 + $0xcc] sm:$0xf]
  %v1592 = vld [vmem:[%s1 + $0xd0] sm:$0xf]
  %v1593 = vld [vmem:[%s1 + $0xd4] sm:$0xf]
  %v1594 = vld [vmem:[%s1 + $0xd8] sm:$0xf]
  %v1595 = vld [vmem:[%s1 + $0xdc] sm:$0xf]
  %v1596 = vld [vmem:[%s1 + $0xe0] sm:$0xf]
  %v1597 = vld [vmem:[%s1 + $0xe4] sm:$0xf]
  %v1598 = vld [vmem:[%s1 + $0xe8] sm:$0xf]
  %v1599 = vld [vmem:[%s1 + $0xec] sm:$0xf]
  %v1600 = vld [vmem:[%s1 + $0xf0] sm:$0xf]
  %v1601 = vld [vmem:[%s1 + $0xf4] sm:$0xf]
  %v1602 = vld [vmem:[%s1 + $0xf8] sm:$0xf]
  %v1603 = vld [vmem:[%s1 + $0xfc] sm:$0xf]
  %v1604 = vld [vmem:[%s1 + $0x100] sm:$0xf]
  %v1605 = vld [vmem:[%s1 + $0x104] sm:$0xf]
  %v1606 = vld [vmem:[%s1 + $0x108] sm:$0xf]
  %v1607 = vld [vmem:[%s1 + $0x10c] sm:$0xf]
  %v1608 = vld [vmem:[%s1 + $0x110] sm:$0xf]
  %v1609 = vld [vmem:[%s1 + $0x114] sm:$0xf]
  %v1610 = vld [vmem:[%s1 + $0x118] sm:$0xf]
  %v1611 = vld [vmem:[%s1 + $0x11c] sm:$0xf]
  %v1612 = vld [vmem:[%s1 + $0x120] sm:$0xf]
  %v1613 = vld [vmem:[%s1 + $0x124] sm:$0xf]
  %v1614 = vld [vmem:[%s1 + $0x128] sm:$0xf]
  %v1615 = vld [vmem:[%s1 + $0x12c] sm:$0xf]
  %v1616 = vld [vmem:[%s1 + $0x130] sm:$0xf]
  %v1617 = vld [vmem:[%s1 + $0x134] sm:$0xf]
  %v1618 = vld [vmem:[%s1 + $0x138] sm:$0xf]
  %v1619 = vld [vmem:[%s1 + $0x13c] sm:$0xf]
  %v1620 = vld [vmem:[%s1 + $0x140] sm:$0xf]
  %v1621 = vld [vmem:[%s1 + $0x144] sm:$0xf]
  %v1622 = vld [vmem:[%s1 + $0x148] sm:$0xf]
  %v1623 = vld [vmem:[%s1 + $0x14c] sm:$0xf]
  %v1624 = vld [vmem:[%s1 + $0x150] sm:$0xf]
  %v1625 = vld [vmem:[%s1 + $0x154] sm:$0xf]
  %v1626 = vld [vmem:[%s1 + $0x158] sm:$0xf]
  %v1627 = vld [vmem:[%s1 + $0x15c] sm:$0xf]
  %v1628 = vld [vmem:[%s1 + $0x160] sm:$0xf]
  %v1629 = vld [vmem:[%s1 + $0x164] sm:$0xf]
  %v1630 = vld [vmem:[%s1 + $0x168] sm:$0xf]
  %v1631 = vld [vmem:[%s1 + $0x16c] sm:$0xf]
  %v1632 = vld [vmem:[%s1 + $0x170] sm:$0xf]
  %v1633 = vld [vmem:[%s1 + $0x174] sm:$0xf]
  %v1634 = vld [vmem:[%s1 + $0x178] sm:$0xf]
  %v1635 = vld [vmem:[%s1 + $0x17c] sm:$0xf]
  %v1636 = vld [vmem:[%s1 + $0x180] sm:$0xf]
  %v1637 = vld [vmem:[%s1 + $0x184] sm:$0xf]
  %v1638 = vld [vmem:[%s1 + $0x188] sm:$0xf]
  %v1639 = vld [vmem:[%s1 + $0x18c] sm:$0xf]
  %v1640 = vld [vmem:[%s1 + $0x190] sm:$0xf]
  %v1641 = vld [vmem:[%s1 + $0x194] sm:$0xf]
  %v1642 = vld [vmem:[%s1 + $0x198] sm:$0xf]
  %v1643 = vld [vmem:[%s1 + $0x19c] sm:$0xf]
  %v1644 = vld [vmem:[%s1 + $0x1a0] sm:$0xf]
  %v1645 = vld [vmem:[%s1 + $0x1a4] sm:$0xf]
  %v1646 = vld [vmem:[%s1 + $0x1a8] sm:$0xf]
  %v1647 = vld [vmem:[%s1 + $0x1ac] sm:$0xf]
  %v1648 = vld [vmem:[%s1 + $0x1b0] sm:$0xf]
  %v1649 = vld [vmem:[%s1 + $0x1b4] sm:$0xf]
  %v1650 = vld [vmem:[%s1 + $0x1b8] sm:$0xf]
  %v1651 = vld [vmem:[%s1 + $0x1bc] sm:$0xf]
  %v1652 = vld [vmem:[%s1 + $0x1c0] sm:$0xf]
  %v1653 = vld [vmem:[%s1 + $0x1c4] sm:$0xf]
  %v1654 = vld [vmem:[%s1 + $0x1c8] sm:$0xf]
  %v1655 = vld [vmem:[%s1 + $0x1cc] sm:$0xf]
  %v1656 = vld [vmem:[%s1 + $0x1d0] sm:$0xf]
  %v1657 = vld [vmem:[%s1 + $0x1d4] sm:$0xf]
  %v1658 = vld [vmem:[%s1 + $0x1d8] sm:$0xf]
  %v1659 = vld [vmem:[%s1 + $0x1dc] sm:$0xf]
  %v1660 = vld [vmem:[%s1 + $0x1e0] sm:$0xf]
  %v1661 = vld [vmem:[%s1 + $0x1e4] sm:$0xf]
  %v1662 = vld [vmem:[%s1 + $0x1e8] sm:$0xf]
  %v1663 = vld [vmem:[%s1 + $0x1ec] sm:$0xf]
  %v1664 = vld [vmem:[%s1 + $0x1f0] sm:$0xf]
  %v1665 = vld [vmem:[%s1 + $0x1f4] sm:$0xf]
  %v1666 = vld [vmem:[%s1 + $0x1f8] sm:$0xf]
  %v1667 = vld [vmem:[%s1 + $0x1fc] sm:$0xf]
  %v1668 = vld [vmem:[%s1 + $0x200] sm:$0xf]
  %v1669 = vld [vmem:[%s1 + $0x204] sm:$0xf]
  %v1670 = vld [vmem:[%s1 + $0x208] sm:$0xf]
  %v1671 = vld [vmem:[%s1 + $0x20c] sm:$0xf]
  %v1672 = vld [vmem:[%s1 + $0x210] sm:$0xf]
  %v1673 = vld [vmem:[%s1 + $0x214] sm:$0xf]
  %v1674 = vld [vmem:[%s1 + $0x218] sm:$0xf]
  %v1675 = vld [vmem:[%s1 + $0x21c] sm:$0xf]
  %v1676 = vld [vmem:[%s1 + $0x220] sm:$0xf]
  %v1677 = vld [vmem:[%s1 + $0x224] sm:$0xf]
  %v1678 = vld [vmem:[%s1 + $0x228] sm:$0xf]
  %v1679 = vld [vmem:[%s1 + $0x22c] sm:$0xf]
  %v1680 = vld [vmem:[%s1 + $0x230] sm:$0xf]
  %v1681 = vld [vmem:[%s1 + $0x234] sm:$0xf]
  %v1682 = vld [vmem:[%s1 + $0x238] sm:$0xf]
  %v1683 = vld [vmem:[%s1 + $0x23c] sm:$0xf]
  %v1684 = vld [vmem:[%s1 + $0x240] sm:$0xf]
  %v1685 = vld [vmem:[%s1 + $0x244] sm:$0xf]
  %v1686 = vld [vmem:[%s1 + $0x248] sm:$0xf]
  %v1687 = vld [vmem:[%s1 + $0x24c] sm:$0xf]
  %v1688 = vld [vmem:[%s1 + $0x250] sm:$0xf]
  %v1689 = vld [vmem:[%s1 + $0x254] sm:$0xf]
  %v1690 = vld [vmem:[%s1 + $0x258] sm:$0xf]
  %v1691 = vld [vmem:[%s1 + $0x25c] sm:$0xf]
  %v1692 = vld [vmem:[%s1 + $0x260] sm:$0xf]
  %v1693 = vld [vmem:[%s1 + $0x264] sm:$0xf]
  %v1694 = vld [vmem:[%s1 + $0x268] sm:$0xf]
  %v1695 = vld [vmem:[%s1 + $0x26c] sm:$0xf]
  %v1696 = vld [vmem:[%s1 + $0x270] sm:$0xf]
  %v1697 = vld [vmem:[%s1 + $0x274] sm:$0xf]
  %v1698 = vld [vmem:[%s1 + $0x278] sm:$0xf]
  %v1699 = vld [vmem:[%s1 + $0x27c] sm:$0xf]
  %v1700 = vld [vmem:[%s1 + $0x280] sm:$0xf]
  %v1701 = vld [vmem:[%s1 + $0x284] sm:$0xf]
  %v1702 = vld [vmem:[%s1 + $0x288] sm:$0xf]
  %v1703 = vld [vmem:[%s1 + $0x28c] sm:$0xf]
  %v1704 = vld [vmem:[%s1 + $0x290] sm:$0xf]
  %v1705 = vld [vmem:[%s1 + $0x294] sm:$0xf]
  %v1706 = vld [vmem:[%s1 + $0x298] sm:$0xf]
  %v1707 = vld [vmem:[%s1 + $0x29c] sm:$0xf]
  %v1708 = vld [vmem:[%s1 + $0x2a0] sm:$0xf]
  %v1709 = vld [vmem:[%s1 + $0x2a4] sm:$0xf]
  %v1710 = vld [vmem:[%s1 + $0x2a8] sm:$0xf]
  %v1711 = vld [vmem:[%s1 + $0x2ac] sm:$0xf]
  %v1712 = vld [vmem:[%s1 + $0x2b0] sm:$0xf]
  %v1713 = vld [vmem:[%s1 + $0x2b4] sm:$0xf]
  %v1714 = vld [vmem:[%s1 + $0x2b8] sm:$0xf]
  %v1715 = vld [vmem:[%s1 + $0x2bc] sm:$0xf]
  %v1716 = vld [vmem:[%s1 + $0x2c0] sm:$0xf]
  %v1717 = vld [vmem:[%s1 + $0x2c4] sm:$0xf]
  %v1718 = vld [vmem:[%s1 + $0x2c8] sm:$0xf]
  %v1719 = vld [vmem:[%s1 + $0x2cc] sm:$0xf]
  %v1720 = vld [vmem:[%s1 + $0x2d0] sm:$0xf]
  %v1721 = vld [vmem:[%s1 + $0x2d4] sm:$0xf]
  %v1722 = vld [vmem:[%s1 + $0x2d8] sm:$0xf]
  %v1723 = vld [vmem:[%s1 + $0x2dc] sm:$0xf]
  %v1724 = vld [vmem:[%s1 + $0x2e0] sm:$0xf]
  %v1725 = vld [vmem:[%s1 + $0x2e4] sm:$0xf]
  %v1726 = vld [vmem:[%s1 + $0x2e8] sm:$0xf]
  %v1727 = vld [vmem:[%s1 + $0x2ec] sm:$0xf]
  %v1728 = vld [vmem:[%s1 + $0x2f0] sm:$0xf]
  %v1729 = vld [vmem:[%s1 + $0x2f4] sm:$0xf]
  %v1730 = vld [vmem:[%s1 + $0x2f8] sm:$0xf]
  %v1731 = vld [vmem:[%s1 + $0x2fc] sm:$0xf]
  %v1732 = vld [vmem:[%s2] sm:$0x1]
  %v1734 = vlaneseq
  %v1735 = vshrl.u32 %v1734, 7
  %v1736 = vsub.s32 0, %v1735
  %v1737 = vrot.slane %v1732, %v1736
  %v1811 = vunpack.c.l.b16 %v1468
  %v1812 = vunpack.c.h.b16 %v1468
  %v1813 = vunpack.c.l.b16 %v1469
  %v1814 = vunpack.c.h.b16 %v1469
  %v1815 = vunpack.c.l.b16 %v1470
  %v1816 = vunpack.c.h.b16 %v1470
  %v1817 = vunpack.c.l.b16 %v1471
  %v1818 = vunpack.c.h.b16 %v1471
  %v1819 = vunpack.c.l.b16 %v1472
  %v1820 = vunpack.c.h.b16 %v1472
  %v1821 = vunpack.c.l.b16 %v1473
  %v1822 = vunpack.c.h.b16 %v1473
  %v1823 = vunpack.c.l.b16 %v1474
  %v1824 = vunpack.c.h.b16 %v1474
  %v1825 = vunpack.c.l.b16 %v1475
  %v1826 = vunpack.c.h.b16 %v1475
  %v1827 = vunpack.c.l.b16 %v1476
  %v1828 = vunpack.c.h.b16 %v1476
  %v1829 = vunpack.c.l.b16 %v1477
  %v1830 = vunpack.c.h.b16 %v1477
  %v1831 = vunpack.c.l.b16 %v1478
  %v1832 = vunpack.c.h.b16 %v1478
  %v1833 = vunpack.c.l.b16 %v1479
  %v1834 = vunpack.c.h.b16 %v1479
  %v1835 = vunpack.c.l.b16 %v1480
  %v1836 = vunpack.c.h.b16 %v1480
  %v1837 = vunpack.c.l.b16 %v1481
  %v1838 = vunpack.c.h.b16 %v1481
  %v1839 = vunpack.c.l.b16 %v1482
  %v1840 = vunpack.c.h.b16 %v1482
  %v1841 = vunpack.c.l.b16 %v1483
  %v1842 = vunpack.c.h.b16 %v1483
  %v1843 = vunpack.c.l.b16 %v1484
  %v1844 = vunpack.c.h.b16 %v1484
  %v1845 = vunpack.c.l.b16 %v1485
  %v1846 = vunpack.c.h.b16 %v1485
  %v1847 = vunpack.c.l.b16 %v1486
  %v1848 = vunpack.c.h.b16 %v1486
  %v1849 = vunpack.c.l.b16 %v1487
  %v1850 = vunpack.c.h.b16 %v1487
  %v1851 = vunpack.c.l.b16 %v1488
  %v1852 = vunpack.c.h.b16 %v1488
  %v1853 = vunpack.c.l.b16 %v1489
  %v1854 = vunpack.c.h.b16 %v1489
  %v1855 = vunpack.c.l.b16 %v1490
  %v1856 = vunpack.c.h.b16 %v1490
  %v1857 = vunpack.c.l.b16 %v1491
  %v1858 = vunpack.c.h.b16 %v1491
  %v1859 = vunpack.c.l.b16 %v1492
  %v1860 = vunpack.c.h.b16 %v1492
  %v1861 = vunpack.c.l.b16 %v1493
  %v1862 = vunpack.c.h.b16 %v1493
  %v1863 = vunpack.c.l.b16 %v1494
  %v1864 = vunpack.c.h.b16 %v1494
  %v1865 = vunpack.c.l.b16 %v1495
  %v1866 = vunpack.c.h.b16 %v1495
  %v1867 = vunpack.c.l.b16 %v1496
  %v1868 = vunpack.c.h.b16 %v1496
  %v1869 = vunpack.c.l.b16 %v1497
  %v1870 = vunpack.c.h.b16 %v1497
  %v1871 = vunpack.c.l.b16 %v1498
  %v1872 = vunpack.c.h.b16 %v1498
  %v1873 = vunpack.c.l.b16 %v1499
  %v1874 = vunpack.c.h.b16 %v1499
  %v1875 = vunpack.c.l.b16 %v1500
  %v1876 = vunpack.c.h.b16 %v1500
  %v1877 = vunpack.c.l.b16 %v1501
  %v1878 = vunpack.c.h.b16 %v1501
  %v1879 = vunpack.c.l.b16 %v1502
  %v1880 = vunpack.c.h.b16 %v1502
  %v1881 = vunpack.c.l.b16 %v1503
  %v1882 = vunpack.c.h.b16 %v1503
  %v1883 = vunpack.c.l.b16 %v1504
  %v1884 = vunpack.c.h.b16 %v1504
  %v1885 = vunpack.c.l.b16 %v1505
  %v1886 = vunpack.c.h.b16 %v1505
  %v1887 = vunpack.c.l.b16 %v1506
  %v1888 = vunpack.c.h.b16 %v1506
  %v1889 = vunpack.c.l.b16 %v1507
  %v1890 = vunpack.c.h.b16 %v1507
  %v1891 = vunpack.c.l.b16 %v1508
  %v1892 = vunpack.c.h.b16 %v1508
  %v1893 = vunpack.c.l.b16 %v1509
  %v1894 = vunpack.c.h.b16 %v1509
  %v1895 = vunpack.c.l.b16 %v1510
  %v1896 = vunpack.c.h.b16 %v1510
  %v1897 = vunpack.c.l.b16 %v1511
  %v1898 = vunpack.c.h.b16 %v1511
  %v1899 = vunpack.c.l.b16 %v1512
  %v1900 = vunpack.c.h.b16 %v1512
  %v1901 = vunpack.c.l.b16 %v1513
  %v1902 = vunpack.c.h.b16 %v1513
  %v1903 = vunpack.c.l.b16 %v1514
  %v1904 = vunpack.c.h.b16 %v1514
  %v1905 = vunpack.c.l.b16 %v1515
  %v1906 = vunpack.c.h.b16 %v1515
  %v1907 = vunpack.c.l.b16 %v1516
  %v1908 = vunpack.c.h.b16 %v1516
  %v1909 = vunpack.c.l.b16 %v1517
  %v1910 = vunpack.c.h.b16 %v1517
  %v1911 = vunpack.c.l.b16 %v1518
  %v1912 = vunpack.c.h.b16 %v1518
  %v1913 = vunpack.c.l.b16 %v1519
  %v1914 = vunpack.c.h.b16 %v1519
  %v1915 = vunpack.c.l.b16 %v1520
  %v1916 = vunpack.c.h.b16 %v1520
  %v1917 = vunpack.c.l.b16 %v1521
  %v1918 = vunpack.c.h.b16 %v1521
  %v1919 = vunpack.c.l.b16 %v1522
  %v1920 = vunpack.c.h.b16 %v1522
  %v1921 = vunpack.c.l.b16 %v1523
  %v1922 = vunpack.c.h.b16 %v1523
  %v1923 = vunpack.c.l.b16 %v1524
  %v1924 = vunpack.c.h.b16 %v1524
  %v1925 = vunpack.c.l.b16 %v1525
  %v1926 = vunpack.c.h.b16 %v1525
  %v1927 = vunpack.c.l.b16 %v1526
  %v1928 = vunpack.c.h.b16 %v1526
  %v1929 = vunpack.c.l.b16 %v1527
  %v1930 = vunpack.c.h.b16 %v1527
  %v1931 = vunpack.c.l.b16 %v1528
  %v1932 = vunpack.c.h.b16 %v1528
  %v1933 = vunpack.c.l.b16 %v1529
  %v1934 = vunpack.c.h.b16 %v1529
  %v1935 = vunpack.c.l.b16 %v1530
  %v1936 = vunpack.c.h.b16 %v1530
  %v1937 = vunpack.c.l.b16 %v1531
  %v1938 = vunpack.c.h.b16 %v1531
  %v1939 = vunpack.c.l.b16 %v1532
  %v1940 = vunpack.c.h.b16 %v1532
  %v1941 = vunpack.c.l.b16 %v1533
  %v1942 = vunpack.c.h.b16 %v1533
  %v1943 = vunpack.c.l.b16 %v1534
  %v1944 = vunpack.c.h.b16 %v1534
  %v1945 = vunpack.c.l.b16 %v1535
  %v1946 = vunpack.c.h.b16 %v1535
  %v1947 = vunpack.c.l.b16 %v1536
  %v1948 = vunpack.c.h.b16 %v1536
  %v1949 = vunpack.c.l.b16 %v1537
  %v1950 = vunpack.c.h.b16 %v1537
  %v1951 = vunpack.c.l.b16 %v1538
  %v1952 = vunpack.c.h.b16 %v1538
  %v1953 = vunpack.c.l.b16 %v1539
  %v1954 = vunpack.c.h.b16 %v1539
  %v1955 = vpack.c.b16 %v1823, %v1811
  %v1956 = vpack.c.b16 %v1824, %v1812
  %v1957 = vpack.c.b16 %v1825, %v1813
  %v1958 = vpack.c.b16 %v1826, %v1814
  %v1959 = vpack.c.b16 %v1827, %v1815
  %v1960 = vpack.c.b16 %v1828, %v1816
  %v1961 = vpack.c.b16 %v1829, %v1817
  %v1962 = vpack.c.b16 %v1830, %v1818
  %v1963 = vpack.c.b16 %v1831, %v1819
  %v1964 = vpack.c.b16 %v1832, %v1820
  %v1965 = vpack.c.b16 %v1833, %v1821
  %v1966 = vpack.c.b16 %v1834, %v1822
  %v1967 = vpack.c.b16 %v1847, %v1835
  %v1968 = vpack.c.b16 %v1848, %v1836
  %v1969 = vpack.c.b16 %v1849, %v1837
  %v1970 = vpack.c.b16 %v1850, %v1838
  %v1971 = vpack.c.b16 %v1851, %v1839
  %v1972 = vpack.c.b16 %v1852, %v1840
  %v1973 = vpack.c.b16 %v1853, %v1841
  %v1974 = vpack.c.b16 %v1854, %v1842
  %v1975 = vpack.c.b16 %v1855, %v1843
  %v1976 = vpack.c.b16 %v1856, %v1844
  %v1977 = vpack.c.b16 %v1857, %v1845
  %v1978 = vpack.c.b16 %v1858, %v1846
  %v1979 = vpack.c.b16 %v1871, %v1859
  %v1980 = vpack.c.b16 %v1872, %v1860
  %v1981 = vpack.c.b16 %v1873, %v1861
  %v1982 = vpack.c.b16 %v1874, %v1862
  %v1983 = vpack.c.b16 %v1875, %v1863
  %v1984 = vpack.c.b16 %v1876, %v1864
  %v1985 = vpack.c.b16 %v1877, %v1865
  %v1986 = vpack.c.b16 %v1878, %v1866
  %v1987 = vpack.c.b16 %v1879, %v1867
  %v1988 = vpack.c.b16 %v1880, %v1868
  %v1989 = vpack.c.b16 %v1881, %v1869
  %v1990 = vpack.c.b16 %v1882, %v1870
  %v1991 = vpack.c.b16 %v1895, %v1883
  %v1992 = vpack.c.b16 %v1896, %v1884
  %v1993 = vpack.c.b16 %v1897, %v1885
  %v1994 = vpack.c.b16 %v1898, %v1886
  %v1995 = vpack.c.b16 %v1899, %v1887
  %v1996 = vpack.c.b16 %v1900, %v1888
  %v1997 = vpack.c.b16 %v1901, %v1889
  %v1998 = vpack.c.b16 %v1902, %v1890
  %v1999 = vpack.c.b16 %v1903, %v1891
  %v2000 = vpack.c.b16 %v1904, %v1892
  %v2001 = vpack.c.b16 %v1905, %v1893
  %v2002 = vpack.c.b16 %v1906, %v1894
  %v2003 = vpack.c.b16 %v1919, %v1907
  %v2004 = vpack.c.b16 %v1920, %v1908
  %v2005 = vpack.c.b16 %v1921, %v1909
  %v2006 = vpack.c.b16 %v1922, %v1910
  %v2007 = vpack.c.b16 %v1923, %v1911
  %v2008 = vpack.c.b16 %v1924, %v1912
  %v2009 = vpack.c.b16 %v1925, %v1913
  %v2010 = vpack.c.b16 %v1926, %v1914
  %v2011 = vpack.c.b16 %v1927, %v1915
  %v2012 = vpack.c.b16 %v1928, %v1916
  %v2013 = vpack.c.b16 %v1929, %v1917
  %v2014 = vpack.c.b16 %v1930, %v1918
  %v2015 = vpack.c.b16 %v1943, %v1931
  %v2016 = vpack.c.b16 %v1944, %v1932
  %v2017 = vpack.c.b16 %v1945, %v1933
  %v2018 = vpack.c.b16 %v1946, %v1934
  %v2019 = vpack.c.b16 %v1947, %v1935
  %v2020 = vpack.c.b16 %v1948, %v1936
  %v2021 = vpack.c.b16 %v1949, %v1937
  %v2022 = vpack.c.b16 %v1950, %v1938
  %v2023 = vpack.c.b16 %v1951, %v1939
  %v2024 = vpack.c.b16 %v1952, %v1940
  %v2025 = vpack.c.b16 %v1953, %v1941
  %v2026 = vpack.c.b16 %v1954, %v1942
  %v2291 = vunpack.c.l.b16 %v1540
  %v2292 = vunpack.c.l.b16 %v1541
  %v2293 = vunpack.c.l.b16 %v1542
  %v2294 = vunpack.c.l.b16 %v1543
  %v2295 = vunpack.c.l.b16 %v1544
  %v2296 = vunpack.c.l.b16 %v1545
  %v2297 = vunpack.c.l.b16 %v1546
  %v2298 = vunpack.c.l.b16 %v1547
  %v2299 = vunpack.c.l.b16 %v1548
  %v2300 = vunpack.c.l.b16 %v1549
  %v2301 = vunpack.c.l.b16 %v1550
  %v2302 = vunpack.c.l.b16 %v1551
  %v2303 = vunpack.c.l.b16 %v1552
  %v2304 = vunpack.c.l.b16 %v1553
  %v2305 = vunpack.c.l.b16 %v1554
  %v2306 = vunpack.c.l.b16 %v1555
  %v2307 = vunpack.c.l.b16 %v1556
  %v2308 = vunpack.c.l.b16 %v1557
  %v2309 = vunpack.c.l.b16 %v1558
  %v2310 = vunpack.c.l.b16 %v1559
  %v2311 = vunpack.c.l.b16 %v1560
  %v2312 = vunpack.c.l.b16 %v1561
  %v2313 = vunpack.c.l.b16 %v1562
  %v2314 = vunpack.c.l.b16 %v1563
  %v2315 = vunpack.c.l.b16 %v1564
  %v2316 = vunpack.c.l.b16 %v1565
  %v2317 = vunpack.c.l.b16 %v1566
  %v2318 = vunpack.c.l.b16 %v1567
  %v2319 = vunpack.c.l.b16 %v1568
  %v2320 = vunpack.c.l.b16 %v1569
  %v2321 = vunpack.c.l.b16 %v1570
  %v2322 = vunpack.c.l.b16 %v1571
  %v2323 = vunpack.c.l.b16 %v1572
  %v2324 = vunpack.c.l.b16 %v1573
  %v2325 = vunpack.c.l.b16 %v1574
  %v2326 = vunpack.c.l.b16 %v1575
  %v2327 = vunpack.c.l.b16 %v1576
  %v2328 = vunpack.c.l.b16 %v1577
  %v2329 = vunpack.c.l.b16 %v1578
  %v2330 = vunpack.c.l.b16 %v1579
  %v2331 = vunpack.c.l.b16 %v1580
  %v2332 = vunpack.c.l.b16 %v1581
  %v2333 = vunpack.c.l.b16 %v1582
  %v2334 = vunpack.c.l.b16 %v1583
  %v2335 = vunpack.c.l.b16 %v1584
  %v2336 = vunpack.c.l.b16 %v1585
  %v2337 = vunpack.c.l.b16 %v1586
  %v2338 = vunpack.c.l.b16 %v1587
  %v2339 = vunpack.c.l.b16 %v1588
  %v2340 = vunpack.c.l.b16 %v1589
  %v2341 = vunpack.c.l.b16 %v1590
  %v2342 = vunpack.c.l.b16 %v1591
  %v2343 = vunpack.c.l.b16 %v1592
  %v2344 = vunpack.c.l.b16 %v1593
  %v2345 = vunpack.c.l.b16 %v1594
  %v2346 = vunpack.c.l.b16 %v1595
  %v2347 = vunpack.c.l.b16 %v1596
  %v2348 = vunpack.c.l.b16 %v1597
  %v2349 = vunpack.c.l.b16 %v1598
  %v2350 = vunpack.c.l.b16 %v1599
  %v2351 = vunpack.c.l.b16 %v1600
  %v2352 = vunpack.c.l.b16 %v1601
  %v2353 = vunpack.c.l.b16 %v1602
  %v2354 = vunpack.c.l.b16 %v1603
  %v2355 = vunpack.c.l.b16 %v1604
  %v2356 = vunpack.c.l.b16 %v1605
  %v2357 = vunpack.c.l.b16 %v1606
  %v2358 = vunpack.c.l.b16 %v1607
  %v2359 = vunpack.c.l.b16 %v1608
  %v2360 = vunpack.c.l.b16 %v1609
  %v2361 = vunpack.c.l.b16 %v1610
  %v2362 = vunpack.c.l.b16 %v1611
  %v2363 = vunpack.c.l.b16 %v1612
  %v2364 = vunpack.c.l.b16 %v1613
  %v2365 = vunpack.c.l.b16 %v1614
  %v2366 = vunpack.c.l.b16 %v1615
  %v2367 = vunpack.c.l.b16 %v1616
  %v2368 = vunpack.c.l.b16 %v1617
  %v2369 = vunpack.c.l.b16 %v1618
  %v2370 = vunpack.c.l.b16 %v1619
  %v2371 = vunpack.c.l.b16 %v1620
  %v2372 = vunpack.c.l.b16 %v1621
  %v2373 = vunpack.c.l.b16 %v1622
  %v2374 = vunpack.c.l.b16 %v1623
  %v2375 = vunpack.c.l.b16 %v1624
  %v2376 = vunpack.c.l.b16 %v1625
  %v2377 = vunpack.c.l.b16 %v1626
  %v2378 = vunpack.c.l.b16 %v1627
  %v2379 = vunpack.c.l.b16 %v1628
  %v2380 = vunpack.c.l.b16 %v1629
  %v2381 = vunpack.c.l.b16 %v1630
  %v2382 = vunpack.c.l.b16 %v1631
  %v2383 = vunpack.c.l.b16 %v1632
  %v2384 = vunpack.c.l.b16 %v1633
  %v2385 = vunpack.c.l.b16 %v1634
  %v2386 = vunpack.c.l.b16 %v1635
  %v2387 = vunpack.c.l.b16 %v1636
  %v2388 = vunpack.c.l.b16 %v1637
  %v2389 = vunpack.c.l.b16 %v1638
  %v2390 = vunpack.c.l.b16 %v1639
  %v2391 = vunpack.c.l.b16 %v1640
  %v2392 = vunpack.c.l.b16 %v1641
  %v2393 = vunpack.c.l.b16 %v1642
  %v2394 = vunpack.c.l.b16 %v1643
  %v2395 = vunpack.c.l.b16 %v1644
  %v2396 = vunpack.c.l.b16 %v1645
  %v2397 = vunpack.c.l.b16 %v1646
  %v2398 = vunpack.c.l.b16 %v1647
  %v2399 = vunpack.c.l.b16 %v1648
  %v2400 = vunpack.c.l.b16 %v1649
  %v2401 = vunpack.c.l.b16 %v1650
  %v2402 = vunpack.c.l.b16 %v1651
  %v2403 = vunpack.c.l.b16 %v1652
  %v2404 = vunpack.c.l.b16 %v1653
  %v2405 = vunpack.c.l.b16 %v1654
  %v2406 = vunpack.c.l.b16 %v1655
  %v2407 = vunpack.c.l.b16 %v1656
  %v2408 = vunpack.c.l.b16 %v1657
  %v2409 = vunpack.c.l.b16 %v1658
  %v2410 = vunpack.c.l.b16 %v1659
  %v2411 = vunpack.c.l.b16 %v1660
  %v2412 = vunpack.c.l.b16 %v1661
  %v2413 = vunpack.c.l.b16 %v1662
  %v2414 = vunpack.c.l.b16 %v1663
  %v2415 = vunpack.c.l.b16 %v1664
  %v2416 = vunpack.c.l.b16 %v1665
  %v2417 = vunpack.c.l.b16 %v1666
  %v2418 = vunpack.c.l.b16 %v1667
  %v2419 = vunpack.c.l.b16 %v1668
  %v2420 = vunpack.c.l.b16 %v1669
  %v2421 = vunpack.c.l.b16 %v1670
  %v2422 = vunpack.c.l.b16 %v1671
  %v2423 = vunpack.c.l.b16 %v1672
  %v2424 = vunpack.c.l.b16 %v1673
  %v2425 = vunpack.c.l.b16 %v1674
  %v2426 = vunpack.c.l.b16 %v1675
  %v2427 = vunpack.c.l.b16 %v1676
  %v2428 = vunpack.c.l.b16 %v1677
  %v2429 = vunpack.c.l.b16 %v1678
  %v2430 = vunpack.c.l.b16 %v1679
  %v2431 = vunpack.c.l.b16 %v1680
  %v2432 = vunpack.c.l.b16 %v1681
  %v2433 = vunpack.c.l.b16 %v1682
  %v2434 = vunpack.c.l.b16 %v1683
  %v2435 = vunpack.c.l.b16 %v1684
  %v2436 = vunpack.c.l.b16 %v1685
  %v2437 = vunpack.c.l.b16 %v1686
  %v2438 = vunpack.c.l.b16 %v1687
  %v2439 = vunpack.c.l.b16 %v1688
  %v2440 = vunpack.c.l.b16 %v1689
  %v2441 = vunpack.c.l.b16 %v1690
  %v2442 = vunpack.c.l.b16 %v1691
  %v2443 = vunpack.c.l.b16 %v1692
  %v2444 = vunpack.c.l.b16 %v1693
  %v2445 = vunpack.c.l.b16 %v1694
  %v2446 = vunpack.c.l.b16 %v1695
  %v2447 = vunpack.c.l.b16 %v1696
  %v2448 = vunpack.c.l.b16 %v1697
  %v2449 = vunpack.c.l.b16 %v1698
  %v2450 = vunpack.c.l.b16 %v1699
  %v2451 = vunpack.c.l.b16 %v1700
  %v2452 = vunpack.c.l.b16 %v1701
  %v2453 = vunpack.c.l.b16 %v1702
  %v2454 = vunpack.c.l.b16 %v1703
  %v2455 = vunpack.c.l.b16 %v1704
  %v2456 = vunpack.c.l.b16 %v1705
  %v2457 = vunpack.c.l.b16 %v1706
  %v2458 = vunpack.c.l.b16 %v1707
  %v2459 = vunpack.c.l.b16 %v1708
  %v2460 = vunpack.c.l.b16 %v1709
  %v2461 = vunpack.c.l.b16 %v1710
  %v2462 = vunpack.c.l.b16 %v1711
  %v2463 = vunpack.c.l.b16 %v1712
  %v2464 = vunpack.c.l.b16 %v1713
  %v2465 = vunpack.c.l.b16 %v1714
  %v2466 = vunpack.c.l.b16 %v1715
  %v2467 = vunpack.c.l.b16 %v1716
  %v2468 = vunpack.c.l.b16 %v1717
  %v2469 = vunpack.c.l.b16 %v1718
  %v2470 = vunpack.c.l.b16 %v1719
  %v2471 = vunpack.c.l.b16 %v1720
  %v2472 = vunpack.c.l.b16 %v1721
  %v2473 = vunpack.c.l.b16 %v1722
  %v2474 = vunpack.c.l.b16 %v1723
  %v2475 = vunpack.c.l.b16 %v1724
  %v2476 = vunpack.c.l.b16 %v1725
  %v2477 = vunpack.c.l.b16 %v1726
  %v2478 = vunpack.c.l.b16 %v1727
  %v2479 = vunpack.c.l.b16 %v1728
  %v2480 = vunpack.c.l.b16 %v1729
  %v2481 = vunpack.c.l.b16 %v1730
  %v2482 = vunpack.c.l.b16 %v1731
  %v2483 = vpack.c.b16 %v2292, %v2291
  %v2484 = vpack.c.b16 %v2294, %v2293
  %v2485 = vpack.c.b16 %v2296, %v2295
  %v2486 = vpack.c.b16 %v2298, %v2297
  %v2487 = vpack.c.b16 %v2300, %v2299
  %v2488 = vpack.c.b16 %v2302, %v2301
  %v2489 = vpack.c.b16 %v2304, %v2303
  %v2490 = vpack.c.b16 %v2306, %v2305
  %v2491 = vpack.c.b16 %v2308, %v2307
  %v2492 = vpack.c.b16 %v2310, %v2309
  %v2493 = vpack.c.b16 %v2312, %v2311
  %v2494 = vpack.c.b16 %v2314, %v2313
  %v2495 = vpack.c.b16 %v2316, %v2315
  %v2496 = vpack.c.b16 %v2318, %v2317
  %v2497 = vpack.c.b16 %v2320, %v2319
  %v2498 = vpack.c.b16 %v2322, %v2321
  %v2499 = vpack.c.b16 %v2324, %v2323
  %v2500 = vpack.c.b16 %v2326, %v2325
  %v2501 = vpack.c.b16 %v2328, %v2327
  %v2502 = vpack.c.b16 %v2330, %v2329
  %v2503 = vpack.c.b16 %v2332, %v2331
  %v2504 = vpack.c.b16 %v2334, %v2333
  %v2505 = vpack.c.b16 %v2336, %v2335
  %v2506 = vpack.c.b16 %v2338, %v2337
  %v2507 = vpack.c.b16 %v2340, %v2339
  %v2508 = vpack.c.b16 %v2342, %v2341
  %v2509 = vpack.c.b16 %v2344, %v2343
  %v2510 = vpack.c.b16 %v2346, %v2345
  %v2511 = vpack.c.b16 %v2348, %v2347
  %v2512 = vpack.c.b16 %v2350, %v2349
  %v2513 = vpack.c.b16 %v2352, %v2351
  %v2514 = vpack.c.b16 %v2354, %v2353
  %v2515 = vpack.c.b16 %v2356, %v2355
  %v2516 = vpack.c.b16 %v2358, %v2357
  %v2517 = vpack.c.b16 %v2360, %v2359
  %v2518 = vpack.c.b16 %v2362, %v2361
  %v2519 = vpack.c.b16 %v2364, %v2363
  %v2520 = vpack.c.b16 %v2366, %v2365
  %v2521 = vpack.c.b16 %v2368, %v2367
  %v2522 = vpack.c.b16 %v2370, %v2369
  %v2523 = vpack.c.b16 %v2372, %v2371
  %v2524 = vpack.c.b16 %v2374, %v2373
  %v2525 = vpack.c.b16 %v2376, %v2375
  %v2526 = vpack.c.b16 %v2378, %v2377
  %v2527 = vpack.c.b16 %v2380, %v2379
  %v2528 = vpack.c.b16 %v2382, %v2381
  %v2529 = vpack.c.b16 %v2384, %v2383
  %v2530 = vpack.c.b16 %v2386, %v2385
  %v2531 = vpack.c.b16 %v2388, %v2387
  %v2532 = vpack.c.b16 %v2390, %v2389
  %v2533 = vpack.c.b16 %v2392, %v2391
  %v2534 = vpack.c.b16 %v2394, %v2393
  %v2535 = vpack.c.b16 %v2396, %v2395
  %v2536 = vpack.c.b16 %v2398, %v2397
  %v2537 = vpack.c.b16 %v2400, %v2399
  %v2538 = vpack.c.b16 %v2402, %v2401
  %v2539 = vpack.c.b16 %v2404, %v2403
  %v2540 = vpack.c.b16 %v2406, %v2405
  %v2541 = vpack.c.b16 %v2408, %v2407
  %v2542 = vpack.c.b16 %v2410, %v2409
  %v2543 = vpack.c.b16 %v2412, %v2411
  %v2544 = vpack.c.b16 %v2414, %v2413
  %v2545 = vpack.c.b16 %v2416, %v2415
  %v2546 = vpack.c.b16 %v2418, %v2417
  %v2547 = vpack.c.b16 %v2420, %v2419
  %v2548 = vpack.c.b16 %v2422, %v2421
  %v2549 = vpack.c.b16 %v2424, %v2423
  %v2550 = vpack.c.b16 %v2426, %v2425
  %v2551 = vpack.c.b16 %v2428, %v2427
  %v2552 = vpack.c.b16 %v2430, %v2429
  %v2553 = vpack.c.b16 %v2432, %v2431
  %v2554 = vpack.c.b16 %v2434, %v2433
  %v2555 = vpack.c.b16 %v2436, %v2435
  %v2556 = vpack.c.b16 %v2438, %v2437
  %v2557 = vpack.c.b16 %v2440, %v2439
  %v2558 = vpack.c.b16 %v2442, %v2441
  %v2559 = vpack.c.b16 %v2444, %v2443
  %v2560 = vpack.c.b16 %v2446, %v2445
  %v2561 = vpack.c.b16 %v2448, %v2447
  %v2562 = vpack.c.b16 %v2450, %v2449
  %v2563 = vpack.c.b16 %v2452, %v2451
  %v2564 = vpack.c.b16 %v2454, %v2453
  %v2565 = vpack.c.b16 %v2456, %v2455
  %v2566 = vpack.c.b16 %v2458, %v2457
  %v2567 = vpack.c.b16 %v2460, %v2459
  %v2568 = vpack.c.b16 %v2462, %v2461
  %v2569 = vpack.c.b16 %v2464, %v2463
  %v2570 = vpack.c.b16 %v2466, %v2465
  %v2571 = vpack.c.b16 %v2468, %v2467
  %v2572 = vpack.c.b16 %v2470, %v2469
  %v2573 = vpack.c.b16 %v2472, %v2471
  %v2574 = vpack.c.b16 %v2474, %v2473
  %v2575 = vpack.c.b16 %v2476, %v2475
  %v2576 = vpack.c.b16 %v2478, %v2477
  %v2577 = vpack.c.b16 %v2480, %v2479
  %v2578 = vpack.c.b16 %v2482, %v2481
  %2675 = vmatprep.subr.bf16.mxu0 0
  %2676 = vmatpush1.bf16.msra.mxu0 %v2483
  %2677 = vmatprep.subr.bf16.mxu0 0
  %2678 = vmatpush1.bf16.msra.mxu0 %v2484
  %2679 = vmatprep.subr.bf16.mxu0 0
  %2680 = vmatpush1.bf16.msra.mxu0 %v2485
  %2681 = vmatprep.subr.bf16.mxu0 0
  %2682 = vmatpush1.bf16.msra.mxu0 %v2486
  %2683 = vmatprep.subr.bf16.mxu0 0
  %2684 = vmatpush1.bf16.msra.mxu0 %v2487
  %2685 = vmatprep.subr.bf16.mxu0 0
  %2686 = vmatpush1.bf16.msra.mxu0 %v2488
  %2687 = vmatprep.subr.bf16.mxu0 0
  %2688 = vmatpush1.bf16.msra.mxu0 %v2489
  %2689 = vmatprep.subr.bf16.mxu0 0
  %2690 = vmatpush1.bf16.msra.mxu0 %v2490
  %2691 = vmatprep.subr.bf16.mxu0 0
  %2692 = vmatpush1.bf16.msra.mxu0 %v2491
  %2693 = vmatprep.subr.bf16.mxu0 0
  %2694 = vmatpush1.bf16.msra.mxu0 %v2492
  %2695 = vmatprep.subr.bf16.mxu0 0
  %2696 = vmatpush1.bf16.msra.mxu0 %v2493
  %2697 = vmatprep.subr.bf16.mxu0 0
  %2698 = vmatpush1.bf16.msra.mxu0 %v2494
  %2699 = vmatprep.subr.bf16.mxu0 0
  %2700 = vmatpush1.bf16.msra.mxu0 %v2495
  %2701 = vmatprep.subr.bf16.mxu0 0
  %2702 = vmatpush1.bf16.msra.mxu0 %v2496
  %2703 = vmatprep.subr.bf16.mxu0 0
  %2704 = vmatpush1.bf16.msra.mxu0 %v2497
  %2705 = vmatprep.subr.bf16.mxu0 0
  %2706 = vmatpush1.bf16.msra.mxu0 %v2498
  %2707 = vmatprep.mubr.bf16.mxu0 %v1956
  %2708 = vmatmul.mubr.bf16.gmra.mrb[0].mxu0 %v1955
  %v2709 = vpop.f32.mrb[0].mxu0
  %v2710 = vadd.f32 %v1737, %v2709
  %v2711 = vpop.f32.mrb[0].mxu0
  %v2712 = vpop.f32.mrb[0].mxu0
  %v2713 = vadd.f32 %v1737, %v2712
  %v2714 = vpop.f32.mrb[0].mxu0
  %2715 = vmatprep.mubr.bf16.mxu0 %v1968
  %2716 = vmatmul.mubr.bf16.gmra.mrb[0].mxu0 %v1967
  %v2717 = vpop.f32.mrb[0].mxu0
  %v2718 = vadd.f32 %v1737, %v2717
  %v2719 = vpop.f32.mrb[0].mxu0
  %v2720 = vpop.f32.mrb[0].mxu0
  %v2721 = vadd.f32 %v1737, %v2720
  %v2722 = vpop.f32.mrb[0].mxu0
  %2723 = vmatprep.mubr.bf16.mxu0 %v1980
  %2724 = vmatmul.mubr.bf16.gmra.mrb[0].mxu0 %v1979
  %v2725 = vpop.f32.mrb[0].mxu0
  %v2726 = vadd.f32 %v1737, %v2725
  %v2727 = vpop.f32.mrb[0].mxu0
  %v2728 = vpop.f32.mrb[0].mxu0
  %v2729 = vadd.f32 %v1737, %v2728
  %v2730 = vpop.f32.mrb[0].mxu0
  %2731 = vmatprep.mubr.bf16.mxu0 %v1992
  %2732 = vmatmul.mubr.bf16.gmra.mrb[0].mxu0 %v1991
  %v2733 = vpop.f32.mrb[0].mxu0
  %v2734 = vadd.f32 %v1737, %v2733
  %v2735 = vpop.f32.mrb[0].mxu0
  %v2736 = vpop.f32.mrb[0].mxu0
  %v2737 = vadd.f32 %v1737, %v2736
  %v2738 = vpop.f32.mrb[0].mxu0
  %2739 = vmatprep.mubr.bf16.mxu0 %v2004
  %2740 = vmatmul.mubr.bf16.gmra.mrb[0].mxu0 %v2003
  %v2741 = vpop.f32.mrb[0].mxu0
  %v2742 = vadd.f32 %v1737, %v2741
  %v2743 = vpop.f32.mrb[0].mxu0
  %v2744 = vpop.f32.mrb[0].mxu0
  %v2745 = vadd.f32 %v1737, %v2744
  %v2746 = vpop.f32.mrb[0].mxu0
  %2747 = vmatprep.mubr.bf16.mxu0 %v2016
  %2748 = vmatmul.mubr.bf16.gmra.mrb[0].mxu0 %v2015
  %v2749 = vpop.f32.mrb[0].mxu0
  %v2750 = vadd.f32 %v1737, %v2749
  %v2751 = vpop.f32.mrb[0].mxu0
  %v2752 = vpop.f32.mrb[0].mxu0
  %v2753 = vadd.f32 %v1737, %v2752
  %v2754 = vpop.f32.mrb[0].mxu0
  %2755 = vdwg.mxu0
  %2756 = vmatprep.subr.bf16.mxu0 0
  %2757 = vmatpush1.bf16.msra.mxu0 %v2499
  %2758 = vmatprep.subr.bf16.mxu0 0
  %2759 = vmatpush1.bf16.msra.mxu0 %v2500
  %2760 = vmatprep.subr.bf16.mxu0 0
  %2761 = vmatpush1.bf16.msra.mxu0 %v2501
  %2762 = vmatprep.subr.bf16.mxu0 0
  %2763 = vmatpush1.bf16.msra.mxu0 %v2502
  %2764 = vmatprep.subr.bf16.mxu0 0
  %2765 = vmatpush1.bf16.msra.mxu0 %v2503
  %2766 = vmatprep.subr.bf16.mxu0 0
  %2767 = vmatpush1.bf16.msra.mxu0 %v2504
  %2768 = vmatprep.subr.bf16.mxu0 0
  %2769 = vmatpush1.bf16.msra.mxu0 %v2505
  %2770 = vmatprep.subr.bf16.mxu0 0
  %2771 = vmatpush1.bf16.msra.mxu0 %v2506
  %2772 = vmatprep.subr.bf16.mxu0 0
  %2773 = vmatpush1.bf16.msra.mxu0 %v2507
  %2774 = vmatprep.subr.bf16.mxu0 0
  %2775 = vmatpush1.bf16.msra.mxu0 %v2508
  %2776 = vmatprep.subr.bf16.mxu0 0
  %2777 = vmatpush1.bf16.msra.mxu0 %v2509
  %2778 = vmatprep.subr.bf16.mxu0 0
  %2779 = vmatpush1.bf16.msra.mxu0 %v2510
  %2780 = vmatprep.subr.bf16.mxu0 0
  %2781 = vmatpush1.bf16.msra.mxu0 %v2511
  %2782 = vmatprep.subr.bf16.mxu0 0
  %2783 = vmatpush1.bf16.msra.mxu0 %v2512
  %2784 = vmatprep.subr.bf16.mxu0 0
  %2785 = vmatpush1.bf16.msra.mxu0 %v2513
  %2786 = vmatprep.subr.bf16.mxu0 0
  %2787 = vmatpush1.bf16.msra.mxu0 %v2514
  %2788 = vmatprep.mubr.bf16.mxu0 %v1958
  %2789 = vmatmul.mubr.bf16.gmra.mrb[0].mxu0 %v1957
  %v2790 = vpop.f32.mrb[0].mxu0
  %v2791 = vadd.f32 %v2710, %v2790
  %v2792 = vpop.f32.mrb[0].mxu0
  %v2793 = vpop.f32.mrb[0].mxu0
  %v2794 = vadd.f32 %v2713, %v2793
  %v2795 = vpop.f32.mrb[0].mxu0
  %2796 = vmatprep.mubr.bf16.mxu0 %v1970
  %2797 = vmatmul.mubr.bf16.gmra.mrb[0].mxu0 %v1969
  %v2798 = vpop.f32.mrb[0].mxu0
  %v2799 = vadd.f32 %v2718, %v2798
  %v2800 = vpop.f32.mrb[0].mxu0
  %v2801 = vpop.f32.mrb[0].mxu0
  %v2802 = vadd.f32 %v2721, %v2801
  %v2803 = vpop.f32.mrb[0].mxu0
  %2804 = vmatprep.mubr.bf16.mxu0 %v1982
  %2805 = vmatmul.mubr.bf16.gmra.mrb[0].mxu0 %v1981
  %v2806 = vpop.f32.mrb[0].mxu0
  %v2807 = vadd.f32 %v2726, %v2806
  %v2808 = vpop.f32.mrb[0].mxu0
  %v2809 = vpop.f32.mrb[0].mxu0
  %v2810 = vadd.f32 %v2729, %v2809
  %v2811 = vpop.f32.mrb[0].mxu0
  %2812 = vmatprep.mubr.bf16.mxu0 %v1994
  %2813 = vmatmul.mubr.bf16.gmra.mrb[0].mxu0 %v1993
  %v2814 = vpop.f32.mrb[0].mxu0
  %v2815 = vadd.f32 %v2734, %v2814
  %v2816 = vpop.f32.mrb[0].mxu0
  %v2817 = vpop.f32.mrb[0].mxu0
  %v2818 = vadd.f32 %v2737, %v2817
  %v2819 = vpop.f32.mrb[0].mxu0
  %2820 = vmatprep.mubr.bf16.mxu0 %v2006
  %2821 = vmatmul.mubr.bf16.gmra.mrb[0].mxu0 %v2005
  %v2822 = vpop.f32.mrb[0].mxu0
  %v2823 = vadd.f32 %v2742, %v2822
  %v2824 = vpop.f32.mrb[0].mxu0
  %v2825 = vpop.f32.mrb[0].mxu0
  %v2826 = vadd.f32 %v2745, %v2825
  %v2827 = vpop.f32.mrb[0].mxu0
  %2828 = vmatprep.mubr.bf16.mxu0 %v2018
  %2829 = vmatmul.mubr.bf16.gmra.mrb[0].mxu0 %v2017
  %v2830 = vpop.f32.mrb[0].mxu0
  %v2831 = vadd.f32 %v2750, %v2830
  %v2832 = vpop.f32.mrb[0].mxu0
  %v2833 = vpop.f32.mrb[0].mxu0
  %v2834 = vadd.f32 %v2753, %v2833
  %v2835 = vpop.f32.mrb[0].mxu0
  %2836 = vdwg.mxu0
  %2837 = vmatprep.subr.bf16.mxu0 0
  %2838 = vmatpush1.bf16.msra.mxu0 %v2515
  %2839 = vmatprep.subr.bf16.mxu0 0
  %2840 = vmatpush1.bf16.msra.mxu0 %v2516
  %2841 = vmatprep.subr.bf16.mxu0 0
  %2842 = vmatpush1.bf16.msra.mxu0 %v2517
  %2843 = vmatprep.subr.bf16.mxu0 0
  %2844 = vmatpush1.bf16.msra.mxu0 %v2518
  %2845 = vmatprep.subr.bf16.mxu0 0
  %2846 = vmatpush1.bf16.msra.mxu0 %v2519
  %2847 = vmatprep.subr.bf16.mxu0 0
  %2848 = vmatpush1.bf16.msra.mxu0 %v2520
  %2849 = vmatprep.subr.bf16.mxu0 0
  %2850 = vmatpush1.bf16.msra.mxu0 %v2521
  %2851 = vmatprep.subr.bf16.mxu0 0
  %2852 = vmatpush1.bf16.msra.mxu0 %v2522
  %2853 = vmatprep.subr.bf16.mxu0 0
  %2854 = vmatpush1.bf16.msra.mxu0 %v2523
  %2855 = vmatprep.subr.bf16.mxu0 0
  %2856 = vmatpush1.bf16.msra.mxu0 %v2524
  %2857 = vmatprep.subr.bf16.mxu0 0
  %2858 = vmatpush1.bf16.msra.mxu0 %v2525
  %2859 = vmatprep.subr.bf16.mxu0 0
  %2860 = vmatpush1.bf16.msra.mxu0 %v2526
  %2861 = vmatprep.subr.bf16.mxu0 0
  %2862 = vmatpush1.bf16.msra.mxu0 %v2527
  %2863 = vmatprep.subr.bf16.mxu0 0
  %2864 = vmatpush1.bf16.msra.mxu0 %v2528
  %2865 = vmatprep.subr.bf16.mxu0 0
  %2866 = vmatpush1.bf16.msra.mxu0 %v2529
  %2867 = vmatprep.subr.bf16.mxu0 0
  %2868 = vmatpush1.bf16.msra.mxu0 %v2530
  %2869 = vmatprep.mubr.bf16.mxu0 %v1960
  %2870 = vmatmul.mubr.bf16.gmra.mrb[0].mxu0 %v1959
  %v2871 = vpop.f32.mrb[0].mxu0
  %v2872 = vadd.f32 %v2791, %v2871
  %v2873 = vpop.f32.mrb[0].mxu0
  %v2874 = vpop.f32.mrb[0].mxu0
  %v2875 = vadd.f32 %v2794, %v2874
  %v2876 = vpop.f32.mrb[0].mxu0
  %2877 = vmatprep.mubr.bf16.mxu0 %v1972
  %2878 = vmatmul.mubr.bf16.gmra.mrb[0].mxu0 %v1971
  %v2879 = vpop.f32.mrb[0].mxu0
  %v2880 = vadd.f32 %v2799, %v2879
  %v2881 = vpop.f32.mrb[0].mxu0
  %v2882 = vpop.f32.mrb[0].mxu0
  %v2883 = vadd.f32 %v2802, %v2882
  %v2884 = vpop.f32.mrb[0].mxu0
  %2885 = vmatprep.mubr.bf16.mxu0 %v1984
  %2886 = vmatmul.mubr.bf16.gmra.mrb[0].mxu0 %v1983
  %v2887 = vpop.f32.mrb[0].mxu0
  %v2888 = vadd.f32 %v2807, %v2887
  %v2889 = vpop.f32.mrb[0].mxu0
  %v2890 = vpop.f32.mrb[0].mxu0
  %v2891 = vadd.f32 %v2810, %v2890
  %v2892 = vpop.f32.mrb[0].mxu0
  %2893 = vmatprep.mubr.bf16.mxu0 %v1996
  %2894 = vmatmul.mubr.bf16.gmra.mrb[0].mxu0 %v1995
  %v2895 = vpop.f32.mrb[0].mxu0
  %v2896 = vadd.f32 %v2815, %v2895
  %v2897 = vpop.f32.mrb[0].mxu0
  %v2898 = vpop.f32.mrb[0].mxu0
  %v2899 = vadd.f32 %v2818, %v2898
  %v2900 = vpop.f32.mrb[0].mxu0
  %2901 = vmatprep.mubr.bf16.mxu0 %v2008
  %2902 = vmatmul.mubr.bf16.gmra.mrb[0].mxu0 %v2007
  %v2903 = vpop.f32.mrb[0].mxu0
  %v2904 = vadd.f32 %v2823, %v2903
  %v2905 = vpop.f32.mrb[0].mxu0
  %v2906 = vpop.f32.mrb[0].mxu0
  %v2907 = vadd.f32 %v2826, %v2906
  %v2908 = vpop.f32.mrb[0].mxu0
  %2909 = vmatprep.mubr.bf16.mxu0 %v2020
  %2910 = vmatmul.mubr.bf16.gmra.mrb[0].mxu0 %v2019
  %v2911 = vpop.f32.mrb[0].mxu0
  %v2912 = vadd.f32 %v2831, %v2911
  %v2913 = vpop.f32.mrb[0].mxu0
  %v2914 = vpop.f32.mrb[0].mxu0
  %v2915 = vadd.f32 %v2834, %v2914
  %v2916 = vpop.f32.mrb[0].mxu0
  %2917 = vdwg.mxu0
  %2918 = vmatprep.subr.bf16.mxu0 0
  %2919 = vmatpush1.bf16.msra.mxu0 %v2531
  %2920 = vmatprep.subr.bf16.mxu0 0
  %2921 = vmatpush1.bf16.msra.mxu0 %v2532
  %2922 = vmatprep.subr.bf16.mxu0 0
  %2923 = vmatpush1.bf16.msra.mxu0 %v2533
  %2924 = vmatprep.subr.bf16.mxu0 0
  %2925 = vmatpush1.bf16.msra.mxu0 %v2534
  %2926 = vmatprep.subr.bf16.mxu0 0
  %2927 = vmatpush1.bf16.msra.mxu0 %v2535
  %2928 = vmatprep.subr.bf16.mxu0 0
  %2929 = vmatpush1.bf16.msra.mxu0 %v2536
  %2930 = vmatprep.subr.bf16.mxu0 0
  %2931 = vmatpush1.bf16.msra.mxu0 %v2537
  %2932 = vmatprep.subr.bf16.mxu0 0
  %2933 = vmatpush1.bf16.msra.mxu0 %v2538
  %2934 = vmatprep.subr.bf16.mxu0 0
  %2935 = vmatpush1.bf16.msra.mxu0 %v2539
  %2936 = vmatprep.subr.bf16.mxu0 0
  %2937 = vmatpush1.bf16.msra.mxu0 %v2540
  %2938 = vmatprep.subr.bf16.mxu0 0
  %2939 = vmatpush1.bf16.msra.mxu0 %v2541
  %2940 = vmatprep.subr.bf16.mxu0 0
  %2941 = vmatpush1.bf16.msra.mxu0 %v2542
  %2942 = vmatprep.subr.bf16.mxu0 0
  %2943 = vmatpush1.bf16.msra.mxu0 %v2543
  %2944 = vmatprep.subr.bf16.mxu0 0
  %2945 = vmatpush1.bf16.msra.mxu0 %v2544
  %2946 = vmatprep.subr.bf16.mxu0 0
  %2947 = vmatpush1.bf16.msra.mxu0 %v2545
  %2948 = vmatprep.subr.bf16.mxu0 0
  %2949 = vmatpush1.bf16.msra.mxu0 %v2546
  %2950 = vmatprep.mubr.bf16.mxu0 %v1962
  %2951 = vmatmul.mubr.bf16.gmra.mrb[0].mxu0 %v1961
  %v2952 = vpop.f32.mrb[0].mxu0
  %v2953 = vadd.f32 %v2872, %v2952
  %v2954 = vpop.f32.mrb[0].mxu0
  %v2955 = vpop.f32.mrb[0].mxu0
  %v2956 = vadd.f32 %v2875, %v2955
  %v2957 = vpop.f32.mrb[0].mxu0
  %2958 = vmatprep.mubr.bf16.mxu0 %v1974
  %2959 = vmatmul.mubr.bf16.gmra.mrb[0].mxu0 %v1973
  %v2960 = vpop.f32.mrb[0].mxu0
  %v2961 = vadd.f32 %v2880, %v2960
  %v2962 = vpop.f32.mrb[0].mxu0
  %v2963 = vpop.f32.mrb[0].mxu0
  %v2964 = vadd.f32 %v2883, %v2963
  %v2965 = vpop.f32.mrb[0].mxu0
  %2966 = vmatprep.mubr.bf16.mxu0 %v1986
  %2967 = vmatmul.mubr.bf16.gmra.mrb[0].mxu0 %v1985
  %v2968 = vpop.f32.mrb[0].mxu0
  %v2969 = vadd.f32 %v2888, %v2968
  %v2970 = vpop.f32.mrb[0].mxu0
  %v2971 = vpop.f32.mrb[0].mxu0
  %v2972 = vadd.f32 %v2891, %v2971
  %v2973 = vpop.f32.mrb[0].mxu0
  %2974 = vmatprep.mubr.bf16.mxu0 %v1998
  %2975 = vmatmul.mubr.bf16.gmra.mrb[0].mxu0 %v1997
  %v2976 = vpop.f32.mrb[0].mxu0
  %v2977 = vadd.f32 %v2896, %v2976
  %v2978 = vpop.f32.mrb[0].mxu0
  %v2979 = vpop.f32.mrb[0].mxu0
  %v2980 = vadd.f32 %v2899, %v2979
  %v2981 = vpop.f32.mrb[0].mxu0
  %2982 = vmatprep.mubr.bf16.mxu0 %v2010
  %2983 = vmatmul.mubr.bf16.gmra.mrb[0].mxu0 %v2009
  %v2984 = vpop.f32.mrb[0].mxu0
  %v2985 = vadd.f32 %v2904, %v2984
  %v2986 = vpop.f32.mrb[0].mxu0
  %v2987 = vpop.f32.mrb[0].mxu0
  %v2988 = vadd.f32 %v2907, %v2987
  %v2989 = vpop.f32.mrb[0].mxu0
  %2990 = vmatprep.mubr.bf16.mxu0 %v2022
  %2991 = vmatmul.mubr.bf16.gmra.mrb[0].mxu0 %v2021
  %v2992 = vpop.f32.mrb[0].mxu0
  %v2993 = vadd.f32 %v2912, %v2992
  %v2994 = vpop.f32.mrb[0].mxu0
  %v2995 = vpop.f32.mrb[0].mxu0
  %v2996 = vadd.f32 %v2915, %v2995
  %v2997 = vpop.f32.mrb[0].mxu0
  %2998 = vdwg.mxu0
  %2999 = vmatprep.subr.bf16.mxu0 0
  %3000 = vmatpush1.bf16.msra.mxu0 %v2547
  %3001 = vmatprep.subr.bf16.mxu0 0
  %3002 = vmatpush1.bf16.msra.mxu0 %v2548
  %3003 = vmatprep.subr.bf16.mxu0 0
  %3004 = vmatpush1.bf16.msra.mxu0 %v2549
  %3005 = vmatprep.subr.bf16.mxu0 0
  %3006 = vmatpush1.bf16.msra.mxu0 %v2550
  %3007 = vmatprep.subr.bf16.mxu0 0
  %3008 = vmatpush1.bf16.msra.mxu0 %v2551
  %3009 = vmatprep.subr.bf16.mxu0 0
  %3010 = vmatpush1.bf16.msra.mxu0 %v2552
  %3011 = vmatprep.subr.bf16.mxu0 0
  %3012 = vmatpush1.bf16.msra.mxu0 %v2553
  %3013 = vmatprep.subr.bf16.mxu0 0
  %3014 = vmatpush1.bf16.msra.mxu0 %v2554
  %3015 = vmatprep.subr.bf16.mxu0 0
  %3016 = vmatpush1.bf16.msra.mxu0 %v2555
  %3017 = vmatprep.subr.bf16.mxu0 0
  %3018 = vmatpush1.bf16.msra.mxu0 %v2556
  %3019 = vmatprep.subr.bf16.mxu0 0
  %3020 = vmatpush1.bf16.msra.mxu0 %v2557
  %3021 = vmatprep.subr.bf16.mxu0 0
  %3022 = vmatpush1.bf16.msra.mxu0 %v2558
  %3023 = vmatprep.subr.bf16.mxu0 0
  %3024 = vmatpush1.bf16.msra.mxu0 %v2559
  %3025 = vmatprep.subr.bf16.mxu0 0
  %3026 = vmatpush1.bf16.msra.mxu0 %v2560
  %3027 = vmatprep.subr.bf16.mxu0 0
  %3028 = vmatpush1.bf16.msra.mxu0 %v2561
  %3029 = vmatprep.subr.bf16.mxu0 0
  %3030 = vmatpush1.bf16.msra.mxu0 %v2562
  %3031 = vmatprep.mubr.bf16.mxu0 %v1964
  %3032 = vmatmul.mubr.bf16.gmra.mrb[0].mxu0 %v1963
  %v3033 = vpop.f32.mrb[0].mxu0
  %v3034 = vadd.f32 %v2953, %v3033
  %v3035 = vpop.f32.mrb[0].mxu0
  %v3036 = vpop.f32.mrb[0].mxu0
  %v3037 = vadd.f32 %v2956, %v3036
  %v3038 = vpop.f32.mrb[0].mxu0
  %3039 = vmatprep.mubr.bf16.mxu0 %v1976
  %3040 = vmatmul.mubr.bf16.gmra.mrb[0].mxu0 %v1975
  %v3041 = vpop.f32.mrb[0].mxu0
  %v3042 = vadd.f32 %v2961, %v3041
  %v3043 = vpop.f32.mrb[0].mxu0
  %v3044 = vpop.f32.mrb[0].mxu0
  %v3045 = vadd.f32 %v2964, %v3044
  %v3046 = vpop.f32.mrb[0].mxu0
  %3047 = vmatprep.mubr.bf16.mxu0 %v1988
  %3048 = vmatmul.mubr.bf16.gmra.mrb[0].mxu0 %v1987
  %v3049 = vpop.f32.mrb[0].mxu0
  %v3050 = vadd.f32 %v2969, %v3049
  %v3051 = vpop.f32.mrb[0].mxu0
  %v3052 = vpop.f32.mrb[0].mxu0
  %v3053 = vadd.f32 %v2972, %v3052
  %v3054 = vpop.f32.mrb[0].mxu0
  %3055 = vmatprep.mubr.bf16.mxu0 %v2000
  %3056 = vmatmul.mubr.bf16.gmra.mrb[0].mxu0 %v1999
  %v3057 = vpop.f32.mrb[0].mxu0
  %v3058 = vadd.f32 %v2977, %v3057
  %v3059 = vpop.f32.mrb[0].mxu0
  %v3060 = vpop.f32.mrb[0].mxu0
  %v3061 = vadd.f32 %v2980, %v3060
  %v3062 = vpop.f32.mrb[0].mxu0
  %3063 = vmatprep.mubr.bf16.mxu0 %v2012
  %3064 = vmatmul.mubr.bf16.gmra.mrb[0].mxu0 %v2011
  %v3065 = vpop.f32.mrb[0].mxu0
  %v3066 = vadd.f32 %v2985, %v3065
  %v3067 = vpop.f32.mrb[0].mxu0
  %v3068 = vpop.f32.mrb[0].mxu0
  %v3069 = vadd.f32 %v2988, %v3068
  %v3070 = vpop.f32.mrb[0].mxu0
  %3071 = vmatprep.mubr.bf16.mxu0 %v2024
  %3072 = vmatmul.mubr.bf16.gmra.mrb[0].mxu0 %v2023
  %v3073 = vpop.f32.mrb[0].mxu0
  %v3074 = vadd.f32 %v2993, %v3073
  %v3075 = vpop.f32.mrb[0].mxu0
  %v3076 = vpop.f32.mrb[0].mxu0
  %v3077 = vadd.f32 %v2996, %v3076
  %v3078 = vpop.f32.mrb[0].mxu0
  %3079 = vdwg.mxu0
  %3080 = vmatprep.subr.bf16.mxu0 0
  %3081 = vmatpush1.bf16.msra.mxu0 %v2563
  %3082 = vmatprep.subr.bf16.mxu0 0
  %3083 = vmatpush1.bf16.msra.mxu0 %v2564
  %3084 = vmatprep.subr.bf16.mxu0 0
  %3085 = vmatpush1.bf16.msra.mxu0 %v2565
  %3086 = vmatprep.subr.bf16.mxu0 0
  %3087 = vmatpush1.bf16.msra.mxu0 %v2566
  %3088 = vmatprep.subr.bf16.mxu0 0
  %3089 = vmatpush1.bf16.msra.mxu0 %v2567
  %3090 = vmatprep.subr.bf16.mxu0 0
  %3091 = vmatpush1.bf16.msra.mxu0 %v2568
  %3092 = vmatprep.subr.bf16.mxu0 0
  %3093 = vmatpush1.bf16.msra.mxu0 %v2569
  %3094 = vmatprep.subr.bf16.mxu0 0
  %3095 = vmatpush1.bf16.msra.mxu0 %v2570
  %3096 = vmatprep.subr.bf16.mxu0 0
  %3097 = vmatpush1.bf16.msra.mxu0 %v2571
  %3098 = vmatprep.subr.bf16.mxu0 0
  %3099 = vmatpush1.bf16.msra.mxu0 %v2572
  %3100 = vmatprep.subr.bf16.mxu0 0
  %3101 = vmatpush1.bf16.msra.mxu0 %v2573
  %3102 = vmatprep.subr.bf16.mxu0 0
  %3103 = vmatpush1.bf16.msra.mxu0 %v2574
  %3104 = vmatprep.subr.bf16.mxu0 0
  %3105 = vmatpush1.bf16.msra.mxu0 %v2575
  %3106 = vmatprep.subr.bf16.mxu0 0
  %3107 = vmatpush1.bf16.msra.mxu0 %v2576
  %3108 = vmatprep.subr.bf16.mxu0 0
  %3109 = vmatpush1.bf16.msra.mxu0 %v2577
  %3110 = vmatprep.subr.bf16.mxu0 0
  %3111 = vmatpush1.bf16.msra.mxu0 %v2578
  %3112 = vmatprep.mubr.bf16.mxu0 %v1966
  %3113 = vmatmul.mubr.bf16.gmra.mrb[0].mxu0 %v1965
  %v3114 = vpop.f32.mrb[0].mxu0
  %v3115 = vadd.f32 %v3034, %v3114
  %v3116 = vpop.f32.mrb[0].mxu0
  %v3117 = vpop.f32.mrb[0].mxu0
  %v3118 = vadd.f32 %v3037, %v3117
  %v3119 = vpop.f32.mrb[0].mxu0
  %3120 = vmatprep.mubr.bf16.mxu0 %v1978
  %3121 = vmatmul.mubr.bf16.gmra.mrb[0].mxu0 %v1977
  %v3122 = vpop.f32.mrb[0].mxu0
  %v3123 = vadd.f32 %v3042, %v3122
  %v3124 = vpop.f32.mrb[0].mxu0
  %v3125 = vpop.f32.mrb[0].mxu0
  %v3126 = vadd.f32 %v3045, %v3125
  %v3127 = vpop.f32.mrb[0].mxu0
  %3128 = vmatprep.mubr.bf16.mxu0 %v1990
  %3129 = vmatmul.mubr.bf16.gmra.mrb[0].mxu0 %v1989
  %v3130 = vpop.f32.mrb[0].mxu0
  %v3131 = vadd.f32 %v3050, %v3130
  %v3132 = vpop.f32.mrb[0].mxu0
  %v3133 = vpop.f32.mrb[0].mxu0
  %v3134 = vadd.f32 %v3053, %v3133
  %v3135 = vpop.f32.mrb[0].mxu0
  %3136 = vmatprep.mubr.bf16.mxu0 %v2002
  %3137 = vmatmul.mubr.bf16.gmra.mrb[0].mxu0 %v2001
  %v3138 = vpop.f32.mrb[0].mxu0
  %v3139 = vadd.f32 %v3058, %v3138
  %v3140 = vpop.f32.mrb[0].mxu0
  %v3141 = vpop.f32.mrb[0].mxu0
  %v3142 = vadd.f32 %v3061, %v3141
  %v3143 = vpop.f32.mrb[0].mxu0
  %3144 = vmatprep.mubr.bf16.mxu0 %v2014
  %3145 = vmatmul.mubr.bf16.gmra.mrb[0].mxu0 %v2013
  %v3146 = vpop.f32.mrb[0].mxu0
  %v3147 = vadd.f32 %v3066, %v3146
  %v3148 = vpop.f32.mrb[0].mxu0
  %v3149 = vpop.f32.mrb[0].mxu0
  %v3150 = vadd.f32 %v3069, %v3149
  %v3151 = vpop.f32.mrb[0].mxu0
  %3152 = vmatprep.mubr.bf16.mxu0 %v2026
  %3153 = vmatmul.mubr.bf16.gmra.mrb[0].mxu0 %v2025
  %v3154 = vpop.f32.mrb[0].mxu0
  %v3155 = vadd.f32 %v3074, %v3154
  %v3156 = vpop.f32.mrb[0].mxu0
  %v3157 = vpop.f32.mrb[0].mxu0
  %v3158 = vadd.f32 %v3077, %v3157
  %v3159 = vpop.f32.mrb[0].mxu0
  %3160 = vdwg.mxu0
  %v3161 = vmax.f32 %v3115, 0.0
  %v3162 = vmax.f32 %v3118, 0.0
  %v3163 = vmax.f32 %v3123, 0.0
  %v3164 = vmax.f32 %v3126, 0.0
  %v3165 = vmax.f32 %v3131, 0.0
  %v3166 = vmax.f32 %v3134, 0.0
  %v3167 = vmax.f32 %v3139, 0.0
  %v3168 = vmax.f32 %v3142, 0.0
  %v3169 = vmax.f32 %v3147, 0.0
  %v3170 = vmax.f32 %v3150, 0.0
  %v3171 = vmax.f32 %v3155, 0.0
  %v3172 = vmax.f32 %v3158, 0.0
  %v3173 = vpack.c.bf16 %v3162, %v3161
  %v3174 = vpack.c.bf16 %v3164, %v3163
  %v3175 = vpack.c.bf16 %v3166, %v3165
  %v3176 = vpack.c.bf16 %v3168, %v3167
  %v3177 = vpack.c.bf16 %v3170, %v3169
  %v3178 = vpack.c.bf16 %v3172, %v3171
  %v3179 = vld [vmem:[%s3] sm:$0xff]
  %v3180 = vld [vmem:[%s3 + $0x8] sm:$0xff]
  %v3181 = vld [vmem:[%s3 + $0x10] sm:$0xff]
  %v3182 = vld [vmem:[%s3 + $0x18] sm:$0xff]
  %v3183 = vld [vmem:[%s3 + $0x20] sm:$0xff]
  %v3184 = vld [vmem:[%s3 + $0x28] sm:$0xff]
  %v3185 = vld [vmem:[%s3 + $0x30] sm:$0xff]
  %v3186 = vld [vmem:[%s3 + $0x38] sm:$0xff]
  %v3187 = vld [vmem:[%s3 + $0x40] sm:$0xff]
  %v3188 = vld [vmem:[%s3 + $0x48] sm:$0xff]
  %v3189 = vld [vmem:[%s3 + $0x50] sm:$0xff]
  %v3190 = vld [vmem:[%s3 + $0x58] sm:$0xff]
  %v3191 = vld [vmem:[%s3 + $0x60] sm:$0xff]
  %v3192 = vld [vmem:[%s3 + $0x68] sm:$0xff]
  %v3193 = vld [vmem:[%s3 + $0x70] sm:$0xff]
  %v3194 = vld [vmem:[%s3 + $0x78] sm:$0xff]
  %v3195 = vld [vmem:[%s4] sm:$0xf]
  %v3197 = vlaneseq
  %v3198 = vshrl.u32 %v3197, 7
  %v3199 = vsub.s32 0, %v3198
  %v3200 = vrot.slane %v3195, %v3199
  %v3201 = vlaneseq
  %v3202 = vshrl.u32 %v3201, 7
  %v3203 = vsub.s32 1, %v3202
  %v3204 = vrot.slane %v3195, %v3203
  %v3205 = vlaneseq
  %v3206 = vshrl.u32 %v3205, 7
  %v3207 = vsub.s32 2, %v3206
  %v3208 = vrot.slane %v3195, %v3207
  %v3209 = vlaneseq
  %v3210 = vshrl.u32 %v3209, 7
  %v3211 = vsub.s32 3, %v3210
  %v3212 = vrot.slane %v3195, %v3211
  %v3233 = vunpack.c.l.b16 %v3179
  %v3234 = vunpack.c.h.b16 %v3179
  %v3235 = vunpack.c.l.b16 %v3180
  %v3236 = vunpack.c.h.b16 %v3180
  %v3237 = vunpack.c.l.b16 %v3181
  %v3238 = vunpack.c.h.b16 %v3181
  %v3239 = vunpack.c.l.b16 %v3182
  %v3240 = vunpack.c.h.b16 %v3182
  %v3241 = vunpack.c.l.b16 %v3183
  %v3242 = vunpack.c.h.b16 %v3183
  %v3243 = vunpack.c.l.b16 %v3184
  %v3244 = vunpack.c.h.b16 %v3184
  %v3245 = vunpack.c.l.b16 %v3185
  %v3246 = vunpack.c.h.b16 %v3185
  %v3247 = vunpack.c.l.b16 %v3186
  %v3248 = vunpack.c.h.b16 %v3186
  %v3249 = vunpack.c.l.b16 %v3187
  %v3250 = vunpack.c.h.b16 %v3187
  %v3251 = vunpack.c.l.b16 %v3188
  %v3252 = vunpack.c.h.b16 %v3188
  %v3253 = vunpack.c.l.b16 %v3189
  %v3254 = vunpack.c.h.b16 %v3189
  %v3255 = vunpack.c.l.b16 %v3190
  %v3256 = vunpack.c.h.b16 %v3190
  %v3257 = vunpack.c.l.b16 %v3191
  %v3258 = vunpack.c.h.b16 %v3191
  %v3259 = vunpack.c.l.b16 %v3192
  %v3260 = vunpack.c.h.b16 %v3192
  %v3261 = vunpack.c.l.b16 %v3193
  %v3262 = vunpack.c.h.b16 %v3193
  %v3263 = vunpack.c.l.b16 %v3194
  %v3264 = vunpack.c.h.b16 %v3194
  %v3265 = vpack.c.b16 %v3237, %v3233
  %v3266 = vpack.c.b16 %v3238, %v3234
  %v3267 = vpack.c.b16 %v3239, %v3235
  %v3268 = vpack.c.b16 %v3240, %v3236
  %v3269 = vpack.c.b16 %v3245, %v3241
  %v3270 = vpack.c.b16 %v3246, %v3242
  %v3271 = vpack.c.b16 %v3247, %v3243
  %v3272 = vpack.c.b16 %v3248, %v3244
  %v3273 = vpack.c.b16 %v3253, %v3249
  %v3274 = vpack.c.b16 %v3254, %v3250
  %v3275 = vpack.c.b16 %v3255, %v3251
  %v3276 = vpack.c.b16 %v3256, %v3252
  %v3277 = vpack.c.b16 %v3261, %v3257
  %v3278 = vpack.c.b16 %v3262, %v3258
  %v3279 = vpack.c.b16 %v3263, %v3259
  %v3280 = vpack.c.b16 %v3264, %v3260
  %vm3297 = vcmask 523264
  %v3299 = vsel %vm3297, %v3173, 0
  %v3302 = vsel %vm3297, %v3174, 0
  %v3305 = vsel %vm3297, %v3175, 0
  %v3308 = vsel %vm3297, %v3176, 0
  %v3311 = vsel %vm3297, %v3177, 0
  %v3314 = vsel %vm3297, %v3178, 0
  %3316 = vmatprep.subr.bf16.mxu0 %v3266
  %3317 = vmatpush1.bf16.msra.mxu0 %v3265
  %3318 = vmatprep.subr.bf16.mxu0 %v3270
  %3319 = vmatpush1.bf16.msra.mxu0 %v3269
  %3320 = vmatprep.subr.bf16.mxu0 %v3274
  %3321 = vmatpush1.bf16.msra.mxu0 %v3273
  %3322 = vmatprep.subr.bf16.mxu0 %v3278
  %3323 = vmatpush1.bf16.msra.mxu0 %v3277
  %3324 = vmatprep.subr.bf16.mxu0 0
  %3325 = vmatpush1.bf16.msra.mxu0 0
  %3326 = vmatprep.subr.bf16.mxu0 0
  %3327 = vmatpush1.bf16.msra.mxu0 0
  %3328 = vmatprep.subr.bf16.mxu0 0
  %3329 = vmatpush1.bf16.msra.mxu0 0
  %3330 = vmatprep.subr.bf16.mxu0 0
  %3331 = vmatpush1.bf16.msra.mxu0 0
  %3332 = vmatprep.subr.bf16.mxu0 0
  %3333 = vmatpush1.bf16.msra.mxu0 0
  %3334 = vmatprep.subr.bf16.mxu0 0
  %3335 = vmatpush1.bf16.msra.mxu0 0
  %3336 = vmatprep.subr.bf16.mxu0 0
  %3337 = vmatpush1.bf16.msra.mxu0 0
  %3338 = vmatprep.subr.bf16.mxu0 0
  %3339 = vmatpush1.bf16.msra.mxu0 0
  %3340 = vmatprep.subr.bf16.mxu0 0
  %3341 = vmatpush1.bf16.msra.mxu0 0
  %3342 = vmatprep.subr.bf16.mxu0 0
  %3343 = vmatpush1.bf16.msra.mxu0 0
  %3344 = vmatprep.subr.bf16.mxu0 0
  %3345 = vmatpush1.bf16.msra.mxu0 0
  %3346 = vmatprep.subr.bf16.mxu0 0
  %3347 = vmatpush1.bf16.msra.mxu0 0
  %3348 = vmatprep.mubr.bf16.mxu0 0
  %3349 = vmatmul.mubr.bf16.gmra.mrb[0].mxu0 %v3299
  %v3350 = vpop.f32.mrb[0].mxu0
  %v3351 = vadd.f32 %v3200, %v3350
  %v3352 = vpop.f32.mrb[0].mxu0
  %v3353 = vadd.f32 %v3204, %v3352
  %v3354 = vpop.f32.mrb[0].mxu0
  %v3355 = vadd.f32 %v3200, %v3354
  %v3356 = vpop.f32.mrb[0].mxu0
  %v3357 = vadd.f32 %v3204, %v3356
  %3358 = vmatprep.mubr.bf16.mxu0 0
  %3359 = vmatmul.mubr.bf16.gmra.mrb[0].mxu0 %v3302
  %v3360 = vpop.f32.mrb[0].mxu0
  %v3361 = vadd.f32 %v3200, %v3360
  %v3362 = vpop.f32.mrb[0].mxu0
  %v3363 = vadd.f32 %v3204, %v3362
  %v3364 = vpop.f32.mrb[0].mxu0
  %v3365 = vadd.f32 %v3200, %v3364
  %v3366 = vpop.f32.mrb[0].mxu0
  %v3367 = vadd.f32 %v3204, %v3366
  %3368 = vmatprep.mubr.bf16.mxu0 0
  %3369 = vmatmul.mubr.bf16.gmra.mrb[0].mxu0 %v3305
  %v3370 = vpop.f32.mrb[0].mxu0
  %v3371 = vadd.f32 %v3200, %v3370
  %v3372 = vpop.f32.mrb[0].mxu0
  %v3373 = vadd.f32 %v3204, %v3372
  %v3374 = vpop.f32.mrb[0].mxu0
  %v3375 = vadd.f32 %v3200, %v3374
  %v3376 = vpop.f32.mrb[0].mxu0
  %v3377 = vadd.f32 %v3204, %v3376
  %3378 = vmatprep.mubr.bf16.mxu0 0
  %3379 = vmatmul.mubr.bf16.gmra.mrb[0].mxu0 %v3308
  %v3380 = vpop.f32.mrb[0].mxu0
  %v3381 = vadd.f32 %v3200, %v3380
  %v3382 = vpop.f32.mrb[0].mxu0
  %v3383 = vadd.f32 %v3204, %v3382
  %v3384 = vpop.f32.mrb[0].mxu0
  %v3385 = vadd.f32 %v3200, %v3384
  %v3386 = vpop.f32.mrb[0].mxu0
  %v3387 = vadd.f32 %v3204, %v3386
  %3388 = vmatprep.mubr.bf16.mxu0 0
  %3389 = vmatmul.mubr.bf16.gmra.mrb[0].mxu0 %v3311
  %v3390 = vpop.f32.mrb[0].mxu0
  %v3391 = vadd.f32 %v3200, %v3390
  %v3392 = vpop.f32.mrb[0].mxu0
  %v3393 = vadd.f32 %v3204, %v3392
  %v3394 = vpop.f32.mrb[0].mxu0
  %v3395 = vadd.f32 %v3200, %v3394
  %v3396 = vpop.f32.mrb[0].mxu0
  %v3397 = vadd.f32 %v3204, %v3396
  %3398 = vmatprep.mubr.bf16.mxu0 0
  %3399 = vmatmul.mubr.bf16.gmra.mrb[0].mxu0 %v3314
  %v3400 = vpop.f32.mrb[0].mxu0
  %v3401 = vadd.f32 %v3200, %v3400
  %v3402 = vpop.f32.mrb[0].mxu0
  %v3403 = vadd.f32 %v3204, %v3402
  %v3404 = vpop.f32.mrb[0].mxu0
  %v3405 = vadd.f32 %v3200, %v3404
  %v3406 = vpop.f32.mrb[0].mxu0
  %v3407 = vadd.f32 %v3204, %v3406
  %3408 = vdwg.mxu0
  %3409 = vmatprep.subr.bf16.mxu0 %v3268
  %3410 = vmatpush1.bf16.msra.mxu0 %v3267
  %3411 = vmatprep.subr.bf16.mxu0 %v3272
  %3412 = vmatpush1.bf16.msra.mxu0 %v3271
  %3413 = vmatprep.subr.bf16.mxu0 %v3276
  %3414 = vmatpush1.bf16.msra.mxu0 %v3275
  %3415 = vmatprep.subr.bf16.mxu0 %v3280
  %3416 = vmatpush1.bf16.msra.mxu0 %v3279
  %3417 = vmatprep.subr.bf16.mxu0 0
  %3418 = vmatpush1.bf16.msra.mxu0 0
  %3419 = vmatprep.subr.bf16.mxu0 0
  %3420 = vmatpush1.bf16.msra.mxu0 0
  %3421 = vmatprep.subr.bf16.mxu0 0
  %3422 = vmatpush1.bf16.msra.mxu0 0
  %3423 = vmatprep.subr.bf16.mxu0 0
  %3424 = vmatpush1.bf16.msra.mxu0 0
  %3425 = vmatprep.subr.bf16.mxu0 0
  %3426 = vmatpush1.bf16.msra.mxu0 0
  %3427 = vmatprep.subr.bf16.mxu0 0
  %3428 = vmatpush1.bf16.msra.mxu0 0
  %3429 = vmatprep.subr.bf16.mxu0 0
  %3430 = vmatpush1.bf16.msra.mxu0 0
  %3431 = vmatprep.subr.bf16.mxu0 0
  %3432 = vmatpush1.bf16.msra.mxu0 0
  %3433 = vmatprep.subr.bf16.mxu0 0
  %3434 = vmatpush1.bf16.msra.mxu0 0
  %3435 = vmatprep.subr.bf16.mxu0 0
  %3436 = vmatpush1.bf16.msra.mxu0 0
  %3437 = vmatprep.subr.bf16.mxu0 0
  %3438 = vmatpush1.bf16.msra.mxu0 0
  %3439 = vmatprep.subr.bf16.mxu0 0
  %3440 = vmatpush1.bf16.msra.mxu0 0
  %3441 = vmatprep.mubr.bf16.mxu0 0
  %3442 = vmatmul.mubr.bf16.gmra.mrb[0].mxu0 %v3299
  %v3443 = vpop.f32.mrb[0].mxu0
  %v3444 = vpop.f32.mrb[0].mxu0
  %v3445 = vpop.f32.mrb[0].mxu0
  %v3446 = vpop.f32.mrb[0].mxu0
  %3447 = vmatprep.mubr.bf16.mxu0 0
  %3448 = vmatmul.mubr.bf16.gmra.mrb[0].mxu0 %v3302
  %v3449 = vpop.f32.mrb[0].mxu0
  %v3450 = vpop.f32.mrb[0].mxu0
  %v3451 = vpop.f32.mrb[0].mxu0
  %v3452 = vpop.f32.mrb[0].mxu0
  %3453 = vmatprep.mubr.bf16.mxu0 0
  %3454 = vmatmul.mubr.bf16.gmra.mrb[0].mxu0 %v3305
  %v3455 = vpop.f32.mrb[0].mxu0
  %v3456 = vpop.f32.mrb[0].mxu0
  %v3457 = vpop.f32.mrb[0].mxu0
  %v3458 = vpop.f32.mrb[0].mxu0
  %3459 = vmatprep.mubr.bf16.mxu0 0
  %3460 = vmatmul.mubr.bf16.gmra.mrb[0].mxu0 %v3308
  %v3461 = vpop.f32.mrb[0].mxu0
  %v3462 = vpop.f32.mrb[0].mxu0
  %v3463 = vpop.f32.mrb[0].mxu0
  %v3464 = vpop.f32.mrb[0].mxu0
  %3465 = vmatprep.mubr.bf16.mxu0 0
  %3466 = vmatmul.mubr.bf16.gmra.mrb[0].mxu0 %v3311
  %v3467 = vpop.f32.mrb[0].mxu0
  %v3468 = vpop.f32.mrb[0].mxu0
  %v3469 = vpop.f32.mrb[0].mxu0
  %v3470 = vpop.f32.mrb[0].mxu0
  %3471 = vmatprep.mubr.bf16.mxu0 0
  %3472 = vmatmul.mubr.bf16.gmra.mrb[0].mxu0 %v3314
  %v3473 = vpop.f32.mrb[0].mxu0
  %v3474 = vpop.f32.mrb[0].mxu0
  %v3475 = vpop.f32.mrb[0].mxu0
  %v3476 = vadd.f32 %v3208, %v3475
  %v3477 = vpop.f32.mrb[0].mxu0
  %v3478 = vadd.f32 %v3212, %v3477
  %3479 = vdwg.mxu0
  %3480 = vst [vmem:[#allocation2] sm:$0xff] %v3351
  %3481 = vst [vmem:[#allocation2 + $0x8] sm:$0xff] %v3353
  %3482 = vst [vmem:[#allocation2 + $0x10] sm:$0xff] %v3355
  %3483 = vst [vmem:[#allocation2 + $0x18] sm:$0xff] %v3357
  %3484 = vst [vmem:[#allocation2 + $0x20] sm:$0xff] %v3361
  %3485 = vst [vmem:[#allocation2 + $0x28] sm:$0xff] %v3363
  %3486 = vst [vmem:[#allocation2 + $0x30] sm:$0xff] %v3365
  %3487 = vst [vmem:[#allocation2 + $0x38] sm:$0xff] %v3367
  %3488 = vst [vmem:[#allocation2 + $0x40] sm:$0xff] %v3371
  %3489 = vst [vmem:[#allocation2 + $0x48] sm:$0xff] %v3373
  %3490 = vst [vmem:[#allocation2 + $0x50] sm:$0xff] %v3375
  %3491 = vst [vmem:[#allocation2 + $0x58] sm:$0xff] %v3377
  %3492 = vst [vmem:[#allocation2 + $0x60] sm:$0xff] %v3381
  %3493 = vst [vmem:[#allocation2 + $0x68] sm:$0xff] %v3383
  %3494 = vst [vmem:[#allocation2 + $0x70] sm:$0xff] %v3385
  %3495 = vst [vmem:[#allocation2 + $0x78] sm:$0xff] %v3387
  %3496 = vst [vmem:[#allocation2 + $0x80] sm:$0xff] %v3391
  %3497 = vst [vmem:[#allocation2 + $0x88] sm:$0xff] %v3393
  %3498 = vst [vmem:[#allocation2 + $0x90] sm:$0xff] %v3395
  %3499 = vst [vmem:[#allocation2 + $0x98] sm:$0xff] %v3397
  %3500 = vst [vmem:[#allocation2 + $0xa0] sm:$0xff] %v3401
  %3501 = vst [vmem:[#allocation2 + $0xa8] sm:$0xff] %v3403
  %3502 = vst [vmem:[#allocation2 + $0xb0] sm:$0xff] %v3405
  %3503 = vst [vmem:[#allocation2 + $0xb8] sm:$0xff] %v3407
  %v3504 = vld [vmem:[%s5] sm:$0xff]
  %v3505 = vld [vmem:[%s5 + $0x8] sm:$0xff]
  %v3506 = vld [vmem:[%s5 + $0x10] sm:$0xff]
  %v3507 = vld [vmem:[%s5 + $0x18] sm:$0xff]
  %v3508 = vld [vmem:[%s5 + $0x20] sm:$0xff]
  %v3509 = vld [vmem:[%s5 + $0x28] sm:$0xff]
  %v3510 = vld [vmem:[%s5 + $0x30] sm:$0xff]
  %v3511 = vld [vmem:[%s5 + $0x38] sm:$0xff]
  %v3512 = vld [vmem:[%s5 + $0x40] sm:$0xff]
  %v3513 = vld [vmem:[%s5 + $0x48] sm:$0xff]
  %v3514 = vld [vmem:[%s5 + $0x50] sm:$0xff]
  %v3515 = vld [vmem:[%s5 + $0x58] sm:$0xff]
  %v3516 = vld [vmem:[%s5 + $0x60] sm:$0xff]
  %v3517 = vld [vmem:[%s5 + $0x68] sm:$0xff]
  %v3518 = vld [vmem:[%s5 + $0x70] sm:$0xff]
  %v3519 = vld [vmem:[%s5 + $0x78] sm:$0xff]
  %v3520 = vsub.f32 0.0, %v3476
  %v3521 = vsub.f32 0.0, %v3478
  %v3522 = vmul.f32 %v3520, 1.442695
  %v3523 = vpow.pop %v3522
  %v3524 = vmul.f32 %v3521, 1.442695
  %v3525 = vpow.pop %v3524
  %v3526 = vadd.f32 %v3523, 1.0
  %v3527 = vadd.f32 %v3525, 1.0
  %v3528 = vrcp.pop %v3526
  %v3529 = vrcp.pop %v3527
  %v3530 = vmul.f32 %v3529, 2.0
  %v3531 = vsub.f32 %v3530, 1.0
  %v3532 = vmul.f32 %v3528, 0.0
  %v3533 = vmul.f32 %v3528, %v3531
  %3535 = vrot.lane.b32.xlu0 %v3533, 64
  %v3536 = vpop.permute.xlu0 %3535
  %v3538 = vadd.f32 %v3532, %v3536
  %v3539 = vtanh.pop %v3538
  %v3540 = vmul.f32 %v3529, %v3539
  %s3541 = smul.u32 0, 2
  %s3542 = smul.addr %s3541, 8
  %s3543 = scalar_lea.vmem [#allocation2], %s3542
  %v3544 = vld [vmem:[%s3543] sm:$0xff]
  %v3545 = vld [vmem:[%s3543 + $0x8] sm:$0xff]
  %v3547 = vsel %vm3297, 0.0, 0
  %3549 = vmatprep.subr.mxu0 %v3505
  %3550 = vmatpush1.msra.mxu0 %v3504
  %3551 = vmatprep.subr.mxu0 %v3507
  %3552 = vmatpush1.msra.mxu0 %v3506
  %3553 = vmatprep.subr.mxu0 %v3509
  %3554 = vmatpush1.msra.mxu0 %v3508
  %3555 = vmatprep.subr.mxu0 %v3511
  %3556 = vmatpush1.msra.mxu0 %v3510
  %3557 = vmatprep.subr.mxu0 %v3513
  %3558 = vmatpush1.msra.mxu0 %v3512
  %3559 = vmatprep.subr.mxu0 %v3515
  %3560 = vmatpush1.msra.mxu0 %v3514
  %3561 = vmatprep.subr.mxu0 %v3517
  %3562 = vmatpush1.msra.mxu0 %v3516
  %3563 = vmatprep.subr.mxu0 %v3519
  %3564 = vmatpush1.msra.mxu0 %v3518
  %3565 = vmatprep.subr.mxu0 0.0
  %3566 = vmatpush1.msra.mxu0 0.0
  %3567 = vmatprep.subr.mxu0 0.0
  %3568 = vmatpush1.msra.mxu0 0.0
  %3569 = vmatprep.subr.mxu0 0.0
  %3570 = vmatpush1.msra.mxu0 0.0
  %3571 = vmatprep.subr.mxu0 0.0
  %3572 = vmatpush1.msra.mxu0 0.0
  %3573 = vmatprep.subr.mxu0 0.0
  %3574 = vmatpush1.msra.mxu0 0.0
  %3575 = vmatprep.subr.mxu0 0.0
  %3576 = vmatpush1.msra.mxu0 0.0
  %3577 = vmatprep.subr.mxu0 0.0
  %3578 = vmatpush1.msra.mxu0 0.0
  %3579 = vmatprep.subr.mxu0 0.0
  %3580 = vmatpush1.msra.mxu0 0.0
  %3581 = vmatprep.subr.mxu0 0.0
  %3582 = vmatpush1.msra.mxu0 0.0
  %3583 = vmatprep.subr.mxu0 0.0
  %3584 = vmatpush1.msra.mxu0 0.0
  %3585 = vmatprep.subr.mxu0 0.0
  %3586 = vmatpush1.msra.mxu0 0.0
  %3587 = vmatprep.subr.mxu0 0.0
  %3588 = vmatpush1.msra.mxu0 0.0
  %3589 = vmatprep.subr.mxu0 0.0
  %3590 = vmatpush1.msra.mxu0 0.0
  %3591 = vmatprep.subr.mxu0 0.0
  %3592 = vmatpush1.msra.mxu0 0.0
  %3593 = vmatprep.subr.mxu0 0.0
  %3594 = vmatpush1.msra.mxu0 0.0
  %3595 = vmatprep.subr.mxu0 0.0
  %3596 = vmatpush1.msra.mxu0 0.0
  %3597 = vmatprep.subr.mxu0 0.0
  %3598 = vmatpush1.msra.mxu0 0.0
  %3599 = vmatprep.subr.mxu0 0.0
  %3600 = vmatpush1.msra.mxu0 0.0
  %3601 = vmatprep.subr.mxu0 0.0
  %3602 = vmatpush1.msra.mxu0 0.0
  %3603 = vmatprep.subr.mxu0 0.0
  %3604 = vmatpush1.msra.mxu0 0.0
  %3605 = vmatprep.subr.mxu0 0.0
  %3606 = vmatpush1.msra.mxu0 0.0
  %3607 = vmatprep.subr.mxu0 0.0
  %3608 = vmatpush1.msra.mxu0 0.0
  %3609 = vmatprep.subr.mxu0 0.0
  %3610 = vmatpush1.msra.mxu0 0.0
  %3611 = vmatprep.subr.mxu0 0.0
  %3612 = vmatpush1.msra.mxu0 0.0
  %3613 = vmatprep.mubr.f32.mxu0 0.0
  %3614 = vmatmul.mubr.f32.gmra.mrb[0].mxu0 %v3547
  %v3615 = vpop.f32.mrb[0].mxu0
  %v3616 = vadd.f32 0.0, %v3615
  %v3617 = vpop.f32.mrb[0].mxu0
  %v3618 = vadd.f32 0.0, %v3617
  %3619 = vdwg.mxu0
  %v3620 = vadd.f32 %v3544, %v3616
  %v3621 = vadd.f32 %v3545, %v3618
  %v3622 = vsub.f32 0.0, %v3620
  %v3623 = vsub.f32 0.0, %v3621
  %v3624 = vmul.f32 %v3622, 1.442695
  %v3625 = vpow.pop %v3624
  %v3626 = vmul.f32 %v3623, 1.442695
  %v3627 = vpow.pop %v3626
  %v3628 = vadd.f32 %v3625, 1.0
  %v3629 = vadd.f32 %v3627, 1.0
  %v3630 = vrcp.pop %v3628
  %v3631 = vrcp.pop %v3629
  %v3632 = vmul.f32 %v3631, 2.0
  %v3633 = vsub.f32 %v3632, 1.0
  %v3634 = vmul.f32 %v3630, 0.0
  %v3635 = vmul.f32 %v3630, %v3633
  %3637 = vrot.lane.b32.xlu0 %v3635, 64
  %v3638 = vpop.permute.xlu0 %3637
  %v3640 = vadd.f32 %v3634, %v3638
  %v3641 = vtanh.pop %v3640
  %v3642 = vmul.f32 %v3631, %v3641
  %s3643 = smul.u32 1, 2
  %s3644 = smul.addr %s3643, 8
  %s3645 = scalar_lea.vmem [#allocation2], %s3644
  %v3646 = vld [vmem:[%s3645] sm:$0xff]
  %v3647 = vld [vmem:[%s3645 + $0x8] sm:$0xff]
  %3649 = vrot.lane.b32.xlu0 %v3642, 64
  %v3650 = vpop.permute.xlu0 %3649
  %v3651 = vsel %vm3297, %v3650, 0
  %3653 = vmatprep.subr.mxu0 %v3505
  %3654 = vmatpush1.msra.mxu0 %v3504
  %3655 = vmatprep.subr.mxu0 %v3507
  %3656 = vmatpush1.msra.mxu0 %v3506
  %3657 = vmatprep.subr.mxu0 %v3509
  %3658 = vmatpush1.msra.mxu0 %v3508
  %3659 = vmatprep.subr.mxu0 %v3511
  %3660 = vmatpush1.msra.mxu0 %v3510
  %3661 = vmatprep.subr.mxu0 %v3513
  %3662 = vmatpush1.msra.mxu0 %v3512
  %3663 = vmatprep.subr.mxu0 %v3515
  %3664 = vmatpush1.msra.mxu0 %v3514
  %3665 = vmatprep.subr.mxu0 %v3517
  %3666 = vmatpush1.msra.mxu0 %v3516
  %3667 = vmatprep.subr.mxu0 %v3519
  %3668 = vmatpush1.msra.mxu0 %v3518
  %3669 = vmatprep.subr.mxu0 0.0
  %3670 = vmatpush1.msra.mxu0 0.0
  %3671 = vmatprep.subr.mxu0 0.0
  %3672 = vmatpush1.msra.mxu0 0.0
  %3673 = vmatprep.subr.mxu0 0.0
  %3674 = vmatpush1.msra.mxu0 0.0
  %3675 = vmatprep.subr.mxu0 0.0
  %3676 = vmatpush1.msra.mxu0 0.0
  %3677 = vmatprep.subr.mxu0 0.0
  %3678 = vmatpush1.msra.mxu0 0.0
  %3679 = vmatprep.subr.mxu0 0.0
  %3680 = vmatpush1.msra.mxu0 0.0
  %3681 = vmatprep.subr.mxu0 0.0
  %3682 = vmatpush1.msra.mxu0 0.0
  %3683 = vmatprep.subr.mxu0 0.0
  %3684 = vmatpush1.msra.mxu0 0.0
  %3685 = vmatprep.subr.mxu0 0.0
  %3686 = vmatpush1.msra.mxu0 0.0
  %3687 = vmatprep.subr.mxu0 0.0
  %3688 = vmatpush1.msra.mxu0 0.0
  %3689 = vmatprep.subr.mxu0 0.0
  %3690 = vmatpush1.msra.mxu0 0.0
  %3691 = vmatprep.subr.mxu0 0.0
  %3692 = vmatpush1.msra.mxu0 0.0
  %3693 = vmatprep.subr.mxu0 0.0
  %3694 = vmatpush1.msra.mxu0 0.0
  %3695 = vmatprep.subr.mxu0 0.0
  %3696 = vmatpush1.msra.mxu0 0.0
  %3697 = vmatprep.subr.mxu0 0.0
  %3698 = vmatpush1.msra.mxu0 0.0
  %3699 = vmatprep.subr.mxu0 0.0
  %3700 = vmatpush1.msra.mxu0 0.0
  %3701 = vmatprep.subr.mxu0 0.0
  %3702 = vmatpush1.msra.mxu0 0.0
  %3703 = vmatprep.subr.mxu0 0.0
  %3704 = vmatpush1.msra.mxu0 0.0
  %3705 = vmatprep.subr.mxu0 0.0
  %3706 = vmatpush1.msra.mxu0 0.0
  %3707 = vmatprep.subr.mxu0 0.0
  %3708 = vmatpush1.msra.mxu0 0.0
  %3709 = vmatprep.subr.mxu0 0.0
  %3710 = vmatpush1.msra.mxu0 0.0
  %3711 = vmatprep.subr.mxu0 0.0
  %3712 = vmatpush1.msra.mxu0 0.0
  %3713 = vmatprep.subr.mxu0 0.0
  %3714 = vmatpush1.msra.mxu0 0.0
  %3715 = vmatprep.subr.mxu0 0.0
  %3716 = vmatpush1.msra.mxu0 0.0
  %3717 = vmatprep.mubr.f32.mxu0 0.0
  %3718 = vmatmul.mubr.f32.gmra.mrb[0].mxu0 %v3651
  %v3719 = vpop.f32.mrb[0].mxu0
  %v3720 = vadd.f32 0.0, %v3719
  %v3721 = vpop.f32.mrb[0].mxu0
  %v3722 = vadd.f32 0.0, %v3721
  %3723 = vdwg.mxu0
  %v3724 = vadd.f32 %v3646, %v3720
  %v3725 = vadd.f32 %v3647, %v3722
  %v3726 = vsub.f32 0.0, %v3724
  %v3727 = vsub.f32 0.0, %v3725
  %v3728 = vmul.f32 %v3726, 1.442695
  %v3729 = vpow.pop %v3728
  %v3730 = vmul.f32 %v3727, 1.442695
  %v3731 = vpow.pop %v3730
  %v3732 = vadd.f32 %v3729, 1.0
  %v3733 = vadd.f32 %v3731, 1.0
  %v3734 = vrcp.pop %v3732
  %v3735 = vrcp.pop %v3733
  %v3736 = vmul.f32 %v3735, 2.0
  %v3737 = vsub.f32 %v3736, 1.0
  %v3738 = vmul.f32 %v3734, %v3640
  %v3739 = vmul.f32 %v3734, %v3737
  %3741 = vrot.lane.b32.xlu0 %v3739, 64
  %v3742 = vpop.permute.xlu0 %3741
  %v3744 = vadd.f32 %v3738, %v3742
  %v3745 = vtanh.pop %v3744
  %v3746 = vmul.f32 %v3735, %v3745
  %s3747 = smul.u32 2, 2
  %s3748 = smul.addr %s3747, 8
  %s3749 = scalar_lea.vmem [#allocation2], %s3748
  %v3750 = vld [vmem:[%s3749] sm:$0xff]
  %v3751 = vld [vmem:[%s3749 + $0x8] sm:$0xff]
  %3753 = vrot.lane.b32.xlu0 %v3746, 64
  %v3754 = vpop.permute.xlu0 %3753
  %v3755 = vsel %vm3297, %v3754, 0
  %3757 = vmatprep.subr.mxu0 %v3505
  %3758 = vmatpush1.msra.mxu0 %v3504
  %3759 = vmatprep.subr.mxu0 %v3507
  %3760 = vmatpush1.msra.mxu0 %v3506
  %3761 = vmatprep.subr.mxu0 %v3509
  %3762 = vmatpush1.msra.mxu0 %v3508
  %3763 = vmatprep.subr.mxu0 %v3511
  %3764 = vmatpush1.msra.mxu0 %v3510
  %3765 = vmatprep.subr.mxu0 %v3513
  %3766 = vmatpush1.msra.mxu0 %v3512
  %3767 = vmatprep.subr.mxu0 %v3515
  %3768 = vmatpush1.msra.mxu0 %v3514
  %3769 = vmatprep.subr.mxu0 %v3517
  %3770 = vmatpush1.msra.mxu0 %v3516
  %3771 = vmatprep.subr.mxu0 %v3519
  %3772 = vmatpush1.msra.mxu0 %v3518
  %3773 = vmatprep.subr.mxu0 0.0
  %3774 = vmatpush1.msra.mxu0 0.0
  %3775 = vmatprep.subr.mxu0 0.0
  %3776 = vmatpush1.msra.mxu0 0.0
  %3777 = vmatprep.subr.mxu0 0.0
  %3778 = vmatpush1.msra.mxu0 0.0
  %3779 = vmatprep.subr.mxu0 0.0
  %3780 = vmatpush1.msra.mxu0 0.0
  %3781 = vmatprep.subr.mxu0 0.0
  %3782 = vmatpush1.msra.mxu0 0.0
  %3783 = vmatprep.subr.mxu0 0.0
  %3784 = vmatpush1.msra.mxu0 0.0
  %3785 = vmatprep.subr.mxu0 0.0
  %3786 = vmatpush1.msra.mxu0 0.0
  %3787 = vmatprep.subr.mxu0 0.0
  %3788 = vmatpush1.msra.mxu0 0.0
  %3789 = vmatprep.subr.mxu0 0.0
  %3790 = vmatpush1.msra.mxu0 0.0
  %3791 = vmatprep.subr.mxu0 0.0
  %3792 = vmatpush1.msra.mxu0 0.0
  %3793 = vmatprep.subr.mxu0 0.0
  %3794 = vmatpush1.msra.mxu0 0.0
  %3795 = vmatprep.subr.mxu0 0.0
  %3796 = vmatpush1.msra.mxu0 0.0
  %3797 = vmatprep.subr.mxu0 0.0
  %3798 = vmatpush1.msra.mxu0 0.0
  %3799 = vmatprep.subr.mxu0 0.0
  %3800 = vmatpush1.msra.mxu0 0.0
  %3801 = vmatprep.subr.mxu0 0.0
  %3802 = vmatpush1.msra.mxu0 0.0
  %3803 = vmatprep.subr.mxu0 0.0
  %3804 = vmatpush1.msra.mxu0 0.0
  %3805 = vmatprep.subr.mxu0 0.0
  %3806 = vmatpush1.msra.mxu0 0.0
  %3807 = vmatprep.subr.mxu0 0.0
  %3808 = vmatpush1.msra.mxu0 0.0
  %3809 = vmatprep.subr.mxu0 0.0
  %3810 = vmatpush1.msra.mxu0 0.0
  %3811 = vmatprep.subr.mxu0 0.0
  %3812 = vmatpush1.msra.mxu0 0.0
  %3813 = vmatprep.subr.mxu0 0.0
  %3814 = vmatpush1.msra.mxu0 0.0
  %3815 = vmatprep.subr.mxu0 0.0
  %3816 = vmatpush1.msra.mxu0 0.0
  %3817 = vmatprep.subr.mxu0 0.0
  %3818 = vmatpush1.msra.mxu0 0.0
  %3819 = vmatprep.subr.mxu0 0.0
  %3820 = vmatpush1.msra.mxu0 0.0
  %3821 = vmatprep.mubr.f32.mxu0 0.0
  %3822 = vmatmul.mubr.f32.gmra.mrb[0].mxu0 %v3755
  %v3823 = vpop.f32.mrb[0].mxu0
  %v3824 = vadd.f32 0.0, %v3823
  %v3825 = vpop.f32.mrb[0].mxu0
  %v3826 = vadd.f32 0.0, %v3825
  %3827 = vdwg.mxu0
  %v3828 = vadd.f32 %v3750, %v3824
  %v3829 = vadd.f32 %v3751, %v3826
  %v3830 = vsub.f32 0.0, %v3828
  %v3831 = vsub.f32 0.0, %v3829
  %v3832 = vmul.f32 %v3830, 1.442695
  %v3833 = vpow.pop %v3832
  %v3834 = vmul.f32 %v3831, 1.442695
  %v3835 = vpow.pop %v3834
  %v3836 = vadd.f32 %v3833, 1.0
  %v3837 = vadd.f32 %v3835, 1.0
  %v3838 = vrcp.pop %v3836
  %v3839 = vrcp.pop %v3837
  %v3840 = vmul.f32 %v3839, 2.0
  %v3841 = vsub.f32 %v3840, 1.0
  %v3842 = vmul.f32 %v3838, %v3744
  %v3843 = vmul.f32 %v3838, %v3841
  %3845 = vrot.lane.b32.xlu0 %v3843, 64
  %v3846 = vpop.permute.xlu0 %3845
  %v3848 = vadd.f32 %v3842, %v3846
  %v3849 = vtanh.pop %v3848
  %v3850 = vmul.f32 %v3839, %v3849
  %s3851 = smul.u32 3, 2
  %s3852 = smul.addr %s3851, 8
  %s3853 = scalar_lea.vmem [#allocation2], %s3852
  %v3854 = vld [vmem:[%s3853] sm:$0xff]
  %v3855 = vld [vmem:[%s3853 + $0x8] sm:$0xff]
  %3857 = vrot.lane.b32.xlu0 %v3850, 64
  %v3858 = vpop.permute.xlu0 %3857
  %v3859 = vsel %vm3297, %v3858, 0
  %3861 = vmatprep.subr.mxu0 %v3505
  %3862 = vmatpush1.msra.mxu0 %v3504
  %3863 = vmatprep.subr.mxu0 %v3507
  %3864 = vmatpush1.msra.mxu0 %v3506
  %3865 = vmatprep.subr.mxu0 %v3509
  %3866 = vmatpush1.msra.mxu0 %v3508
  %3867 = vmatprep.subr.mxu0 %v3511
  %3868 = vmatpush1.msra.mxu0 %v3510
  %3869 = vmatprep.subr.mxu0 %v3513
  %3870 = vmatpush1.msra.mxu0 %v3512
  %3871 = vmatprep.subr.mxu0 %v3515
  %3872 = vmatpush1.msra.mxu0 %v3514
  %3873 = vmatprep.subr.mxu0 %v3517
  %3874 = vmatpush1.msra.mxu0 %v3516
  %3875 = vmatprep.subr.mxu0 %v3519
  %3876 = vmatpush1.msra.mxu0 %v3518
  %3877 = vmatprep.subr.mxu0 0.0
  %3878 = vmatpush1.msra.mxu0 0.0
  %3879 = vmatprep.subr.mxu0 0.0
  %3880 = vmatpush1.msra.mxu0 0.0
  %3881 = vmatprep.subr.mxu0 0.0
  %3882 = vmatpush1.msra.mxu0 0.0
  %3883 = vmatprep.subr.mxu0 0.0
  %3884 = vmatpush1.msra.mxu0 0.0
  %3885 = vmatprep.subr.mxu0 0.0
  %3886 = vmatpush1.msra.mxu0 0.0
  %3887 = vmatprep.subr.mxu0 0.0
  %3888 = vmatpush1.msra.mxu0 0.0
  %3889 = vmatprep.subr.mxu0 0.0
  %3890 = vmatpush1.msra.mxu0 0.0
  %3891 = vmatprep.subr.mxu0 0.0
  %3892 = vmatpush1.msra.mxu0 0.0
  %3893 = vmatprep.subr.mxu0 0.0
  %3894 = vmatpush1.msra.mxu0 0.0
  %3895 = vmatprep.subr.mxu0 0.0
  %3896 = vmatpush1.msra.mxu0 0.0
  %3897 = vmatprep.subr.mxu0 0.0
  %3898 = vmatpush1.msra.mxu0 0.0
  %3899 = vmatprep.subr.mxu0 0.0
  %3900 = vmatpush1.msra.mxu0 0.0
  %3901 = vmatprep.subr.mxu0 0.0
  %3902 = vmatpush1.msra.mxu0 0.0
  %3903 = vmatprep.subr.mxu0 0.0
  %3904 = vmatpush1.msra.mxu0 0.0
  %3905 = vmatprep.subr.mxu0 0.0
  %3906 = vmatpush1.msra.mxu0 0.0
  %3907 = vmatprep.subr.mxu0 0.0
  %3908 = vmatpush1.msra.mxu0 0.0
  %3909 = vmatprep.subr.mxu0 0.0
  %3910 = vmatpush1.msra.mxu0 0.0
  %3911 = vmatprep.subr.mxu0 0.0
  %3912 = vmatpush1.msra.mxu0 0.0
  %3913 = vmatprep.subr.mxu0 0.0
  %3914 = vmatpush1.msra.mxu0 0.0
  %3915 = vmatprep.subr.mxu0 0.0
  %3916 = vmatpush1.msra.mxu0 0.0
  %3917 = vmatprep.subr.mxu0 0.0
  %3918 = vmatpush1.msra.mxu0 0.0
  %3919 = vmatprep.subr.mxu0 0.0
  %3920 = vmatpush1.msra.mxu0 0.0
  %3921 = vmatprep.subr.mxu0 0.0
  %3922 = vmatpush1.msra.mxu0 0.0
  %3923 = vmatprep.subr.mxu0 0.0
  %3924 = vmatpush1.msra.mxu0 0.0
  %3925 = vmatprep.mubr.f32.mxu0 0.0
  %3926 = vmatmul.mubr.f32.gmra.mrb[0].mxu0 %v3859
  %v3927 = vpop.f32.mrb[0].mxu0
  %v3928 = vadd.f32 0.0, %v3927
  %v3929 = vpop.f32.mrb[0].mxu0
  %v3930 = vadd.f32 0.0, %v3929
  %3931 = vdwg.mxu0
  %v3932 = vadd.f32 %v3854, %v3928
  %v3933 = vadd.f32 %v3855, %v3930
  %v3934 = vsub.f32 0.0, %v3932
  %v3935 = vsub.f32 0.0, %v3933
  %v3936 = vmul.f32 %v3934, 1.442695
  %v3937 = vpow.pop %v3936
  %v3938 = vmul.f32 %v3935, 1.442695
  %v3939 = vpow.pop %v3938
  %v3940 = vadd.f32 %v3937, 1.0
  %v3941 = vadd.f32 %v3939, 1.0
  %v3942 = vrcp.pop %v3940
  %v3943 = vrcp.pop %v3941
  %v3944 = vmul.f32 %v3943, 2.0
  %v3945 = vsub.f32 %v3944, 1.0
  %v3946 = vmul.f32 %v3942, %v3848
  %v3947 = vmul.f32 %v3942, %v3945
  %3949 = vrot.lane.b32.xlu0 %v3947, 64
  %v3950 = vpop.permute.xlu0 %3949
  %v3952 = vadd.f32 %v3946, %v3950
  %v3953 = vtanh.pop %v3952
  %v3954 = vmul.f32 %v3943, %v3953
  %s3955 = smul.u32 4, 2
  %s3956 = smul.addr %s3955, 8
  %s3957 = scalar_lea.vmem [#allocation2], %s3956
  %v3958 = vld [vmem:[%s3957] sm:$0xff]
  %v3959 = vld [vmem:[%s3957 + $0x8] sm:$0xff]
  %3961 = vrot.lane.b32.xlu0 %v3954, 64
  %v3962 = vpop.permute.xlu0 %3961
  %v3963 = vsel %vm3297, %v3962, 0
  %3965 = vmatprep.subr.mxu0 %v3505
  %3966 = vmatpush1.msra.mxu0 %v3504
  %3967 = vmatprep.subr.mxu0 %v3507
  %3968 = vmatpush1.msra.mxu0 %v3506
  %3969 = vmatprep.subr.mxu0 %v3509
  %3970 = vmatpush1.msra.mxu0 %v3508
  %3971 = vmatprep.subr.mxu0 %v3511
  %3972 = vmatpush1.msra.mxu0 %v3510
  %3973 = vmatprep.subr.mxu0 %v3513
  %3974 = vmatpush1.msra.mxu0 %v3512
  %3975 = vmatprep.subr.mxu0 %v3515
  %3976 = vmatpush1.msra.mxu0 %v3514
  %3977 = vmatprep.subr.mxu0 %v3517
  %3978 = vmatpush1.msra.mxu0 %v3516
  %3979 = vmatprep.subr.mxu0 %v3519
  %3980 = vmatpush1.msra.mxu0 %v3518
  %3981 = vmatprep.subr.mxu0 0.0
  %3982 = vmatpush1.msra.mxu0 0.0
  %3983 = vmatprep.subr.mxu0 0.0
  %3984 = vmatpush1.msra.mxu0 0.0
  %3985 = vmatprep.subr.mxu0 0.0
  %3986 = vmatpush1.msra.mxu0 0.0
  %3987 = vmatprep.subr.mxu0 0.0
  %3988 = vmatpush1.msra.mxu0 0.0
  %3989 = vmatprep.subr.mxu0 0.0
  %3990 = vmatpush1.msra.mxu0 0.0
  %3991 = vmatprep.subr.mxu0 0.0
  %3992 = vmatpush1.msra.mxu0 0.0
  %3993 = vmatprep.subr.mxu0 0.0
  %3994 = vmatpush1.msra.mxu0 0.0
  %3995 = vmatprep.subr.mxu0 0.0
  %3996 = vmatpush1.msra.mxu0 0.0
  %3997 = vmatprep.subr.mxu0 0.0
  %3998 = vmatpush1.msra.mxu0 0.0
  %3999 = vmatprep.subr.mxu0 0.0
  %4000 = vmatpush1.msra.mxu0 0.0
  %4001 = vmatprep.subr.mxu0 0.0
  %4002 = vmatpush1.msra.mxu0 0.0
  %4003 = vmatprep.subr.mxu0 0.0
  %4004 = vmatpush1.msra.mxu0 0.0
  %4005 = vmatprep.subr.mxu0 0.0
  %4006 = vmatpush1.msra.mxu0 0.0
  %4007 = vmatprep.subr.mxu0 0.0
  %4008 = vmatpush1.msra.mxu0 0.0
  %4009 = vmatprep.subr.mxu0 0.0
  %4010 = vmatpush1.msra.mxu0 0.0
  %4011 = vmatprep.subr.mxu0 0.0
  %4012 = vmatpush1.msra.mxu0 0.0
  %4013 = vmatprep.subr.mxu0 0.0
  %4014 = vmatpush1.msra.mxu0 0.0
  %4015 = vmatprep.subr.mxu0 0.0
  %4016 = vmatpush1.msra.mxu0 0.0
  %4017 = vmatprep.subr.mxu0 0.0
  %4018 = vmatpush1.msra.mxu0 0.0
  %4019 = vmatprep.subr.mxu0 0.0
  %4020 = vmatpush1.msra.mxu0 0.0
  %4021 = vmatprep.subr.mxu0 0.0
  %4022 = vmatpush1.msra.mxu0 0.0
  %4023 = vmatprep.subr.mxu0 0.0
  %4024 = vmatpush1.msra.mxu0 0.0
  %4025 = vmatprep.subr.mxu0 0.0
  %4026 = vmatpush1.msra.mxu0 0.0
  %4027 = vmatprep.subr.mxu0 0.0
  %4028 = vmatpush1.msra.mxu0 0.0
  %4029 = vmatprep.mubr.f32.mxu0 0.0
  %4030 = vmatmul.mubr.f32.gmra.mrb[0].mxu0 %v3963
  %v4031 = vpop.f32.mrb[0].mxu0
  %v4032 = vadd.f32 0.0, %v4031
  %v4033 = vpop.f32.mrb[0].mxu0
  %v4034 = vadd.f32 0.0, %v4033
  %4035 = vdwg.mxu0
  %v4036 = vadd.f32 %v3958, %v4032
  %v4037 = vadd.f32 %v3959, %v4034
  %v4038 = vsub.f32 0.0, %v4036
  %v4039 = vsub.f32 0.0, %v4037
  %v4040 = vmul.f32 %v4038, 1.442695
  %v4041 = vpow.pop %v4040
  %v4042 = vmul.f32 %v4039, 1.442695
  %v4043 = vpow.pop %v4042
  %v4044 = vadd.f32 %v4041, 1.0
  %v4045 = vadd.f32 %v4043, 1.0
  %v4046 = vrcp.pop %v4044
  %v4047 = vrcp.pop %v4045
  %v4048 = vmul.f32 %v4047, 2.0
  %v4049 = vsub.f32 %v4048, 1.0
  %v4050 = vmul.f32 %v4046, %v3952
  %v4051 = vmul.f32 %v4046, %v4049
  %4053 = vrot.lane.b32.xlu0 %v4051, 64
  %v4054 = vpop.permute.xlu0 %4053
  %v4056 = vadd.f32 %v4050, %v4054
  %v4057 = vtanh.pop %v4056
  %v4058 = vmul.f32 %v4047, %v4057
  %s4059 = smul.u32 5, 2
  %s4060 = smul.addr %s4059, 8
  %s4061 = scalar_lea.vmem [#allocation2], %s4060
  %v4062 = vld [vmem:[%s4061] sm:$0xff]
  %v4063 = vld [vmem:[%s4061 + $0x8] sm:$0xff]
  %4065 = vrot.lane.b32.xlu0 %v4058, 64
  %v4066 = vpop.permute.xlu0 %4065
  %v4067 = vsel %vm3297, %v4066, 0
  %4069 = vmatprep.subr.mxu0 %v3505
  %4070 = vmatpush1.msra.mxu0 %v3504
  %4071 = vmatprep.subr.mxu0 %v3507
  %4072 = vmatpush1.msra.mxu0 %v3506
  %4073 = vmatprep.subr.mxu0 %v3509
  %4074 = vmatpush1.msra.mxu0 %v3508
  %4075 = vmatprep.subr.mxu0 %v3511
  %4076 = vmatpush1.msra.mxu0 %v3510
  %4077 = vmatprep.subr.mxu0 %v3513
  %4078 = vmatpush1.msra.mxu0 %v3512
  %4079 = vmatprep.subr.mxu0 %v3515
  %4080 = vmatpush1.msra.mxu0 %v3514
  %4081 = vmatprep.subr.mxu0 %v3517
  %4082 = vmatpush1.msra.mxu0 %v3516
  %4083 = vmatprep.subr.mxu0 %v3519
  %4084 = vmatpush1.msra.mxu0 %v3518
  %4085 = vmatprep.subr.mxu0 0.0
  %4086 = vmatpush1.msra.mxu0 0.0
  %4087 = vmatprep.subr.mxu0 0.0
  %4088 = vmatpush1.msra.mxu0 0.0
  %4089 = vmatprep.subr.mxu0 0.0
  %4090 = vmatpush1.msra.mxu0 0.0
  %4091 = vmatprep.subr.mxu0 0.0
  %4092 = vmatpush1.msra.mxu0 0.0
  %4093 = vmatprep.subr.mxu0 0.0
  %4094 = vmatpush1.msra.mxu0 0.0
  %4095 = vmatprep.subr.mxu0 0.0
  %4096 = vmatpush1.msra.mxu0 0.0
  %4097 = vmatprep.subr.mxu0 0.0
  %4098 = vmatpush1.msra.mxu0 0.0
  %4099 = vmatprep.subr.mxu0 0.0
  %4100 = vmatpush1.msra.mxu0 0.0
  %4101 = vmatprep.subr.mxu0 0.0
  %4102 = vmatpush1.msra.mxu0 0.0
  %4103 = vmatprep.subr.mxu0 0.0
  %4104 = vmatpush1.msra.mxu0 0.0
  %4105 = vmatprep.subr.mxu0 0.0
  %4106 = vmatpush1.msra.mxu0 0.0
  %4107 = vmatprep.subr.mxu0 0.0
  %4108 = vmatpush1.msra.mxu0 0.0
  %4109 = vmatprep.subr.mxu0 0.0
  %4110 = vmatpush1.msra.mxu0 0.0
  %4111 = vmatprep.subr.mxu0 0.0
  %4112 = vmatpush1.msra.mxu0 0.0
  %4113 = vmatprep.subr.mxu0 0.0
  %4114 = vmatpush1.msra.mxu0 0.0
  %4115 = vmatprep.subr.mxu0 0.0
  %4116 = vmatpush1.msra.mxu0 0.0
  %4117 = vmatprep.subr.mxu0 0.0
  %4118 = vmatpush1.msra.mxu0 0.0
  %4119 = vmatprep.subr.mxu0 0.0
  %4120 = vmatpush1.msra.mxu0 0.0
  %4121 = vmatprep.subr.mxu0 0.0
  %4122 = vmatpush1.msra.mxu0 0.0
  %4123 = vmatprep.subr.mxu0 0.0
  %4124 = vmatpush1.msra.mxu0 0.0
  %4125 = vmatprep.subr.mxu0 0.0
  %4126 = vmatpush1.msra.mxu0 0.0
  %4127 = vmatprep.subr.mxu0 0.0
  %4128 = vmatpush1.msra.mxu0 0.0
  %4129 = vmatprep.subr.mxu0 0.0
  %4130 = vmatpush1.msra.mxu0 0.0
  %4131 = vmatprep.subr.mxu0 0.0
  %4132 = vmatpush1.msra.mxu0 0.0
  %4133 = vmatprep.mubr.f32.mxu0 0.0
  %4134 = vmatmul.mubr.f32.gmra.mrb[0].mxu0 %v4067
  %v4135 = vpop.f32.mrb[0].mxu0
  %v4136 = vadd.f32 0.0, %v4135
  %v4137 = vpop.f32.mrb[0].mxu0
  %v4138 = vadd.f32 0.0, %v4137
  %4139 = vdwg.mxu0
  %v4140 = vadd.f32 %v4062, %v4136
  %v4141 = vadd.f32 %v4063, %v4138
  %v4142 = vsub.f32 0.0, %v4140
  %v4143 = vsub.f32 0.0, %v4141
  %v4144 = vmul.f32 %v4142, 1.442695
  %v4145 = vpow.pop %v4144
  %v4146 = vmul.f32 %v4143, 1.442695
  %v4147 = vpow.pop %v4146
  %v4148 = vadd.f32 %v4145, 1.0
  %v4149 = vadd.f32 %v4147, 1.0
  %v4150 = vrcp.pop %v4148
  %v4151 = vrcp.pop %v4149
  %v4152 = vmul.f32 %v4151, 2.0
  %v4153 = vsub.f32 %v4152, 1.0
  %v4154 = vmul.f32 %v4150, %v4056
  %v4155 = vmul.f32 %v4150, %v4153
  %4157 = vrot.lane.b32.xlu0 %v4155, 64
  %v4158 = vpop.permute.xlu0 %4157
  %v4160 = vadd.f32 %v4154, %v4158
  %v4161 = vtanh.pop %v4160
  %v4162 = vmul.f32 %v4151, %v4161
  %s4163 = smul.u32 6, 2
  %s4164 = smul.addr %s4163, 8
  %s4165 = scalar_lea.vmem [#allocation2], %s4164
  %v4166 = vld [vmem:[%s4165] sm:$0xff]
  %v4167 = vld [vmem:[%s4165 + $0x8] sm:$0xff]
  %4169 = vrot.lane.b32.xlu0 %v4162, 64
  %v4170 = vpop.permute.xlu0 %4169
  %v4171 = vsel %vm3297, %v4170, 0
  %4173 = vmatprep.subr.mxu0 %v3505
  %4174 = vmatpush1.msra.mxu0 %v3504
  %4175 = vmatprep.subr.mxu0 %v3507
  %4176 = vmatpush1.msra.mxu0 %v3506
  %4177 = vmatprep.subr.mxu0 %v3509
  %4178 = vmatpush1.msra.mxu0 %v3508
  %4179 = vmatprep.subr.mxu0 %v3511
  %4180 = vmatpush1.msra.mxu0 %v3510
  %4181 = vmatprep.subr.mxu0 %v3513
  %4182 = vmatpush1.msra.mxu0 %v3512
  %4183 = vmatprep.subr.mxu0 %v3515
  %4184 = vmatpush1.msra.mxu0 %v3514
  %4185 = vmatprep.subr.mxu0 %v3517
  %4186 = vmatpush1.msra.mxu0 %v3516
  %4187 = vmatprep.subr.mxu0 %v3519
  %4188 = vmatpush1.msra.mxu0 %v3518
  %4189 = vmatprep.subr.mxu0 0.0
  %4190 = vmatpush1.msra.mxu0 0.0
  %4191 = vmatprep.subr.mxu0 0.0
  %4192 = vmatpush1.msra.mxu0 0.0
  %4193 = vmatprep.subr.mxu0 0.0
  %4194 = vmatpush1.msra.mxu0 0.0
  %4195 = vmatprep.subr.mxu0 0.0
  %4196 = vmatpush1.msra.mxu0 0.0
  %4197 = vmatprep.subr.mxu0 0.0
  %4198 = vmatpush1.msra.mxu0 0.0
  %4199 = vmatprep.subr.mxu0 0.0
  %4200 = vmatpush1.msra.mxu0 0.0
  %4201 = vmatprep.subr.mxu0 0.0
  %4202 = vmatpush1.msra.mxu0 0.0
  %4203 = vmatprep.subr.mxu0 0.0
  %4204 = vmatpush1.msra.mxu0 0.0
  %4205 = vmatprep.subr.mxu0 0.0
  %4206 = vmatpush1.msra.mxu0 0.0
  %4207 = vmatprep.subr.mxu0 0.0
  %4208 = vmatpush1.msra.mxu0 0.0
  %4209 = vmatprep.subr.mxu0 0.0
  %4210 = vmatpush1.msra.mxu0 0.0
  %4211 = vmatprep.subr.mxu0 0.0
  %4212 = vmatpush1.msra.mxu0 0.0
  %4213 = vmatprep.subr.mxu0 0.0
  %4214 = vmatpush1.msra.mxu0 0.0
  %4215 = vmatprep.subr.mxu0 0.0
  %4216 = vmatpush1.msra.mxu0 0.0
  %4217 = vmatprep.subr.mxu0 0.0
  %4218 = vmatpush1.msra.mxu0 0.0
  %4219 = vmatprep.subr.mxu0 0.0
  %4220 = vmatpush1.msra.mxu0 0.0
  %4221 = vmatprep.subr.mxu0 0.0
  %4222 = vmatpush1.msra.mxu0 0.0
  %4223 = vmatprep.subr.mxu0 0.0
  %4224 = vmatpush1.msra.mxu0 0.0
  %4225 = vmatprep.subr.mxu0 0.0
  %4226 = vmatpush1.msra.mxu0 0.0
  %4227 = vmatprep.subr.mxu0 0.0
  %4228 = vmatpush1.msra.mxu0 0.0
  %4229 = vmatprep.subr.mxu0 0.0
  %4230 = vmatpush1.msra.mxu0 0.0
  %4231 = vmatprep.subr.mxu0 0.0
  %4232 = vmatpush1.msra.mxu0 0.0
  %4233 = vmatprep.subr.mxu0 0.0
  %4234 = vmatpush1.msra.mxu0 0.0
  %4235 = vmatprep.subr.mxu0 0.0
  %4236 = vmatpush1.msra.mxu0 0.0
  %4237 = vmatprep.mubr.f32.mxu0 0.0
  %4238 = vmatmul.mubr.f32.gmra.mrb[0].mxu0 %v4171
  %v4239 = vpop.f32.mrb[0].mxu0
  %v4240 = vadd.f32 0.0, %v4239
  %v4241 = vpop.f32.mrb[0].mxu0
  %v4242 = vadd.f32 0.0, %v4241
  %4243 = vdwg.mxu0
  %v4244 = vadd.f32 %v4166, %v4240
  %v4245 = vadd.f32 %v4167, %v4242
  %v4246 = vsub.f32 0.0, %v4244
  %v4247 = vsub.f32 0.0, %v4245
  %v4248 = vmul.f32 %v4246, 1.442695
  %v4249 = vpow.pop %v4248
  %v4250 = vmul.f32 %v4247, 1.442695
  %v4251 = vpow.pop %v4250
  %v4252 = vadd.f32 %v4249, 1.0
  %v4253 = vadd.f32 %v4251, 1.0
  %v4254 = vrcp.pop %v4252
  %v4255 = vrcp.pop %v4253
  %v4256 = vmul.f32 %v4255, 2.0
  %v4257 = vsub.f32 %v4256, 1.0
  %v4258 = vmul.f32 %v4254, %v4160
  %v4259 = vmul.f32 %v4254, %v4257
  %4261 = vrot.lane.b32.xlu0 %v4259, 64
  %v4262 = vpop.permute.xlu0 %4261
  %v4264 = vadd.f32 %v4258, %v4262
  %v4265 = vtanh.pop %v4264
  %v4266 = vmul.f32 %v4255, %v4265
  %s4267 = smul.u32 7, 2
  %s4268 = smul.addr %s4267, 8
  %s4269 = scalar_lea.vmem [#allocation2], %s4268
  %v4270 = vld [vmem:[%s4269] sm:$0xff]
  %v4271 = vld [vmem:[%s4269 + $0x8] sm:$0xff]
  %4273 = vrot.lane.b32.xlu0 %v4266, 64
  %v4274 = vpop.permute.xlu0 %4273
  %v4275 = vsel %vm3297, %v4274, 0
  %4277 = vmatprep.subr.mxu0 %v3505
  %4278 = vmatpush1.msra.mxu0 %v3504
  %4279 = vmatprep.subr.mxu0 %v3507
  %4280 = vmatpush1.msra.mxu0 %v3506
  %4281 = vmatprep.subr.mxu0 %v3509
  %4282 = vmatpush1.msra.mxu0 %v3508
  %4283 = vmatprep.subr.mxu0 %v3511
  %4284 = vmatpush1.msra.mxu0 %v3510
  %4285 = vmatprep.subr.mxu0 %v3513
  %4286 = vmatpush1.msra.mxu0 %v3512
  %4287 = vmatprep.subr.mxu0 %v3515
  %4288 = vmatpush1.msra.mxu0 %v3514
  %4289 = vmatprep.subr.mxu0 %v3517
  %4290 = vmatpush1.msra.mxu0 %v3516
  %4291 = vmatprep.subr.mxu0 %v3519
  %4292 = vmatpush1.msra.mxu0 %v3518
  %4293 = vmatprep.subr.mxu0 0.0
  %4294 = vmatpush1.msra.mxu0 0.0
  %4295 = vmatprep.subr.mxu0 0.0
  %4296 = vmatpush1.msra.mxu0 0.0
  %4297 = vmatprep.subr.mxu0 0.0
  %4298 = vmatpush1.msra.mxu0 0.0
  %4299 = vmatprep.subr.mxu0 0.0
  %4300 = vmatpush1.msra.mxu0 0.0
  %4301 = vmatprep.subr.mxu0 0.0
  %4302 = vmatpush1.msra.mxu0 0.0
  %4303 = vmatprep.subr.mxu0 0.0
  %4304 = vmatpush1.msra.mxu0 0.0
  %4305 = vmatprep.subr.mxu0 0.0
  %4306 = vmatpush1.msra.mxu0 0.0
  %4307 = vmatprep.subr.mxu0 0.0
  %4308 = vmatpush1.msra.mxu0 0.0
  %4309 = vmatprep.subr.mxu0 0.0
  %4310 = vmatpush1.msra.mxu0 0.0
  %4311 = vmatprep.subr.mxu0 0.0
  %4312 = vmatpush1.msra.mxu0 0.0
  %4313 = vmatprep.subr.mxu0 0.0
  %4314 = vmatpush1.msra.mxu0 0.0
  %4315 = vmatprep.subr.mxu0 0.0
  %4316 = vmatpush1.msra.mxu0 0.0
  %4317 = vmatprep.subr.mxu0 0.0
  %4318 = vmatpush1.msra.mxu0 0.0
  %4319 = vmatprep.subr.mxu0 0.0
  %4320 = vmatpush1.msra.mxu0 0.0
  %4321 = vmatprep.subr.mxu0 0.0
  %4322 = vmatpush1.msra.mxu0 0.0
  %4323 = vmatprep.subr.mxu0 0.0
  %4324 = vmatpush1.msra.mxu0 0.0
  %4325 = vmatprep.subr.mxu0 0.0
  %4326 = vmatpush1.msra.mxu0 0.0
  %4327 = vmatprep.subr.mxu0 0.0
  %4328 = vmatpush1.msra.mxu0 0.0
  %4329 = vmatprep.subr.mxu0 0.0
  %4330 = vmatpush1.msra.mxu0 0.0
  %4331 = vmatprep.subr.mxu0 0.0
  %4332 = vmatpush1.msra.mxu0 0.0
  %4333 = vmatprep.subr.mxu0 0.0
  %4334 = vmatpush1.msra.mxu0 0.0
  %4335 = vmatprep.subr.mxu0 0.0
  %4336 = vmatpush1.msra.mxu0 0.0
  %4337 = vmatprep.subr.mxu0 0.0
  %4338 = vmatpush1.msra.mxu0 0.0
  %4339 = vmatprep.subr.mxu0 0.0
  %4340 = vmatpush1.msra.mxu0 0.0
  %4341 = vmatprep.mubr.f32.mxu0 0.0
  %4342 = vmatmul.mubr.f32.gmra.mrb[0].mxu0 %v4275
  %v4343 = vpop.f32.mrb[0].mxu0
  %v4344 = vadd.f32 0.0, %v4343
  %v4345 = vpop.f32.mrb[0].mxu0
  %v4346 = vadd.f32 0.0, %v4345
  %4347 = vdwg.mxu0
  %v4348 = vadd.f32 %v4270, %v4344
  %v4349 = vadd.f32 %v4271, %v4346
  %v4350 = vsub.f32 0.0, %v4348
  %v4351 = vsub.f32 0.0, %v4349
  %v4352 = vmul.f32 %v4350, 1.442695
  %v4353 = vpow.pop %v4352
  %v4354 = vmul.f32 %v4351, 1.442695
  %v4355 = vpow.pop %v4354
  %v4356 = vadd.f32 %v4353, 1.0
  %v4357 = vadd.f32 %v4355, 1.0
  %v4358 = vrcp.pop %v4356
  %v4359 = vrcp.pop %v4357
  %v4360 = vmul.f32 %v4359, 2.0
  %v4361 = vsub.f32 %v4360, 1.0
  %v4362 = vmul.f32 %v4358, %v4264
  %v4363 = vmul.f32 %v4358, %v4361
  %4365 = vrot.lane.b32.xlu0 %v4363, 64
  %v4366 = vpop.permute.xlu0 %4365
  %v4368 = vadd.f32 %v4362, %v4366
  %v4369 = vtanh.pop %v4368
  %v4370 = vmul.f32 %v4359, %v4369
  %s4371 = smul.u32 8, 2
  %s4372 = smul.addr %s4371, 8
  %s4373 = scalar_lea.vmem [#allocation2], %s4372
  %v4374 = vld [vmem:[%s4373] sm:$0xff]
  %v4375 = vld [vmem:[%s4373 + $0x8] sm:$0xff]
  %4377 = vrot.lane.b32.xlu0 %v4370, 64
  %v4378 = vpop.permute.xlu0 %4377
  %v4379 = vsel %vm3297, %v4378, 0
  %4381 = vmatprep.subr.mxu0 %v3505
  %4382 = vmatpush1.msra.mxu0 %v3504
  %4383 = vmatprep.subr.mxu0 %v3507
  %4384 = vmatpush1.msra.mxu0 %v3506
  %4385 = vmatprep.subr.mxu0 %v3509
  %4386 = vmatpush1.msra.mxu0 %v3508
  %4387 = vmatprep.subr.mxu0 %v3511
  %4388 = vmatpush1.msra.mxu0 %v3510
  %4389 = vmatprep.subr.mxu0 %v3513
  %4390 = vmatpush1.msra.mxu0 %v3512
  %4391 = vmatprep.subr.mxu0 %v3515
  %4392 = vmatpush1.msra.mxu0 %v3514
  %4393 = vmatprep.subr.mxu0 %v3517
  %4394 = vmatpush1.msra.mxu0 %v3516
  %4395 = vmatprep.subr.mxu0 %v3519
  %4396 = vmatpush1.msra.mxu0 %v3518
  %4397 = vmatprep.subr.mxu0 0.0
  %4398 = vmatpush1.msra.mxu0 0.0
  %4399 = vmatprep.subr.mxu0 0.0
  %4400 = vmatpush1.msra.mxu0 0.0
  %4401 = vmatprep.subr.mxu0 0.0
  %4402 = vmatpush1.msra.mxu0 0.0
  %4403 = vmatprep.subr.mxu0 0.0
  %4404 = vmatpush1.msra.mxu0 0.0
  %4405 = vmatprep.subr.mxu0 0.0
  %4406 = vmatpush1.msra.mxu0 0.0
  %4407 = vmatprep.subr.mxu0 0.0
  %4408 = vmatpush1.msra.mxu0 0.0
  %4409 = vmatprep.subr.mxu0 0.0
  %4410 = vmatpush1.msra.mxu0 0.0
  %4411 = vmatprep.subr.mxu0 0.0
  %4412 = vmatpush1.msra.mxu0 0.0
  %4413 = vmatprep.subr.mxu0 0.0
  %4414 = vmatpush1.msra.mxu0 0.0
  %4415 = vmatprep.subr.mxu0 0.0
  %4416 = vmatpush1.msra.mxu0 0.0
  %4417 = vmatprep.subr.mxu0 0.0
  %4418 = vmatpush1.msra.mxu0 0.0
  %4419 = vmatprep.subr.mxu0 0.0
  %4420 = vmatpush1.msra.mxu0 0.0
  %4421 = vmatprep.subr.mxu0 0.0
  %4422 = vmatpush1.msra.mxu0 0.0
  %4423 = vmatprep.subr.mxu0 0.0
  %4424 = vmatpush1.msra.mxu0 0.0
  %4425 = vmatprep.subr.mxu0 0.0
  %4426 = vmatpush1.msra.mxu0 0.0
  %4427 = vmatprep.subr.mxu0 0.0
  %4428 = vmatpush1.msra.mxu0 0.0
  %4429 = vmatprep.subr.mxu0 0.0
  %4430 = vmatpush1.msra.mxu0 0.0
  %4431 = vmatprep.subr.mxu0 0.0
  %4432 = vmatpush1.msra.mxu0 0.0
  %4433 = vmatprep.subr.mxu0 0.0
  %4434 = vmatpush1.msra.mxu0 0.0
  %4435 = vmatprep.subr.mxu0 0.0
  %4436 = vmatpush1.msra.mxu0 0.0
  %4437 = vmatprep.subr.mxu0 0.0
  %4438 = vmatpush1.msra.mxu0 0.0
  %4439 = vmatprep.subr.mxu0 0.0
  %4440 = vmatpush1.msra.mxu0 0.0
  %4441 = vmatprep.subr.mxu0 0.0
  %4442 = vmatpush1.msra.mxu0 0.0
  %4443 = vmatprep.subr.mxu0 0.0
  %4444 = vmatpush1.msra.mxu0 0.0
  %4445 = vmatprep.mubr.f32.mxu0 0.0
  %4446 = vmatmul.mubr.f32.gmra.mrb[0].mxu0 %v4379
  %v4447 = vpop.f32.mrb[0].mxu0
  %v4448 = vadd.f32 0.0, %v4447
  %v4449 = vpop.f32.mrb[0].mxu0
  %v4450 = vadd.f32 0.0, %v4449
  %4451 = vdwg.mxu0
  %v4452 = vadd.f32 %v4374, %v4448
  %v4453 = vadd.f32 %v4375, %v4450
  %v4454 = vsub.f32 0.0, %v4452
  %v4455 = vsub.f32 0.0, %v4453
  %v4456 = vmul.f32 %v4454, 1.442695
  %v4457 = vpow.pop %v4456
  %v4458 = vmul.f32 %v4455, 1.442695
  %v4459 = vpow.pop %v4458
  %v4460 = vadd.f32 %v4457, 1.0
  %v4461 = vadd.f32 %v4459, 1.0
  %v4462 = vrcp.pop %v4460
  %v4463 = vrcp.pop %v4461
  %v4464 = vmul.f32 %v4463, 2.0
  %v4465 = vsub.f32 %v4464, 1.0
  %v4466 = vmul.f32 %v4462, %v4368
  %v4467 = vmul.f32 %v4462, %v4465
  %4469 = vrot.lane.b32.xlu0 %v4467, 64
  %v4470 = vpop.permute.xlu0 %4469
  %v4472 = vadd.f32 %v4466, %v4470
  %v4473 = vtanh.pop %v4472
  %v4474 = vmul.f32 %v4463, %v4473
  %s4475 = smul.u32 9, 2
  %s4476 = smul.addr %s4475, 8
  %s4477 = scalar_lea.vmem [#allocation2], %s4476
  %v4478 = vld [vmem:[%s4477] sm:$0xff]
  %v4479 = vld [vmem:[%s4477 + $0x8] sm:$0xff]
  %4481 = vrot.lane.b32.xlu0 %v4474, 64
  %v4482 = vpop.permute.xlu0 %4481
  %v4483 = vsel %vm3297, %v4482, 0
  %4485 = vmatprep.subr.mxu0 %v3505
  %4486 = vmatpush1.msra.mxu0 %v3504
  %4487 = vmatprep.subr.mxu0 %v3507
  %4488 = vmatpush1.msra.mxu0 %v3506
  %4489 = vmatprep.subr.mxu0 %v3509
  %4490 = vmatpush1.msra.mxu0 %v3508
  %4491 = vmatprep.subr.mxu0 %v3511
  %4492 = vmatpush1.msra.mxu0 %v3510
  %4493 = vmatprep.subr.mxu0 %v3513
  %4494 = vmatpush1.msra.mxu0 %v3512
  %4495 = vmatprep.subr.mxu0 %v3515
  %4496 = vmatpush1.msra.mxu0 %v3514
  %4497 = vmatprep.subr.mxu0 %v3517
  %4498 = vmatpush1.msra.mxu0 %v3516
  %4499 = vmatprep.subr.mxu0 %v3519
  %4500 = vmatpush1.msra.mxu0 %v3518
  %4501 = vmatprep.subr.mxu0 0.0
  %4502 = vmatpush1.msra.mxu0 0.0
  %4503 = vmatprep.subr.mxu0 0.0
  %4504 = vmatpush1.msra.mxu0 0.0
  %4505 = vmatprep.subr.mxu0 0.0
  %4506 = vmatpush1.msra.mxu0 0.0
  %4507 = vmatprep.subr.mxu0 0.0
  %4508 = vmatpush1.msra.mxu0 0.0
  %4509 = vmatprep.subr.mxu0 0.0
  %4510 = vmatpush1.msra.mxu0 0.0
  %4511 = vmatprep.subr.mxu0 0.0
  %4512 = vmatpush1.msra.mxu0 0.0
  %4513 = vmatprep.subr.mxu0 0.0
  %4514 = vmatpush1.msra.mxu0 0.0
  %4515 = vmatprep.subr.mxu0 0.0
  %4516 = vmatpush1.msra.mxu0 0.0
  %4517 = vmatprep.subr.mxu0 0.0
  %4518 = vmatpush1.msra.mxu0 0.0
  %4519 = vmatprep.subr.mxu0 0.0
  %4520 = vmatpush1.msra.mxu0 0.0
  %4521 = vmatprep.subr.mxu0 0.0
  %4522 = vmatpush1.msra.mxu0 0.0
  %4523 = vmatprep.subr.mxu0 0.0
  %4524 = vmatpush1.msra.mxu0 0.0
  %4525 = vmatprep.subr.mxu0 0.0
  %4526 = vmatpush1.msra.mxu0 0.0
  %4527 = vmatprep.subr.mxu0 0.0
  %4528 = vmatpush1.msra.mxu0 0.0
  %4529 = vmatprep.subr.mxu0 0.0
  %4530 = vmatpush1.msra.mxu0 0.0
  %4531 = vmatprep.subr.mxu0 0.0
  %4532 = vmatpush1.msra.mxu0 0.0
  %4533 = vmatprep.subr.mxu0 0.0
  %4534 = vmatpush1.msra.mxu0 0.0
  %4535 = vmatprep.subr.mxu0 0.0
  %4536 = vmatpush1.msra.mxu0 0.0
  %4537 = vmatprep.subr.mxu0 0.0
  %4538 = vmatpush1.msra.mxu0 0.0
  %4539 = vmatprep.subr.mxu0 0.0
  %4540 = vmatpush1.msra.mxu0 0.0
  %4541 = vmatprep.subr.mxu0 0.0
  %4542 = vmatpush1.msra.mxu0 0.0
  %4543 = vmatprep.subr.mxu0 0.0
  %4544 = vmatpush1.msra.mxu0 0.0
  %4545 = vmatprep.subr.mxu0 0.0
  %4546 = vmatpush1.msra.mxu0 0.0
  %4547 = vmatprep.subr.mxu0 0.0
  %4548 = vmatpush1.msra.mxu0 0.0
  %4549 = vmatprep.mubr.f32.mxu0 0.0
  %4550 = vmatmul.mubr.f32.gmra.mrb[0].mxu0 %v4483
  %v4551 = vpop.f32.mrb[0].mxu0
  %v4552 = vadd.f32 0.0, %v4551
  %v4553 = vpop.f32.mrb[0].mxu0
  %v4554 = vadd.f32 0.0, %v4553
  %4555 = vdwg.mxu0
  %v4556 = vadd.f32 %v4478, %v4552
  %v4557 = vadd.f32 %v4479, %v4554
  %v4558 = vsub.f32 0.0, %v4556
  %v4559 = vsub.f32 0.0, %v4557
  %v4560 = vmul.f32 %v4558, 1.442695
  %v4561 = vpow.pop %v4560
  %v4562 = vmul.f32 %v4559, 1.442695
  %v4563 = vpow.pop %v4562
  %v4564 = vadd.f32 %v4561, 1.0
  %v4565 = vadd.f32 %v4563, 1.0
  %v4566 = vrcp.pop %v4564
  %v4567 = vrcp.pop %v4565
  %v4568 = vmul.f32 %v4567, 2.0
  %v4569 = vsub.f32 %v4568, 1.0
  %v4570 = vmul.f32 %v4566, %v4472
  %v4571 = vmul.f32 %v4566, %v4569
  %4573 = vrot.lane.b32.xlu0 %v4571, 64
  %v4574 = vpop.permute.xlu0 %4573
  %v4576 = vadd.f32 %v4570, %v4574
  %v4577 = vtanh.pop %v4576
  %v4578 = vmul.f32 %v4567, %v4577
  %s4579 = smul.u32 10, 2
  %s4580 = smul.addr %s4579, 8
  %s4581 = scalar_lea.vmem [#allocation2], %s4580
  %v4582 = vld [vmem:[%s4581] sm:$0xff]
  %v4583 = vld [vmem:[%s4581 + $0x8] sm:$0xff]
  %4585 = vrot.lane.b32.xlu0 %v4578, 64
  %v4586 = vpop.permute.xlu0 %4585
  %v4587 = vsel %vm3297, %v4586, 0
  %4589 = vmatprep.subr.mxu0 %v3505
  %4590 = vmatpush1.msra.mxu0 %v3504
  %4591 = vmatprep.subr.mxu0 %v3507
  %4592 = vmatpush1.msra.mxu0 %v3506
  %4593 = vmatprep.subr.mxu0 %v3509
  %4594 = vmatpush1.msra.mxu0 %v3508
  %4595 = vmatprep.subr.mxu0 %v3511
  %4596 = vmatpush1.msra.mxu0 %v3510
  %4597 = vmatprep.subr.mxu0 %v3513
  %4598 = vmatpush1.msra.mxu0 %v3512
  %4599 = vmatprep.subr.mxu0 %v3515
  %4600 = vmatpush1.msra.mxu0 %v3514
  %4601 = vmatprep.subr.mxu0 %v3517
  %4602 = vmatpush1.msra.mxu0 %v3516
  %4603 = vmatprep.subr.mxu0 %v3519
  %4604 = vmatpush1.msra.mxu0 %v3518
  %4605 = vmatprep.subr.mxu0 0.0
  %4606 = vmatpush1.msra.mxu0 0.0
  %4607 = vmatprep.subr.mxu0 0.0
  %4608 = vmatpush1.msra.mxu0 0.0
  %4609 = vmatprep.subr.mxu0 0.0
  %4610 = vmatpush1.msra.mxu0 0.0
  %4611 = vmatprep.subr.mxu0 0.0
  %4612 = vmatpush1.msra.mxu0 0.0
  %4613 = vmatprep.subr.mxu0 0.0
  %4614 = vmatpush1.msra.mxu0 0.0
  %4615 = vmatprep.subr.mxu0 0.0
  %4616 = vmatpush1.msra.mxu0 0.0
  %4617 = vmatprep.subr.mxu0 0.0
  %4618 = vmatpush1.msra.mxu0 0.0
  %4619 = vmatprep.subr.mxu0 0.0
  %4620 = vmatpush1.msra.mxu0 0.0
  %4621 = vmatprep.subr.mxu0 0.0
  %4622 = vmatpush1.msra.mxu0 0.0
  %4623 = vmatprep.subr.mxu0 0.0
  %4624 = vmatpush1.msra.mxu0 0.0
  %4625 = vmatprep.subr.mxu0 0.0
  %4626 = vmatpush1.msra.mxu0 0.0
  %4627 = vmatprep.subr.mxu0 0.0
  %4628 = vmatpush1.msra.mxu0 0.0
  %4629 = vmatprep.subr.mxu0 0.0
  %4630 = vmatpush1.msra.mxu0 0.0
  %4631 = vmatprep.subr.mxu0 0.0
  %4632 = vmatpush1.msra.mxu0 0.0
  %4633 = vmatprep.subr.mxu0 0.0
  %4634 = vmatpush1.msra.mxu0 0.0
  %4635 = vmatprep.subr.mxu0 0.0
  %4636 = vmatpush1.msra.mxu0 0.0
  %4637 = vmatprep.subr.mxu0 0.0
  %4638 = vmatpush1.msra.mxu0 0.0
  %4639 = vmatprep.subr.mxu0 0.0
  %4640 = vmatpush1.msra.mxu0 0.0
  %4641 = vmatprep.subr.mxu0 0.0
  %4642 = vmatpush1.msra.mxu0 0.0
  %4643 = vmatprep.subr.mxu0 0.0
  %4644 = vmatpush1.msra.mxu0 0.0
  %4645 = vmatprep.subr.mxu0 0.0
  %4646 = vmatpush1.msra.mxu0 0.0
  %4647 = vmatprep.subr.mxu0 0.0
  %4648 = vmatpush1.msra.mxu0 0.0
  %4649 = vmatprep.subr.mxu0 0.0
  %4650 = vmatpush1.msra.mxu0 0.0
  %4651 = vmatprep.subr.mxu0 0.0
  %4652 = vmatpush1.msra.mxu0 0.0
  %4653 = vmatprep.mubr.f32.mxu0 0.0
  %4654 = vmatmul.mubr.f32.gmra.mrb[0].mxu0 %v4587
  %v4655 = vpop.f32.mrb[0].mxu0
  %v4656 = vadd.f32 0.0, %v4655
  %v4657 = vpop.f32.mrb[0].mxu0
  %v4658 = vadd.f32 0.0, %v4657
  %4659 = vdwg.mxu0
  %v4660 = vadd.f32 %v4582, %v4656
  %v4661 = vadd.f32 %v4583, %v4658
  %v4662 = vsub.f32 0.0, %v4660
  %v4663 = vsub.f32 0.0, %v4661
  %v4664 = vmul.f32 %v4662, 1.442695
  %v4665 = vpow.pop %v4664
  %v4666 = vmul.f32 %v4663, 1.442695
  %v4667 = vpow.pop %v4666
  %v4668 = vadd.f32 %v4665, 1.0
  %v4669 = vadd.f32 %v4667, 1.0
  %v4670 = vrcp.pop %v4668
  %v4671 = vrcp.pop %v4669
  %v4672 = vmul.f32 %v4671, 2.0
  %v4673 = vsub.f32 %v4672, 1.0
  %v4674 = vmul.f32 %v4670, %v4576
  %v4675 = vmul.f32 %v4670, %v4673
  %4677 = vrot.lane.b32.xlu0 %v4675, 64
  %v4678 = vpop.permute.xlu0 %4677
  %v4680 = vadd.f32 %v4674, %v4678
  %v4681 = vtanh.pop %v4680
  %v4682 = vmul.f32 %v4671, %v4681
  %s4683 = smul.u32 11, 2
  %s4684 = smul.addr %s4683, 8
  %s4685 = scalar_lea.vmem [#allocation2], %s4684
  %v4686 = vld [vmem:[%s4685] sm:$0xff]
  %v4687 = vld [vmem:[%s4685 + $0x8] sm:$0xff]
  %4689 = vrot.lane.b32.xlu0 %v4682, 64
  %v4690 = vpop.permute.xlu0 %4689
  %v4691 = vsel %vm3297, %v4690, 0
  %4693 = vmatprep.subr.mxu0 %v3505
  %4694 = vmatpush1.msra.mxu0 %v3504
  %4695 = vmatprep.subr.mxu0 %v3507
  %4696 = vmatpush1.msra.mxu0 %v3506
  %4697 = vmatprep.subr.mxu0 %v3509
  %4698 = vmatpush1.msra.mxu0 %v3508
  %4699 = vmatprep.subr.mxu0 %v3511
  %4700 = vmatpush1.msra.mxu0 %v3510
  %4701 = vmatprep.subr.mxu0 %v3513
  %4702 = vmatpush1.msra.mxu0 %v3512
  %4703 = vmatprep.subr.mxu0 %v3515
  %4704 = vmatpush1.msra.mxu0 %v3514
  %4705 = vmatprep.subr.mxu0 %v3517
  %4706 = vmatpush1.msra.mxu0 %v3516
  %4707 = vmatprep.subr.mxu0 %v3519
  %4708 = vmatpush1.msra.mxu0 %v3518
  %4709 = vmatprep.subr.mxu0 0.0
  %4710 = vmatpush1.msra.mxu0 0.0
  %4711 = vmatprep.subr.mxu0 0.0
  %4712 = vmatpush1.msra.mxu0 0.0
  %4713 = vmatprep.subr.mxu0 0.0
  %4714 = vmatpush1.msra.mxu0 0.0
  %4715 = vmatprep.subr.mxu0 0.0
  %4716 = vmatpush1.msra.mxu0 0.0
  %4717 = vmatprep.subr.mxu0 0.0
  %4718 = vmatpush1.msra.mxu0 0.0
  %4719 = vmatprep.subr.mxu0 0.0
  %4720 = vmatpush1.msra.mxu0 0.0
  %4721 = vmatprep.subr.mxu0 0.0
  %4722 = vmatpush1.msra.mxu0 0.0
  %4723 = vmatprep.subr.mxu0 0.0
  %4724 = vmatpush1.msra.mxu0 0.0
  %4725 = vmatprep.subr.mxu0 0.0
  %4726 = vmatpush1.msra.mxu0 0.0
  %4727 = vmatprep.subr.mxu0 0.0
  %4728 = vmatpush1.msra.mxu0 0.0
  %4729 = vmatprep.subr.mxu0 0.0
  %4730 = vmatpush1.msra.mxu0 0.0
  %4731 = vmatprep.subr.mxu0 0.0
  %4732 = vmatpush1.msra.mxu0 0.0
  %4733 = vmatprep.subr.mxu0 0.0
  %4734 = vmatpush1.msra.mxu0 0.0
  %4735 = vmatprep.subr.mxu0 0.0
  %4736 = vmatpush1.msra.mxu0 0.0
  %4737 = vmatprep.subr.mxu0 0.0
  %4738 = vmatpush1.msra.mxu0 0.0
  %4739 = vmatprep.subr.mxu0 0.0
  %4740 = vmatpush1.msra.mxu0 0.0
  %4741 = vmatprep.subr.mxu0 0.0
  %4742 = vmatpush1.msra.mxu0 0.0
  %4743 = vmatprep.subr.mxu0 0.0
  %4744 = vmatpush1.msra.mxu0 0.0
  %4745 = vmatprep.subr.mxu0 0.0
  %4746 = vmatpush1.msra.mxu0 0.0
  %4747 = vmatprep.subr.mxu0 0.0
  %4748 = vmatpush1.msra.mxu0 0.0
  %4749 = vmatprep.subr.mxu0 0.0
  %4750 = vmatpush1.msra.mxu0 0.0
  %4751 = vmatprep.subr.mxu0 0.0
  %4752 = vmatpush1.msra.mxu0 0.0
  %4753 = vmatprep.subr.mxu0 0.0
  %4754 = vmatpush1.msra.mxu0 0.0
  %4755 = vmatprep.subr.mxu0 0.0
  %4756 = vmatpush1.msra.mxu0 0.0
  %4757 = vmatprep.mubr.f32.mxu0 0.0
  %4758 = vmatmul.mubr.f32.gmra.mrb[0].mxu0 %v4691
  %v4759 = vpop.f32.mrb[0].mxu0
  %v4760 = vadd.f32 0.0, %v4759
  %v4761 = vpop.f32.mrb[0].mxu0
  %v4762 = vadd.f32 0.0, %v4761
  %4763 = vdwg.mxu0
  %v4764 = vadd.f32 %v4686, %v4760
  %v4765 = vadd.f32 %v4687, %v4762
  %v4766 = vsub.f32 0.0, %v4764
  %v4767 = vsub.f32 0.0, %v4765
  %v4768 = vmul.f32 %v4766, 1.442695
  %v4769 = vpow.pop %v4768
  %v4770 = vmul.f32 %v4767, 1.442695
  %v4771 = vpow.pop %v4770
  %v4772 = vadd.f32 %v4769, 1.0
  %v4773 = vadd.f32 %v4771, 1.0
  %v4774 = vrcp.pop %v4772
  %v4775 = vrcp.pop %v4773
  %v4776 = vmul.f32 %v4775, 2.0
  %v4777 = vsub.f32 %v4776, 1.0
  %v4778 = vmul.f32 %v4774, %v4680
  %v4779 = vmul.f32 %v4774, %v4777
  %4781 = vrot.lane.b32.xlu0 %v4779, 64
  %v4782 = vpop.permute.xlu0 %4781
  %v4784 = vadd.f32 %v4778, %v4782
  %v4785 = vtanh.pop %v4784
  %v4786 = vmul.f32 %v4775, %v4785
  %s4787 = smul.u32 4, 8
  %s4788 = smul.u32 %s4787, 4
  %s4789 = sshll.u32 %s4788, 4
  %4790 = dma.done [#allocation5], %s4789
  %s4791 = sshll.u32 %s4788, 4
  %4792 = dma.done %s218, %s4791
  %v4793 = vpack.c.bf16 %v4786, %v4786
  %v4794 = vld [vmem:[#allocation3] sm:$0xff]
  %v4795 = vld [vmem:[#allocation3 + $0x8] sm:$0xff]
  %v4796 = vld [vmem:[#allocation3 + $0x10] sm:$0xff]
  %v4797 = vld [vmem:[#allocation3 + $0x18] sm:$0xff]
  %v4798 = vld [vmem:[#allocation3 + $0x20] sm:$0xff]
  %v4799 = vld [vmem:[#allocation3 + $0x28] sm:$0xff]
  %v4800 = vld [vmem:[#allocation3 + $0x30] sm:$0xff]
  %v4801 = vld [vmem:[#allocation3 + $0x38] sm:$0xff]
  %v4802 = vld [vmem:[#allocation3 + $0x40] sm:$0xff]
  %v4803 = vld [vmem:[#allocation3 + $0x48] sm:$0xff]
  %v4804 = vld [vmem:[#allocation3 + $0x50] sm:$0xff]
  %v4805 = vld [vmem:[#allocation3 + $0x58] sm:$0xff]
  %v4806 = vld [vmem:[#allocation3 + $0x60] sm:$0xff]
  %v4807 = vld [vmem:[#allocation3 + $0x68] sm:$0xff]
  %v4808 = vld [vmem:[#allocation3 + $0x70] sm:$0xff]
  %v4809 = vld [vmem:[#allocation3 + $0x78] sm:$0xff]
  %v4810 = vpack.c.bf16 %v3540, %v3540
  %v4811 = vld [vmem:[%s217] sm:$0xff]
  %v4812 = vld [vmem:[%s217 + $0x8] sm:$0xff]
  %v4813 = vld [vmem:[%s217 + $0x10] sm:$0xff]
  %v4814 = vld [vmem:[%s217 + $0x18] sm:$0xff]
  %v4815 = vld [vmem:[%s217 + $0x20] sm:$0xff]
  %v4816 = vld [vmem:[%s217 + $0x28] sm:$0xff]
  %v4817 = vld [vmem:[%s217 + $0x30] sm:$0xff]
  %v4818 = vld [vmem:[%s217 + $0x38] sm:$0xff]
  %v4819 = vld [vmem:[%s217 + $0x40] sm:$0xff]
  %v4820 = vld [vmem:[%s217 + $0x48] sm:$0xff]
  %v4821 = vld [vmem:[%s217 + $0x50] sm:$0xff]
  %v4822 = vld [vmem:[%s217 + $0x58] sm:$0xff]
  %v4823 = vld [vmem:[%s217 + $0x60] sm:$0xff]
  %v4824 = vld [vmem:[%s217 + $0x68] sm:$0xff]
  %v4825 = vld [vmem:[%s217 + $0x70] sm:$0xff]
  %v4826 = vld [vmem:[%s217 + $0x78] sm:$0xff]
  %4828 = vrot.lane.b32.xlu0 %v4810, 64
  %v4829 = vpop.permute.xlu0 %4828
  %v4831 = vsel %vm3297, %v4829, 0
  %4833 = vmatprep.subr.bf16.mxu0 %v4812
  %4834 = vmatpush1.bf16.msra.mxu0 %v4811
  %4835 = vmatprep.subr.bf16.mxu0 %v4816
  %4836 = vmatpush1.bf16.msra.mxu0 %v4815
  %4837 = vmatprep.subr.bf16.mxu0 %v4820
  %4838 = vmatpush1.bf16.msra.mxu0 %v4819
  %4839 = vmatprep.subr.bf16.mxu0 %v4824
  %4840 = vmatpush1.bf16.msra.mxu0 %v4823
  %4841 = vmatprep.subr.bf16.mxu0 0
  %4842 = vmatpush1.bf16.msra.mxu0 0
  %4843 = vmatprep.subr.bf16.mxu0 0
  %4844 = vmatpush1.bf16.msra.mxu0 0
  %4845 = vmatprep.subr.bf16.mxu0 0
  %4846 = vmatpush1.bf16.msra.mxu0 0
  %4847 = vmatprep.subr.bf16.mxu0 0
  %4848 = vmatpush1.bf16.msra.mxu0 0
  %4849 = vmatprep.subr.bf16.mxu0 0
  %4850 = vmatpush1.bf16.msra.mxu0 0
  %4851 = vmatprep.subr.bf16.mxu0 0
  %4852 = vmatpush1.bf16.msra.mxu0 0
  %4853 = vmatprep.subr.bf16.mxu0 0
  %4854 = vmatpush1.bf16.msra.mxu0 0
  %4855 = vmatprep.subr.bf16.mxu0 0
  %4856 = vmatpush1.bf16.msra.mxu0 0
  %4857 = vmatprep.subr.bf16.mxu0 0
  %4858 = vmatpush1.bf16.msra.mxu0 0
  %4859 = vmatprep.subr.bf16.mxu0 0
  %4860 = vmatpush1.bf16.msra.mxu0 0
  %4861 = vmatprep.subr.bf16.mxu0 0
  %4862 = vmatpush1.bf16.msra.mxu0 0
  %4863 = vmatprep.subr.bf16.mxu0 0
  %4864 = vmatpush1.bf16.msra.mxu0 0
  %4865 = vmatprep.mubr.bf16.mxu0 0
  %4866 = vmatmul.mubr.bf16.gmra.mrb[0].mxu0 %v4831
  %v4867 = vpop.f32.mrb[0].mxu0
  %v4868 = vadd.f32 0.0, %v4867
  %v4869 = vpop.f32.mrb[0].mxu0
  %v4870 = vadd.f32 0.0, %v4869
  %v4871 = vpop.f32.mrb[0].mxu0
  %v4872 = vpop.f32.mrb[0].mxu0
  %4873 = vdwg.mxu0
  %4874 = vmatprep.subr.bf16.mxu0 %v4814
  %4875 = vmatpush1.bf16.msra.mxu0 %v4813
  %4876 = vmatprep.subr.bf16.mxu0 %v4818
  %4877 = vmatpush1.bf16.msra.mxu0 %v4817
  %4878 = vmatprep.subr.bf16.mxu0 %v4822
  %4879 = vmatpush1.bf16.msra.mxu0 %v4821
  %4880 = vmatprep.subr.bf16.mxu0 %v4826
  %4881 = vmatpush1.bf16.msra.mxu0 %v4825
  %4882 = vmatprep.subr.bf16.mxu0 0
  %4883 = vmatpush1.bf16.msra.mxu0 0
  %4884 = vmatprep.subr.bf16.mxu0 0
  %4885 = vmatpush1.bf16.msra.mxu0 0
  %4886 = vmatprep.subr.bf16.mxu0 0
  %4887 = vmatpush1.bf16.msra.mxu0 0
  %4888 = vmatprep.subr.bf16.mxu0 0
  %4889 = vmatpush1.bf16.msra.mxu0 0
  %4890 = vmatprep.subr.bf16.mxu0 0
  %4891 = vmatpush1.bf16.msra.mxu0 0
  %4892 = vmatprep.subr.bf16.mxu0 0
  %4893 = vmatpush1.bf16.msra.mxu0 0
  %4894 = vmatprep.subr.bf16.mxu0 0
  %4895 = vmatpush1.bf16.msra.mxu0 0
  %4896 = vmatprep.subr.bf16.mxu0 0
  %4897 = vmatpush1.bf16.msra.mxu0 0
  %4898 = vmatprep.subr.bf16.mxu0 0
  %4899 = vmatpush1.bf16.msra.mxu0 0
  %4900 = vmatprep.subr.bf16.mxu0 0
  %4901 = vmatpush1.bf16.msra.mxu0 0
  %4902 = vmatprep.subr.bf16.mxu0 0
  %4903 = vmatpush1.bf16.msra.mxu0 0
  %4904 = vmatprep.subr.bf16.mxu0 0
  %4905 = vmatpush1.bf16.msra.mxu0 0
  %4906 = vmatprep.mubr.bf16.mxu0 0
  %4907 = vmatmul.mubr.bf16.gmra.mrb[0].mxu0 %v4831
  %v4908 = vpop.f32.mrb[0].mxu0
  %v4909 = vadd.f32 0.0, %v4908
  %v4910 = vpop.f32.mrb[0].mxu0
  %v4911 = vadd.f32 0.0, %v4910
  %v4912 = vpop.f32.mrb[0].mxu0
  %v4913 = vpop.f32.mrb[0].mxu0
  %4914 = vdwg.mxu0
  %4916 = vrot.lane.b32.xlu0 %v4793, 64
  %v4917 = vpop.permute.xlu0 %4916
  %v4919 = vsel %vm3297, %v4917, 0
  %4921 = vmatprep.subr.bf16.mxu0 %v4795
  %4922 = vmatpush1.bf16.msra.mxu0 %v4794
  %4923 = vmatprep.subr.bf16.mxu0 %v4799
  %4924 = vmatpush1.bf16.msra.mxu0 %v4798
  %4925 = vmatprep.subr.bf16.mxu0 %v4803
  %4926 = vmatpush1.bf16.msra.mxu0 %v4802
  %4927 = vmatprep.subr.bf16.mxu0 %v4807
  %4928 = vmatpush1.bf16.msra.mxu0 %v4806
  %4929 = vmatprep.subr.bf16.mxu0 0
  %4930 = vmatpush1.bf16.msra.mxu0 0
  %4931 = vmatprep.subr.bf16.mxu0 0
  %4932 = vmatpush1.bf16.msra.mxu0 0
  %4933 = vmatprep.subr.bf16.mxu0 0
  %4934 = vmatpush1.bf16.msra.mxu0 0
  %4935 = vmatprep.subr.bf16.mxu0 0
  %4936 = vmatpush1.bf16.msra.mxu0 0
  %4937 = vmatprep.subr.bf16.mxu0 0
  %4938 = vmatpush1.bf16.msra.mxu0 0
  %4939 = vmatprep.subr.bf16.mxu0 0
  %4940 = vmatpush1.bf16.msra.mxu0 0
  %4941 = vmatprep.subr.bf16.mxu0 0
  %4942 = vmatpush1.bf16.msra.mxu0 0
  %4943 = vmatprep.subr.bf16.mxu0 0
  %4944 = vmatpush1.bf16.msra.mxu0 0
  %4945 = vmatprep.subr.bf16.mxu0 0
  %4946 = vmatpush1.bf16.msra.mxu0 0
  %4947 = vmatprep.subr.bf16.mxu0 0
  %4948 = vmatpush1.bf16.msra.mxu0 0
  %4949 = vmatprep.subr.bf16.mxu0 0
  %4950 = vmatpush1.bf16.msra.mxu0 0
  %4951 = vmatprep.subr.bf16.mxu0 0
  %4952 = vmatpush1.bf16.msra.mxu0 0
  %4953 = vmatprep.mubr.bf16.mxu0 0
  %4954 = vmatmul.mubr.bf16.gmra.mrb[0].mxu0 %v4919
  %v4955 = vpop.f32.mrb[0].mxu0
  %v4956 = vadd.f32 %v4868, %v4955
  %v4957 = vpop.f32.mrb[0].mxu0
  %v4958 = vadd.f32 %v4870, %v4957
  %v4959 = vpop.f32.mrb[0].mxu0
  %v4960 = vpop.f32.mrb[0].mxu0
  %4961 = vdwg.mxu0
  %4962 = vmatprep.subr.bf16.mxu0 %v4797
  %4963 = vmatpush1.bf16.msra.mxu0 %v4796
  %4964 = vmatprep.subr.bf16.mxu0 %v4801
  %4965 = vmatpush1.bf16.msra.mxu0 %v4800
  %4966 = vmatprep.subr.bf16.mxu0 %v4805
  %4967 = vmatpush1.bf16.msra.mxu0 %v4804
  %4968 = vmatprep.subr.bf16.mxu0 %v4809
  %4969 = vmatpush1.bf16.msra.mxu0 %v4808
  %4970 = vmatprep.subr.bf16.mxu0 0
  %4971 = vmatpush1.bf16.msra.mxu0 0
  %4972 = vmatprep.subr.bf16.mxu0 0
  %4973 = vmatpush1.bf16.msra.mxu0 0
  %4974 = vmatprep.subr.bf16.mxu0 0
  %4975 = vmatpush1.bf16.msra.mxu0 0
  %4976 = vmatprep.subr.bf16.mxu0 0
  %4977 = vmatpush1.bf16.msra.mxu0 0
  %4978 = vmatprep.subr.bf16.mxu0 0
  %4979 = vmatpush1.bf16.msra.mxu0 0
  %4980 = vmatprep.subr.bf16.mxu0 0
  %4981 = vmatpush1.bf16.msra.mxu0 0
  %4982 = vmatprep.subr.bf16.mxu0 0
  %4983 = vmatpush1.bf16.msra.mxu0 0
  %4984 = vmatprep.subr.bf16.mxu0 0
  %4985 = vmatpush1.bf16.msra.mxu0 0
  %4986 = vmatprep.subr.bf16.mxu0 0
  %4987 = vmatpush1.bf16.msra.mxu0 0
  %4988 = vmatprep.subr.bf16.mxu0 0
  %4989 = vmatpush1.bf16.msra.mxu0 0
  %4990 = vmatprep.subr.bf16.mxu0 0
  %4991 = vmatpush1.bf16.msra.mxu0 0
  %4992 = vmatprep.subr.bf16.mxu0 0
  %4993 = vmatpush1.bf16.msra.mxu0 0
  %4994 = vmatprep.mubr.bf16.mxu0 0
  %4995 = vmatmul.mubr.bf16.gmra.mrb[0].mxu0 %v4919
  %v4996 = vpop.f32.mrb[0].mxu0
  %v4997 = vadd.f32 %v4909, %v4996
  %v4998 = vpop.f32.mrb[0].mxu0
  %v4999 = vadd.f32 %v4911, %v4998
  %v5000 = vpop.f32.mrb[0].mxu0
  %v5001 = vpop.f32.mrb[0].mxu0
  %5002 = vdwg.mxu0
  %v5003 = vld [vmem:[%s8] sm:$0xf]
  %v5005 = vlaneseq
  %v5006 = vshrl.u32 %v5005, 7
  %v5007 = vsub.s32 0, %v5006
  %v5008 = vrot.slane %v5003, %v5007
  %v5009 = vlaneseq
  %v5010 = vshrl.u32 %v5009, 7
  %v5011 = vsub.s32 1, %v5010
  %v5012 = vrot.slane %v5003, %v5011
  %v5013 = vlaneseq
  %v5014 = vshrl.u32 %v5013, 7
  %v5015 = vsub.s32 2, %v5014
  %v5016 = vrot.slane %v5003, %v5015
  %v5017 = vlaneseq
  %v5018 = vshrl.u32 %v5017, 7
  %v5019 = vsub.s32 3, %v5018
  %v5020 = vrot.slane %v5003, %v5019
  %v5025 = vadd.f32 %v4956, %v5008
  %v5026 = vadd.f32 %v4958, %v5012
  %v5027 = vadd.f32 %v4997, %v5016
  %v5028 = vadd.f32 %v4999, %v5020
  %v5029 = vmax.f32 %v5025, 0.0
  %v5030 = vmax.f32 %v5026, 0.0
  %v5031 = vmax.f32 %v5027, 0.0
  %v5032 = vmax.f32 %v5028, 0.0
  %s5033 = smul.u32 4, 64
  %s5034 = smul.u32 %s5033, 4
  %s5035 = sshll.u32 %s5034, 4
  %5036 = dma.done %s395, %s5035
  %v5037 = vpack.c.bf16 %v5029, %v5029
  %v5038 = vpack.c.bf16 %v5030, %v5030
  %v5039 = vpack.c.bf16 %v5031, %v5031
  %v5040 = vpack.c.bf16 %v5032, %v5032
  %v5041 = vld [vmem:[#allocation4] sm:$0xff]
  %v5042 = vld [vmem:[#allocation4 + $0x8] sm:$0xff]
  %v5043 = vld [vmem:[#allocation4 + $0x10] sm:$0xff]
  %v5044 = vld [vmem:[#allocation4 + $0x18] sm:$0xff]
  %v5045 = vld [vmem:[#allocation4 + $0x20] sm:$0xff]
  %v5046 = vld [vmem:[#allocation4 + $0x28] sm:$0xff]
  %v5047 = vld [vmem:[#allocation4 + $0x30] sm:$0xff]
  %v5048 = vld [vmem:[#allocation4 + $0x38] sm:$0xff]
  %v5049 = vld [vmem:[#allocation4 + $0x40] sm:$0xff]
  %v5050 = vld [vmem:[#allocation4 + $0x48] sm:$0xff]
  %v5051 = vld [vmem:[#allocation4 + $0x50] sm:$0xff]
  %v5052 = vld [vmem:[#allocation4 + $0x58] sm:$0xff]
  %v5053 = vld [vmem:[#allocation4 + $0x60] sm:$0xff]
  %v5054 = vld [vmem:[#allocation4 + $0x68] sm:$0xff]
  %v5055 = vld [vmem:[#allocation4 + $0x70] sm:$0xff]
  %v5056 = vld [vmem:[#allocation4 + $0x78] sm:$0xff]
  %v5057 = vld [vmem:[#allocation4 + $0x80] sm:$0xff]
  %v5058 = vld [vmem:[#allocation4 + $0x88] sm:$0xff]
  %v5059 = vld [vmem:[#allocation4 + $0x90] sm:$0xff]
  %v5060 = vld [vmem:[#allocation4 + $0x98] sm:$0xff]
  %v5061 = vld [vmem:[#allocation4 + $0xa0] sm:$0xff]
  %v5062 = vld [vmem:[#allocation4 + $0xa8] sm:$0xff]
  %v5063 = vld [vmem:[#allocation4 + $0xb0] sm:$0xff]
  %v5064 = vld [vmem:[#allocation4 + $0xb8] sm:$0xff]
  %v5065 = vld [vmem:[#allocation4 + $0xc0] sm:$0xff]
  %v5066 = vld [vmem:[#allocation4 + $0xc8] sm:$0xff]
  %v5067 = vld [vmem:[#allocation4 + $0xd0] sm:$0xff]
  %v5068 = vld [vmem:[#allocation4 + $0xd8] sm:$0xff]
  %v5069 = vld [vmem:[#allocation4 + $0xe0] sm:$0xff]
  %v5070 = vld [vmem:[#allocation4 + $0xe8] sm:$0xff]
  %v5071 = vld [vmem:[#allocation4 + $0xf0] sm:$0xff]
  %v5072 = vld [vmem:[#allocation4 + $0xf8] sm:$0xff]
  %v5073 = vld [vmem:[#allocation4 + $0x100] sm:$0xff]
  %v5074 = vld [vmem:[#allocation4 + $0x108] sm:$0xff]
  %v5075 = vld [vmem:[#allocation4 + $0x110] sm:$0xff]
  %v5076 = vld [vmem:[#allocation4 + $0x118] sm:$0xff]
  %v5077 = vld [vmem:[#allocation4 + $0x120] sm:$0xff]
  %v5078 = vld [vmem:[#allocation4 + $0x128] sm:$0xff]
  %v5079 = vld [vmem:[#allocation4 + $0x130] sm:$0xff]
  %v5080 = vld [vmem:[#allocation4 + $0x138] sm:$0xff]
  %v5081 = vld [vmem:[#allocation4 + $0x140] sm:$0xff]
  %v5082 = vld [vmem:[#allocation4 + $0x148] sm:$0xff]
  %v5083 = vld [vmem:[#allocation4 + $0x150] sm:$0xff]
  %v5084 = vld [vmem:[#allocation4 + $0x158] sm:$0xff]
  %v5085 = vld [vmem:[#allocation4 + $0x160] sm:$0xff]
  %v5086 = vld [vmem:[#allocation4 + $0x168] sm:$0xff]
  %v5087 = vld [vmem:[#allocation4 + $0x170] sm:$0xff]
  %v5088 = vld [vmem:[#allocation4 + $0x178] sm:$0xff]
  %v5089 = vld [vmem:[#allocation4 + $0x180] sm:$0xff]
  %v5090 = vld [vmem:[#allocation4 + $0x188] sm:$0xff]
  %v5091 = vld [vmem:[#allocation4 + $0x190] sm:$0xff]
  %v5092 = vld [vmem:[#allocation4 + $0x198] sm:$0xff]
  %v5093 = vld [vmem:[#allocation4 + $0x1a0] sm:$0xff]
  %v5094 = vld [vmem:[#allocation4 + $0x1a8] sm:$0xff]
  %v5095 = vld [vmem:[#allocation4 + $0x1b0] sm:$0xff]
  %v5096 = vld [vmem:[#allocation4 + $0x1b8] sm:$0xff]
  %v5097 = vld [vmem:[#allocation4 + $0x1c0] sm:$0xff]
  %v5098 = vld [vmem:[#allocation4 + $0x1c8] sm:$0xff]
  %v5099 = vld [vmem:[#allocation4 + $0x1d0] sm:$0xff]
  %v5100 = vld [vmem:[#allocation4 + $0x1d8] sm:$0xff]
  %v5101 = vld [vmem:[#allocation4 + $0x1e0] sm:$0xff]
  %v5102 = vld [vmem:[#allocation4 + $0x1e8] sm:$0xff]
  %v5103 = vld [vmem:[#allocation4 + $0x1f0] sm:$0xff]
  %v5104 = vld [vmem:[#allocation4 + $0x1f8] sm:$0xff]
  %v5105 = vld [vmem:[#allocation4 + $0x200] sm:$0xff]
  %v5106 = vld [vmem:[#allocation4 + $0x208] sm:$0xff]
  %v5107 = vld [vmem:[#allocation4 + $0x210] sm:$0xff]
  %v5108 = vld [vmem:[#allocation4 + $0x218] sm:$0xff]
  %v5109 = vld [vmem:[#allocation4 + $0x220] sm:$0xff]
  %v5110 = vld [vmem:[#allocation4 + $0x228] sm:$0xff]
  %v5111 = vld [vmem:[#allocation4 + $0x230] sm:$0xff]
  %v5112 = vld [vmem:[#allocation4 + $0x238] sm:$0xff]
  %v5113 = vld [vmem:[#allocation4 + $0x240] sm:$0xff]
  %v5114 = vld [vmem:[#allocation4 + $0x248] sm:$0xff]
  %v5115 = vld [vmem:[#allocation4 + $0x250] sm:$0xff]
  %v5116 = vld [vmem:[#allocation4 + $0x258] sm:$0xff]
  %v5117 = vld [vmem:[#allocation4 + $0x260] sm:$0xff]
  %v5118 = vld [vmem:[#allocation4 + $0x268] sm:$0xff]
  %v5119 = vld [vmem:[#allocation4 + $0x270] sm:$0xff]
  %v5120 = vld [vmem:[#allocation4 + $0x278] sm:$0xff]
  %v5121 = vld [vmem:[#allocation4 + $0x280] sm:$0xff]
  %v5122 = vld [vmem:[#allocation4 + $0x288] sm:$0xff]
  %v5123 = vld [vmem:[#allocation4 + $0x290] sm:$0xff]
  %v5124 = vld [vmem:[#allocation4 + $0x298] sm:$0xff]
  %v5125 = vld [vmem:[#allocation4 + $0x2a0] sm:$0xff]
  %v5126 = vld [vmem:[#allocation4 + $0x2a8] sm:$0xff]
  %v5127 = vld [vmem:[#allocation4 + $0x2b0] sm:$0xff]
  %v5128 = vld [vmem:[#allocation4 + $0x2b8] sm:$0xff]
  %v5129 = vld [vmem:[#allocation4 + $0x2c0] sm:$0xff]
  %v5130 = vld [vmem:[#allocation4 + $0x2c8] sm:$0xff]
  %v5131 = vld [vmem:[#allocation4 + $0x2d0] sm:$0xff]
  %v5132 = vld [vmem:[#allocation4 + $0x2d8] sm:$0xff]
  %v5133 = vld [vmem:[#allocation4 + $0x2e0] sm:$0xff]
  %v5134 = vld [vmem:[#allocation4 + $0x2e8] sm:$0xff]
  %v5135 = vld [vmem:[#allocation4 + $0x2f0] sm:$0xff]
  %v5136 = vld [vmem:[#allocation4 + $0x2f8] sm:$0xff]
  %v5137 = vld [vmem:[#allocation4 + $0x300] sm:$0xff]
  %v5138 = vld [vmem:[#allocation4 + $0x308] sm:$0xff]
  %v5139 = vld [vmem:[#allocation4 + $0x310] sm:$0xff]
  %v5140 = vld [vmem:[#allocation4 + $0x318] sm:$0xff]
  %v5141 = vld [vmem:[#allocation4 + $0x320] sm:$0xff]
  %v5142 = vld [vmem:[#allocation4 + $0x328] sm:$0xff]
  %v5143 = vld [vmem:[#allocation4 + $0x330] sm:$0xff]
  %v5144 = vld [vmem:[#allocation4 + $0x338] sm:$0xff]
  %v5145 = vld [vmem:[#allocation4 + $0x340] sm:$0xff]
  %v5146 = vld [vmem:[#allocation4 + $0x348] sm:$0xff]
  %v5147 = vld [vmem:[#allocation4 + $0x350] sm:$0xff]
  %v5148 = vld [vmem:[#allocation4 + $0x358] sm:$0xff]
  %v5149 = vld [vmem:[#allocation4 + $0x360] sm:$0xff]
  %v5150 = vld [vmem:[#allocation4 + $0x368] sm:$0xff]
  %v5151 = vld [vmem:[#allocation4 + $0x370] sm:$0xff]
  %v5152 = vld [vmem:[#allocation4 + $0x378] sm:$0xff]
  %v5153 = vld [vmem:[#allocation4 + $0x380] sm:$0xff]
  %v5154 = vld [vmem:[#allocation4 + $0x388] sm:$0xff]
  %v5155 = vld [vmem:[#allocation4 + $0x390] sm:$0xff]
  %v5156 = vld [vmem:[#allocation4 + $0x398] sm:$0xff]
  %v5157 = vld [vmem:[#allocation4 + $0x3a0] sm:$0xff]
  %v5158 = vld [vmem:[#allocation4 + $0x3a8] sm:$0xff]
  %v5159 = vld [vmem:[#allocation4 + $0x3b0] sm:$0xff]
  %v5160 = vld [vmem:[#allocation4 + $0x3b8] sm:$0xff]
  %v5161 = vld [vmem:[#allocation4 + $0x3c0] sm:$0xff]
  %v5162 = vld [vmem:[#allocation4 + $0x3c8] sm:$0xff]
  %v5163 = vld [vmem:[#allocation4 + $0x3d0] sm:$0xff]
  %v5164 = vld [vmem:[#allocation4 + $0x3d8] sm:$0xff]
  %v5165 = vld [vmem:[#allocation4 + $0x3e0] sm:$0xff]
  %v5166 = vld [vmem:[#allocation4 + $0x3e8] sm:$0xff]
  %v5167 = vld [vmem:[#allocation4 + $0x3f0] sm:$0xff]
  %v5168 = vld [vmem:[#allocation4 + $0x3f8] sm:$0xff]
  %v5169 = vld [vmem:[%s10] sm:$0xf]
  %v5171 = vlaneseq
  %v5172 = vshrl.u32 %v5171, 7
  %v5173 = vsub.s32 0, %v5172
  %v5174 = vrot.slane %v5169, %v5173
  %v5175 = vlaneseq
  %v5176 = vshrl.u32 %v5175, 7
  %v5177 = vsub.s32 1, %v5176
  %v5178 = vrot.slane %v5169, %v5177
  %v5179 = vlaneseq
  %v5180 = vshrl.u32 %v5179, 7
  %v5181 = vsub.s32 2, %v5180
  %v5182 = vrot.slane %v5169, %v5181
  %v5183 = vlaneseq
  %v5184 = vshrl.u32 %v5183, 7
  %v5185 = vsub.s32 3, %v5184
  %v5186 = vrot.slane %v5169, %v5185
  %5191 = vmatprep.subr.bf16.mxu0 %v5042
  %5192 = vmatpush1.bf16.msra.mxu0 %v5041
  %5193 = vmatprep.subr.bf16.mxu0 %v5046
  %5194 = vmatpush1.bf16.msra.mxu0 %v5045
  %5195 = vmatprep.subr.bf16.mxu0 %v5050
  %5196 = vmatpush1.bf16.msra.mxu0 %v5049
  %5197 = vmatprep.subr.bf16.mxu0 %v5054
  %5198 = vmatpush1.bf16.msra.mxu0 %v5053
  %5199 = vmatprep.subr.bf16.mxu0 %v5058
  %5200 = vmatpush1.bf16.msra.mxu0 %v5057
  %5201 = vmatprep.subr.bf16.mxu0 %v5062
  %5202 = vmatpush1.bf16.msra.mxu0 %v5061
  %5203 = vmatprep.subr.bf16.mxu0 %v5066
  %5204 = vmatpush1.bf16.msra.mxu0 %v5065
  %5205 = vmatprep.subr.bf16.mxu0 %v5070
  %5206 = vmatpush1.bf16.msra.mxu0 %v5069
  %5207 = vmatprep.subr.bf16.mxu0 %v5074
  %5208 = vmatpush1.bf16.msra.mxu0 %v5073
  %5209 = vmatprep.subr.bf16.mxu0 %v5078
  %5210 = vmatpush1.bf16.msra.mxu0 %v5077
  %5211 = vmatprep.subr.bf16.mxu0 %v5082
  %5212 = vmatpush1.bf16.msra.mxu0 %v5081
  %5213 = vmatprep.subr.bf16.mxu0 %v5086
  %5214 = vmatpush1.bf16.msra.mxu0 %v5085
  %5215 = vmatprep.subr.bf16.mxu0 %v5090
  %5216 = vmatpush1.bf16.msra.mxu0 %v5089
  %5217 = vmatprep.subr.bf16.mxu0 %v5094
  %5218 = vmatpush1.bf16.msra.mxu0 %v5093
  %5219 = vmatprep.subr.bf16.mxu0 %v5098
  %5220 = vmatpush1.bf16.msra.mxu0 %v5097
  %5221 = vmatprep.subr.bf16.mxu0 %v5102
  %5222 = vmatpush1.bf16.msra.mxu0 %v5101
  %5223 = vmatprep.mubr.bf16.mxu0 %v5038
  %5224 = vmatmul.mubr.bf16.gmra.mrb[0].mxu0 %v5037
  %v5225 = vpop.f32.mrb[0].mxu0
  %v5226 = vadd.f32 %v5174, %v5225
  %v5227 = vpop.f32.mrb[0].mxu0
  %v5228 = vadd.f32 %v5178, %v5227
  %v5229 = vpop.f32.mrb[0].mxu0
  %v5230 = vpop.f32.mrb[0].mxu0
  %5231 = vdwg.mxu0
  %5232 = vmatprep.subr.bf16.mxu0 %v5106
  %5233 = vmatpush1.bf16.msra.mxu0 %v5105
  %5234 = vmatprep.subr.bf16.mxu0 %v5110
  %5235 = vmatpush1.bf16.msra.mxu0 %v5109
  %5236 = vmatprep.subr.bf16.mxu0 %v5114
  %5237 = vmatpush1.bf16.msra.mxu0 %v5113
  %5238 = vmatprep.subr.bf16.mxu0 %v5118
  %5239 = vmatpush1.bf16.msra.mxu0 %v5117
  %5240 = vmatprep.subr.bf16.mxu0 %v5122
  %5241 = vmatpush1.bf16.msra.mxu0 %v5121
  %5242 = vmatprep.subr.bf16.mxu0 %v5126
  %5243 = vmatpush1.bf16.msra.mxu0 %v5125
  %5244 = vmatprep.subr.bf16.mxu0 %v5130
  %5245 = vmatpush1.bf16.msra.mxu0 %v5129
  %5246 = vmatprep.subr.bf16.mxu0 %v5134
  %5247 = vmatpush1.bf16.msra.mxu0 %v5133
  %5248 = vmatprep.subr.bf16.mxu0 %v5138
  %5249 = vmatpush1.bf16.msra.mxu0 %v5137
  %5250 = vmatprep.subr.bf16.mxu0 %v5142
  %5251 = vmatpush1.bf16.msra.mxu0 %v5141
  %5252 = vmatprep.subr.bf16.mxu0 %v5146
  %5253 = vmatpush1.bf16.msra.mxu0 %v5145
  %5254 = vmatprep.subr.bf16.mxu0 %v5150
  %5255 = vmatpush1.bf16.msra.mxu0 %v5149
  %5256 = vmatprep.subr.bf16.mxu0 %v5154
  %5257 = vmatpush1.bf16.msra.mxu0 %v5153
  %5258 = vmatprep.subr.bf16.mxu0 %v5158
  %5259 = vmatpush1.bf16.msra.mxu0 %v5157
  %5260 = vmatprep.subr.bf16.mxu0 %v5162
  %5261 = vmatpush1.bf16.msra.mxu0 %v5161
  %5262 = vmatprep.subr.bf16.mxu0 %v5166
  %5263 = vmatpush1.bf16.msra.mxu0 %v5165
  %5264 = vmatprep.mubr.bf16.mxu0 %v5040
  %5265 = vmatmul.mubr.bf16.gmra.mrb[0].mxu0 %v5039
  %v5266 = vpop.f32.mrb[0].mxu0
  %v5267 = vadd.f32 %v5226, %v5266
  %v5268 = vpop.f32.mrb[0].mxu0
  %v5269 = vadd.f32 %v5228, %v5268
  %v5270 = vpop.f32.mrb[0].mxu0
  %v5271 = vpop.f32.mrb[0].mxu0
  %5272 = vdwg.mxu0
  %5273 = vmatprep.subr.bf16.mxu0 %v5044
  %5274 = vmatpush1.bf16.msra.mxu0 %v5043
  %5275 = vmatprep.subr.bf16.mxu0 %v5048
  %5276 = vmatpush1.bf16.msra.mxu0 %v5047
  %5277 = vmatprep.subr.bf16.mxu0 %v5052
  %5278 = vmatpush1.bf16.msra.mxu0 %v5051
  %5279 = vmatprep.subr.bf16.mxu0 %v5056
  %5280 = vmatpush1.bf16.msra.mxu0 %v5055
  %5281 = vmatprep.subr.bf16.mxu0 %v5060
  %5282 = vmatpush1.bf16.msra.mxu0 %v5059
  %5283 = vmatprep.subr.bf16.mxu0 %v5064
  %5284 = vmatpush1.bf16.msra.mxu0 %v5063
  %5285 = vmatprep.subr.bf16.mxu0 %v5068
  %5286 = vmatpush1.bf16.msra.mxu0 %v5067
  %5287 = vmatprep.subr.bf16.mxu0 %v5072
  %5288 = vmatpush1.bf16.msra.mxu0 %v5071
  %5289 = vmatprep.subr.bf16.mxu0 %v5076
  %5290 = vmatpush1.bf16.msra.mxu0 %v5075
  %5291 = vmatprep.subr.bf16.mxu0 %v5080
  %5292 = vmatpush1.bf16.msra.mxu0 %v5079
  %5293 = vmatprep.subr.bf16.mxu0 %v5084
  %5294 = vmatpush1.bf16.msra.mxu0 %v5083
  %5295 = vmatprep.subr.bf16.mxu0 %v5088
  %5296 = vmatpush1.bf16.msra.mxu0 %v5087
  %5297 = vmatprep.subr.bf16.mxu0 %v5092
  %5298 = vmatpush1.bf16.msra.mxu0 %v5091
  %5299 = vmatprep.subr.bf16.mxu0 %v5096
  %5300 = vmatpush1.bf16.msra.mxu0 %v5095
  %5301 = vmatprep.subr.bf16.mxu0 %v5100
  %5302 = vmatpush1.bf16.msra.mxu0 %v5099
  %5303 = vmatprep.subr.bf16.mxu0 %v5104
  %5304 = vmatpush1.bf16.msra.mxu0 %v5103
  %5305 = vmatprep.mubr.bf16.mxu0 %v5038
  %5306 = vmatmul.mubr.bf16.gmra.mrb[0].mxu0 %v5037
  %v5307 = vpop.f32.mrb[0].mxu0
  %v5308 = vadd.f32 %v5182, %v5307
  %v5309 = vpop.f32.mrb[0].mxu0
  %v5310 = vadd.f32 %v5186, %v5309
  %v5311 = vpop.f32.mrb[0].mxu0
  %v5312 = vpop.f32.mrb[0].mxu0
  %5313 = vdwg.mxu0
  %5314 = vmatprep.subr.bf16.mxu0 %v5108
  %5315 = vmatpush1.bf16.msra.mxu0 %v5107
  %5316 = vmatprep.subr.bf16.mxu0 %v5112
  %5317 = vmatpush1.bf16.msra.mxu0 %v5111
  %5318 = vmatprep.subr.bf16.mxu0 %v5116
  %5319 = vmatpush1.bf16.msra.mxu0 %v5115
  %5320 = vmatprep.subr.bf16.mxu0 %v5120
  %5321 = vmatpush1.bf16.msra.mxu0 %v5119
  %5322 = vmatprep.subr.bf16.mxu0 %v5124
  %5323 = vmatpush1.bf16.msra.mxu0 %v5123
  %5324 = vmatprep.subr.bf16.mxu0 %v5128
  %5325 = vmatpush1.bf16.msra.mxu0 %v5127
  %5326 = vmatprep.subr.bf16.mxu0 %v5132
  %5327 = vmatpush1.bf16.msra.mxu0 %v5131
  %5328 = vmatprep.subr.bf16.mxu0 %v5136
  %5329 = vmatpush1.bf16.msra.mxu0 %v5135
  %5330 = vmatprep.subr.bf16.mxu0 %v5140
  %5331 = vmatpush1.bf16.msra.mxu0 %v5139
  %5332 = vmatprep.subr.bf16.mxu0 %v5144
  %5333 = vmatpush1.bf16.msra.mxu0 %v5143
  %5334 = vmatprep.subr.bf16.mxu0 %v5148
  %5335 = vmatpush1.bf16.msra.mxu0 %v5147
  %5336 = vmatprep.subr.bf16.mxu0 %v5152
  %5337 = vmatpush1.bf16.msra.mxu0 %v5151
  %5338 = vmatprep.subr.bf16.mxu0 %v5156
  %5339 = vmatpush1.bf16.msra.mxu0 %v5155
  %5340 = vmatprep.subr.bf16.mxu0 %v5160
  %5341 = vmatpush1.bf16.msra.mxu0 %v5159
  %5342 = vmatprep.subr.bf16.mxu0 %v5164
  %5343 = vmatpush1.bf16.msra.mxu0 %v5163
  %5344 = vmatprep.subr.bf16.mxu0 %v5168
  %5345 = vmatpush1.bf16.msra.mxu0 %v5167
  %5346 = vmatprep.mubr.bf16.mxu0 %v5040
  %5347 = vmatmul.mubr.bf16.gmra.mrb[0].mxu0 %v5039
  %v5348 = vpop.f32.mrb[0].mxu0
  %v5349 = vadd.f32 %v5308, %v5348
  %v5350 = vpop.f32.mrb[0].mxu0
  %v5351 = vadd.f32 %v5310, %v5350
  %v5352 = vpop.f32.mrb[0].mxu0
  %v5353 = vpop.f32.mrb[0].mxu0
  %5354 = vdwg.mxu0
  %v5355 = vmax.f32 %v5267, 0.0
  %v5356 = vmax.f32 %v5269, 0.0
  %v5357 = vmax.f32 %v5349, 0.0
  %v5358 = vmax.f32 %v5351, 0.0
  %v5359 = vpack.c.bf16 %v5355, %v5355
  %v5360 = vpack.c.bf16 %v5356, %v5356
  %v5361 = vpack.c.bf16 %v5357, %v5357
  %v5362 = vpack.c.bf16 %v5358, %v5358
  %v5363 = vld [vmem:[%s11] sm:$0xf]
  %v5364 = vld [vmem:[%s11 + $0x4] sm:$0xf]
  %v5365 = vld [vmem:[%s11 + $0x8] sm:$0xf]
  %v5366 = vld [vmem:[%s11 + $0xc] sm:$0xf]
  %v5367 = vld [vmem:[%s11 + $0x10] sm:$0xf]
  %v5368 = vld [vmem:[%s11 + $0x14] sm:$0xf]
  %v5369 = vld [vmem:[%s11 + $0x18] sm:$0xf]
  %v5370 = vld [vmem:[%s11 + $0x1c] sm:$0xf]
  %v5371 = vld [vmem:[%s11 + $0x20] sm:$0xf]
  %v5372 = vld [vmem:[%s11 + $0x24] sm:$0xf]
  %v5373 = vld [vmem:[%s11 + $0x28] sm:$0xf]
  %v5374 = vld [vmem:[%s11 + $0x2c] sm:$0xf]
  %v5375 = vld [vmem:[%s11 + $0x30] sm:$0xf]
  %v5376 = vld [vmem:[%s11 + $0x34] sm:$0xf]
  %v5377 = vld [vmem:[%s11 + $0x38] sm:$0xf]
  %v5378 = vld [vmem:[%s11 + $0x3c] sm:$0xf]
  %v5379 = vld [vmem:[%s11 + $0x40] sm:$0xf]
  %v5380 = vld [vmem:[%s11 + $0x44] sm:$0xf]
  %v5381 = vld [vmem:[%s11 + $0x48] sm:$0xf]
  %v5382 = vld [vmem:[%s11 + $0x4c] sm:$0xf]
  %v5383 = vld [vmem:[%s11 + $0x50] sm:$0xf]
  %v5384 = vld [vmem:[%s11 + $0x54] sm:$0xf]
  %v5385 = vld [vmem:[%s11 + $0x58] sm:$0xf]
  %v5386 = vld [vmem:[%s11 + $0x5c] sm:$0xf]
  %v5387 = vld [vmem:[%s11 + $0x60] sm:$0xf]
  %v5388 = vld [vmem:[%s11 + $0x64] sm:$0xf]
  %v5389 = vld [vmem:[%s11 + $0x68] sm:$0xf]
  %v5390 = vld [vmem:[%s11 + $0x6c] sm:$0xf]
  %v5391 = vld [vmem:[%s11 + $0x70] sm:$0xf]
  %v5392 = vld [vmem:[%s11 + $0x74] sm:$0xf]
  %v5393 = vld [vmem:[%s11 + $0x78] sm:$0xf]
  %v5394 = vld [vmem:[%s11 + $0x7c] sm:$0xf]
  %v5395 = vld [vmem:[%s11 + $0x80] sm:$0xf]
  %v5396 = vld [vmem:[%s11 + $0x84] sm:$0xf]
  %v5397 = vld [vmem:[%s11 + $0x88] sm:$0xf]
  %v5398 = vld [vmem:[%s11 + $0x8c] sm:$0xf]
  %v5399 = vld [vmem:[%s11 + $0x90] sm:$0xf]
  %v5400 = vld [vmem:[%s11 + $0x94] sm:$0xf]
  %v5401 = vld [vmem:[%s11 + $0x98] sm:$0xf]
  %v5402 = vld [vmem:[%s11 + $0x9c] sm:$0xf]
  %v5403 = vld [vmem:[%s11 + $0xa0] sm:$0xf]
  %v5404 = vld [vmem:[%s11 + $0xa4] sm:$0xf]
  %v5405 = vld [vmem:[%s11 + $0xa8] sm:$0xf]
  %v5406 = vld [vmem:[%s11 + $0xac] sm:$0xf]
  %v5407 = vld [vmem:[%s11 + $0xb0] sm:$0xf]
  %v5408 = vld [vmem:[%s11 + $0xb4] sm:$0xf]
  %v5409 = vld [vmem:[%s11 + $0xb8] sm:$0xf]
  %v5410 = vld [vmem:[%s11 + $0xbc] sm:$0xf]
  %v5411 = vld [vmem:[%s11 + $0xc0] sm:$0xf]
  %v5412 = vld [vmem:[%s11 + $0xc4] sm:$0xf]
  %v5413 = vld [vmem:[%s11 + $0xc8] sm:$0xf]
  %v5414 = vld [vmem:[%s11 + $0xcc] sm:$0xf]
  %v5415 = vld [vmem:[%s11 + $0xd0] sm:$0xf]
  %v5416 = vld [vmem:[%s11 + $0xd4] sm:$0xf]
  %v5417 = vld [vmem:[%s11 + $0xd8] sm:$0xf]
  %v5418 = vld [vmem:[%s11 + $0xdc] sm:$0xf]
  %v5419 = vld [vmem:[%s11 + $0xe0] sm:$0xf]
  %v5420 = vld [vmem:[%s11 + $0xe4] sm:$0xf]
  %v5421 = vld [vmem:[%s11 + $0xe8] sm:$0xf]
  %v5422 = vld [vmem:[%s11 + $0xec] sm:$0xf]
  %v5423 = vld [vmem:[%s11 + $0xf0] sm:$0xf]
  %v5424 = vld [vmem:[%s11 + $0xf4] sm:$0xf]
  %v5425 = vld [vmem:[%s11 + $0xf8] sm:$0xf]
  %v5426 = vld [vmem:[%s11 + $0xfc] sm:$0xf]
  %v5427 = vld [vmem:[#allocation6] sm:$0x1]
  %v5429 = vlaneseq
  %v5430 = vshrl.u32 %v5429, 7
  %v5431 = vsub.s32 0, %v5430
  %v5432 = vrot.slane %v5427, %v5431
  %v5498 = vunpack.c.l.b16 %v5363
  %v5499 = vunpack.c.l.b16 %v5364
  %v5500 = vunpack.c.l.b16 %v5365
  %v5501 = vunpack.c.l.b16 %v5366
  %v5502 = vunpack.c.l.b16 %v5367
  %v5503 = vunpack.c.l.b16 %v5368
  %v5504 = vunpack.c.l.b16 %v5369
  %v5505 = vunpack.c.l.b16 %v5370
  %v5506 = vunpack.c.l.b16 %v5371
  %v5507 = vunpack.c.l.b16 %v5372
  %v5508 = vunpack.c.l.b16 %v5373
  %v5509 = vunpack.c.l.b16 %v5374
  %v5510 = vunpack.c.l.b16 %v5375
  %v5511 = vunpack.c.l.b16 %v5376
  %v5512 = vunpack.c.l.b16 %v5377
  %v5513 = vunpack.c.l.b16 %v5378
  %v5514 = vunpack.c.l.b16 %v5379
  %v5515 = vunpack.c.l.b16 %v5380
  %v5516 = vunpack.c.l.b16 %v5381
  %v5517 = vunpack.c.l.b16 %v5382
  %v5518 = vunpack.c.l.b16 %v5383
  %v5519 = vunpack.c.l.b16 %v5384
  %v5520 = vunpack.c.l.b16 %v5385
  %v5521 = vunpack.c.l.b16 %v5386
  %v5522 = vunpack.c.l.b16 %v5387
  %v5523 = vunpack.c.l.b16 %v5388
  %v5524 = vunpack.c.l.b16 %v5389
  %v5525 = vunpack.c.l.b16 %v5390
  %v5526 = vunpack.c.l.b16 %v5391
  %v5527 = vunpack.c.l.b16 %v5392
  %v5528 = vunpack.c.l.b16 %v5393
  %v5529 = vunpack.c.l.b16 %v5394
  %v5530 = vunpack.c.l.b16 %v5395
  %v5531 = vunpack.c.l.b16 %v5396
  %v5532 = vunpack.c.l.b16 %v5397
  %v5533 = vunpack.c.l.b16 %v5398
  %v5534 = vunpack.c.l.b16 %v5399
  %v5535 = vunpack.c.l.b16 %v5400
  %v5536 = vunpack.c.l.b16 %v5401
  %v5537 = vunpack.c.l.b16 %v5402
  %v5538 = vunpack.c.l.b16 %v5403
  %v5539 = vunpack.c.l.b16 %v5404
  %v5540 = vunpack.c.l.b16 %v5405
  %v5541 = vunpack.c.l.b16 %v5406
  %v5542 = vunpack.c.l.b16 %v5407
  %v5543 = vunpack.c.l.b16 %v5408
  %v5544 = vunpack.c.l.b16 %v5409
  %v5545 = vunpack.c.l.b16 %v5410
  %v5546 = vunpack.c.l.b16 %v5411
  %v5547 = vunpack.c.l.b16 %v5412
  %v5548 = vunpack.c.l.b16 %v5413
  %v5549 = vunpack.c.l.b16 %v5414
  %v5550 = vunpack.c.l.b16 %v5415
  %v5551 = vunpack.c.l.b16 %v5416
  %v5552 = vunpack.c.l.b16 %v5417
  %v5553 = vunpack.c.l.b16 %v5418
  %v5554 = vunpack.c.l.b16 %v5419
  %v5555 = vunpack.c.l.b16 %v5420
  %v5556 = vunpack.c.l.b16 %v5421
  %v5557 = vunpack.c.l.b16 %v5422
  %v5558 = vunpack.c.l.b16 %v5423
  %v5559 = vunpack.c.l.b16 %v5424
  %v5560 = vunpack.c.l.b16 %v5425
  %v5561 = vunpack.c.l.b16 %v5426
  %v5562 = vpack.c.b16 %v5499, %v5498
  %v5563 = vpack.c.b16 %v5501, %v5500
  %v5564 = vpack.c.b16 %v5503, %v5502
  %v5565 = vpack.c.b16 %v5505, %v5504
  %v5566 = vpack.c.b16 %v5507, %v5506
  %v5567 = vpack.c.b16 %v5509, %v5508
  %v5568 = vpack.c.b16 %v5511, %v5510
  %v5569 = vpack.c.b16 %v5513, %v5512
  %v5570 = vpack.c.b16 %v5515, %v5514
  %v5571 = vpack.c.b16 %v5517, %v5516
  %v5572 = vpack.c.b16 %v5519, %v5518
  %v5573 = vpack.c.b16 %v5521, %v5520
  %v5574 = vpack.c.b16 %v5523, %v5522
  %v5575 = vpack.c.b16 %v5525, %v5524
  %v5576 = vpack.c.b16 %v5527, %v5526
  %v5577 = vpack.c.b16 %v5529, %v5528
  %v5578 = vpack.c.b16 %v5531, %v5530
  %v5579 = vpack.c.b16 %v5533, %v5532
  %v5580 = vpack.c.b16 %v5535, %v5534
  %v5581 = vpack.c.b16 %v5537, %v5536
  %v5582 = vpack.c.b16 %v5539, %v5538
  %v5583 = vpack.c.b16 %v5541, %v5540
  %v5584 = vpack.c.b16 %v5543, %v5542
  %v5585 = vpack.c.b16 %v5545, %v5544
  %v5586 = vpack.c.b16 %v5547, %v5546
  %v5587 = vpack.c.b16 %v5549, %v5548
  %v5588 = vpack.c.b16 %v5551, %v5550
  %v5589 = vpack.c.b16 %v5553, %v5552
  %v5590 = vpack.c.b16 %v5555, %v5554
  %v5591 = vpack.c.b16 %v5557, %v5556
  %v5592 = vpack.c.b16 %v5559, %v5558
  %v5593 = vpack.c.b16 %v5561, %v5560
  %5626 = vmatprep.subr.bf16.mxu0 0
  %5627 = vmatpush1.bf16.msra.mxu0 %v5562
  %5628 = vmatprep.subr.bf16.mxu0 0
  %5629 = vmatpush1.bf16.msra.mxu0 %v5563
  %5630 = vmatprep.subr.bf16.mxu0 0
  %5631 = vmatpush1.bf16.msra.mxu0 %v5564
  %5632 = vmatprep.subr.bf16.mxu0 0
  %5633 = vmatpush1.bf16.msra.mxu0 %v5565
  %5634 = vmatprep.subr.bf16.mxu0 0
  %5635 = vmatpush1.bf16.msra.mxu0 %v5566
  %5636 = vmatprep.subr.bf16.mxu0 0
  %5637 = vmatpush1.bf16.msra.mxu0 %v5567
  %5638 = vmatprep.subr.bf16.mxu0 0
  %5639 = vmatpush1.bf16.msra.mxu0 %v5568
  %5640 = vmatprep.subr.bf16.mxu0 0
  %5641 = vmatpush1.bf16.msra.mxu0 %v5569
  %5642 = vmatprep.subr.bf16.mxu0 0
  %5643 = vmatpush1.bf16.msra.mxu0 %v5570
  %5644 = vmatprep.subr.bf16.mxu0 0
  %5645 = vmatpush1.bf16.msra.mxu0 %v5571
  %5646 = vmatprep.subr.bf16.mxu0 0
  %5647 = vmatpush1.bf16.msra.mxu0 %v5572
  %5648 = vmatprep.subr.bf16.mxu0 0
  %5649 = vmatpush1.bf16.msra.mxu0 %v5573
  %5650 = vmatprep.subr.bf16.mxu0 0
  %5651 = vmatpush1.bf16.msra.mxu0 %v5574
  %5652 = vmatprep.subr.bf16.mxu0 0
  %5653 = vmatpush1.bf16.msra.mxu0 %v5575
  %5654 = vmatprep.subr.bf16.mxu0 0
  %5655 = vmatpush1.bf16.msra.mxu0 %v5576
  %5656 = vmatprep.subr.bf16.mxu0 0
  %5657 = vmatpush1.bf16.msra.mxu0 %v5577
  %5658 = vmatprep.mubr.bf16.mxu0 %v5360
  %5659 = vmatmul.mubr.bf16.gmra.mrb[0].mxu0 %v5359
  %v5660 = vpop.f32.mrb[0].mxu0
  %v5661 = vadd.f32 %v5432, %v5660
  %v5662 = vpop.f32.mrb[0].mxu0
  %v5663 = vpop.f32.mrb[0].mxu0
  %v5664 = vpop.f32.mrb[0].mxu0
  %5665 = vdwg.mxu0
  %5666 = vmatprep.subr.bf16.mxu0 0
  %5667 = vmatpush1.bf16.msra.mxu0 %v5578
  %5668 = vmatprep.subr.bf16.mxu0 0
  %5669 = vmatpush1.bf16.msra.mxu0 %v5579
  %5670 = vmatprep.subr.bf16.mxu0 0
  %5671 = vmatpush1.bf16.msra.mxu0 %v5580
  %5672 = vmatprep.subr.bf16.mxu0 0
  %5673 = vmatpush1.bf16.msra.mxu0 %v5581
  %5674 = vmatprep.subr.bf16.mxu0 0
  %5675 = vmatpush1.bf16.msra.mxu0 %v5582
  %5676 = vmatprep.subr.bf16.mxu0 0
  %5677 = vmatpush1.bf16.msra.mxu0 %v5583
  %5678 = vmatprep.subr.bf16.mxu0 0
  %5679 = vmatpush1.bf16.msra.mxu0 %v5584
  %5680 = vmatprep.subr.bf16.mxu0 0
  %5681 = vmatpush1.bf16.msra.mxu0 %v5585
  %5682 = vmatprep.subr.bf16.mxu0 0
  %5683 = vmatpush1.bf16.msra.mxu0 %v5586
  %5684 = vmatprep.subr.bf16.mxu0 0
  %5685 = vmatpush1.bf16.msra.mxu0 %v5587
  %5686 = vmatprep.subr.bf16.mxu0 0
  %5687 = vmatpush1.bf16.msra.mxu0 %v5588
  %5688 = vmatprep.subr.bf16.mxu0 0
  %5689 = vmatpush1.bf16.msra.mxu0 %v5589
  %5690 = vmatprep.subr.bf16.mxu0 0
  %5691 = vmatpush1.bf16.msra.mxu0 %v5590
  %5692 = vmatprep.subr.bf16.mxu0 0
  %5693 = vmatpush1.bf16.msra.mxu0 %v5591
  %5694 = vmatprep.subr.bf16.mxu0 0
  %5695 = vmatpush1.bf16.msra.mxu0 %v5592
  %5696 = vmatprep.subr.bf16.mxu0 0
  %5697 = vmatpush1.bf16.msra.mxu0 %v5593
  %5698 = vmatprep.mubr.bf16.mxu0 %v5362
  %5699 = vmatmul.mubr.bf16.gmra.mrb[0].mxu0 %v5361
  %v5700 = vpop.f32.mrb[0].mxu0
  %v5701 = vadd.f32 %v5661, %v5700
  %v5702 = vpop.f32.mrb[0].mxu0
  %v5703 = vpop.f32.mrb[0].mxu0
  %v5704 = vpop.f32.mrb[0].mxu0
  %5705 = vdwg.mxu0
  %v5706 = vsub.f32 0.0, %v5701
  %v5707 = vmul.f32 %v5706, 1.442695
  %v5708 = vpow.pop %v5707
  %v5709 = vadd.f32 %v5708, 1.0
  %v5710 = vrcp.pop %v5709
  %vm5711 = vcmask 1024
  %5712 = vst.msk [vmem:[%s13] sm:$0x3] %vm5711, %v5710
  // Predicated region
  $region153: #{model_forward.1} parent=0 // pred_check
    _
  $region154: #{model_forward.1} parent=0 // pred_check_branch
    %5714 = sbr.rel (0) target = $region156
  $region155: #{model_forward.1} parent=0 // pred_region
    _
  $region156: #{model_forward.1} parent=0 // pred_fallthru
    _
  // Predicated region
  $region157: #{model_forward.1} parent=0 // pred_check
    _
  $region158: #{model_forward.1} parent=0 // pred_check_branch
    %5716 = sbr.rel (0) target = $region160
  $region159: #{model_forward.1} parent=0 // pred_region
    _
  $region160: #{model_forward.1} parent=0 // pred_fallthru
    _
  %5717 = vsyncmov [#allocation5]
  %s5718 = vpop.sfrf %5717
  %p5719 = scmp.eq.s32.totalorder %s5718, 0
  %p5720 = pneg %p5719
  %5722 = shalt.err (%p5720)
  %s5723 = scalar_lea.sflag [#allocation5], 1
  %5724 = vsyncmov %s5723
  %s5725 = vpop.sfrf %5724
  %p5726 = scmp.eq.s32.totalorder %s5725, 0
  %p5727 = pneg %p5726
  %5729 = shalt.err (%p5727)
  %s5730 = scalar_lea.sflag [#allocation5], 2
  %5731 = vsyncmov %s5730
  %s5732 = vpop.sfrf %5731
  %p5733 = scmp.eq.s32.totalorder %s5732, 0
  %p5734 = pneg %p5733
  %5736 = shalt.err (%p5734)

</llo_original>
